<compile_context>
chip_gen: v7x
topology: tpu7x:2x2x1
jax: 0.10.0
libtpu: 0.0.40
codegen_flags: <defaults>
</compile_context>

<pallas_src>
import jax
import jax.numpy as jnp
from jax import lax
from jax.experimental import pallas as pl
from jax.experimental.pallas import tpu as pltpu

NUM_HEADS = 9            # npe, idt, lpe, rpe, cpe, gte, lt, chronic, acute_and_chronic
_LANE = 128
_SUBLANE = 8


def _round_up(n, m):
    return ((n + m - 1) // m) * m


def penet_kernel(x_ref, mask_ref,
                 wih_ref, bx_ref, whh_ref, bhn_ref,
                 wcomb_ref, attb_ref, bpe_ref,
                 wheads_ref, bheads_ref,
                 out_pe_ref, out_heads_ref,
                 gx_ref, h2_ref):
    T, Bt, D = x_ref.shape
    H2 = h2_ref.shape[-1]          # 2 * H (padded)
    H = H2 // 2
    G = 3 * H                      # fused [r | z | n] gate width per direction

    # ---- hoisted input projection: one big MXU matmul for BOTH directions ----
    # bf16 operands, f32 accumulation (MXU headline rate is bf16 on all gens).
    # columns: [r_f | z_f | n_f | r_b | z_b | n_b]; r/z biases (input + hidden)
    # and the n input bias are already folded into bx.
    x2d = x_ref[...].reshape(T * Bt, D).astype(jnp.bfloat16)
    gx = jnp.dot(x2d, wih_ref[...], preferred_element_type=jnp.float32) + bx_ref[...]
    gx_ref[...] = gx.reshape(T, Bt, 2 * G).astype(gx_ref.dtype)

    # ---- bidirectional GRU: one serial loop, stacked (Bt, 2H) state,
    #      one fused block-diagonal recurrent matmul per step ----
    def step(i, h):
        t = i
        rt = T - 1 - i
        gh = jnp.dot(h, whh_ref[...], preferred_element_type=jnp.float32) + bhn_ref[...]
        af = gx_ref[t, :, :G].astype(jnp.float32)    # forward gates at time t      (Bt, 3H)
        ab = gx_ref[rt, :, G:].astype(jnp.float32)   # backward gates at time T-1-i (Bt, 3H)
        ghf = gh[:, :G]
        ghb = gh[:, G:]

        # forward direction
        rz_f = jax.nn.sigmoid(af[:, :2 * H] + ghf[:, :2 * H])   # one EUP slab (r|z)
        n_f = jnp.tanh(af[:, 2 * H:] + rz_f[:, :H] * ghf[:, 2 * H:])
        z_f = rz_f[:, H:]
        hf = (1.0 - z_f) * n_f + z_f * h[:, :H]

        # backward direction
        rz_b = jax.nn.sigmoid(ab[:, :2 * H] + ghb[:, :2 * H])
        n_b = jnp.tanh(ab[:, 2 * H:] + rz_b[:, :H] * ghb[:, 2 * H:])
        z_b = rz_b[:, H:]
        hb = (1.0 - z_b) * n_b + z_b * h[:, H:]

        # write straight into the (T, Bt, 2H) scratch -> no hcat concat later
        h2_ref[t, :, :H] = hf
        h2_ref[rt, :, H:] = hb
        # H is a multiple of 128 lanes -> this concat is vreg adjacency (no copy)
        return jnp.concatenate([hf, hb], axis=-1)

    # unroll tied to the batch block: full unroll only when vreg pressure is low
    if T <= 32 and Bt < 64:
        unroll = True
    elif Bt >= 64:
        unroll = 2
    else:
        unroll = 4
    h0 = jnp.zeros((Bt, H2), jnp.float32)
    lax.fori_loop(0, T, step, h0, unroll=unroll)

    hc = h2_ref[...]                                            # (T, Bt, 2H)

    # ---- fused per-step logit streams: one MXU pass over hc ----
    # column 0 of wcomb = last_linear_pe weight, column 1 = attention weight.
    lg = jnp.dot(hc.reshape(T * Bt, H2), wcomb_ref[...],
                 preferred_element_type=jnp.float32)            # (T*Bt, 128)
    lg3 = lg.reshape(T, Bt, wcomb_ref.shape[-1])

    # per-step PE logits -> lane-dense (T, Bt) output (batch on the lane axis)
    lp_col = lg3[:, :, 0:1] + bpe_ref[...]                      # (T, Bt, 1)
    out_pe_ref[...] = jnp.sum(lp_col, axis=-1)                  # (T, Bt)

    # ---- attention pool (exact semantics of Attention.forward) ----
    eij = jnp.tanh(lg3[:, :, 1:2] + attb_ref[...])              # + b, tanh   (T, Bt, 1)
    a = jnp.exp(eij) * mask_ref[...]                            # mask
    a = a / jnp.sum(a, axis=0, keepdims=True) + 1e-10           # eps AFTER div (ref quirk)
    att_pool = jnp.sum(a * hc, axis=0)                          # (Bt, 2H)

    # ---- max pool over time (unmasked, matches reference) ----
    max_pool = jnp.max(hc, axis=0)                              # (Bt, 2H)

    # ---- concat + 9 heads (padded to a 128-lane output -> unmasked stores) ----
    conc = jnp.concatenate([max_pool, att_pool], axis=-1)       # (Bt, 4H)
    out_heads_ref[...] = (jnp.dot(conc, wheads_ref[...],
                                  preferred_element_type=jnp.float32)
                          + bheads_ref[...])                    # (Bt, 128)


def init_params(key, D, H, T):
    ks = jax.random.split(key, 13)
    s = 0.1
    return {
        "wih_f": jax.random.normal(ks[0], (3, D, H), jnp.float32) * s,
        "whh_f": jax.random.normal(ks[1], (3, H, H), jnp.float32) * s,
        "bih_f": jax.random.normal(ks[2], (3, 1, H), jnp.float32) * s,
        "bhh_f": jax.random.normal(ks[3], (3, 1, H), jnp.float32) * s,
        "wih_b": jax.random.normal(ks[4], (3, D, H), jnp.float32) * s,
        "whh_b": jax.random.normal(ks[5], (3, H, H), jnp.float32) * s,
        "bih_b": jax.random.normal(ks[6], (3, 1, H), jnp.float32) * s,
        "bhh_b": jax.random.normal(ks[7], (3, 1, H), jnp.float32) * s,
        # Attention(feature_dim=2H, step_dim=T): weight (2H,), bias zeros(T)
        "att_w": jax.random.normal(ks[8], (1, 2 * H), jnp.float32) * s,
        "att_b": jnp.zeros((T, 1, 1), jnp.float32),
        # last_linear_pe: Linear(2H, 1)
        "w_pe": jax.random.normal(ks[9], (1, 2 * H), jnp.float32) * s,
        "b_pe": jax.random.normal(ks[10], (1, 1), jnp.float32) * s,
        # 9 heads Linear(4H, 1) stacked, pre-transposed: (4H, 9), bias (1, 9)
        "w_heads": jax.random.normal(ks[11], (4 * H, NUM_HEADS), jnp.float32) * s,
        "b_heads": jax.random.normal(ks[12], (1, NUM_HEADS), jnp.float32) * s,
    }


def _build_fused_params(params, D, H):
    """Fuse per-gate GRU weights into MXU-friendly padded matrices."""
    Dp = _round_up(D, _LANE)
    Hp = _round_up(H, _LANE)
    f32 = jnp.float32

    wih = jnp.zeros((Dp, 6 * Hp), f32)       # x -> [rf zf nf | rb zb nb]
    bx = jnp.zeros((1, 6 * Hp), f32)         # folded biases for the x projection
    whh = jnp.zeros((2 * Hp, 6 * Hp), f32)   # block-diag: hf -> fwd gates, hb -> bwd gates
    bhn = jnp.zeros((1, 6 * Hp), f32)        # hidden bias of the n gate only

    dirs = (
        (params["wih_f"], params["whh_f"], params["bih_f"], params["bhh_f"]),
        (params["wih_b"], params["whh_b"], params["bih_b"], params["bhh_b"]),
    )
    for d, (wi, wh, bi, bh) in enumerate(dirs):
        for g in range(3):                   # gate order [r, z, n]
            c0 = (3 * d + g) * Hp
            wih = wih.at[:D, c0:c0 + H].set(wi[g])
            whh = whh.at[d * Hp:d * Hp + H, c0:c0 + H].set(wh[g])
            if g < 2:                        # r, z: fold input + hidden bias into x-proj
                bx = bx.at[:, c0:c0 + H].set(bi[g] + bh[g])
            else:                            # n: hidden bias stays on the recurrent path
                bx = bx.at[:, c0:c0 + H].set(bi[g])
                bhn = bhn.at[:, c0:c0 + H].set(bh[g])

    # fused per-step logit RHS (2Hp, 128): col 0 = last_linear_pe, col 1 = attention
    wcomb = jnp.zeros((2 * Hp, _LANE), f32)
    wcomb = wcomb.at[:H, 0].set(params["w_pe"][0, :H])
    wcomb = wcomb.at[Hp:Hp + H, 0].set(params["w_pe"][0, H:])
    wcomb = wcomb.at[:H, 1].set(params["att_w"][0, :H])
    wcomb = wcomb.at[Hp:Hp + H, 1].set(params["att_w"][0, H:])

    # 9 heads padded to a 128-lane output; conc layout [max_f, max_b, att_f, att_b]
    wheads = jnp.zeros((4 * Hp, _LANE), f32)
    for blk in range(4):
        wheads = wheads.at[blk * Hp:blk * Hp + H, :NUM_HEADS].set(
            params["w_heads"][blk * H:(blk + 1) * H])
    bheads = jnp.zeros((1, _LANE), f32).at[:, :NUM_HEADS].set(params["b_heads"])

    return dict(wih=wih.astype(jnp.bfloat16),   # bf16 operand for the big x-proj matmul
                bx=bx, whh=whh, bhn=bhn, wcomb=wcomb,
                wheads=wheads, bheads=bheads, Dp=Dp, Hp=Hp)


def _vmem_capacity_bytes():
    try:
        info = pltpu.get_tpu_info()
        cap = getattr(info, "vmem_capacity_bytes", None)
        if cap:
            return int(cap)
    except Exception:
        pass
    return 64 * 1024 * 1024        # conservative fallback: v7x physical per-TC


def penet_forward(x, mask, params, *, batch_block=None):
    """x: (B, T, D) float32, mask: (B, T) float32 -> tuple of 10 logits."""
    B, T, D = x.shape
    H = params["whh_f"].shape[-1]
    fused = _build_fused_params(params, D, H)
    Dp, Hp = fused["Dp"], fused["Hp"]

    # ---- batch-block selection: feed the MXU a real M dimension, but never
    # pay for padding beyond the 8-row sublane minimum; >=2 blocks once the
    # padded batch exceeds 128 so both v7x TensorCores get work.
    Bp8 = _round_up(B, _SUBLANE)
    if batch_block is None:
        bt = Bp8 if Bp8 <= _LANE else _LANE
    else:
        bt = batch_block
    Bp = _round_up(B, bt)
    grid = (Bp // bt,)

    # gx scratch precision: drop to bf16 when the f32 footprint would be large
    gx_dtype = jnp.bfloat16 if (T * bt * 6 * Hp * 4) > (12 << 20) else jnp.float32

    # ---- VMEM budget sized from the real footprint, capped per generation ----
    gx_bytes = T * bt * 6 * Hp * (2 if gx_dtype == jnp.bfloat16 else 4)
    h2_bytes = T * bt * 2 * Hp * 4
    io_bytes = 2 * (T * bt * Dp * 4 + T * bt * 4 + T * bt * 4 + bt * _LANE * 4)
    w_bytes = 2 * (Dp * 6 * Hp * 2
                   + (2 * Hp * 6 * Hp + 2 * Hp * _LANE + 4 * Hp * _LANE
                      + 12 * Hp + T + _LANE + 1) * 4)
    needed = gx_bytes + h2_bytes + io_bytes + w_bytes
    cap = _vmem_capacity_bytes()
    vmem_limit = min(int(cap * 3 // 4), max(32 << 20, 2 * needed))

    # ---- time-major, padded inputs (padded lanes/rows are zeros; padded batch
    # rows get mask=1 so the attention normalization stays finite there). ----
    # TODO(synk): this host-side pad+transpose of x is one extra HBM round trip
    # of the full activation tensor; fold it into the upstream producer for
    # large T*B*D or keep x batch-major and adapt the BlockSpec.
    x_tbd = jnp.zeros((T, Bp, Dp), jnp.float32)
    x_tbd = x_tbd.at[:, :B, :D].set(jnp.transpose(x, (1, 0, 2)).astype(jnp.float32))
    mask_tb1 = jnp.ones((T, Bp, 1), jnp.float32)
    mask_tb1 = mask_tb1.at[:, :B, 0].set(jnp.transpose(mask, (1, 0)).astype(jnp.float32))

    args = (x_tbd, mask_tb1,
            fused["wih"], fused["bx"], fused["whh"], fused["bhn"],
            fused["wcomb"], params["att_b"], params["b_pe"],
            fused["wheads"], fused["bheads"])

    def full(shape):
        return pl.BlockSpec(shape, lambda i, _s=shape: (0,) * len(_s))

    grid_spec = pltpu.PrefetchScalarGridSpec(
        num_scalar_prefetch=0,
        grid=grid,
        in_specs=[
            pl.BlockSpec((T, bt, Dp), lambda i: (0, i, 0)),      # x (batch-blocked)
            pl.BlockSpec((T, bt, 1), lambda i: (0, i, 0)),       # mask (column layout)
            full((Dp, 6 * Hp)),                                  # fused W_ih (bf16, both dirs)
            full((1, 6 * Hp)),                                   # folded input biases
            full((2 * Hp, 6 * Hp)),                              # block-diag W_hh
            full((1, 6 * Hp)),                                   # hidden bias (n gate)
            full((2 * Hp, _LANE)),                               # fused [pe | attention] weights
            full((T, 1, 1)),                                     # attention bias (per step)
            full((1, 1)),                                        # last_linear_pe bias
            full((4 * Hp, _LANE)),                               # 9 stacked heads (padded)
            full((1, _LANE)),                                    # head biases (padded)
        ],
        out_specs=(
            pl.BlockSpec((T, bt), lambda i: (0, i)),             # per-step PE logits (lane-dense)
            pl.BlockSpec((bt, _LANE), lambda i: (i, 0)),         # pooled head logits (lane-dense)
        ),
        scratch_shapes=[
            pltpu.VMEM((T, bt, 6 * Hp), gx_dtype),               # hoisted x-projection
            pltpu.VMEM((T, bt, 2 * Hp), jnp.float32),            # bidirectional hidden states
        ],
    )

    out_pe, heads = pl.pallas_call(
        penet_kernel,
        out_shape=(
            jax.ShapeDtypeStruct((T, Bp), jnp.float32),
            jax.ShapeDtypeStruct((Bp, _LANE), jnp.float32),
        ),
        grid_spec=grid_spec,
        compiler_params=pltpu.CompilerParams(
            dimension_semantics=("parallel",),       # batch blocks shard across cores
            vmem_limit_bytes=vmem_limit,
        ),
    )(*args)

    logits_pe = jnp.transpose(out_pe)[:B][:, :, None]            # (B, T, 1)
    heads = heads[:B, :NUM_HEADS]
    head_cols = [heads[:, i:i + 1] for i in range(NUM_HEADS)]    # each (B, 1)
    # order: npe, idt, lpe, rpe, cpe, gte, lt, chronic, acute_and_chronic
    return (logits_pe, *head_cols)


if __name__ == "__main__":
    B, T, D, H = 2, 8, 16, 16   # batch, seq_len, input_len, lstm_size (small demo shapes)
    key = jax.random.PRNGKey(0)
    kx, km, kp = jax.random.split(key, 3)

    x = jax.random.normal(kx, (B, T, D), jnp.float32)
    mask = (jax.random.uniform(km, (B, T)) > 0.2).astype(jnp.float32)
    params = init_params(kp, D, H, T)

    outs = jax.block_until_ready(penet_forward(x, mask, params))

    assert outs[0].shape == (B, T, 1)
    assert all(o.shape == (B, 1) for o in outs[1:])
    print("KERNEL_OK")
</pallas_src>

<mosaic_0001>
module attributes {stable_mosaic.version = 11 : i64} {
  func.func @penet_kernel(%arg0: i32, %arg1: memref<8x8x128xf32, #tpu.memory_space<vmem>>, %arg2: memref<8x8x1xf32, #tpu.memory_space<vmem>>, %arg3: memref<128x768xbf16, #tpu.memory_space<vmem>>, %arg4: memref<1x768xf32, #tpu.memory_space<vmem>>, %arg5: memref<256x768xf32, #tpu.memory_space<vmem>>, %arg6: memref<1x768xf32, #tpu.memory_space<vmem>>, %arg7: memref<256x128xf32, #tpu.memory_space<vmem>>, %arg8: memref<8x1x1xf32, #tpu.memory_space<vmem>>, %arg9: memref<1x1xf32, #tpu.memory_space<vmem>>, %arg10: memref<512x128xf32, #tpu.memory_space<vmem>>, %arg11: memref<1x128xf32, #tpu.memory_space<vmem>>, %arg12: memref<8x8xf32, #tpu.memory_space<vmem>>, %arg13: memref<8x128xf32, #tpu.memory_space<vmem>>, %arg14: memref<8x8x768xf32, #tpu.memory_space<vmem>>, %arg15: memref<8x8x256xf32, #tpu.memory_space<vmem>>) attributes {dimension_semantics = [#tpu.dimension_semantics<parallel>], iteration_bounds = array<i64: 1>, scalar_prefetch = 0 : i64, scratch_operands = 2 : i64, tpu.core_type = #tpu.core_type<tc>, window_params = [{transform_indices = @transform_0, window_bounds = array<i64: 8, 8, 128>}, {transform_indices = @transform_1, window_bounds = array<i64: 8, 8, 1>}, {pipeline_mode = #tpu.pipeline_mode<synchronous>, transform_indices = @transform_2, window_bounds = array<i64: 128, 768>}, {pipeline_mode = #tpu.pipeline_mode<synchronous>, transform_indices = @transform_3, window_bounds = array<i64: 1, 768>}, {pipeline_mode = #tpu.pipeline_mode<synchronous>, transform_indices = @transform_4, window_bounds = array<i64: 256, 768>}, {pipeline_mode = #tpu.pipeline_mode<synchronous>, transform_indices = @transform_5, window_bounds = array<i64: 1, 768>}, {pipeline_mode = #tpu.pipeline_mode<synchronous>, transform_indices = @transform_6, window_bounds = array<i64: 256, 128>}, {pipeline_mode = #tpu.pipeline_mode<synchronous>, transform_indices = @transform_7, window_bounds = array<i64: 8, 1, 1>}, {pipeline_mode = #tpu.pipeline_mode<synchronous>, transform_indices = @transform_8, window_bounds = array<i64: 1, 1>}, {pipeline_mode = #tpu.pipeline_mode<synchronous>, transform_indices = @transform_9, window_bounds = array<i64: 512, 128>}, {pipeline_mode = #tpu.pipeline_mode<synchronous>, transform_indices = @transform_10, window_bounds = array<i64: 1, 128>}, {transform_indices = @transform_11, window_bounds = array<i64: 8, 8>}, {transform_indices = @transform_12, window_bounds = array<i64: 8, 128>}]} {
    %c0 = arith.constant 0 : index
    %c0_0 = arith.constant 0 : index
    %c0_1 = arith.constant 0 : index
    %0 = vector.load %arg1[%c0, %c0_0, %c0_1] : memref<8x8x128xf32, #tpu.memory_space<vmem>>, vector<8x8x128xf32>
    %1 = vector.shape_cast %0 : vector<8x8x128xf32> to vector<64x128xf32>
    %2 = arith.truncf %1 : vector<64x128xf32> to vector<64x128xbf16>
    %c0_2 = arith.constant 0 : index
    %c0_3 = arith.constant 0 : index
    %3 = vector.load %arg3[%c0_2, %c0_3] : memref<128x768xbf16, #tpu.memory_space<vmem>>, vector<128x768xbf16>
    %cst = arith.constant dense<0.000000e+00> : vector<64x768xf32>
    %4 = tpu.matmul %2, %3, %cst {dimension_numbers = #tpu.dot_dimension_numbers<[1], [0], [0], [1], [0, 0, 1, 1], [], []>} : vector<64x128xbf16>, vector<128x768xbf16>, vector<64x768xf32> -> vector<64x768xf32>
    %c0_4 = arith.constant 0 : index
    %c0_5 = arith.constant 0 : index
    %5 = vector.load %arg4[%c0_4, %c0_5] : memref<1x768xf32, #tpu.memory_space<vmem>>, vector<1x768xf32>
    %6 = vector.broadcast %5 : vector<1x768xf32> to vector<64x768xf32>
    %7 = arith.addf %4, %6 : vector<64x768xf32>
    %8 = vector.shape_cast %7 : vector<64x768xf32> to vector<8x8x768xf32>
    %c0_6 = arith.constant 0 : index
    %c0_7 = arith.constant 0 : index
    %c0_8 = arith.constant 0 : index
    %9 = vector.load %arg14[%c0_6, %c0_7, %c0_8] : memref<8x8x768xf32, #tpu.memory_space<vmem>>, vector<8x8x768xf32>
    tpu.vector_store %arg14[%c0_6, %c0_7, %c0_8], %8 {strides = array<i32>} : memref<8x8x768xf32, #tpu.memory_space<vmem>>, vector<8x8x768xf32>,
    %cst_9 = arith.constant 0.000000e+00 : f32
    %10 = vector.broadcast %cst_9 : f32 to vector<8x256xf32>
    %c0_i32 = arith.constant 0 : i32
    %c7_i32 = arith.constant 7 : i32
    %11 = arith.subi %c7_i32, %c0_i32 : i32
    %c0_10 = arith.constant 0 : index
    %c0_11 = arith.constant 0 : index
    %12 = vector.load %arg5[%c0_10, %c0_11] : memref<256x768xf32, #tpu.memory_space<vmem>>, vector<256x768xf32>
    %cst_12 = arith.constant dense<0.000000e+00> : vector<8x768xf32>
    %13 = tpu.matmul %10, %12, %cst_12 {dimension_numbers = #tpu.dot_dimension_numbers<[1], [0], [0], [1], [0, 0, 1, 1], [], []>} : vector<8x256xf32>, vector<256x768xf32>, vector<8x768xf32> -> vector<8x768xf32>
    %c0_13 = arith.constant 0 : index
    %c0_14 = arith.constant 0 : index
    %14 = vector.load %arg6[%c0_13, %c0_14] : memref<1x768xf32, #tpu.memory_space<vmem>>, vector<1x768xf32>
    %15 = vector.broadcast %14 : vector<1x768xf32> to vector<8x768xf32>
    %16 = arith.addf %13, %15 : vector<8x768xf32>
    %17 = arith.index_cast %c0_i32 : i32 to index
    %c0_15 = arith.constant 0 : index
    %c0_16 = arith.constant 0 : index
    %18 = vector.load %arg14[%17, %c0_15, %c0_16] : memref<8x8x768xf32, #tpu.memory_space<vmem>>, vector<1x8x384xf32>
    %19 = vector.shape_cast %18 : vector<1x8x384xf32> to vector<8x384xf32>
    %20 = arith.index_cast %11 : i32 to index
    %c0_17 = arith.constant 0 : index
    %c384 = arith.constant 384 : index
    %21 = vector.load %arg14[%20, %c0_17, %c384] : memref<8x8x768xf32, #tpu.memory_space<vmem>>, vector<1x8x384xf32>
    %22 = vector.shape_cast %21 : vector<1x8x384xf32> to vector<8x384xf32>
    %23 = vector.extract_strided_slice %16 {offsets = [0, 0], sizes = [8, 384], strides = [1, 1]} : vector<8x768xf32> to vector<8x384xf32>
    %24 = vector.extract_strided_slice %16 {offsets = [0, 384], sizes = [8, 384], strides = [1, 1]} : vector<8x768xf32> to vector<8x384xf32>
    %25 = vector.extract_strided_slice %19 {offsets = [0, 0], sizes = [8, 256], strides = [1, 1]} : vector<8x384xf32> to vector<8x256xf32>
    %26 = vector.extract_strided_slice %23 {offsets = [0, 0], sizes = [8, 256], strides = [1, 1]} : vector<8x384xf32> to vector<8x256xf32>
    %27 = arith.addf %25, %26 : vector<8x256xf32>
    %28 = arith.negf %27 : vector<8x256xf32>
    %29 = math.exp %28 : vector<8x256xf32>
    %cst_18 = arith.constant 1.000000e+00 : f32
    %30 = vector.broadcast %cst_18 : f32 to vector<8x256xf32>
    %31 = arith.addf %30, %29 : vector<8x256xf32>
    %32 = arith.divf %30, %31 : vector<8x256xf32>
    %33 = vector.extract_strided_slice %19 {offsets = [0, 256], sizes = [8, 128], strides = [1, 1]} : vector<8x384xf32> to vector<8x128xf32>
    %34 = vector.extract_strided_slice %32 {offsets = [0, 0], sizes = [8, 128], strides = [1, 1]} : vector<8x256xf32> to vector<8x128xf32>
    %35 = vector.extract_strided_slice %23 {offsets = [0, 256], sizes = [8, 128], strides = [1, 1]} : vector<8x384xf32> to vector<8x128xf32>
    %36 = arith.mulf %34, %35 : vector<8x128xf32>
    %37 = arith.addf %33, %36 : vector<8x128xf32>
    %38 = math.tanh %37 : vector<8x128xf32>
    %39 = vector.extract_strided_slice %32 {offsets = [0, 128], sizes = [8, 128], strides = [1, 1]} : vector<8x256xf32> to vector<8x128xf32>
    %cst_19 = arith.constant 1.000000e+00 : f32
    %40 = vector.broadcast %cst_19 : f32 to vector<8x128xf32>
    %41 = arith.subf %40, %39 : vector<8x128xf32>
    %42 = arith.mulf %41, %38 : vector<8x128xf32>
    %43 = vector.extract_strided_slice %10 {offsets = [0, 0], sizes = [8, 128], strides = [1, 1]} : vector<8x256xf32> to vector<8x128xf32>
    %44 = arith.mulf %39, %43 : vector<8x128xf32>
    %45 = arith.addf %42, %44 : vector<8x128xf32>
    %46 = vector.extract_strided_slice %22 {offsets = [0, 0], sizes = [8, 256], strides = [1, 1]} : vector<8x384xf32> to vector<8x256xf32>
    %47 = vector.extract_strided_slice %24 {offsets = [0, 0], sizes = [8, 256], strides = [1, 1]} : vector<8x384xf32> to vector<8x256xf32>
    %48 = arith.addf %46, %47 : vector<8x256xf32>
    %49 = arith.negf %48 : vector<8x256xf32>
    %50 = math.exp %49 : vector<8x256xf32>
    %cst_20 = arith.constant 1.000000e+00 : f32
    %51 = vector.broadcast %cst_20 : f32 to vector<8x256xf32>
    %52 = arith.addf %51, %50 : vector<8x256xf32>
    %53 = arith.divf %51, %52 : vector<8x256xf32>
    %54 = vector.extract_strided_slice %22 {offsets = [0, 256], sizes = [8, 128], strides = [1, 1]} : vector<8x384xf32> to vector<8x128xf32>
    %55 = vector.extract_strided_slice %53 {offsets = [0, 0], sizes = [8, 128], strides = [1, 1]} : vector<8x256xf32> to vector<8x128xf32>
    %56 = vector.extract_strided_slice %24 {offsets = [0, 256], sizes = [8, 128], strides = [1, 1]} : vector<8x384xf32> to vector<8x128xf32>
    %57 = arith.mulf %55, %56 : vector<8x128xf32>
    %58 = arith.addf %54, %57 : vector<8x128xf32>
    %59 = math.tanh %58 : vector<8x128xf32>
    %60 = vector.extract_strided_slice %53 {offsets = [0, 128], sizes = [8, 128], strides = [1, 1]} : vector<8x256xf32> to vector<8x128xf32>
    %cst_21 = arith.constant 1.000000e+00 : f32
    %61 = vector.broadcast %cst_21 : f32 to vector<8x128xf32>
    %62 = arith.subf %61, %60 : vector<8x128xf32>
    %63 = arith.mulf %62, %59 : vector<8x128xf32>
    %64 = vector.extract_strided_slice %10 {offsets = [0, 128], sizes = [8, 128], strides = [1, 1]} : vector<8x256xf32> to vector<8x128xf32>
    %65 = arith.mulf %60, %64 : vector<8x128xf32>
    %66 = arith.addf %63, %65 : vector<8x128xf32>
    %67 = arith.index_cast %c0_i32 : i32 to index
    %c0_22 = arith.constant 0 : index
    %c0_23 = arith.constant 0 : index
    %68 = vector.load %arg15[%67, %c0_22, %c0_23] : memref<8x8x256xf32, #tpu.memory_space<vmem>>, vector<1x8x128xf32>
    %69 = vector.shape_cast %68 : vector<1x8x128xf32> to vector<8x128xf32>
    %70 = vector.shape_cast %45 : vector<8x128xf32> to vector<1x8x128xf32>
    tpu.vector_store %arg15[%67, %c0_22, %c0_23], %70 {strides = array<i32>} : memref<8x8x256xf32, #tpu.memory_space<vmem>>, vector<1x8x128xf32>,
    %71 = arith.index_cast %11 : i32 to index
    %c0_24 = arith.constant 0 : index
    %c128 = arith.constant 128 : index
    %72 = vector.load %arg15[%71, %c0_24, %c128] : memref<8x8x256xf32, #tpu.memory_space<vmem>>, vector<1x8x128xf32>
    %73 = vector.shape_cast %72 : vector<1x8x128xf32> to vector<8x128xf32>
    %74 = vector.shape_cast %66 : vector<8x128xf32> to vector<1x8x128xf32>
    tpu.vector_store %arg15[%71, %c0_24, %c128], %74 {strides = array<i32>} : memref<8x8x256xf32, #tpu.memory_space<vmem>>, vector<1x8x128xf32>,
    %75 = tpu.concatenate %45, %66 in 1 : vector<8x128xf32>, vector<8x128xf32> -> vector<8x256xf32>
    %c1_i32 = arith.constant 1 : i32
    %c7_i32_25 = arith.constant 7 : i32
    %76 = arith.subi %c7_i32_25, %c1_i32 : i32
    %c0_26 = arith.constant 0 : index
    %c0_27 = arith.constant 0 : index
    %77 = vector.load %arg5[%c0_26, %c0_27] : memref<256x768xf32, #tpu.memory_space<vmem>>, vector<256x768xf32>
    %cst_28 = arith.constant dense<0.000000e+00> : vector<8x768xf32>
    %78 = tpu.matmul %75, %77, %cst_28 {dimension_numbers = #tpu.dot_dimension_numbers<[1], [0], [0], [1], [0, 0, 1, 1], [], []>} : vector<8x256xf32>, vector<256x768xf32>, vector<8x768xf32> -> vector<8x768xf32>
    %c0_29 = arith.constant 0 : index
    %c0_30 = arith.constant 0 : index
    %79 = vector.load %arg6[%c0_29, %c0_30] : memref<1x768xf32, #tpu.memory_space<vmem>>, vector<1x768xf32>
    %80 = vector.broadcast %79 : vector<1x768xf32> to vector<8x768xf32>
    %81 = arith.addf %78, %80 : vector<8x768xf32>
    %82 = arith.index_cast %c1_i32 : i32 to index
    %c0_31 = arith.constant 0 : index
    %c0_32 = arith.constant 0 : index
    %83 = vector.load %arg14[%82, %c0_31, %c0_32] : memref<8x8x768xf32, #tpu.memory_space<vmem>>, vector<1x8x384xf32>
    %84 = vector.shape_cast %83 : vector<1x8x384xf32> to vector<8x384xf32>
    %85 = arith.index_cast %76 : i32 to index
    %c0_33 = arith.constant 0 : index
    %c384_34 = arith.constant 384 : index
    %86 = vector.load %arg14[%85, %c0_33, %c384_34] : memref<8x8x768xf32, #tpu.memory_space<vmem>>, vector<1x8x384xf32>
    %87 = vector.shape_cast %86 : vector<1x8x384xf32> to vector<8x384xf32>
    %88 = vector.extract_strided_slice %81 {offsets = [0, 0], sizes = [8, 384], strides = [1, 1]} : vector<8x768xf32> to vector<8x384xf32>
    %89 = vector.extract_strided_slice %81 {offsets = [0, 384], sizes = [8, 384], strides = [1, 1]} : vector<8x768xf32> to vector<8x384xf32>
    %90 = vector.extract_strided_slice %84 {offsets = [0, 0], sizes = [8, 256], strides = [1, 1]} : vector<8x384xf32> to vector<8x256xf32>
    %91 = vector.extract_strided_slice %88 {offsets = [0, 0], sizes = [8, 256], strides = [1, 1]} : vector<8x384xf32> to vector<8x256xf32>
    %92 = arith.addf %90, %91 : vector<8x256xf32>
    %93 = arith.negf %92 : vector<8x256xf32>
    %94 = math.exp %93 : vector<8x256xf32>
    %cst_35 = arith.constant 1.000000e+00 : f32
    %95 = vector.broadcast %cst_35 : f32 to vector<8x256xf32>
    %96 = arith.addf %95, %94 : vector<8x256xf32>
    %97 = arith.divf %95, %96 : vector<8x256xf32>
    %98 = vector.extract_strided_slice %84 {offsets = [0, 256], sizes = [8, 128], strides = [1, 1]} : vector<8x384xf32> to vector<8x128xf32>
    %99 = vector.extract_strided_slice %97 {offsets = [0, 0], sizes = [8, 128], strides = [1, 1]} : vector<8x256xf32> to vector<8x128xf32>
    %100 = vector.extract_strided_slice %88 {offsets = [0, 256], sizes = [8, 128], strides = [1, 1]} : vector<8x384xf32> to vector<8x128xf32>
    %101 = arith.mulf %99, %100 : vector<8x128xf32>
    %102 = arith.addf %98, %101 : vector<8x128xf32>
    %103 = math.tanh %102 : vector<8x128xf32>
    %104 = vector.extract_strided_slice %97 {offsets = [0, 128], sizes = [8, 128], strides = [1, 1]} : vector<8x256xf32> to vector<8x128xf32>
    %cst_36 = arith.constant 1.000000e+00 : f32
    %105 = vector.broadcast %cst_36 : f32 to vector<8x128xf32>
    %106 = arith.subf %105, %104 : vector<8x128xf32>
    %107 = arith.mulf %106, %103 : vector<8x128xf32>
    %108 = vector.extract_strided_slice %75 {offsets = [0, 0], sizes = [8, 128], strides = [1, 1]} : vector<8x256xf32> to vector<8x128xf32>
    %109 = arith.mulf %104, %108 : vector<8x128xf32>
    %110 = arith.addf %107, %109 : vector<8x128xf32>
    %111 = vector.extract_strided_slice %87 {offsets = [0, 0], sizes = [8, 256], strides = [1, 1]} : vector<8x384xf32> to vector<8x256xf32>
    %112 = vector.extract_strided_slice %89 {offsets = [0, 0], sizes = [8, 256], strides = [1, 1]} : vector<8x384xf32> to vector<8x256xf32>
    %113 = arith.addf %111, %112 : vector<8x256xf32>
    %114 = arith.negf %113 : vector<8x256xf32>
    %115 = math.exp %114 : vector<8x256xf32>
    %cst_37 = arith.constant 1.000000e+00 : f32
    %116 = vector.broadcast %cst_37 : f32 to vector<8x256xf32>
    %117 = arith.addf %116, %115 : vector<8x256xf32>
    %118 = arith.divf %116, %117 : vector<8x256xf32>
    %119 = vector.extract_strided_slice %87 {offsets = [0, 256], sizes = [8, 128], strides = [1, 1]} : vector<8x384xf32> to vector<8x128xf32>
    %120 = vector.extract_strided_slice %118 {offsets = [0, 0], sizes = [8, 128], strides = [1, 1]} : vector<8x256xf32> to vector<8x128xf32>
    %121 = vector.extract_strided_slice %89 {offsets = [0, 256], sizes = [8, 128], strides = [1, 1]} : vector<8x384xf32> to vector<8x128xf32>
    %122 = arith.mulf %120, %121 : vector<8x128xf32>
    %123 = arith.addf %119, %122 : vector<8x128xf32>
    %124 = math.tanh %123 : vector<8x128xf32>
    %125 = vector.extract_strided_slice %118 {offsets = [0, 128], sizes = [8, 128], strides = [1, 1]} : vector<8x256xf32> to vector<8x128xf32>
    %cst_38 = arith.constant 1.000000e+00 : f32
    %126 = vector.broadcast %cst_38 : f32 to vector<8x128xf32>
    %127 = arith.subf %126, %125 : vector<8x128xf32>
    %128 = arith.mulf %127, %124 : vector<8x128xf32>
    %129 = vector.extract_strided_slice %75 {offsets = [0, 128], sizes = [8, 128], strides = [1, 1]} : vector<8x256xf32> to vector<8x128xf32>
    %130 = arith.mulf %125, %129 : vector<8x128xf32>
    %131 = arith.addf %128, %130 : vector<8x128xf32>
    %132 = arith.index_cast %c1_i32 : i32 to index
    %c0_39 = arith.constant 0 : index
    %c0_40 = arith.constant 0 : index
    %133 = vector.load %arg15[%132, %c0_39, %c0_40] : memref<8x8x256xf32, #tpu.memory_space<vmem>>, vector<1x8x128xf32>
    %134 = vector.shape_cast %133 : vector<1x8x128xf32> to vector<8x128xf32>
    %135 = vector.shape_cast %110 : vector<8x128xf32> to vector<1x8x128xf32>
    tpu.vector_store %arg15[%132, %c0_39, %c0_40], %135 {strides = array<i32>} : memref<8x8x256xf32, #tpu.memory_space<vmem>>, vector<1x8x128xf32>,
    %136 = arith.index_cast %76 : i32 to index
    %c0_41 = arith.constant 0 : index
    %c128_42 = arith.constant 128 : index
    %137 = vector.load %arg15[%136, %c0_41, %c128_42] : memref<8x8x256xf32, #tpu.memory_space<vmem>>, vector<1x8x128xf32>
    %138 = vector.shape_cast %137 : vector<1x8x128xf32> to vector<8x128xf32>
    %139 = vector.shape_cast %131 : vector<8x128xf32> to vector<1x8x128xf32>
    tpu.vector_store %arg15[%136, %c0_41, %c128_42], %139 {strides = array<i32>} : memref<8x8x256xf32, #tpu.memory_space<vmem>>, vector<1x8x128xf32>,
    %140 = tpu.concatenate %110, %131 in 1 : vector<8x128xf32>, vector<8x128xf32> -> vector<8x256xf32>
    %c2_i32 = arith.constant 2 : i32
    %c7_i32_43 = arith.constant 7 : i32
    %141 = arith.subi %c7_i32_43, %c2_i32 : i32
    %c0_44 = arith.constant 0 : index
    %c0_45 = arith.constant 0 : index
    %142 = vector.load %arg5[%c0_44, %c0_45] : memref<256x768xf32, #tpu.memory_space<vmem>>, vector<256x768xf32>
    %cst_46 = arith.constant dense<0.000000e+00> : vector<8x768xf32>
    %143 = tpu.matmul %140, %142, %cst_46 {dimension_numbers = #tpu.dot_dimension_numbers<[1], [0], [0], [1], [0, 0, 1, 1], [], []>} : vector<8x256xf32>, vector<256x768xf32>, vector<8x768xf32> -> vector<8x768xf32>
    %c0_47 = arith.constant 0 : index
    %c0_48 = arith.constant 0 : index
    %144 = vector.load %arg6[%c0_47, %c0_48] : memref<1x768xf32, #tpu.memory_space<vmem>>, vector<1x768xf32>
    %145 = vector.broadcast %144 : vector<1x768xf32> to vector<8x768xf32>
    %146 = arith.addf %143, %145 : vector<8x768xf32>
    %147 = arith.index_cast %c2_i32 : i32 to index
    %c0_49 = arith.constant 0 : index
    %c0_50 = arith.constant 0 : index
    %148 = vector.load %arg14[%147, %c0_49, %c0_50] : memref<8x8x768xf32, #tpu.memory_space<vmem>>, vector<1x8x384xf32>
    %149 = vector.shape_cast %148 : vector<1x8x384xf32> to vector<8x384xf32>
    %150 = arith.index_cast %141 : i32 to index
    %c0_51 = arith.constant 0 : index
    %c384_52 = arith.constant 384 : index
    %151 = vector.load %arg14[%150, %c0_51, %c384_52] : memref<8x8x768xf32, #tpu.memory_space<vmem>>, vector<1x8x384xf32>
    %152 = vector.shape_cast %151 : vector<1x8x384xf32> to vector<8x384xf32>
    %153 = vector.extract_strided_slice %146 {offsets = [0, 0], sizes = [8, 384], strides = [1, 1]} : vector<8x768xf32> to vector<8x384xf32>
    %154 = vector.extract_strided_slice %146 {offsets = [0, 384], sizes = [8, 384], strides = [1, 1]} : vector<8x768xf32> to vector<8x384xf32>
    %155 = vector.extract_strided_slice %149 {offsets = [0, 0], sizes = [8, 256], strides = [1, 1]} : vector<8x384xf32> to vector<8x256xf32>
    %156 = vector.extract_strided_slice %153 {offsets = [0, 0], sizes = [8, 256], strides = [1, 1]} : vector<8x384xf32> to vector<8x256xf32>
    %157 = arith.addf %155, %156 : vector<8x256xf32>
    %158 = arith.negf %157 : vector<8x256xf32>
    %159 = math.exp %158 : vector<8x256xf32>
    %cst_53 = arith.constant 1.000000e+00 : f32
    %160 = vector.broadcast %cst_53 : f32 to vector<8x256xf32>
    %161 = arith.addf %160, %159 : vector<8x256xf32>
    %162 = arith.divf %160, %161 : vector<8x256xf32>
    %163 = vector.extract_strided_slice %149 {offsets = [0, 256], sizes = [8, 128], strides = [1, 1]} : vector<8x384xf32> to vector<8x128xf32>
    %164 = vector.extract_strided_slice %162 {offsets = [0, 0], sizes = [8, 128], strides = [1, 1]} : vector<8x256xf32> to vector<8x128xf32>
    %165 = vector.extract_strided_slice %153 {offsets = [0, 256], sizes = [8, 128], strides = [1, 1]} : vector<8x384xf32> to vector<8x128xf32>
    %166 = arith.mulf %164, %165 : vector<8x128xf32>
    %167 = arith.addf %163, %166 : vector<8x128xf32>
    %168 = math.tanh %167 : vector<8x128xf32>
    %169 = vector.extract_strided_slice %162 {offsets = [0, 128], sizes = [8, 128], strides = [1, 1]} : vector<8x256xf32> to vector<8x128xf32>
    %cst_54 = arith.constant 1.000000e+00 : f32
    %170 = vector.broadcast %cst_54 : f32 to vector<8x128xf32>
    %171 = arith.subf %170, %169 : vector<8x128xf32>
    %172 = arith.mulf %171, %168 : vector<8x128xf32>
    %173 = vector.extract_strided_slice %140 {offsets = [0, 0], sizes = [8, 128], strides = [1, 1]} : vector<8x256xf32> to vector<8x128xf32>
    %174 = arith.mulf %169, %173 : vector<8x128xf32>
    %175 = arith.addf %172, %174 : vector<8x128xf32>
    %176 = vector.extract_strided_slice %152 {offsets = [0, 0], sizes = [8, 256], strides = [1, 1]} : vector<8x384xf32> to vector<8x256xf32>
    %177 = vector.extract_strided_slice %154 {offsets = [0, 0], sizes = [8, 256], strides = [1, 1]} : vector<8x384xf32> to vector<8x256xf32>
    %178 = arith.addf %176, %177 : vector<8x256xf32>
    %179 = arith.negf %178 : vector<8x256xf32>
    %180 = math.exp %179 : vector<8x256xf32>
    %cst_55 = arith.constant 1.000000e+00 : f32
    %181 = vector.broadcast %cst_55 : f32 to vector<8x256xf32>
    %182 = arith.addf %181, %180 : vector<8x256xf32>
    %183 = arith.divf %181, %182 : vector<8x256xf32>
    %184 = vector.extract_strided_slice %152 {offsets = [0, 256], sizes = [8, 128], strides = [1, 1]} : vector<8x384xf32> to vector<8x128xf32>
    %185 = vector.extract_strided_slice %183 {offsets = [0, 0], sizes = [8, 128], strides = [1, 1]} : vector<8x256xf32> to vector<8x128xf32>
    %186 = vector.extract_strided_slice %154 {offsets = [0, 256], sizes = [8, 128], strides = [1, 1]} : vector<8x384xf32> to vector<8x128xf32>
    %187 = arith.mulf %185, %186 : vector<8x128xf32>
    %188 = arith.addf %184, %187 : vector<8x128xf32>
    %189 = math.tanh %188 : vector<8x128xf32>
    %190 = vector.extract_strided_slice %183 {offsets = [0, 128], sizes = [8, 128], strides = [1, 1]} : vector<8x256xf32> to vector<8x128xf32>
    %cst_56 = arith.constant 1.000000e+00 : f32
    %191 = vector.broadcast %cst_56 : f32 to vector<8x128xf32>
    %192 = arith.subf %191, %190 : vector<8x128xf32>
    %193 = arith.mulf %192, %189 : vector<8x128xf32>
    %194 = vector.extract_strided_slice %140 {offsets = [0, 128], sizes = [8, 128], strides = [1, 1]} : vector<8x256xf32> to vector<8x128xf32>
    %195 = arith.mulf %190, %194 : vector<8x128xf32>
    %196 = arith.addf %193, %195 : vector<8x128xf32>
    %197 = arith.index_cast %c2_i32 : i32 to index
    %c0_57 = arith.constant 0 : index
    %c0_58 = arith.constant 0 : index
    %198 = vector.load %arg15[%197, %c0_57, %c0_58] : memref<8x8x256xf32, #tpu.memory_space<vmem>>, vector<1x8x128xf32>
    %199 = vector.shape_cast %198 : vector<1x8x128xf32> to vector<8x128xf32>
    %200 = vector.shape_cast %175 : vector<8x128xf32> to vector<1x8x128xf32>
    tpu.vector_store %arg15[%197, %c0_57, %c0_58], %200 {strides = array<i32>} : memref<8x8x256xf32, #tpu.memory_space<vmem>>, vector<1x8x128xf32>,
    %201 = arith.index_cast %141 : i32 to index
    %c0_59 = arith.constant 0 : index
    %c128_60 = arith.constant 128 : index
    %202 = vector.load %arg15[%201, %c0_59, %c128_60] : memref<8x8x256xf32, #tpu.memory_space<vmem>>, vector<1x8x128xf32>
    %203 = vector.shape_cast %202 : vector<1x8x128xf32> to vector<8x128xf32>
    %204 = vector.shape_cast %196 : vector<8x128xf32> to vector<1x8x128xf32>
    tpu.vector_store %arg15[%201, %c0_59, %c128_60], %204 {strides = array<i32>} : memref<8x8x256xf32, #tpu.memory_space<vmem>>, vector<1x8x128xf32>,
    %205 = tpu.concatenate %175, %196 in 1 : vector<8x128xf32>, vector<8x128xf32> -> vector<8x256xf32>
    %c3_i32 = arith.constant 3 : i32
    %c7_i32_61 = arith.constant 7 : i32
    %206 = arith.subi %c7_i32_61, %c3_i32 : i32
    %c0_62 = arith.constant 0 : index
    %c0_63 = arith.constant 0 : index
    %207 = vector.load %arg5[%c0_62, %c0_63] : memref<256x768xf32, #tpu.memory_space<vmem>>, vector<256x768xf32>
    %cst_64 = arith.constant dense<0.000000e+00> : vector<8x768xf32>
    %208 = tpu.matmul %205, %207, %cst_64 {dimension_numbers = #tpu.dot_dimension_numbers<[1], [0], [0], [1], [0, 0, 1, 1], [], []>} : vector<8x256xf32>, vector<256x768xf32>, vector<8x768xf32> -> vector<8x768xf32>
    %c0_65 = arith.constant 0 : index
    %c0_66 = arith.constant 0 : index
    %209 = vector.load %arg6[%c0_65, %c0_66] : memref<1x768xf32, #tpu.memory_space<vmem>>, vector<1x768xf32>
    %210 = vector.broadcast %209 : vector<1x768xf32> to vector<8x768xf32>
    %211 = arith.addf %208, %210 : vector<8x768xf32>
    %212 = arith.index_cast %c3_i32 : i32 to index
    %c0_67 = arith.constant 0 : index
    %c0_68 = arith.constant 0 : index
    %213 = vector.load %arg14[%212, %c0_67, %c0_68] : memref<8x8x768xf32, #tpu.memory_space<vmem>>, vector<1x8x384xf32>
    %214 = vector.shape_cast %213 : vector<1x8x384xf32> to vector<8x384xf32>
    %215 = arith.index_cast %206 : i32 to index
    %c0_69 = arith.constant 0 : index
    %c384_70 = arith.constant 384 : index
    %216 = vector.load %arg14[%215, %c0_69, %c384_70] : memref<8x8x768xf32, #tpu.memory_space<vmem>>, vector<1x8x384xf32>
    %217 = vector.shape_cast %216 : vector<1x8x384xf32> to vector<8x384xf32>
    %218 = vector.extract_strided_slice %211 {offsets = [0, 0], sizes = [8, 384], strides = [1, 1]} : vector<8x768xf32> to vector<8x384xf32>
    %219 = vector.extract_strided_slice %211 {offsets = [0, 384], sizes = [8, 384], strides = [1, 1]} : vector<8x768xf32> to vector<8x384xf32>
    %220 = vector.extract_strided_slice %214 {offsets = [0, 0], sizes = [8, 256], strides = [1, 1]} : vector<8x384xf32> to vector<8x256xf32>
    %221 = vector.extract_strided_slice %218 {offsets = [0, 0], sizes = [8, 256], strides = [1, 1]} : vector<8x384xf32> to vector<8x256xf32>
    %222 = arith.addf %220, %221 : vector<8x256xf32>
    %223 = arith.negf %222 : vector<8x256xf32>
    %224 = math.exp %223 : vector<8x256xf32>
    %cst_71 = arith.constant 1.000000e+00 : f32
    %225 = vector.broadcast %cst_71 : f32 to vector<8x256xf32>
    %226 = arith.addf %225, %224 : vector<8x256xf32>
    %227 = arith.divf %225, %226 : vector<8x256xf32>
    %228 = vector.extract_strided_slice %214 {offsets = [0, 256], sizes = [8, 128], strides = [1, 1]} : vector<8x384xf32> to vector<8x128xf32>
    %229 = vector.extract_strided_slice %227 {offsets = [0, 0], sizes = [8, 128], strides = [1, 1]} : vector<8x256xf32> to vector<8x128xf32>
    %230 = vector.extract_strided_slice %218 {offsets = [0, 256], sizes = [8, 128], strides = [1, 1]} : vector<8x384xf32> to vector<8x128xf32>
    %231 = arith.mulf %229, %230 : vector<8x128xf32>
    %232 = arith.addf %228, %231 : vector<8x128xf32>
    %233 = math.tanh %232 : vector<8x128xf32>
    %234 = vector.extract_strided_slice %227 {offsets = [0, 128], sizes = [8, 128], strides = [1, 1]} : vector<8x256xf32> to vector<8x128xf32>
    %cst_72 = arith.constant 1.000000e+00 : f32
    %235 = vector.broadcast %cst_72 : f32 to vector<8x128xf32>
    %236 = arith.subf %235, %234 : vector<8x128xf32>
    %237 = arith.mulf %236, %233 : vector<8x128xf32>
    %238 = vector.extract_strided_slice %205 {offsets = [0, 0], sizes = [8, 128], strides = [1, 1]} : vector<8x256xf32> to vector<8x128xf32>
    %239 = arith.mulf %234, %238 : vector<8x128xf32>
    %240 = arith.addf %237, %239 : vector<8x128xf32>
    %241 = vector.extract_strided_slice %217 {offsets = [0, 0], sizes = [8, 256], strides = [1, 1]} : vector<8x384xf32> to vector<8x256xf32>
    %242 = vector.extract_strided_slice %219 {offsets = [0, 0], sizes = [8, 256], strides = [1, 1]} : vector<8x384xf32> to vector<8x256xf32>
    %243 = arith.addf %241, %242 : vector<8x256xf32>
    %244 = arith.negf %243 : vector<8x256xf32>
    %245 = math.exp %244 : vector<8x256xf32>
    %cst_73 = arith.constant 1.000000e+00 : f32
    %246 = vector.broadcast %cst_73 : f32 to vector<8x256xf32>
    %247 = arith.addf %246, %245 : vector<8x256xf32>
    %248 = arith.divf %246, %247 : vector<8x256xf32>
    %249 = vector.extract_strided_slice %217 {offsets = [0, 256], sizes = [8, 128], strides = [1, 1]} : vector<8x384xf32> to vector<8x128xf32>
    %250 = vector.extract_strided_slice %248 {offsets = [0, 0], sizes = [8, 128], strides = [1, 1]} : vector<8x256xf32> to vector<8x128xf32>
    %251 = vector.extract_strided_slice %219 {offsets = [0, 256], sizes = [8, 128], strides = [1, 1]} : vector<8x384xf32> to vector<8x128xf32>
    %252 = arith.mulf %250, %251 : vector<8x128xf32>
    %253 = arith.addf %249, %252 : vector<8x128xf32>
    %254 = math.tanh %253 : vector<8x128xf32>
    %255 = vector.extract_strided_slice %248 {offsets = [0, 128], sizes = [8, 128], strides = [1, 1]} : vector<8x256xf32> to vector<8x128xf32>
    %cst_74 = arith.constant 1.000000e+00 : f32
    %256 = vector.broadcast %cst_74 : f32 to vector<8x128xf32>
    %257 = arith.subf %256, %255 : vector<8x128xf32>
    %258 = arith.mulf %257, %254 : vector<8x128xf32>
    %259 = vector.extract_strided_slice %205 {offsets = [0, 128], sizes = [8, 128], strides = [1, 1]} : vector<8x256xf32> to vector<8x128xf32>
    %260 = arith.mulf %255, %259 : vector<8x128xf32>
    %261 = arith.addf %258, %260 : vector<8x128xf32>
    %262 = arith.index_cast %c3_i32 : i32 to index
    %c0_75 = arith.constant 0 : index
    %c0_76 = arith.constant 0 : index
    %263 = vector.load %arg15[%262, %c0_75, %c0_76] : memref<8x8x256xf32, #tpu.memory_space<vmem>>, vector<1x8x128xf32>
    %264 = vector.shape_cast %263 : vector<1x8x128xf32> to vector<8x128xf32>
    %265 = vector.shape_cast %240 : vector<8x128xf32> to vector<1x8x128xf32>
    tpu.vector_store %arg15[%262, %c0_75, %c0_76], %265 {strides = array<i32>} : memref<8x8x256xf32, #tpu.memory_space<vmem>>, vector<1x8x128xf32>,
    %266 = arith.index_cast %206 : i32 to index
    %c0_77 = arith.constant 0 : index
    %c128_78 = arith.constant 128 : index
    %267 = vector.load %arg15[%266, %c0_77, %c128_78] : memref<8x8x256xf32, #tpu.memory_space<vmem>>, vector<1x8x128xf32>
    %268 = vector.shape_cast %267 : vector<1x8x128xf32> to vector<8x128xf32>
    %269 = vector.shape_cast %261 : vector<8x128xf32> to vector<1x8x128xf32>
    tpu.vector_store %arg15[%266, %c0_77, %c128_78], %269 {strides = array<i32>} : memref<8x8x256xf32, #tpu.memory_space<vmem>>, vector<1x8x128xf32>,
    %270 = tpu.concatenate %240, %261 in 1 : vector<8x128xf32>, vector<8x128xf32> -> vector<8x256xf32>
    %c4_i32 = arith.constant 4 : i32
    %c7_i32_79 = arith.constant 7 : i32
    %271 = arith.subi %c7_i32_79, %c4_i32 : i32
    %c0_80 = arith.constant 0 : index
    %c0_81 = arith.constant 0 : index
    %272 = vector.load %arg5[%c0_80, %c0_81] : memref<256x768xf32, #tpu.memory_space<vmem>>, vector<256x768xf32>
    %cst_82 = arith.constant dense<0.000000e+00> : vector<8x768xf32>
    %273 = tpu.matmul %270, %272, %cst_82 {dimension_numbers = #tpu.dot_dimension_numbers<[1], [0], [0], [1], [0, 0, 1, 1], [], []>} : vector<8x256xf32>, vector<256x768xf32>, vector<8x768xf32> -> vector<8x768xf32>
    %c0_83 = arith.constant 0 : index
    %c0_84 = arith.constant 0 : index
    %274 = vector.load %arg6[%c0_83, %c0_84] : memref<1x768xf32, #tpu.memory_space<vmem>>, vector<1x768xf32>
    %275 = vector.broadcast %274 : vector<1x768xf32> to vector<8x768xf32>
    %276 = arith.addf %273, %275 : vector<8x768xf32>
    %277 = arith.index_cast %c4_i32 : i32 to index
    %c0_85 = arith.constant 0 : index
    %c0_86 = arith.constant 0 : index
    %278 = vector.load %arg14[%277, %c0_85, %c0_86] : memref<8x8x768xf32, #tpu.memory_space<vmem>>, vector<1x8x384xf32>
    %279 = vector.shape_cast %278 : vector<1x8x384xf32> to vector<8x384xf32>
    %280 = arith.index_cast %271 : i32 to index
    %c0_87 = arith.constant 0 : index
    %c384_88 = arith.constant 384 : index
    %281 = vector.load %arg14[%280, %c0_87, %c384_88] : memref<8x8x768xf32, #tpu.memory_space<vmem>>, vector<1x8x384xf32>
    %282 = vector.shape_cast %281 : vector<1x8x384xf32> to vector<8x384xf32>
    %283 = vector.extract_strided_slice %276 {offsets = [0, 0], sizes = [8, 384], strides = [1, 1]} : vector<8x768xf32> to vector<8x384xf32>
    %284 = vector.extract_strided_slice %276 {offsets = [0, 384], sizes = [8, 384], strides = [1, 1]} : vector<8x768xf32> to vector<8x384xf32>
    %285 = vector.extract_strided_slice %279 {offsets = [0, 0], sizes = [8, 256], strides = [1, 1]} : vector<8x384xf32> to vector<8x256xf32>
    %286 = vector.extract_strided_slice %283 {offsets = [0, 0], sizes = [8, 256], strides = [1, 1]} : vector<8x384xf32> to vector<8x256xf32>
    %287 = arith.addf %285, %286 : vector<8x256xf32>
    %288 = arith.negf %287 : vector<8x256xf32>
    %289 = math.exp %288 : vector<8x256xf32>
    %cst_89 = arith.constant 1.000000e+00 : f32
    %290 = vector.broadcast %cst_89 : f32 to vector<8x256xf32>
    %291 = arith.addf %290, %289 : vector<8x256xf32>
    %292 = arith.divf %290, %291 : vector<8x256xf32>
    %293 = vector.extract_strided_slice %279 {offsets = [0, 256], sizes = [8, 128], strides = [1, 1]} : vector<8x384xf32> to vector<8x128xf32>
    %294 = vector.extract_strided_slice %292 {offsets = [0, 0], sizes = [8, 128], strides = [1, 1]} : vector<8x256xf32> to vector<8x128xf32>
    %295 = vector.extract_strided_slice %283 {offsets = [0, 256], sizes = [8, 128], strides = [1, 1]} : vector<8x384xf32> to vector<8x128xf32>
    %296 = arith.mulf %294, %295 : vector<8x128xf32>
    %297 = arith.addf %293, %296 : vector<8x128xf32>
    %298 = math.tanh %297 : vector<8x128xf32>
    %299 = vector.extract_strided_slice %292 {offsets = [0, 128], sizes = [8, 128], strides = [1, 1]} : vector<8x256xf32> to vector<8x128xf32>
    %cst_90 = arith.constant 1.000000e+00 : f32
    %300 = vector.broadcast %cst_90 : f32 to vector<8x128xf32>
    %301 = arith.subf %300, %299 : vector<8x128xf32>
    %302 = arith.mulf %301, %298 : vector<8x128xf32>
    %303 = vector.extract_strided_slice %270 {offsets = [0, 0], sizes = [8, 128], strides = [1, 1]} : vector<8x256xf32> to vector<8x128xf32>
    %304 = arith.mulf %299, %303 : vector<8x128xf32>
    %305 = arith.addf %302, %304 : vector<8x128xf32>
    %306 = vector.extract_strided_slice %282 {offsets = [0, 0], sizes = [8, 256], strides = [1, 1]} : vector<8x384xf32> to vector<8x256xf32>
    %307 = vector.extract_strided_slice %284 {offsets = [0, 0], sizes = [8, 256], strides = [1, 1]} : vector<8x384xf32> to vector<8x256xf32>
    %308 = arith.addf %306, %307 : vector<8x256xf32>
    %309 = arith.negf %308 : vector<8x256xf32>
    %310 = math.exp %309 : vector<8x256xf32>
    %cst_91 = arith.constant 1.000000e+00 : f32
    %311 = vector.broadcast %cst_91 : f32 to vector<8x256xf32>
    %312 = arith.addf %311, %310 : vector<8x256xf32>
    %313 = arith.divf %311, %312 : vector<8x256xf32>
    %314 = vector.extract_strided_slice %282 {offsets = [0, 256], sizes = [8, 128], strides = [1, 1]} : vector<8x384xf32> to vector<8x128xf32>
    %315 = vector.extract_strided_slice %313 {offsets = [0, 0], sizes = [8, 128], strides = [1, 1]} : vector<8x256xf32> to vector<8x128xf32>
    %316 = vector.extract_strided_slice %284 {offsets = [0, 256], sizes = [8, 128], strides = [1, 1]} : vector<8x384xf32> to vector<8x128xf32>
    %317 = arith.mulf %315, %316 : vector<8x128xf32>
    %318 = arith.addf %314, %317 : vector<8x128xf32>
    %319 = math.tanh %318 : vector<8x128xf32>
    %320 = vector.extract_strided_slice %313 {offsets = [0, 128], sizes = [8, 128], strides = [1, 1]} : vector<8x256xf32> to vector<8x128xf32>
    %cst_92 = arith.constant 1.000000e+00 : f32
    %321 = vector.broadcast %cst_92 : f32 to vector<8x128xf32>
    %322 = arith.subf %321, %320 : vector<8x128xf32>
    %323 = arith.mulf %322, %319 : vector<8x128xf32>
    %324 = vector.extract_strided_slice %270 {offsets = [0, 128], sizes = [8, 128], strides = [1, 1]} : vector<8x256xf32> to vector<8x128xf32>
    %325 = arith.mulf %320, %324 : vector<8x128xf32>
    %326 = arith.addf %323, %325 : vector<8x128xf32>
    %327 = arith.index_cast %c4_i32 : i32 to index
    %c0_93 = arith.constant 0 : index
    %c0_94 = arith.constant 0 : index
    %328 = vector.load %arg15[%327, %c0_93, %c0_94] : memref<8x8x256xf32, #tpu.memory_space<vmem>>, vector<1x8x128xf32>
    %329 = vector.shape_cast %328 : vector<1x8x128xf32> to vector<8x128xf32>
    %330 = vector.shape_cast %305 : vector<8x128xf32> to vector<1x8x128xf32>
    tpu.vector_store %arg15[%327, %c0_93, %c0_94], %330 {strides = array<i32>} : memref<8x8x256xf32, #tpu.memory_space<vmem>>, vector<1x8x128xf32>,
    %331 = arith.index_cast %271 : i32 to index
    %c0_95 = arith.constant 0 : index
    %c128_96 = arith.constant 128 : index
    %332 = vector.load %arg15[%331, %c0_95, %c128_96] : memref<8x8x256xf32, #tpu.memory_space<vmem>>, vector<1x8x128xf32>
    %333 = vector.shape_cast %332 : vector<1x8x128xf32> to vector<8x128xf32>
    %334 = vector.shape_cast %326 : vector<8x128xf32> to vector<1x8x128xf32>
    tpu.vector_store %arg15[%331, %c0_95, %c128_96], %334 {strides = array<i32>} : memref<8x8x256xf32, #tpu.memory_space<vmem>>, vector<1x8x128xf32>,
    %335 = tpu.concatenate %305, %326 in 1 : vector<8x128xf32>, vector<8x128xf32> -> vector<8x256xf32>
    %c5_i32 = arith.constant 5 : i32
    %c7_i32_97 = arith.constant 7 : i32
    %336 = arith.subi %c7_i32_97, %c5_i32 : i32
    %c0_98 = arith.constant 0 : index
    %c0_99 = arith.constant 0 : index
    %337 = vector.load %arg5[%c0_98, %c0_99] : memref<256x768xf32, #tpu.memory_space<vmem>>, vector<256x768xf32>
    %cst_100 = arith.constant dense<0.000000e+00> : vector<8x768xf32>
    %338 = tpu.matmul %335, %337, %cst_100 {dimension_numbers = #tpu.dot_dimension_numbers<[1], [0], [0], [1], [0, 0, 1, 1], [], []>} : vector<8x256xf32>, vector<256x768xf32>, vector<8x768xf32> -> vector<8x768xf32>
    %c0_101 = arith.constant 0 : index
    %c0_102 = arith.constant 0 : index
    %339 = vector.load %arg6[%c0_101, %c0_102] : memref<1x768xf32, #tpu.memory_space<vmem>>, vector<1x768xf32>
    %340 = vector.broadcast %339 : vector<1x768xf32> to vector<8x768xf32>
    %341 = arith.addf %338, %340 : vector<8x768xf32>
    %342 = arith.index_cast %c5_i32 : i32 to index
    %c0_103 = arith.constant 0 : index
    %c0_104 = arith.constant 0 : index
    %343 = vector.load %arg14[%342, %c0_103, %c0_104] : memref<8x8x768xf32, #tpu.memory_space<vmem>>, vector<1x8x384xf32>
    %344 = vector.shape_cast %343 : vector<1x8x384xf32> to vector<8x384xf32>
    %345 = arith.index_cast %336 : i32 to index
    %c0_105 = arith.constant 0 : index
    %c384_106 = arith.constant 384 : index
    %346 = vector.load %arg14[%345, %c0_105, %c384_106] : memref<8x8x768xf32, #tpu.memory_space<vmem>>, vector<1x8x384xf32>
    %347 = vector.shape_cast %346 : vector<1x8x384xf32> to vector<8x384xf32>
    %348 = vector.extract_strided_slice %341 {offsets = [0, 0], sizes = [8, 384], strides = [1, 1]} : vector<8x768xf32> to vector<8x384xf32>
    %349 = vector.extract_strided_slice %341 {offsets = [0, 384], sizes = [8, 384], strides = [1, 1]} : vector<8x768xf32> to vector<8x384xf32>
    %350 = vector.extract_strided_slice %344 {offsets = [0, 0], sizes = [8, 256], strides = [1, 1]} : vector<8x384xf32> to vector<8x256xf32>
    %351 = vector.extract_strided_slice %348 {offsets = [0, 0], sizes = [8, 256], strides = [1, 1]} : vector<8x384xf32> to vector<8x256xf32>
    %352 = arith.addf %350, %351 : vector<8x256xf32>
    %353 = arith.negf %352 : vector<8x256xf32>
    %354 = math.exp %353 : vector<8x256xf32>
    %cst_107 = arith.constant 1.000000e+00 : f32
    %355 = vector.broadcast %cst_107 : f32 to vector<8x256xf32>
    %356 = arith.addf %355, %354 : vector<8x256xf32>
    %357 = arith.divf %355, %356 : vector<8x256xf32>
    %358 = vector.extract_strided_slice %344 {offsets = [0, 256], sizes = [8, 128], strides = [1, 1]} : vector<8x384xf32> to vector<8x128xf32>
    %359 = vector.extract_strided_slice %357 {offsets = [0, 0], sizes = [8, 128], strides = [1, 1]} : vector<8x256xf32> to vector<8x128xf32>
    %360 = vector.extract_strided_slice %348 {offsets = [0, 256], sizes = [8, 128], strides = [1, 1]} : vector<8x384xf32> to vector<8x128xf32>
    %361 = arith.mulf %359, %360 : vector<8x128xf32>
    %362 = arith.addf %358, %361 : vector<8x128xf32>
    %363 = math.tanh %362 : vector<8x128xf32>
    %364 = vector.extract_strided_slice %357 {offsets = [0, 128], sizes = [8, 128], strides = [1, 1]} : vector<8x256xf32> to vector<8x128xf32>
    %cst_108 = arith.constant 1.000000e+00 : f32
    %365 = vector.broadcast %cst_108 : f32 to vector<8x128xf32>
    %366 = arith.subf %365, %364 : vector<8x128xf32>
    %367 = arith.mulf %366, %363 : vector<8x128xf32>
    %368 = vector.extract_strided_slice %335 {offsets = [0, 0], sizes = [8, 128], strides = [1, 1]} : vector<8x256xf32> to vector<8x128xf32>
    %369 = arith.mulf %364, %368 : vector<8x128xf32>
    %370 = arith.addf %367, %369 : vector<8x128xf32>
    %371 = vector.extract_strided_slice %347 {offsets = [0, 0], sizes = [8, 256], strides = [1, 1]} : vector<8x384xf32> to vector<8x256xf32>
    %372 = vector.extract_strided_slice %349 {offsets = [0, 0], sizes = [8, 256], strides = [1, 1]} : vector<8x384xf32> to vector<8x256xf32>
    %373 = arith.addf %371, %372 : vector<8x256xf32>
    %374 = arith.negf %373 : vector<8x256xf32>
    %375 = math.exp %374 : vector<8x256xf32>
    %cst_109 = arith.constant 1.000000e+00 : f32
    %376 = vector.broadcast %cst_109 : f32 to vector<8x256xf32>
    %377 = arith.addf %376, %375 : vector<8x256xf32>
    %378 = arith.divf %376, %377 : vector<8x256xf32>
    %379 = vector.extract_strided_slice %347 {offsets = [0, 256], sizes = [8, 128], strides = [1, 1]} : vector<8x384xf32> to vector<8x128xf32>
    %380 = vector.extract_strided_slice %378 {offsets = [0, 0], sizes = [8, 128], strides = [1, 1]} : vector<8x256xf32> to vector<8x128xf32>
    %381 = vector.extract_strided_slice %349 {offsets = [0, 256], sizes = [8, 128], strides = [1, 1]} : vector<8x384xf32> to vector<8x128xf32>
    %382 = arith.mulf %380, %381 : vector<8x128xf32>
    %383 = arith.addf %379, %382 : vector<8x128xf32>
    %384 = math.tanh %383 : vector<8x128xf32>
    %385 = vector.extract_strided_slice %378 {offsets = [0, 128], sizes = [8, 128], strides = [1, 1]} : vector<8x256xf32> to vector<8x128xf32>
    %cst_110 = arith.constant 1.000000e+00 : f32
    %386 = vector.broadcast %cst_110 : f32 to vector<8x128xf32>
    %387 = arith.subf %386, %385 : vector<8x128xf32>
    %388 = arith.mulf %387, %384 : vector<8x128xf32>
    %389 = vector.extract_strided_slice %335 {offsets = [0, 128], sizes = [8, 128], strides = [1, 1]} : vector<8x256xf32> to vector<8x128xf32>
    %390 = arith.mulf %385, %389 : vector<8x128xf32>
    %391 = arith.addf %388, %390 : vector<8x128xf32>
    %392 = arith.index_cast %c5_i32 : i32 to index
    %c0_111 = arith.constant 0 : index
    %c0_112 = arith.constant 0 : index
    %393 = vector.load %arg15[%392, %c0_111, %c0_112] : memref<8x8x256xf32, #tpu.memory_space<vmem>>, vector<1x8x128xf32>
    %394 = vector.shape_cast %393 : vector<1x8x128xf32> to vector<8x128xf32>
    %395 = vector.shape_cast %370 : vector<8x128xf32> to vector<1x8x128xf32>
    tpu.vector_store %arg15[%392, %c0_111, %c0_112], %395 {strides = array<i32>} : memref<8x8x256xf32, #tpu.memory_space<vmem>>, vector<1x8x128xf32>,
    %396 = arith.index_cast %336 : i32 to index
    %c0_113 = arith.constant 0 : index
    %c128_114 = arith.constant 128 : index
    %397 = vector.load %arg15[%396, %c0_113, %c128_114] : memref<8x8x256xf32, #tpu.memory_space<vmem>>, vector<1x8x128xf32>
    %398 = vector.shape_cast %397 : vector<1x8x128xf32> to vector<8x128xf32>
    %399 = vector.shape_cast %391 : vector<8x128xf32> to vector<1x8x128xf32>
    tpu.vector_store %arg15[%396, %c0_113, %c128_114], %399 {strides = array<i32>} : memref<8x8x256xf32, #tpu.memory_space<vmem>>, vector<1x8x128xf32>,
    %400 = tpu.concatenate %370, %391 in 1 : vector<8x128xf32>, vector<8x128xf32> -> vector<8x256xf32>
    %c6_i32 = arith.constant 6 : i32
    %c7_i32_115 = arith.constant 7 : i32
    %401 = arith.subi %c7_i32_115, %c6_i32 : i32
    %c0_116 = arith.constant 0 : index
    %c0_117 = arith.constant 0 : index
    %402 = vector.load %arg5[%c0_116, %c0_117] : memref<256x768xf32, #tpu.memory_space<vmem>>, vector<256x768xf32>
    %cst_118 = arith.constant dense<0.000000e+00> : vector<8x768xf32>
    %403 = tpu.matmul %400, %402, %cst_118 {dimension_numbers = #tpu.dot_dimension_numbers<[1], [0], [0], [1], [0, 0, 1, 1], [], []>} : vector<8x256xf32>, vector<256x768xf32>, vector<8x768xf32> -> vector<8x768xf32>
    %c0_119 = arith.constant 0 : index
    %c0_120 = arith.constant 0 : index
    %404 = vector.load %arg6[%c0_119, %c0_120] : memref<1x768xf32, #tpu.memory_space<vmem>>, vector<1x768xf32>
    %405 = vector.broadcast %404 : vector<1x768xf32> to vector<8x768xf32>
    %406 = arith.addf %403, %405 : vector<8x768xf32>
    %407 = arith.index_cast %c6_i32 : i32 to index
    %c0_121 = arith.constant 0 : index
    %c0_122 = arith.constant 0 : index
    %408 = vector.load %arg14[%407, %c0_121, %c0_122] : memref<8x8x768xf32, #tpu.memory_space<vmem>>, vector<1x8x384xf32>
    %409 = vector.shape_cast %408 : vector<1x8x384xf32> to vector<8x384xf32>
    %410 = arith.index_cast %401 : i32 to index
    %c0_123 = arith.constant 0 : index
    %c384_124 = arith.constant 384 : index
    %411 = vector.load %arg14[%410, %c0_123, %c384_124] : memref<8x8x768xf32, #tpu.memory_space<vmem>>, vector<1x8x384xf32>
    %412 = vector.shape_cast %411 : vector<1x8x384xf32> to vector<8x384xf32>
    %413 = vector.extract_strided_slice %406 {offsets = [0, 0], sizes = [8, 384], strides = [1, 1]} : vector<8x768xf32> to vector<8x384xf32>
    %414 = vector.extract_strided_slice %406 {offsets = [0, 384], sizes = [8, 384], strides = [1, 1]} : vector<8x768xf32> to vector<8x384xf32>
    %415 = vector.extract_strided_slice %409 {offsets = [0, 0], sizes = [8, 256], strides = [1, 1]} : vector<8x384xf32> to vector<8x256xf32>
    %416 = vector.extract_strided_slice %413 {offsets = [0, 0], sizes = [8, 256], strides = [1, 1]} : vector<8x384xf32> to vector<8x256xf32>
    %417 = arith.addf %415, %416 : vector<8x256xf32>
    %418 = arith.negf %417 : vector<8x256xf32>
    %419 = math.exp %418 : vector<8x256xf32>
    %cst_125 = arith.constant 1.000000e+00 : f32
    %420 = vector.broadcast %cst_125 : f32 to vector<8x256xf32>
    %421 = arith.addf %420, %419 : vector<8x256xf32>
    %422 = arith.divf %420, %421 : vector<8x256xf32>
    %423 = vector.extract_strided_slice %409 {offsets = [0, 256], sizes = [8, 128], strides = [1, 1]} : vector<8x384xf32> to vector<8x128xf32>
    %424 = vector.extract_strided_slice %422 {offsets = [0, 0], sizes = [8, 128], strides = [1, 1]} : vector<8x256xf32> to vector<8x128xf32>
    %425 = vector.extract_strided_slice %413 {offsets = [0, 256], sizes = [8, 128], strides = [1, 1]} : vector<8x384xf32> to vector<8x128xf32>
    %426 = arith.mulf %424, %425 : vector<8x128xf32>
    %427 = arith.addf %423, %426 : vector<8x128xf32>
    %428 = math.tanh %427 : vector<8x128xf32>
    %429 = vector.extract_strided_slice %422 {offsets = [0, 128], sizes = [8, 128], strides = [1, 1]} : vector<8x256xf32> to vector<8x128xf32>
    %cst_126 = arith.constant 1.000000e+00 : f32
    %430 = vector.broadcast %cst_126 : f32 to vector<8x128xf32>
    %431 = arith.subf %430, %429 : vector<8x128xf32>
    %432 = arith.mulf %431, %428 : vector<8x128xf32>
    %433 = vector.extract_strided_slice %400 {offsets = [0, 0], sizes = [8, 128], strides = [1, 1]} : vector<8x256xf32> to vector<8x128xf32>
    %434 = arith.mulf %429, %433 : vector<8x128xf32>
    %435 = arith.addf %432, %434 : vector<8x128xf32>
    %436 = vector.extract_strided_slice %412 {offsets = [0, 0], sizes = [8, 256], strides = [1, 1]} : vector<8x384xf32> to vector<8x256xf32>
    %437 = vector.extract_strided_slice %414 {offsets = [0, 0], sizes = [8, 256], strides = [1, 1]} : vector<8x384xf32> to vector<8x256xf32>
    %438 = arith.addf %436, %437 : vector<8x256xf32>
    %439 = arith.negf %438 : vector<8x256xf32>
    %440 = math.exp %439 : vector<8x256xf32>
    %cst_127 = arith.constant 1.000000e+00 : f32
    %441 = vector.broadcast %cst_127 : f32 to vector<8x256xf32>
    %442 = arith.addf %441, %440 : vector<8x256xf32>
    %443 = arith.divf %441, %442 : vector<8x256xf32>
    %444 = vector.extract_strided_slice %412 {offsets = [0, 256], sizes = [8, 128], strides = [1, 1]} : vector<8x384xf32> to vector<8x128xf32>
    %445 = vector.extract_strided_slice %443 {offsets = [0, 0], sizes = [8, 128], strides = [1, 1]} : vector<8x256xf32> to vector<8x128xf32>
    %446 = vector.extract_strided_slice %414 {offsets = [0, 256], sizes = [8, 128], strides = [1, 1]} : vector<8x384xf32> to vector<8x128xf32>
    %447 = arith.mulf %445, %446 : vector<8x128xf32>
    %448 = arith.addf %444, %447 : vector<8x128xf32>
    %449 = math.tanh %448 : vector<8x128xf32>
    %450 = vector.extract_strided_slice %443 {offsets = [0, 128], sizes = [8, 128], strides = [1, 1]} : vector<8x256xf32> to vector<8x128xf32>
    %cst_128 = arith.constant 1.000000e+00 : f32
    %451 = vector.broadcast %cst_128 : f32 to vector<8x128xf32>
    %452 = arith.subf %451, %450 : vector<8x128xf32>
    %453 = arith.mulf %452, %449 : vector<8x128xf32>
    %454 = vector.extract_strided_slice %400 {offsets = [0, 128], sizes = [8, 128], strides = [1, 1]} : vector<8x256xf32> to vector<8x128xf32>
    %455 = arith.mulf %450, %454 : vector<8x128xf32>
    %456 = arith.addf %453, %455 : vector<8x128xf32>
    %457 = arith.index_cast %c6_i32 : i32 to index
    %c0_129 = arith.constant 0 : index
    %c0_130 = arith.constant 0 : index
    %458 = vector.load %arg15[%457, %c0_129, %c0_130] : memref<8x8x256xf32, #tpu.memory_space<vmem>>, vector<1x8x128xf32>
    %459 = vector.shape_cast %458 : vector<1x8x128xf32> to vector<8x128xf32>
    %460 = vector.shape_cast %435 : vector<8x128xf32> to vector<1x8x128xf32>
    tpu.vector_store %arg15[%457, %c0_129, %c0_130], %460 {strides = array<i32>} : memref<8x8x256xf32, #tpu.memory_space<vmem>>, vector<1x8x128xf32>,
    %461 = arith.index_cast %401 : i32 to index
    %c0_131 = arith.constant 0 : index
    %c128_132 = arith.constant 128 : index
    %462 = vector.load %arg15[%461, %c0_131, %c128_132] : memref<8x8x256xf32, #tpu.memory_space<vmem>>, vector<1x8x128xf32>
    %463 = vector.shape_cast %462 : vector<1x8x128xf32> to vector<8x128xf32>
    %464 = vector.shape_cast %456 : vector<8x128xf32> to vector<1x8x128xf32>
    tpu.vector_store %arg15[%461, %c0_131, %c128_132], %464 {strides = array<i32>} : memref<8x8x256xf32, #tpu.memory_space<vmem>>, vector<1x8x128xf32>,
    %465 = tpu.concatenate %435, %456 in 1 : vector<8x128xf32>, vector<8x128xf32> -> vector<8x256xf32>
    %c7_i32_133 = arith.constant 7 : i32
    %c7_i32_134 = arith.constant 7 : i32
    %466 = arith.subi %c7_i32_134, %c7_i32_133 : i32
    %c0_135 = arith.constant 0 : index
    %c0_136 = arith.constant 0 : index
    %467 = vector.load %arg5[%c0_135, %c0_136] : memref<256x768xf32, #tpu.memory_space<vmem>>, vector<256x768xf32>
    %cst_137 = arith.constant dense<0.000000e+00> : vector<8x768xf32>
    %468 = tpu.matmul %465, %467, %cst_137 {dimension_numbers = #tpu.dot_dimension_numbers<[1], [0], [0], [1], [0, 0, 1, 1], [], []>} : vector<8x256xf32>, vector<256x768xf32>, vector<8x768xf32> -> vector<8x768xf32>
    %c0_138 = arith.constant 0 : index
    %c0_139 = arith.constant 0 : index
    %469 = vector.load %arg6[%c0_138, %c0_139] : memref<1x768xf32, #tpu.memory_space<vmem>>, vector<1x768xf32>
    %470 = vector.broadcast %469 : vector<1x768xf32> to vector<8x768xf32>
    %471 = arith.addf %468, %470 : vector<8x768xf32>
    %472 = arith.index_cast %c7_i32_133 : i32 to index
    %c0_140 = arith.constant 0 : index
    %c0_141 = arith.constant 0 : index
    %473 = vector.load %arg14[%472, %c0_140, %c0_141] : memref<8x8x768xf32, #tpu.memory_space<vmem>>, vector<1x8x384xf32>
    %474 = vector.shape_cast %473 : vector<1x8x384xf32> to vector<8x384xf32>
    %475 = arith.index_cast %466 : i32 to index
    %c0_142 = arith.constant 0 : index
    %c384_143 = arith.constant 384 : index
    %476 = vector.load %arg14[%475, %c0_142, %c384_143] : memref<8x8x768xf32, #tpu.memory_space<vmem>>, vector<1x8x384xf32>
    %477 = vector.shape_cast %476 : vector<1x8x384xf32> to vector<8x384xf32>
    %478 = vector.extract_strided_slice %471 {offsets = [0, 0], sizes = [8, 384], strides = [1, 1]} : vector<8x768xf32> to vector<8x384xf32>
    %479 = vector.extract_strided_slice %471 {offsets = [0, 384], sizes = [8, 384], strides = [1, 1]} : vector<8x768xf32> to vector<8x384xf32>
    %480 = vector.extract_strided_slice %474 {offsets = [0, 0], sizes = [8, 256], strides = [1, 1]} : vector<8x384xf32> to vector<8x256xf32>
    %481 = vector.extract_strided_slice %478 {offsets = [0, 0], sizes = [8, 256], strides = [1, 1]} : vector<8x384xf32> to vector<8x256xf32>
    %482 = arith.addf %480, %481 : vector<8x256xf32>
    %483 = arith.negf %482 : vector<8x256xf32>
    %484 = math.exp %483 : vector<8x256xf32>
    %cst_144 = arith.constant 1.000000e+00 : f32
    %485 = vector.broadcast %cst_144 : f32 to vector<8x256xf32>
    %486 = arith.addf %485, %484 : vector<8x256xf32>
    %487 = arith.divf %485, %486 : vector<8x256xf32>
    %488 = vector.extract_strided_slice %474 {offsets = [0, 256], sizes = [8, 128], strides = [1, 1]} : vector<8x384xf32> to vector<8x128xf32>
    %489 = vector.extract_strided_slice %487 {offsets = [0, 0], sizes = [8, 128], strides = [1, 1]} : vector<8x256xf32> to vector<8x128xf32>
    %490 = vector.extract_strided_slice %478 {offsets = [0, 256], sizes = [8, 128], strides = [1, 1]} : vector<8x384xf32> to vector<8x128xf32>
    %491 = arith.mulf %489, %490 : vector<8x128xf32>
    %492 = arith.addf %488, %491 : vector<8x128xf32>
    %493 = math.tanh %492 : vector<8x128xf32>
    %494 = vector.extract_strided_slice %487 {offsets = [0, 128], sizes = [8, 128], strides = [1, 1]} : vector<8x256xf32> to vector<8x128xf32>
    %cst_145 = arith.constant 1.000000e+00 : f32
    %495 = vector.broadcast %cst_145 : f32 to vector<8x128xf32>
    %496 = arith.subf %495, %494 : vector<8x128xf32>
    %497 = arith.mulf %496, %493 : vector<8x128xf32>
    %498 = vector.extract_strided_slice %465 {offsets = [0, 0], sizes = [8, 128], strides = [1, 1]} : vector<8x256xf32> to vector<8x128xf32>
    %499 = arith.mulf %494, %498 : vector<8x128xf32>
    %500 = arith.addf %497, %499 : vector<8x128xf32>
    %501 = vector.extract_strided_slice %477 {offsets = [0, 0], sizes = [8, 256], strides = [1, 1]} : vector<8x384xf32> to vector<8x256xf32>
    %502 = vector.extract_strided_slice %479 {offsets = [0, 0], sizes = [8, 256], strides = [1, 1]} : vector<8x384xf32> to vector<8x256xf32>
    %503 = arith.addf %501, %502 : vector<8x256xf32>
    %504 = arith.negf %503 : vector<8x256xf32>
    %505 = math.exp %504 : vector<8x256xf32>
    %cst_146 = arith.constant 1.000000e+00 : f32
    %506 = vector.broadcast %cst_146 : f32 to vector<8x256xf32>
    %507 = arith.addf %506, %505 : vector<8x256xf32>
    %508 = arith.divf %506, %507 : vector<8x256xf32>
    %509 = vector.extract_strided_slice %477 {offsets = [0, 256], sizes = [8, 128], strides = [1, 1]} : vector<8x384xf32> to vector<8x128xf32>
    %510 = vector.extract_strided_slice %508 {offsets = [0, 0], sizes = [8, 128], strides = [1, 1]} : vector<8x256xf32> to vector<8x128xf32>
    %511 = vector.extract_strided_slice %479 {offsets = [0, 256], sizes = [8, 128], strides = [1, 1]} : vector<8x384xf32> to vector<8x128xf32>
    %512 = arith.mulf %510, %511 : vector<8x128xf32>
    %513 = arith.addf %509, %512 : vector<8x128xf32>
    %514 = math.tanh %513 : vector<8x128xf32>
    %515 = vector.extract_strided_slice %508 {offsets = [0, 128], sizes = [8, 128], strides = [1, 1]} : vector<8x256xf32> to vector<8x128xf32>
    %cst_147 = arith.constant 1.000000e+00 : f32
    %516 = vector.broadcast %cst_147 : f32 to vector<8x128xf32>
    %517 = arith.subf %516, %515 : vector<8x128xf32>
    %518 = arith.mulf %517, %514 : vector<8x128xf32>
    %519 = vector.extract_strided_slice %465 {offsets = [0, 128], sizes = [8, 128], strides = [1, 1]} : vector<8x256xf32> to vector<8x128xf32>
    %520 = arith.mulf %515, %519 : vector<8x128xf32>
    %521 = arith.addf %518, %520 : vector<8x128xf32>
    %522 = arith.index_cast %c7_i32_133 : i32 to index
    %c0_148 = arith.constant 0 : index
    %c0_149 = arith.constant 0 : index
    %523 = vector.load %arg15[%522, %c0_148, %c0_149] : memref<8x8x256xf32, #tpu.memory_space<vmem>>, vector<1x8x128xf32>
    %524 = vector.shape_cast %523 : vector<1x8x128xf32> to vector<8x128xf32>
    %525 = vector.shape_cast %500 : vector<8x128xf32> to vector<1x8x128xf32>
    tpu.vector_store %arg15[%522, %c0_148, %c0_149], %525 {strides = array<i32>} : memref<8x8x256xf32, #tpu.memory_space<vmem>>, vector<1x8x128xf32>,
    %526 = arith.index_cast %466 : i32 to index
    %c0_150 = arith.constant 0 : index
    %c128_151 = arith.constant 128 : index
    %527 = vector.load %arg15[%526, %c0_150, %c128_151] : memref<8x8x256xf32, #tpu.memory_space<vmem>>, vector<1x8x128xf32>
    %528 = vector.shape_cast %527 : vector<1x8x128xf32> to vector<8x128xf32>
    %529 = vector.shape_cast %521 : vector<8x128xf32> to vector<1x8x128xf32>
    tpu.vector_store %arg15[%526, %c0_150, %c128_151], %529 {strides = array<i32>} : memref<8x8x256xf32, #tpu.memory_space<vmem>>, vector<1x8x128xf32>,
    %530 = tpu.concatenate %500, %521 in 1 : vector<8x128xf32>, vector<8x128xf32> -> vector<8x256xf32>
    %c8_i32 = arith.constant 8 : i32
    %c0_152 = arith.constant 0 : index
    %c0_153 = arith.constant 0 : index
    %c0_154 = arith.constant 0 : index
    %531 = vector.load %arg15[%c0_152, %c0_153, %c0_154] : memref<8x8x256xf32, #tpu.memory_space<vmem>>, vector<8x8x256xf32>
    %532 = vector.shape_cast %531 : vector<8x8x256xf32> to vector<64x256xf32>
    %c0_155 = arith.constant 0 : index
    %c0_156 = arith.constant 0 : index
    %533 = vector.load %arg7[%c0_155, %c0_156] : memref<256x128xf32, #tpu.memory_space<vmem>>, vector<256x128xf32>
    %cst_157 = arith.constant dense<0.000000e+00> : vector<64x128xf32>
    %534 = tpu.matmul %532, %533, %cst_157 {dimension_numbers = #tpu.dot_dimension_numbers<[1], [0], [0], [1], [0, 0, 1, 1], [], []>} : vector<64x256xf32>, vector<256x128xf32>, vector<64x128xf32> -> vector<64x128xf32>
    %535 = vector.shape_cast %534 : vector<64x128xf32> to vector<8x8x128xf32>
    %536 = vector.extract_strided_slice %535 {offsets = [0, 0, 0], sizes = [8, 8, 1], strides = [1, 1, 1]} : vector<8x8x128xf32> to vector<8x8x1xf32>
    %c0_158 = arith.constant 0 : index
    %c0_159 = arith.constant 0 : index
    %537 = vector.load %arg9[%c0_158, %c0_159] : memref<1x1xf32, #tpu.memory_space<vmem>>, vector<1x1xf32>
    %538 = vector.shape_cast %537 : vector<1x1xf32> to vector<1x1x1xf32>
    %539 = vector.broadcast %538 : vector<1x1x1xf32> to vector<8x8x1xf32>
    %540 = arith.addf %536, %539 : vector<8x8x1xf32>
    %cst_160 = arith.constant dense<0.000000e+00> : vector<8x8xf32>
    %541 = vector.multi_reduction <add>, %540, %cst_160 [2] : vector<8x8x1xf32> to vector<8x8xf32>
    %c0_161 = arith.constant 0 : index
    %c0_162 = arith.constant 0 : index
    %542 = vector.load %arg12[%c0_161, %c0_162] : memref<8x8xf32, #tpu.memory_space<vmem>>, vector<8x8xf32>
    tpu.vector_store %arg12[%c0_161, %c0_162], %541 {strides = array<i32>} : memref<8x8xf32, #tpu.memory_space<vmem>>, vector<8x8xf32>,
    %543 = vector.extract_strided_slice %535 {offsets = [0, 0, 1], sizes = [8, 8, 1], strides = [1, 1, 1]} : vector<8x8x128xf32> to vector<8x8x1xf32>
    %c0_163 = arith.constant 0 : index
    %c0_164 = arith.constant 0 : index
    %c0_165 = arith.constant 0 : index
    %544 = vector.load %arg8[%c0_163, %c0_164, %c0_165] : memref<8x1x1xf32, #tpu.memory_space<vmem>>, vector<8x1x1xf32>
    %545 = vector.broadcast %544 : vector<8x1x1xf32> to vector<8x8x1xf32>
    %546 = arith.addf %543, %545 : vector<8x8x1xf32>
    %547 = math.tanh %546 : vector<8x8x1xf32>
    %548 = math.exp %547 : vector<8x8x1xf32>
    %c0_166 = arith.constant 0 : index
    %c0_167 = arith.constant 0 : index
    %c0_168 = arith.constant 0 : index
    %549 = vector.load %arg2[%c0_166, %c0_167, %c0_168] : memref<8x8x1xf32, #tpu.memory_space<vmem>>, vector<8x8x1xf32>
    %550 = arith.mulf %548, %549 : vector<8x8x1xf32>
    %cst_169 = arith.constant dense<0.000000e+00> : vector<8x1xf32>
    %551 = vector.multi_reduction <add>, %550, %cst_169 [0] : vector<8x8x1xf32> to vector<8x1xf32>
    %552 = vector.shape_cast %551 : vector<8x1xf32> to vector<1x8x1xf32>
    %553 = vector.broadcast %552 : vector<1x8x1xf32> to vector<8x8x1xf32>
    %554 = arith.divf %550, %553 : vector<8x8x1xf32>
    %cst_170 = arith.constant 1.000000e-10 : f32
    %555 = vector.broadcast %cst_170 : f32 to vector<8x8x1xf32>
    %556 = arith.addf %554, %555 : vector<8x8x1xf32>
    %557 = vector.broadcast %556 : vector<8x8x1xf32> to vector<8x8x256xf32>
    %558 = arith.mulf %557, %531 : vector<8x8x256xf32>
    %cst_171 = arith.constant dense<0.000000e+00> : vector<8x256xf32>
    %559 = vector.multi_reduction <add>, %558, %cst_171 [0] : vector<8x8x256xf32> to vector<8x256xf32>
    %cst_172 = arith.constant dense<0xFF800000> : vector<8x256xf32>
    %560 = vector.multi_reduction <maximumf>, %531, %cst_172 [0] : vector<8x8x256xf32> to vector<8x256xf32>
    %561 = tpu.concatenate %560, %559 in 1 : vector<8x256xf32>, vector<8x256xf32> -> vector<8x512xf32>
    %c0_173 = arith.constant 0 : index
    %c0_174 = arith.constant 0 : index
    %562 = vector.load %arg10[%c0_173, %c0_174] : memref<512x128xf32, #tpu.memory_space<vmem>>, vector<512x128xf32>
    %cst_175 = arith.constant dense<0.000000e+00> : vector<8x128xf32>
    %563 = tpu.matmul %561, %562, %cst_175 {dimension_numbers = #tpu.dot_dimension_numbers<[1], [0], [0], [1], [0, 0, 1, 1], [], []>} : vector<8x512xf32>, vector<512x128xf32>, vector<8x128xf32> -> vector<8x128xf32>
    %c0_176 = arith.constant 0 : index
    %c0_177 = arith.constant 0 : index
    %564 = vector.load %arg11[%c0_176, %c0_177] : memref<1x128xf32, #tpu.memory_space<vmem>>, vector<1x128xf32>
    %565 = vector.broadcast %564 : vector<1x128xf32> to vector<8x128xf32>
    %566 = arith.addf %563, %565 : vector<8x128xf32>
    %c0_178 = arith.constant 0 : index
    %c0_179 = arith.constant 0 : index
    %567 = vector.load %arg13[%c0_178, %c0_179] : memref<8x128xf32, #tpu.memory_space<vmem>>, vector<8x128xf32>
    tpu.vector_store %arg13[%c0_178, %c0_179], %566 {strides = array<i32>} : memref<8x128xf32, #tpu.memory_space<vmem>>, vector<8x128xf32>,
    return
  }
  func.func @transform_0(%arg0: i32) -> (i32, i32, i32) {
    %c0_i32 = arith.constant 0 : i32
    %c0_i32_0 = arith.constant 0 : i32
    %c0_i32_1 = arith.constant 0 : i32
    return %c0_i32, %arg0, %c0_i32_0 : i32, i32, i32
  }
  func.func @transform_1(%arg0: i32) -> (i32, i32, i32) {
    %c0_i32 = arith.constant 0 : i32
    %c0_i32_0 = arith.constant 0 : i32
    %c0_i32_1 = arith.constant 0 : i32
    return %c0_i32, %arg0, %c0_i32_0 : i32, i32, i32
  }
  func.func @transform_2(%arg0: i32) -> (i32, i32) {
    %c0_i32 = arith.constant 0 : i32
    %c0_i32_0 = arith.constant 0 : i32
    %c0_i32_1 = arith.constant 0 : i32
    return %c0_i32, %c0_i32_0 : i32, i32
  }
  func.func @transform_3(%arg0: i32) -> (i32, i32) {
    %c0_i32 = arith.constant 0 : i32
    %c0_i32_0 = arith.constant 0 : i32
    %c0_i32_1 = arith.constant 0 : i32
    return %c0_i32, %c0_i32_0 : i32, i32
  }
  func.func @transform_4(%arg0: i32) -> (i32, i32) {
    %c0_i32 = arith.constant 0 : i32
    %c0_i32_0 = arith.constant 0 : i32
    %c0_i32_1 = arith.constant 0 : i32
    return %c0_i32, %c0_i32_0 : i32, i32
  }
  func.func @transform_5(%arg0: i32) -> (i32, i32) {
    %c0_i32 = arith.constant 0 : i32
    %c0_i32_0 = arith.constant 0 : i32
    %c0_i32_1 = arith.constant 0 : i32
    return %c0_i32, %c0_i32_0 : i32, i32
  }
  func.func @transform_6(%arg0: i32) -> (i32, i32) {
    %c0_i32 = arith.constant 0 : i32
    %c0_i32_0 = arith.constant 0 : i32
    %c0_i32_1 = arith.constant 0 : i32
    return %c0_i32, %c0_i32_0 : i32, i32
  }
  func.func @transform_7(%arg0: i32) -> (i32, i32, i32) {
    %c0_i32 = arith.constant 0 : i32
    %c0_i32_0 = arith.constant 0 : i32
    %c0_i32_1 = arith.constant 0 : i32
    %c0_i32_2 = arith.constant 0 : i32
    return %c0_i32, %c0_i32_0, %c0_i32_1 : i32, i32, i32
  }
  func.func @transform_8(%arg0: i32) -> (i32, i32) {
    %c0_i32 = arith.constant 0 : i32
    %c0_i32_0 = arith.constant 0 : i32
    %c0_i32_1 = arith.constant 0 : i32
    return %c0_i32, %c0_i32_0 : i32, i32
  }
  func.func @transform_9(%arg0: i32) -> (i32, i32) {
    %c0_i32 = arith.constant 0 : i32
    %c0_i32_0 = arith.constant 0 : i32
    %c0_i32_1 = arith.constant 0 : i32
    return %c0_i32, %c0_i32_0 : i32, i32
  }
  func.func @transform_10(%arg0: i32) -> (i32, i32) {
    %c0_i32 = arith.constant 0 : i32
    %c0_i32_0 = arith.constant 0 : i32
    %c0_i32_1 = arith.constant 0 : i32
    return %c0_i32, %c0_i32_0 : i32, i32
  }
  func.func @transform_11(%arg0: i32) -> (i32, i32) {
    %c0_i32 = arith.constant 0 : i32
    %c0_i32_0 = arith.constant 0 : i32
    return %c0_i32, %arg0 : i32, i32
  }
  func.func @transform_12(%arg0: i32) -> (i32, i32) {
    %c0_i32 = arith.constant 0 : i32
    %c0_i32_0 = arith.constant 0 : i32
    return %arg0, %c0_i32 : i32, i32
  }
}

</mosaic_0001>

<llo_original>
// kernel: tpu_custom_call.1
$region0: #{tpu_custom_call.1}
  #allocation0 [shape = 'u32[]', space=smem, size = 0x4, offset = 0x4, fixed_abs, tag = 'smem constant byte address 0x4 - core index']
  #allocation1 [shape = 'u32[144,128]{1,0:T(1,128)}', space=vmem, size = 0x12000, scoped, tag = 'internal scratch']
  #allocation2 [shape = 'f32[8,8,768]{2,1,0:T(8,128)}', space=vmem, size = 0x30000, scoped, tag = 'scratch operand']
  #allocation3 [shape = 'f32[8,8,256]{2,1,0:T(8,128)}', space=vmem, size = 0x10000, scoped, tag = 'scratch operand']
  #allocation4 [shape = 'f32[1,1]{1,0:T(1,128)S(1)}', space=vmem, size = 0x200, scoped, tag = 'scoped memory for tpu_custom_call.1']
  %s0 = inlined_call_operand.vmem [shape: f32[8,8,128], index: 0, kind: input, shape index: {}]
  %s1 = inlined_call_operand.vmem [shape: f32[8,8,1], index: 1, kind: input, shape index: {}]
  %s2 = inlined_call_operand.hbm [shape: bf16[128,768], index: 2, kind: input, shape index: {}]
  %s3 = inlined_call_operand.vmem [shape: f32[1,768], index: 3, kind: input, shape index: {}]
  %s4 = inlined_call_operand.hbm [shape: f32[256,768], index: 4, kind: input, shape index: {}]
  %s5 = inlined_call_operand.vmem [shape: f32[1,768], index: 5, kind: input, shape index: {}]
  %s6 = inlined_call_operand.hbm [shape: f32[256,128], index: 6, kind: input, shape index: {}]
  %s7 = inlined_call_operand.vmem [shape: f32[8,1,1], index: 7, kind: input, shape index: {}]
  %s8 = inlined_call_operand.<no memory space> [shape: f32[1,1], index: 8, kind: input, shape index: {}]
  %s9 = inlined_call_operand.hbm [shape: f32[512,128], index: 9, kind: input, shape index: {}]
  %s10 = inlined_call_operand.vmem [shape: f32[1,128], index: 10, kind: input, shape index: {}]
  %s11 = inlined_call_operand.hbm [shape: f32[8,8], index: 11, kind: output, shape index: {0}]
  %s12 = inlined_call_operand.hbm [shape: f32[8,128], index: 12, kind: output, shape index: {1}]
  %13 = xla_tuple %s11, %s12
  %s14 = sld [smem:[#allocation0]]
  $region78: #{tpu_custom_call.1} parent=0
    _
  %s16 = ssub.s32 1, %s14
  %s17 = scalar_select 0, %s16, %s14
  %v18 = vstv %s8
  %19 = vst [vmem:[#allocation4] sm:$0x1] %v18
  $region1: #{tpu_custom_call.1} parent=0
    #allocation5 [shape = 'u8[196608]{0}', space=vmem, size = 0x30000, scoped, tag = 'input window, operand 2, single buffered']
    #allocation6 [shape = 's32[1]{0}', space=sflag, size = 0x4, scoped, tag = 'scoped memory for tpu_custom_call.1']
    #allocation7 [shape = 's32[1]{0}', space=sflag, size = 0x4, scoped, tag = 'scoped memory for tpu_custom_call.1']
    #allocation8 [shape = 'u8[786432]{0}', space=vmem, size = 0xc0000, scoped, tag = 'input window, operand 4, single buffered']
    #allocation9 [shape = 's32[1]{0}', space=sflag, size = 0x4, scoped, tag = 'scoped memory for tpu_custom_call.1']
    #allocation10 [shape = 'u8[131072]{0}', space=vmem, size = 0x20000, scoped, tag = 'input window, operand 6, single buffered']
    #allocation11 [shape = 'u8[262144]{0}', space=vmem, size = 0x40000, scoped, tag = 'input window, operand 9, single buffered']
    #allocation12 [shape = 's32[1]{0}', space=sflag, size = 0x4, scoped, tag = 'scoped memory for tpu_custom_call.1']
    #allocation13 [shape = 'u8[4096]{0}', space=vmem, size = 0x1000, scoped, tag = 'output window, operand 0, single buffered']
    #allocation14 [shape = 'u8[4096]{0}', space=vmem, size = 0x1000, scoped, tag = 'output window, operand 1, single buffered']
    #allocation15 [shape = 's32[1]{0}', space=sflag, size = 0x4, scoped, tag = 'scoped memory for tpu_custom_call.1']
    %20 = vsyncpa [#allocation6], 0
    %21 = vsyncpa [#allocation9], 0
    %22 = vsyncpa [#allocation12], 0
    %23 = vsyncpa [#allocation7], 0
    %24 = vsyncpa [#allocation15], 0
    // Predicated region
    $region2: #{tpu_custom_call.1} parent=1 // pred_check
      _
    $region3: #{tpu_custom_call.1} parent=1 // pred_check_branch
      %26 = sbr.rel (0) target = $region5
    $region4: #{tpu_custom_call.1} parent=1 // pred_region
      _
    $region5: #{tpu_custom_call.1} parent=1 // pred_fallthru
      _
    // Predicated region
    $region6: #{tpu_custom_call.1} parent=1 // pred_check
      _
    $region7: #{tpu_custom_call.1} parent=1 // pred_check_branch
      %28 = sbr.rel (0) target = $region9
    $region8: #{tpu_custom_call.1} parent=1 // pred_region
      _
    $region9: #{tpu_custom_call.1} parent=1 // pred_fallthru
      _
    // Predicated region
    $region10: #{tpu_custom_call.1} parent=1 // pred_check
      _
    $region11: #{tpu_custom_call.1} parent=1 // pred_check_branch
      %30 = sbr.rel (0) target = $region13
    $region12: #{tpu_custom_call.1} parent=1 // pred_region
      %s32 = ssub.s32 6144, 6144
      %33 = vsyncadd [#allocation6], %s32
      %s34 = sshll.u32 [#allocation5], 4
      %s35 = int_to_ptr.vmem [resolvable:$true] %s34
      %40 = dma.hbm_to_vmem [thread:$0]  %s2, 6144, %s35, [#allocation6], 384, 384, 24
    $region13: #{tpu_custom_call.1} parent=1 // pred_fallthru
      _
    // Predicated region
    $region14: #{tpu_custom_call.1} parent=1 // pred_check
      _
    $region15: #{tpu_custom_call.1} parent=1 // pred_check_branch
      %42 = sbr.rel (0) target = $region17
    $region16: #{tpu_custom_call.1} parent=1 // pred_region
      _
    $region17: #{tpu_custom_call.1} parent=1 // pred_fallthru
      _
    // Predicated region
    $region18: #{tpu_custom_call.1} parent=1 // pred_check
      _
    $region19: #{tpu_custom_call.1} parent=1 // pred_check_branch
      %44 = sbr.rel (0) target = $region21
    $region20: #{tpu_custom_call.1} parent=1 // pred_region
      %s46 = ssub.s32 24576, 24576
      %47 = vsyncadd [#allocation9], %s46
      %s48 = sshll.u32 [#allocation8], 4
      %s49 = int_to_ptr.vmem [resolvable:$true] %s48
      %54 = dma.hbm_to_vmem [thread:$0]  %s4, 24576, %s49, [#allocation9], 768, 768, 48
    $region21: #{tpu_custom_call.1} parent=1 // pred_fallthru
      _
    // Predicated region
    $region22: #{tpu_custom_call.1} parent=1 // pred_check
      _
    $region23: #{tpu_custom_call.1} parent=1 // pred_check_branch
      %56 = sbr.rel (0) target = $region25
    $region24: #{tpu_custom_call.1} parent=1 // pred_region
      _
    $region25: #{tpu_custom_call.1} parent=1 // pred_fallthru
      _
    // Predicated region
    $region26: #{tpu_custom_call.1} parent=1 // pred_check
      _
    $region27: #{tpu_custom_call.1} parent=1 // pred_check_branch
      %58 = sbr.rel (0) target = $region29
    $region28: #{tpu_custom_call.1} parent=1 // pred_region
      %s60 = ssub.s32 4096, 4096
      %61 = vsyncadd [#allocation9], %s60
      %s62 = sshll.u32 [#allocation10], 4
      %s63 = int_to_ptr.vmem [resolvable:$true] %s62
      %68 = dma.hbm_to_vmem [thread:$0]  %s6, 4096, %s63, [#allocation9], 128, 128, 8
    $region29: #{tpu_custom_call.1} parent=1 // pred_fallthru
      _
    // Predicated region
    $region30: #{tpu_custom_call.1} parent=1 // pred_check
      _
    $region31: #{tpu_custom_call.1} parent=1 // pred_check_branch
      %70 = sbr.rel (0) target = $region33
    $region32: #{tpu_custom_call.1} parent=1 // pred_region
      _
    $region33: #{tpu_custom_call.1} parent=1 // pred_fallthru
      _
    // Predicated region
    $region34: #{tpu_custom_call.1} parent=1 // pred_check
      _
    $region35: #{tpu_custom_call.1} parent=1 // pred_check_branch
      %72 = sbr.rel (0) target = $region37
    $region36: #{tpu_custom_call.1} parent=1 // pred_region
      _
    $region37: #{tpu_custom_call.1} parent=1 // pred_fallthru
      _
    // Predicated region
    $region38: #{tpu_custom_call.1} parent=1 // pred_check
      _
    $region39: #{tpu_custom_call.1} parent=1 // pred_check_branch
      %74 = sbr.rel (0) target = $region41
    $region40: #{tpu_custom_call.1} parent=1 // pred_region
      %s76 = ssub.s32 8192, 8192
      %77 = vsyncadd [#allocation12], %s76
      %s78 = sshll.u32 [#allocation11], 4
      %s79 = int_to_ptr.vmem [resolvable:$true] %s78
      %84 = dma.hbm_to_vmem [thread:$0]  %s9, 8192, %s79, [#allocation12], 128, 128, 8
    $region41: #{tpu_custom_call.1} parent=1 // pred_fallthru
      _
    // Predicated region
    $region42: #{tpu_custom_call.1} parent=1 // pred_check
      _
    $region43: #{tpu_custom_call.1} parent=1 // pred_check_branch
      %86 = sbr.rel (0) target = $region45
    $region44: #{tpu_custom_call.1} parent=1 // pred_region
      _
    $region45: #{tpu_custom_call.1} parent=1 // pred_fallthru
      _
    // Predicated region
    $region46: #{tpu_custom_call.1} parent=1 // pred_check
      _
    $region47: #{tpu_custom_call.1} parent=1 // pred_check_branch
      %88 = sbr.rel (0) target = $region49
    $region48: #{tpu_custom_call.1} parent=1 // pred_region
      %89 = dma.done [#allocation6], 6144
    $region49: #{tpu_custom_call.1} parent=1 // pred_fallthru
      _
    // Predicated region
    $region50: #{tpu_custom_call.1} parent=1 // pred_check
      _
    $region51: #{tpu_custom_call.1} parent=1 // pred_check_branch
      %91 = sbr.rel (0) target = $region53
    $region52: #{tpu_custom_call.1} parent=1 // pred_region
      %92 = dma.done [#allocation9], 24576
    $region53: #{tpu_custom_call.1} parent=1 // pred_fallthru
      _
    // Predicated region
    $region54: #{tpu_custom_call.1} parent=1 // pred_check
      _
    $region55: #{tpu_custom_call.1} parent=1 // pred_check_branch
      %94 = sbr.rel (0) target = $region57
    $region56: #{tpu_custom_call.1} parent=1 // pred_region
      %95 = dma.done [#allocation9], 4096
    $region57: #{tpu_custom_call.1} parent=1 // pred_fallthru
      _
    // Predicated region
    $region58: #{tpu_custom_call.1} parent=1 // pred_check
      _
    $region59: #{tpu_custom_call.1} parent=1 // pred_check_branch
      %97 = sbr.rel (0) target = $region61
    $region60: #{tpu_custom_call.1} parent=1 // pred_region
      %98 = dma.done [#allocation12], 8192
    $region61: #{tpu_custom_call.1} parent=1 // pred_fallthru
      _
    %v100 = vld [vmem:[%s0] sm:$0xff]
    %v101 = vld [vmem:[%s0 + $0x8] sm:$0xff]
    %v102 = vld [vmem:[%s0 + $0x10] sm:$0xff]
    %v103 = vld [vmem:[%s0 + $0x18] sm:$0xff]
    %v104 = vld [vmem:[%s0 + $0x20] sm:$0xff]
    %v105 = vld [vmem:[%s0 + $0x28] sm:$0xff]
    %v106 = vld [vmem:[%s0 + $0x30] sm:$0xff]
    %v107 = vld [vmem:[%s0 + $0x38] sm:$0xff]
    %v108 = vpack.c.bf16 %v101, %v100
    %v109 = vpack.c.bf16 %v103, %v102
    %v110 = vpack.c.bf16 %v105, %v104
    %v111 = vpack.c.bf16 %v107, %v106
    %v112 = vld [vmem:[#allocation5] sm:$0xff]
    %v113 = vld [vmem:[#allocation5 + $0x8] sm:$0xff]
    %v114 = vld [vmem:[#allocation5 + $0x10] sm:$0xff]
    %v115 = vld [vmem:[#allocation5 + $0x18] sm:$0xff]
    %v116 = vld [vmem:[#allocation5 + $0x20] sm:$0xff]
    %v117 = vld [vmem:[#allocation5 + $0x28] sm:$0xff]
    %v118 = vld [vmem:[#allocation5 + $0x30] sm:$0xff]
    %v119 = vld [vmem:[#allocation5 + $0x38] sm:$0xff]
    %v120 = vld [vmem:[#allocation5 + $0x40] sm:$0xff]
    %v121 = vld [vmem:[#allocation5 + $0x48] sm:$0xff]
    %v122 = vld [vmem:[#allocation5 + $0x50] sm:$0xff]
    %v123 = vld [vmem:[#allocation5 + $0x58] sm:$0xff]
    %v124 = vld [vmem:[#allocation5 + $0x60] sm:$0xff]
    %v125 = vld [vmem:[#allocation5 + $0x68] sm:$0xff]
    %v126 = vld [vmem:[#allocation5 + $0x70] sm:$0xff]
    %v127 = vld [vmem:[#allocation5 + $0x78] sm:$0xff]
    %v128 = vld [vmem:[#allocation5 + $0x80] sm:$0xff]
    %v129 = vld [vmem:[#allocation5 + $0x88] sm:$0xff]
    %v130 = vld [vmem:[#allocation5 + $0x90] sm:$0xff]
    %v131 = vld [vmem:[#allocation5 + $0x98] sm:$0xff]
    %v132 = vld [vmem:[#allocation5 + $0xa0] sm:$0xff]
    %v133 = vld [vmem:[#allocation5 + $0xa8] sm:$0xff]
    %v134 = vld [vmem:[#allocation5 + $0xb0] sm:$0xff]
    %v135 = vld [vmem:[#allocation5 + $0xb8] sm:$0xff]
    %v136 = vld [vmem:[#allocation5 + $0xc0] sm:$0xff]
    %v137 = vld [vmem:[#allocation5 + $0xc8] sm:$0xff]
    %v138 = vld [vmem:[#allocation5 + $0xd0] sm:$0xff]
    %v139 = vld [vmem:[#allocation5 + $0xd8] sm:$0xff]
    %v140 = vld [vmem:[#allocation5 + $0xe0] sm:$0xff]
    %v141 = vld [vmem:[#allocation5 + $0xe8] sm:$0xff]
    %v142 = vld [vmem:[#allocation5 + $0xf0] sm:$0xff]
    %v143 = vld [vmem:[#allocation5 + $0xf8] sm:$0xff]
    %v144 = vld [vmem:[#allocation5 + $0x100] sm:$0xff]
    %v145 = vld [vmem:[#allocation5 + $0x108] sm:$0xff]
    %v146 = vld [vmem:[#allocation5 + $0x110] sm:$0xff]
    %v147 = vld [vmem:[#allocation5 + $0x118] sm:$0xff]
    %v148 = vld [vmem:[#allocation5 + $0x120] sm:$0xff]
    %v149 = vld [vmem:[#allocation5 + $0x128] sm:$0xff]
    %v150 = vld [vmem:[#allocation5 + $0x130] sm:$0xff]
    %v151 = vld [vmem:[#allocation5 + $0x138] sm:$0xff]
    %v152 = vld [vmem:[#allocation5 + $0x140] sm:$0xff]
    %v153 = vld [vmem:[#allocation5 + $0x148] sm:$0xff]
    %v154 = vld [vmem:[#allocation5 + $0x150] sm:$0xff]
    %v155 = vld [vmem:[#allocation5 + $0x158] sm:$0xff]
    %v156 = vld [vmem:[#allocation5 + $0x160] sm:$0xff]
    %v157 = vld [vmem:[#allocation5 + $0x168] sm:$0xff]
    %v158 = vld [vmem:[#allocation5 + $0x170] sm:$0xff]
    %v159 = vld [vmem:[#allocation5 + $0x178] sm:$0xff]
    %v160 = vld [vmem:[%s3] sm:$0x3f]
    %v162 = vlaneseq
    %v163 = vshrl.u32 %v162, 7
    %v164 = vsub.s32 0, %v163
    %v165 = vrot.slane %v160, %v164
    %v166 = vlaneseq
    %v167 = vshrl.u32 %v166, 7
    %v168 = vsub.s32 1, %v167
    %v169 = vrot.slane %v160, %v168
    %v170 = vlaneseq
    %v171 = vshrl.u32 %v170, 7
    %v172 = vsub.s32 2, %v171
    %v173 = vrot.slane %v160, %v172
    %v174 = vlaneseq
    %v175 = vshrl.u32 %v174, 7
    %v176 = vsub.s32 3, %v175
    %v177 = vrot.slane %v160, %v176
    %v178 = vlaneseq
    %v179 = vshrl.u32 %v178, 7
    %v180 = vsub.s32 4, %v179
    %v181 = vrot.slane %v160, %v180
    %v182 = vlaneseq
    %v183 = vshrl.u32 %v182, 7
    %v184 = vsub.s32 5, %v183
    %v185 = vrot.slane %v160, %v184
    %v240 = vunpack.c.l.b16 %v112
    %v241 = vunpack.c.h.b16 %v112
    %v242 = vunpack.c.l.b16 %v113
    %v243 = vunpack.c.h.b16 %v113
    %v244 = vunpack.c.l.b16 %v114
    %v245 = vunpack.c.h.b16 %v114
    %v246 = vunpack.c.l.b16 %v115
    %v247 = vunpack.c.h.b16 %v115
    %v248 = vunpack.c.l.b16 %v116
    %v249 = vunpack.c.h.b16 %v116
    %v250 = vunpack.c.l.b16 %v117
    %v251 = vunpack.c.h.b16 %v117
    %v252 = vunpack.c.l.b16 %v118
    %v253 = vunpack.c.h.b16 %v118
    %v254 = vunpack.c.l.b16 %v119
    %v255 = vunpack.c.h.b16 %v119
    %v256 = vunpack.c.l.b16 %v120
    %v257 = vunpack.c.h.b16 %v120
    %v258 = vunpack.c.l.b16 %v121
    %v259 = vunpack.c.h.b16 %v121
    %v260 = vunpack.c.l.b16 %v122
    %v261 = vunpack.c.h.b16 %v122
    %v262 = vunpack.c.l.b16 %v123
    %v263 = vunpack.c.h.b16 %v123
    %v264 = vunpack.c.l.b16 %v124
    %v265 = vunpack.c.h.b16 %v124
    %v266 = vunpack.c.l.b16 %v125
    %v267 = vunpack.c.h.b16 %v125
    %v268 = vunpack.c.l.b16 %v126
    %v269 = vunpack.c.h.b16 %v126
    %v270 = vunpack.c.l.b16 %v127
    %v271 = vunpack.c.h.b16 %v127
    %v272 = vunpack.c.l.b16 %v128
    %v273 = vunpack.c.h.b16 %v128
    %v274 = vunpack.c.l.b16 %v129
    %v275 = vunpack.c.h.b16 %v129
    %v276 = vunpack.c.l.b16 %v130
    %v277 = vunpack.c.h.b16 %v130
    %v278 = vunpack.c.l.b16 %v131
    %v279 = vunpack.c.h.b16 %v131
    %v280 = vunpack.c.l.b16 %v132
    %v281 = vunpack.c.h.b16 %v132
    %v282 = vunpack.c.l.b16 %v133
    %v283 = vunpack.c.h.b16 %v133
    %v284 = vunpack.c.l.b16 %v134
    %v285 = vunpack.c.h.b16 %v134
    %v286 = vunpack.c.l.b16 %v135
    %v287 = vunpack.c.h.b16 %v135
    %v288 = vunpack.c.l.b16 %v136
    %v289 = vunpack.c.h.b16 %v136
    %v290 = vunpack.c.l.b16 %v137
    %v291 = vunpack.c.h.b16 %v137
    %v292 = vunpack.c.l.b16 %v138
    %v293 = vunpack.c.h.b16 %v138
    %v294 = vunpack.c.l.b16 %v139
    %v295 = vunpack.c.h.b16 %v139
    %v296 = vunpack.c.l.b16 %v140
    %v297 = vunpack.c.h.b16 %v140
    %v298 = vunpack.c.l.b16 %v141
    %v299 = vunpack.c.h.b16 %v141
    %v300 = vunpack.c.l.b16 %v142
    %v301 = vunpack.c.h.b16 %v142
    %v302 = vunpack.c.l.b16 %v143
    %v303 = vunpack.c.h.b16 %v143
    %v304 = vunpack.c.l.b16 %v144
    %v305 = vunpack.c.h.b16 %v144
    %v306 = vunpack.c.l.b16 %v145
    %v307 = vunpack.c.h.b16 %v145
    %v308 = vunpack.c.l.b16 %v146
    %v309 = vunpack.c.h.b16 %v146
    %v310 = vunpack.c.l.b16 %v147
    %v311 = vunpack.c.h.b16 %v147
    %v312 = vunpack.c.l.b16 %v148
    %v313 = vunpack.c.h.b16 %v148
    %v314 = vunpack.c.l.b16 %v149
    %v315 = vunpack.c.h.b16 %v149
    %v316 = vunpack.c.l.b16 %v150
    %v317 = vunpack.c.h.b16 %v150
    %v318 = vunpack.c.l.b16 %v151
    %v319 = vunpack.c.h.b16 %v151
    %v320 = vunpack.c.l.b16 %v152
    %v321 = vunpack.c.h.b16 %v152
    %v322 = vunpack.c.l.b16 %v153
    %v323 = vunpack.c.h.b16 %v153
    %v324 = vunpack.c.l.b16 %v154
    %v325 = vunpack.c.h.b16 %v154
    %v326 = vunpack.c.l.b16 %v155
    %v327 = vunpack.c.h.b16 %v155
    %v328 = vunpack.c.l.b16 %v156
    %v329 = vunpack.c.h.b16 %v156
    %v330 = vunpack.c.l.b16 %v157
    %v331 = vunpack.c.h.b16 %v157
    %v332 = vunpack.c.l.b16 %v158
    %v333 = vunpack.c.h.b16 %v158
    %v334 = vunpack.c.l.b16 %v159
    %v335 = vunpack.c.h.b16 %v159
    %v336 = vpack.c.b16 %v246, %v240
    %v337 = vpack.c.b16 %v247, %v241
    %v338 = vpack.c.b16 %v248, %v242
    %v339 = vpack.c.b16 %v249, %v243
    %v340 = vpack.c.b16 %v250, %v244
    %v341 = vpack.c.b16 %v251, %v245
    %v342 = vpack.c.b16 %v258, %v252
    %v343 = vpack.c.b16 %v259, %v253
    %v344 = vpack.c.b16 %v260, %v254
    %v345 = vpack.c.b16 %v261, %v255
    %v346 = vpack.c.b16 %v262, %v256
    %v347 = vpack.c.b16 %v263, %v257
    %v348 = vpack.c.b16 %v270, %v264
    %v349 = vpack.c.b16 %v271, %v265
    %v350 = vpack.c.b16 %v272, %v266
    %v351 = vpack.c.b16 %v273, %v267
    %v352 = vpack.c.b16 %v274, %v268
    %v353 = vpack.c.b16 %v275, %v269
    %v354 = vpack.c.b16 %v282, %v276
    %v355 = vpack.c.b16 %v283, %v277
    %v356 = vpack.c.b16 %v284, %v278
    %v357 = vpack.c.b16 %v285, %v279
    %v358 = vpack.c.b16 %v286, %v280
    %v359 = vpack.c.b16 %v287, %v281
    %v360 = vpack.c.b16 %v294, %v288
    %v361 = vpack.c.b16 %v295, %v289
    %v362 = vpack.c.b16 %v296, %v290
    %v363 = vpack.c.b16 %v297, %v291
    %v364 = vpack.c.b16 %v298, %v292
    %v365 = vpack.c.b16 %v299, %v293
    %v366 = vpack.c.b16 %v306, %v300
    %v367 = vpack.c.b16 %v307, %v301
    %v368 = vpack.c.b16 %v308, %v302
    %v369 = vpack.c.b16 %v309, %v303
    %v370 = vpack.c.b16 %v310, %v304
    %v371 = vpack.c.b16 %v311, %v305
    %v372 = vpack.c.b16 %v318, %v312
    %v373 = vpack.c.b16 %v319, %v313
    %v374 = vpack.c.b16 %v320, %v314
    %v375 = vpack.c.b16 %v321, %v315
    %v376 = vpack.c.b16 %v322, %v316
    %v377 = vpack.c.b16 %v323, %v317
    %v378 = vpack.c.b16 %v330, %v324
    %v379 = vpack.c.b16 %v331, %v325
    %v380 = vpack.c.b16 %v332, %v326
    %v381 = vpack.c.b16 %v333, %v327
    %v382 = vpack.c.b16 %v334, %v328
    %v383 = vpack.c.b16 %v335, %v329
    %432 = vmatprep.subr.bf16.mxu0 %v337
    %433 = vmatpush1.bf16.msra.mxu0 %v336
    %434 = vmatprep.subr.bf16.mxu0 %v343
    %435 = vmatpush1.bf16.msra.mxu0 %v342
    %436 = vmatprep.subr.bf16.mxu0 %v349
    %437 = vmatpush1.bf16.msra.mxu0 %v348
    %438 = vmatprep.subr.bf16.mxu0 %v355
    %439 = vmatpush1.bf16.msra.mxu0 %v354
    %440 = vmatprep.subr.bf16.mxu0 %v361
    %441 = vmatpush1.bf16.msra.mxu0 %v360
    %442 = vmatprep.subr.bf16.mxu0 %v367
    %443 = vmatpush1.bf16.msra.mxu0 %v366
    %444 = vmatprep.subr.bf16.mxu0 %v373
    %445 = vmatpush1.bf16.msra.mxu0 %v372
    %446 = vmatprep.subr.bf16.mxu0 %v379
    %447 = vmatpush1.bf16.msra.mxu0 %v378
    %448 = vmatprep.subr.bf16.mxu0 0
    %449 = vmatpush1.bf16.msra.mxu0 0
    %450 = vmatprep.subr.bf16.mxu0 0
    %451 = vmatpush1.bf16.msra.mxu0 0
    %452 = vmatprep.subr.bf16.mxu0 0
    %453 = vmatpush1.bf16.msra.mxu0 0
    %454 = vmatprep.subr.bf16.mxu0 0
    %455 = vmatpush1.bf16.msra.mxu0 0
    %456 = vmatprep.subr.bf16.mxu0 0
    %457 = vmatpush1.bf16.msra.mxu0 0
    %458 = vmatprep.subr.bf16.mxu0 0
    %459 = vmatpush1.bf16.msra.mxu0 0
    %460 = vmatprep.subr.bf16.mxu0 0
    %461 = vmatpush1.bf16.msra.mxu0 0
    %462 = vmatprep.subr.bf16.mxu0 0
    %463 = vmatpush1.bf16.msra.mxu0 0
    %464 = vmatprep.mubr.bf16.mxu0 0
    %465 = vmatmul.mubr.bf16.gmra.mrb[0].mxu0 %v108
    %v466 = vpop.f32.mrb[0].mxu0
    %v467 = vadd.f32 %v165, %v466
    %v468 = vpop.f32.mrb[0].mxu0
    %v469 = vadd.f32 %v169, %v468
    %v470 = vpop.f32.mrb[0].mxu0
    %v471 = vadd.f32 %v165, %v470
    %v472 = vpop.f32.mrb[0].mxu0
    %v473 = vadd.f32 %v169, %v472
    %474 = vmatprep.mubr.bf16.mxu0 0
    %475 = vmatmul.mubr.bf16.gmra.mrb[0].mxu0 %v109
    %v476 = vpop.f32.mrb[0].mxu0
    %v477 = vadd.f32 %v165, %v476
    %v478 = vpop.f32.mrb[0].mxu0
    %v479 = vadd.f32 %v169, %v478
    %v480 = vpop.f32.mrb[0].mxu0
    %v481 = vadd.f32 %v165, %v480
    %v482 = vpop.f32.mrb[0].mxu0
    %v483 = vadd.f32 %v169, %v482
    %484 = vmatprep.mubr.bf16.mxu0 0
    %485 = vmatmul.mubr.bf16.gmra.mrb[0].mxu0 %v110
    %v486 = vpop.f32.mrb[0].mxu0
    %v487 = vadd.f32 %v165, %v486
    %v488 = vpop.f32.mrb[0].mxu0
    %v489 = vadd.f32 %v169, %v488
    %v490 = vpop.f32.mrb[0].mxu0
    %v491 = vadd.f32 %v165, %v490
    %v492 = vpop.f32.mrb[0].mxu0
    %v493 = vadd.f32 %v169, %v492
    %494 = vmatprep.mubr.bf16.mxu0 0
    %495 = vmatmul.mubr.bf16.gmra.mrb[0].mxu0 %v111
    %v496 = vpop.f32.mrb[0].mxu0
    %v497 = vadd.f32 %v165, %v496
    %v498 = vpop.f32.mrb[0].mxu0
    %v499 = vadd.f32 %v169, %v498
    %v500 = vpop.f32.mrb[0].mxu0
    %v501 = vadd.f32 %v165, %v500
    %v502 = vpop.f32.mrb[0].mxu0
    %v503 = vadd.f32 %v169, %v502
    %504 = vdwg.mxu0
    %505 = vmatprep.subr.bf16.mxu0 %v339
    %506 = vmatpush1.bf16.msra.mxu0 %v338
    %507 = vmatprep.subr.bf16.mxu0 %v345
    %508 = vmatpush1.bf16.msra.mxu0 %v344
    %509 = vmatprep.subr.bf16.mxu0 %v351
    %510 = vmatpush1.bf16.msra.mxu0 %v350
    %511 = vmatprep.subr.bf16.mxu0 %v357
    %512 = vmatpush1.bf16.msra.mxu0 %v356
    %513 = vmatprep.subr.bf16.mxu0 %v363
    %514 = vmatpush1.bf16.msra.mxu0 %v362
    %515 = vmatprep.subr.bf16.mxu0 %v369
    %516 = vmatpush1.bf16.msra.mxu0 %v368
    %517 = vmatprep.subr.bf16.mxu0 %v375
    %518 = vmatpush1.bf16.msra.mxu0 %v374
    %519 = vmatprep.subr.bf16.mxu0 %v381
    %520 = vmatpush1.bf16.msra.mxu0 %v380
    %521 = vmatprep.subr.bf16.mxu0 0
    %522 = vmatpush1.bf16.msra.mxu0 0
    %523 = vmatprep.subr.bf16.mxu0 0
    %524 = vmatpush1.bf16.msra.mxu0 0
    %525 = vmatprep.subr.bf16.mxu0 0
    %526 = vmatpush1.bf16.msra.mxu0 0
    %527 = vmatprep.subr.bf16.mxu0 0
    %528 = vmatpush1.bf16.msra.mxu0 0
    %529 = vmatprep.subr.bf16.mxu0 0
    %530 = vmatpush1.bf16.msra.mxu0 0
    %531 = vmatprep.subr.bf16.mxu0 0
    %532 = vmatpush1.bf16.msra.mxu0 0
    %533 = vmatprep.subr.bf16.mxu0 0
    %534 = vmatpush1.bf16.msra.mxu0 0
    %535 = vmatprep.subr.bf16.mxu0 0
    %536 = vmatpush1.bf16.msra.mxu0 0
    %537 = vmatprep.mubr.bf16.mxu0 0
    %538 = vmatmul.mubr.bf16.gmra.mrb[0].mxu0 %v108
    %v539 = vpop.f32.mrb[0].mxu0
    %v540 = vadd.f32 %v173, %v539
    %v541 = vpop.f32.mrb[0].mxu0
    %v542 = vadd.f32 %v177, %v541
    %v543 = vpop.f32.mrb[0].mxu0
    %v544 = vadd.f32 %v173, %v543
    %v545 = vpop.f32.mrb[0].mxu0
    %v546 = vadd.f32 %v177, %v545
    %547 = vmatprep.mubr.bf16.mxu0 0
    %548 = vmatmul.mubr.bf16.gmra.mrb[0].mxu0 %v109
    %v549 = vpop.f32.mrb[0].mxu0
    %v550 = vadd.f32 %v173, %v549
    %v551 = vpop.f32.mrb[0].mxu0
    %v552 = vadd.f32 %v177, %v551
    %v553 = vpop.f32.mrb[0].mxu0
    %v554 = vadd.f32 %v173, %v553
    %v555 = vpop.f32.mrb[0].mxu0
    %v556 = vadd.f32 %v177, %v555
    %557 = vmatprep.mubr.bf16.mxu0 0
    %558 = vmatmul.mubr.bf16.gmra.mrb[0].mxu0 %v110
    %v559 = vpop.f32.mrb[0].mxu0
    %v560 = vadd.f32 %v173, %v559
    %v561 = vpop.f32.mrb[0].mxu0
    %v562 = vadd.f32 %v177, %v561
    %v563 = vpop.f32.mrb[0].mxu0
    %v564 = vadd.f32 %v173, %v563
    %v565 = vpop.f32.mrb[0].mxu0
    %v566 = vadd.f32 %v177, %v565
    %567 = vmatprep.mubr.bf16.mxu0 0
    %568 = vmatmul.mubr.bf16.gmra.mrb[0].mxu0 %v111
    %v569 = vpop.f32.mrb[0].mxu0
    %v570 = vadd.f32 %v173, %v569
    %v571 = vpop.f32.mrb[0].mxu0
    %v572 = vadd.f32 %v177, %v571
    %v573 = vpop.f32.mrb[0].mxu0
    %v574 = vadd.f32 %v173, %v573
    %v575 = vpop.f32.mrb[0].mxu0
    %v576 = vadd.f32 %v177, %v575
    %577 = vdwg.mxu0
    %578 = vmatprep.subr.bf16.mxu0 %v341
    %579 = vmatpush1.bf16.msra.mxu0 %v340
    %580 = vmatprep.subr.bf16.mxu0 %v347
    %581 = vmatpush1.bf16.msra.mxu0 %v346
    %582 = vmatprep.subr.bf16.mxu0 %v353
    %583 = vmatpush1.bf16.msra.mxu0 %v352
    %584 = vmatprep.subr.bf16.mxu0 %v359
    %585 = vmatpush1.bf16.msra.mxu0 %v358
    %586 = vmatprep.subr.bf16.mxu0 %v365
    %587 = vmatpush1.bf16.msra.mxu0 %v364
    %588 = vmatprep.subr.bf16.mxu0 %v371
    %589 = vmatpush1.bf16.msra.mxu0 %v370
    %590 = vmatprep.subr.bf16.mxu0 %v377
    %591 = vmatpush1.bf16.msra.mxu0 %v376
    %592 = vmatprep.subr.bf16.mxu0 %v383
    %593 = vmatpush1.bf16.msra.mxu0 %v382
    %594 = vmatprep.subr.bf16.mxu0 0
    %595 = vmatpush1.bf16.msra.mxu0 0
    %596 = vmatprep.subr.bf16.mxu0 0
    %597 = vmatpush1.bf16.msra.mxu0 0
    %598 = vmatprep.subr.bf16.mxu0 0
    %599 = vmatpush1.bf16.msra.mxu0 0
    %600 = vmatprep.subr.bf16.mxu0 0
    %601 = vmatpush1.bf16.msra.mxu0 0
    %602 = vmatprep.subr.bf16.mxu0 0
    %603 = vmatpush1.bf16.msra.mxu0 0
    %604 = vmatprep.subr.bf16.mxu0 0
    %605 = vmatpush1.bf16.msra.mxu0 0
    %606 = vmatprep.subr.bf16.mxu0 0
    %607 = vmatpush1.bf16.msra.mxu0 0
    %608 = vmatprep.subr.bf16.mxu0 0
    %609 = vmatpush1.bf16.msra.mxu0 0
    %610 = vmatprep.mubr.bf16.mxu0 0
    %611 = vmatmul.mubr.bf16.gmra.mrb[0].mxu0 %v108
    %v612 = vpop.f32.mrb[0].mxu0
    %v613 = vadd.f32 %v181, %v612
    %v614 = vpop.f32.mrb[0].mxu0
    %v615 = vadd.f32 %v185, %v614
    %v616 = vpop.f32.mrb[0].mxu0
    %v617 = vadd.f32 %v181, %v616
    %v618 = vpop.f32.mrb[0].mxu0
    %v619 = vadd.f32 %v185, %v618
    %620 = vmatprep.mubr.bf16.mxu0 0
    %621 = vmatmul.mubr.bf16.gmra.mrb[0].mxu0 %v109
    %v622 = vpop.f32.mrb[0].mxu0
    %v623 = vadd.f32 %v181, %v622
    %v624 = vpop.f32.mrb[0].mxu0
    %v625 = vadd.f32 %v185, %v624
    %v626 = vpop.f32.mrb[0].mxu0
    %v627 = vadd.f32 %v181, %v626
    %v628 = vpop.f32.mrb[0].mxu0
    %v629 = vadd.f32 %v185, %v628
    %630 = vmatprep.mubr.bf16.mxu0 0
    %631 = vmatmul.mubr.bf16.gmra.mrb[0].mxu0 %v110
    %v632 = vpop.f32.mrb[0].mxu0
    %v633 = vadd.f32 %v181, %v632
    %v634 = vpop.f32.mrb[0].mxu0
    %v635 = vadd.f32 %v185, %v634
    %v636 = vpop.f32.mrb[0].mxu0
    %v637 = vadd.f32 %v181, %v636
    %v638 = vpop.f32.mrb[0].mxu0
    %v639 = vadd.f32 %v185, %v638
    %640 = vmatprep.mubr.bf16.mxu0 0
    %641 = vmatmul.mubr.bf16.gmra.mrb[0].mxu0 %v111
    %v642 = vpop.f32.mrb[0].mxu0
    %v643 = vadd.f32 %v181, %v642
    %v644 = vpop.f32.mrb[0].mxu0
    %v645 = vadd.f32 %v185, %v644
    %v646 = vpop.f32.mrb[0].mxu0
    %v647 = vadd.f32 %v181, %v646
    %v648 = vpop.f32.mrb[0].mxu0
    %v649 = vadd.f32 %v185, %v648
    %650 = vdwg.mxu0
    %651 = vst [vmem:[#allocation2] sm:$0xff] %v467
    %652 = vst [vmem:[#allocation2 + $0x8] sm:$0xff] %v469
    %653 = vst [vmem:[#allocation2 + $0x10] sm:$0xff] %v540
    %654 = vst [vmem:[#allocation2 + $0x18] sm:$0xff] %v542
    %655 = vst [vmem:[#allocation2 + $0x20] sm:$0xff] %v613
    %656 = vst [vmem:[#allocation2 + $0x28] sm:$0xff] %v615
    %657 = vst [vmem:[#allocation2 + $0x30] sm:$0xff] %v471
    %658 = vst [vmem:[#allocation2 + $0x38] sm:$0xff] %v473
    %659 = vst [vmem:[#allocation2 + $0x40] sm:$0xff] %v544
    %660 = vst [vmem:[#allocation2 + $0x48] sm:$0xff] %v546
    %661 = vst [vmem:[#allocation2 + $0x50] sm:$0xff] %v617
    %662 = vst [vmem:[#allocation2 + $0x58] sm:$0xff] %v619
    %663 = vst [vmem:[#allocation2 + $0x60] sm:$0xff] %v477
    %664 = vst [vmem:[#allocation2 + $0x68] sm:$0xff] %v479
    %665 = vst [vmem:[#allocation2 + $0x70] sm:$0xff] %v550
    %666 = vst [vmem:[#allocation2 + $0x78] sm:$0xff] %v552
    %667 = vst [vmem:[#allocation2 + $0x80] sm:$0xff] %v623
    %668 = vst [vmem:[#allocation2 + $0x88] sm:$0xff] %v625
    %669 = vst [vmem:[#allocation2 + $0x90] sm:$0xff] %v481
    %670 = vst [vmem:[#allocation2 + $0x98] sm:$0xff] %v483
    %671 = vst [vmem:[#allocation2 + $0xa0] sm:$0xff] %v554
    %672 = vst [vmem:[#allocation2 + $0xa8] sm:$0xff] %v556
    %673 = vst [vmem:[#allocation2 + $0xb0] sm:$0xff] %v627
    %674 = vst [vmem:[#allocation2 + $0xb8] sm:$0xff] %v629
    %675 = vst [vmem:[#allocation2 + $0xc0] sm:$0xff] %v487
    %676 = vst [vmem:[#allocation2 + $0xc8] sm:$0xff] %v489
    %677 = vst [vmem:[#allocation2 + $0xd0] sm:$0xff] %v560
    %678 = vst [vmem:[#allocation2 + $0xd8] sm:$0xff] %v562
    %679 = vst [vmem:[#allocation2 + $0xe0] sm:$0xff] %v633
    %680 = vst [vmem:[#allocation2 + $0xe8] sm:$0xff] %v635
    %681 = vst [vmem:[#allocation2 + $0xf0] sm:$0xff] %v491
    %682 = vst [vmem:[#allocation2 + $0xf8] sm:$0xff] %v493
    %683 = vst [vmem:[#allocation2 + $0x100] sm:$0xff] %v564
    %684 = vst [vmem:[#allocation2 + $0x108] sm:$0xff] %v566
    %685 = vst [vmem:[#allocation2 + $0x110] sm:$0xff] %v637
    %686 = vst [vmem:[#allocation2 + $0x118] sm:$0xff] %v639
    %687 = vst [vmem:[#allocation2 + $0x120] sm:$0xff] %v497
    %688 = vst [vmem:[#allocation2 + $0x128] sm:$0xff] %v499
    %689 = vst [vmem:[#allocation2 + $0x130] sm:$0xff] %v570
    %690 = vst [vmem:[#allocation2 + $0x138] sm:$0xff] %v572
    %691 = vst [vmem:[#allocation2 + $0x140] sm:$0xff] %v643
    %692 = vst [vmem:[#allocation2 + $0x148] sm:$0xff] %v645
    %693 = vst [vmem:[#allocation2 + $0x150] sm:$0xff] %v501
    %694 = vst [vmem:[#allocation2 + $0x158] sm:$0xff] %v503
    %695 = vst [vmem:[#allocation2 + $0x160] sm:$0xff] %v574
    %696 = vst [vmem:[#allocation2 + $0x168] sm:$0xff] %v576
    %697 = vst [vmem:[#allocation2 + $0x170] sm:$0xff] %v647
    %698 = vst [vmem:[#allocation2 + $0x178] sm:$0xff] %v649
    %v699 = vld [vmem:[#allocation8] sm:$0xff]
    %v700 = vld [vmem:[#allocation8 + $0x8] sm:$0xff]
    %v701 = vld [vmem:[#allocation8 + $0x10] sm:$0xff]
    %v702 = vld [vmem:[#allocation8 + $0x18] sm:$0xff]
    %v703 = vld [vmem:[#allocation8 + $0x20] sm:$0xff]
    %v704 = vld [vmem:[#allocation8 + $0x28] sm:$0xff]
    %v705 = vld [vmem:[#allocation8 + $0x30] sm:$0xff]
    %v706 = vld [vmem:[#allocation8 + $0x38] sm:$0xff]
    %v707 = vld [vmem:[#allocation8 + $0x40] sm:$0xff]
    %v708 = vld [vmem:[#allocation8 + $0x48] sm:$0xff]
    %v709 = vld [vmem:[#allocation8 + $0x50] sm:$0xff]
    %v710 = vld [vmem:[#allocation8 + $0x58] sm:$0xff]
    %v711 = vld [vmem:[#allocation8 + $0x60] sm:$0xff]
    %v712 = vld [vmem:[#allocation8 + $0x68] sm:$0xff]
    %v713 = vld [vmem:[#allocation8 + $0x70] sm:$0xff]
    %v714 = vld [vmem:[#allocation8 + $0x78] sm:$0xff]
    %v715 = vld [vmem:[#allocation8 + $0x80] sm:$0xff]
    %v716 = vld [vmem:[#allocation8 + $0x88] sm:$0xff]
    %v717 = vld [vmem:[#allocation8 + $0x90] sm:$0xff]
    %v718 = vld [vmem:[#allocation8 + $0x98] sm:$0xff]
    %v719 = vld [vmem:[#allocation8 + $0xa0] sm:$0xff]
    %v720 = vld [vmem:[#allocation8 + $0xa8] sm:$0xff]
    %v721 = vld [vmem:[#allocation8 + $0xb0] sm:$0xff]
    %v722 = vld [vmem:[#allocation8 + $0xb8] sm:$0xff]
    %v723 = vld [vmem:[#allocation8 + $0xc0] sm:$0xff]
    %v724 = vld [vmem:[#allocation8 + $0xc8] sm:$0xff]
    %v725 = vld [vmem:[#allocation8 + $0xd0] sm:$0xff]
    %v726 = vld [vmem:[#allocation8 + $0xd8] sm:$0xff]
    %v727 = vld [vmem:[#allocation8 + $0xe0] sm:$0xff]
    %v728 = vld [vmem:[#allocation8 + $0xe8] sm:$0xff]
    %v729 = vld [vmem:[#allocation8 + $0xf0] sm:$0xff]
    %v730 = vld [vmem:[#allocation8 + $0xf8] sm:$0xff]
    %v731 = vld [vmem:[#allocation8 + $0x100] sm:$0xff]
    %v732 = vld [vmem:[#allocation8 + $0x108] sm:$0xff]
    %v733 = vld [vmem:[#allocation8 + $0x110] sm:$0xff]
    %v734 = vld [vmem:[#allocation8 + $0x118] sm:$0xff]
    %v735 = vld [vmem:[#allocation8 + $0x120] sm:$0xff]
    %v736 = vld [vmem:[#allocation8 + $0x128] sm:$0xff]
    %v737 = vld [vmem:[#allocation8 + $0x130] sm:$0xff]
    %v738 = vld [vmem:[#allocation8 + $0x138] sm:$0xff]
    %v739 = vld [vmem:[#allocation8 + $0x140] sm:$0xff]
    %v740 = vld [vmem:[#allocation8 + $0x148] sm:$0xff]
    %v741 = vld [vmem:[#allocation8 + $0x150] sm:$0xff]
    %v742 = vld [vmem:[#allocation8 + $0x158] sm:$0xff]
    %v743 = vld [vmem:[#allocation8 + $0x160] sm:$0xff]
    %v744 = vld [vmem:[#allocation8 + $0x168] sm:$0xff]
    %v745 = vld [vmem:[#allocation8 + $0x170] sm:$0xff]
    %v746 = vld [vmem:[#allocation8 + $0x178] sm:$0xff]
    %v747 = vld [vmem:[#allocation8 + $0x180] sm:$0xff]
    %v748 = vld [vmem:[#allocation8 + $0x188] sm:$0xff]
    %v749 = vld [vmem:[#allocation8 + $0x190] sm:$0xff]
    %v750 = vld [vmem:[#allocation8 + $0x198] sm:$0xff]
    %v751 = vld [vmem:[#allocation8 + $0x1a0] sm:$0xff]
    %v752 = vld [vmem:[#allocation8 + $0x1a8] sm:$0xff]
    %v753 = vld [vmem:[#allocation8 + $0x1b0] sm:$0xff]
    %v754 = vld [vmem:[#allocation8 + $0x1b8] sm:$0xff]
    %v755 = vld [vmem:[#allocation8 + $0x1c0] sm:$0xff]
    %v756 = vld [vmem:[#allocation8 + $0x1c8] sm:$0xff]
    %v757 = vld [vmem:[#allocation8 + $0x1d0] sm:$0xff]
    %v758 = vld [vmem:[#allocation8 + $0x1d8] sm:$0xff]
    %v759 = vld [vmem:[#allocation8 + $0x1e0] sm:$0xff]
    %v760 = vld [vmem:[#allocation8 + $0x1e8] sm:$0xff]
    %v761 = vld [vmem:[#allocation8 + $0x1f0] sm:$0xff]
    %v762 = vld [vmem:[#allocation8 + $0x1f8] sm:$0xff]
    %v763 = vld [vmem:[#allocation8 + $0x200] sm:$0xff]
    %v764 = vld [vmem:[#allocation8 + $0x208] sm:$0xff]
    %v765 = vld [vmem:[#allocation8 + $0x210] sm:$0xff]
    %v766 = vld [vmem:[#allocation8 + $0x218] sm:$0xff]
    %v767 = vld [vmem:[#allocation8 + $0x220] sm:$0xff]
    %v768 = vld [vmem:[#allocation8 + $0x228] sm:$0xff]
    %v769 = vld [vmem:[#allocation8 + $0x230] sm:$0xff]
    %v770 = vld [vmem:[#allocation8 + $0x238] sm:$0xff]
    %v771 = vld [vmem:[#allocation8 + $0x240] sm:$0xff]
    %v772 = vld [vmem:[#allocation8 + $0x248] sm:$0xff]
    %v773 = vld [vmem:[#allocation8 + $0x250] sm:$0xff]
    %v774 = vld [vmem:[#allocation8 + $0x258] sm:$0xff]
    %v775 = vld [vmem:[#allocation8 + $0x260] sm:$0xff]
    %v776 = vld [vmem:[#allocation8 + $0x268] sm:$0xff]
    %v777 = vld [vmem:[#allocation8 + $0x270] sm:$0xff]
    %v778 = vld [vmem:[#allocation8 + $0x278] sm:$0xff]
    %v779 = vld [vmem:[#allocation8 + $0x280] sm:$0xff]
    %v780 = vld [vmem:[#allocation8 + $0x288] sm:$0xff]
    %v781 = vld [vmem:[#allocation8 + $0x290] sm:$0xff]
    %v782 = vld [vmem:[#allocation8 + $0x298] sm:$0xff]
    %v783 = vld [vmem:[#allocation8 + $0x2a0] sm:$0xff]
    %v784 = vld [vmem:[#allocation8 + $0x2a8] sm:$0xff]
    %v785 = vld [vmem:[#allocation8 + $0x2b0] sm:$0xff]
    %v786 = vld [vmem:[#allocation8 + $0x2b8] sm:$0xff]
    %v787 = vld [vmem:[#allocation8 + $0x2c0] sm:$0xff]
    %v788 = vld [vmem:[#allocation8 + $0x2c8] sm:$0xff]
    %v789 = vld [vmem:[#allocation8 + $0x2d0] sm:$0xff]
    %v790 = vld [vmem:[#allocation8 + $0x2d8] sm:$0xff]
    %v791 = vld [vmem:[#allocation8 + $0x2e0] sm:$0xff]
    %v792 = vld [vmem:[#allocation8 + $0x2e8] sm:$0xff]
    %v793 = vld [vmem:[#allocation8 + $0x2f0] sm:$0xff]
    %v794 = vld [vmem:[#allocation8 + $0x2f8] sm:$0xff]
    %v795 = vld [vmem:[#allocation8 + $0x300] sm:$0xff]
    %v796 = vld [vmem:[#allocation8 + $0x308] sm:$0xff]
    %v797 = vld [vmem:[#allocation8 + $0x310] sm:$0xff]
    %v798 = vld [vmem:[#allocation8 + $0x318] sm:$0xff]
    %v799 = vld [vmem:[#allocation8 + $0x320] sm:$0xff]
    %v800 = vld [vmem:[#allocation8 + $0x328] sm:$0xff]
    %v801 = vld [vmem:[#allocation8 + $0x330] sm:$0xff]
    %v802 = vld [vmem:[#allocation8 + $0x338] sm:$0xff]
    %v803 = vld [vmem:[#allocation8 + $0x340] sm:$0xff]
    %v804 = vld [vmem:[#allocation8 + $0x348] sm:$0xff]
    %v805 = vld [vmem:[#allocation8 + $0x350] sm:$0xff]
    %v806 = vld [vmem:[#allocation8 + $0x358] sm:$0xff]
    %v807 = vld [vmem:[#allocation8 + $0x360] sm:$0xff]
    %v808 = vld [vmem:[#allocation8 + $0x368] sm:$0xff]
    %v809 = vld [vmem:[#allocation8 + $0x370] sm:$0xff]
    %v810 = vld [vmem:[#allocation8 + $0x378] sm:$0xff]
    %v811 = vld [vmem:[#allocation8 + $0x380] sm:$0xff]
    %v812 = vld [vmem:[#allocation8 + $0x388] sm:$0xff]
    %v813 = vld [vmem:[#allocation8 + $0x390] sm:$0xff]
    %v814 = vld [vmem:[#allocation8 + $0x398] sm:$0xff]
    %v815 = vld [vmem:[#allocation8 + $0x3a0] sm:$0xff]
    %v816 = vld [vmem:[#allocation8 + $0x3a8] sm:$0xff]
    %v817 = vld [vmem:[#allocation8 + $0x3b0] sm:$0xff]
    %v818 = vld [vmem:[#allocation8 + $0x3b8] sm:$0xff]
    %v819 = vld [vmem:[#allocation8 + $0x3c0] sm:$0xff]
    %v820 = vld [vmem:[#allocation8 + $0x3c8] sm:$0xff]
    %v821 = vld [vmem:[#allocation8 + $0x3d0] sm:$0xff]
    %v822 = vld [vmem:[#allocation8 + $0x3d8] sm:$0xff]
    %v823 = vld [vmem:[#allocation8 + $0x3e0] sm:$0xff]
    %v824 = vld [vmem:[#allocation8 + $0x3e8] sm:$0xff]
    %v825 = vld [vmem:[#allocation8 + $0x3f0] sm:$0xff]
    %v826 = vld [vmem:[#allocation8 + $0x3f8] sm:$0xff]
    %v827 = vld [vmem:[#allocation8 + $0x400] sm:$0xff]
    %v828 = vld [vmem:[#allocation8 + $0x408] sm:$0xff]
    %v829 = vld [vmem:[#allocation8 + $0x410] sm:$0xff]
    %v830 = vld [vmem:[#allocation8 + $0x418] sm:$0xff]
    %v831 = vld [vmem:[#allocation8 + $0x420] sm:$0xff]
    %v832 = vld [vmem:[#allocation8 + $0x428] sm:$0xff]
    %v833 = vld [vmem:[#allocation8 + $0x430] sm:$0xff]
    %v834 = vld [vmem:[#allocation8 + $0x438] sm:$0xff]
    %v835 = vld [vmem:[#allocation8 + $0x440] sm:$0xff]
    %v836 = vld [vmem:[#allocation8 + $0x448] sm:$0xff]
    %v837 = vld [vmem:[#allocation8 + $0x450] sm:$0xff]
    %v838 = vld [vmem:[#allocation8 + $0x458] sm:$0xff]
    %v839 = vld [vmem:[#allocation8 + $0x460] sm:$0xff]
    %v840 = vld [vmem:[#allocation8 + $0x468] sm:$0xff]
    %v841 = vld [vmem:[#allocation8 + $0x470] sm:$0xff]
    %v842 = vld [vmem:[#allocation8 + $0x478] sm:$0xff]
    %v843 = vld [vmem:[#allocation8 + $0x480] sm:$0xff]
    %v844 = vld [vmem:[#allocation8 + $0x488] sm:$0xff]
    %v845 = vld [vmem:[#allocation8 + $0x490] sm:$0xff]
    %v846 = vld [vmem:[#allocation8 + $0x498] sm:$0xff]
    %v847 = vld [vmem:[#allocation8 + $0x4a0] sm:$0xff]
    %v848 = vld [vmem:[#allocation8 + $0x4a8] sm:$0xff]
    %v849 = vld [vmem:[#allocation8 + $0x4b0] sm:$0xff]
    %v850 = vld [vmem:[#allocation8 + $0x4b8] sm:$0xff]
    %v851 = vld [vmem:[#allocation8 + $0x4c0] sm:$0xff]
    %v852 = vld [vmem:[#allocation8 + $0x4c8] sm:$0xff]
    %v853 = vld [vmem:[#allocation8 + $0x4d0] sm:$0xff]
    %v854 = vld [vmem:[#allocation8 + $0x4d8] sm:$0xff]
    %v855 = vld [vmem:[#allocation8 + $0x4e0] sm:$0xff]
    %v856 = vld [vmem:[#allocation8 + $0x4e8] sm:$0xff]
    %v857 = vld [vmem:[#allocation8 + $0x4f0] sm:$0xff]
    %v858 = vld [vmem:[#allocation8 + $0x4f8] sm:$0xff]
    %v859 = vld [vmem:[#allocation8 + $0x500] sm:$0xff]
    %v860 = vld [vmem:[#allocation8 + $0x508] sm:$0xff]
    %v861 = vld [vmem:[#allocation8 + $0x510] sm:$0xff]
    %v862 = vld [vmem:[#allocation8 + $0x518] sm:$0xff]
    %v863 = vld [vmem:[#allocation8 + $0x520] sm:$0xff]
    %v864 = vld [vmem:[#allocation8 + $0x528] sm:$0xff]
    %v865 = vld [vmem:[#allocation8 + $0x530] sm:$0xff]
    %v866 = vld [vmem:[#allocation8 + $0x538] sm:$0xff]
    %v867 = vld [vmem:[#allocation8 + $0x540] sm:$0xff]
    %v868 = vld [vmem:[#allocation8 + $0x548] sm:$0xff]
    %v869 = vld [vmem:[#allocation8 + $0x550] sm:$0xff]
    %v870 = vld [vmem:[#allocation8 + $0x558] sm:$0xff]
    %v871 = vld [vmem:[#allocation8 + $0x560] sm:$0xff]
    %v872 = vld [vmem:[#allocation8 + $0x568] sm:$0xff]
    %v873 = vld [vmem:[#allocation8 + $0x570] sm:$0xff]
    %v874 = vld [vmem:[#allocation8 + $0x578] sm:$0xff]
    %v875 = vld [vmem:[#allocation8 + $0x580] sm:$0xff]
    %v876 = vld [vmem:[#allocation8 + $0x588] sm:$0xff]
    %v877 = vld [vmem:[#allocation8 + $0x590] sm:$0xff]
    %v878 = vld [vmem:[#allocation8 + $0x598] sm:$0xff]
    %v879 = vld [vmem:[#allocation8 + $0x5a0] sm:$0xff]
    %v880 = vld [vmem:[#allocation8 + $0x5a8] sm:$0xff]
    %v881 = vld [vmem:[#allocation8 + $0x5b0] sm:$0xff]
    %v882 = vld [vmem:[#allocation8 + $0x5b8] sm:$0xff]
    %v883 = vld [vmem:[#allocation8 + $0x5c0] sm:$0xff]
    %v884 = vld [vmem:[#allocation8 + $0x5c8] sm:$0xff]
    %v885 = vld [vmem:[#allocation8 + $0x5d0] sm:$0xff]
    %v886 = vld [vmem:[#allocation8 + $0x5d8] sm:$0xff]
    %v887 = vld [vmem:[#allocation8 + $0x5e0] sm:$0xff]
    %v888 = vld [vmem:[#allocation8 + $0x5e8] sm:$0xff]
    %v889 = vld [vmem:[#allocation8 + $0x5f0] sm:$0xff]
    %v890 = vld [vmem:[#allocation8 + $0x5f8] sm:$0xff]
    %v891 = vld [vmem:[%s5] sm:$0x3f]
    %v893 = vlaneseq
    %v894 = vshrl.u32 %v893, 7
    %v895 = vsub.s32 0, %v894
    %v896 = vrot.slane %v891, %v895
    %v897 = vlaneseq
    %v898 = vshrl.u32 %v897, 7
    %v899 = vsub.s32 1, %v898
    %v900 = vrot.slane %v891, %v899
    %v901 = vlaneseq
    %v902 = vshrl.u32 %v901, 7
    %v903 = vsub.s32 2, %v902
    %v904 = vrot.slane %v891, %v903
    %v905 = vlaneseq
    %v906 = vshrl.u32 %v905, 7
    %v907 = vsub.s32 3, %v906
    %v908 = vrot.slane %v891, %v907
    %v909 = vlaneseq
    %v910 = vshrl.u32 %v909, 7
    %v911 = vsub.s32 4, %v910
    %v912 = vrot.slane %v891, %v911
    %v913 = vlaneseq
    %v914 = vshrl.u32 %v913, 7
    %v915 = vsub.s32 5, %v914
    %v916 = vrot.slane %v891, %v915
    %923 = vmatprep.subr.mxu0 %v700
    %924 = vmatpush1.msra.mxu0 %v699
    %925 = vmatprep.subr.mxu0 %v706
    %926 = vmatpush1.msra.mxu0 %v705
    %927 = vmatprep.subr.mxu0 %v712
    %928 = vmatpush1.msra.mxu0 %v711
    %929 = vmatprep.subr.mxu0 %v718
    %930 = vmatpush1.msra.mxu0 %v717
    %931 = vmatprep.subr.mxu0 %v724
    %932 = vmatpush1.msra.mxu0 %v723
    %933 = vmatprep.subr.mxu0 %v730
    %934 = vmatpush1.msra.mxu0 %v729
    %935 = vmatprep.subr.mxu0 %v736
    %936 = vmatpush1.msra.mxu0 %v735
    %937 = vmatprep.subr.mxu0 %v742
    %938 = vmatpush1.msra.mxu0 %v741
    %939 = vmatprep.subr.mxu0 %v748
    %940 = vmatpush1.msra.mxu0 %v747
    %941 = vmatprep.subr.mxu0 %v754
    %942 = vmatpush1.msra.mxu0 %v753
    %943 = vmatprep.subr.mxu0 %v760
    %944 = vmatpush1.msra.mxu0 %v759
    %945 = vmatprep.subr.mxu0 %v766
    %946 = vmatpush1.msra.mxu0 %v765
    %947 = vmatprep.subr.mxu0 %v772
    %948 = vmatpush1.msra.mxu0 %v771
    %949 = vmatprep.subr.mxu0 %v778
    %950 = vmatpush1.msra.mxu0 %v777
    %951 = vmatprep.subr.mxu0 %v784
    %952 = vmatpush1.msra.mxu0 %v783
    %953 = vmatprep.subr.mxu0 %v790
    %954 = vmatpush1.msra.mxu0 %v789
    %955 = vmatprep.subr.mxu0 %v796
    %956 = vmatpush1.msra.mxu0 %v795
    %957 = vmatprep.subr.mxu0 %v802
    %958 = vmatpush1.msra.mxu0 %v801
    %959 = vmatprep.subr.mxu0 %v808
    %960 = vmatpush1.msra.mxu0 %v807
    %961 = vmatprep.subr.mxu0 %v814
    %962 = vmatpush1.msra.mxu0 %v813
    %963 = vmatprep.subr.mxu0 %v820
    %964 = vmatpush1.msra.mxu0 %v819
    %965 = vmatprep.subr.mxu0 %v826
    %966 = vmatpush1.msra.mxu0 %v825
    %967 = vmatprep.subr.mxu0 %v832
    %968 = vmatpush1.msra.mxu0 %v831
    %969 = vmatprep.subr.mxu0 %v838
    %970 = vmatpush1.msra.mxu0 %v837
    %971 = vmatprep.subr.mxu0 %v844
    %972 = vmatpush1.msra.mxu0 %v843
    %973 = vmatprep.subr.mxu0 %v850
    %974 = vmatpush1.msra.mxu0 %v849
    %975 = vmatprep.subr.mxu0 %v856
    %976 = vmatpush1.msra.mxu0 %v855
    %977 = vmatprep.subr.mxu0 %v862
    %978 = vmatpush1.msra.mxu0 %v861
    %979 = vmatprep.subr.mxu0 %v868
    %980 = vmatpush1.msra.mxu0 %v867
    %981 = vmatprep.subr.mxu0 %v874
    %982 = vmatpush1.msra.mxu0 %v873
    %983 = vmatprep.subr.mxu0 %v880
    %984 = vmatpush1.msra.mxu0 %v879
    %985 = vmatprep.subr.mxu0 %v886
    %986 = vmatpush1.msra.mxu0 %v885
    %987 = vmatprep.mubr.f32.mxu0 0.0
    %988 = vmatmul.mubr.f32.gmra.mrb[0].mxu0 0.0
    %v989 = vpop.f32.mrb[0].mxu0
    %v990 = vadd.f32 %v896, %v989
    %v991 = vpop.f32.mrb[0].mxu0
    %v992 = vadd.f32 %v900, %v991
    %993 = vdwg.mxu0
    %994 = vmatprep.subr.mxu0 %v702
    %995 = vmatpush1.msra.mxu0 %v701
    %996 = vmatprep.subr.mxu0 %v708
    %997 = vmatpush1.msra.mxu0 %v707
    %998 = vmatprep.subr.mxu0 %v714
    %999 = vmatpush1.msra.mxu0 %v713
    %1000 = vmatprep.subr.mxu0 %v720
    %1001 = vmatpush1.msra.mxu0 %v719
    %1002 = vmatprep.subr.mxu0 %v726
    %1003 = vmatpush1.msra.mxu0 %v725
    %1004 = vmatprep.subr.mxu0 %v732
    %1005 = vmatpush1.msra.mxu0 %v731
    %1006 = vmatprep.subr.mxu0 %v738
    %1007 = vmatpush1.msra.mxu0 %v737
    %1008 = vmatprep.subr.mxu0 %v744
    %1009 = vmatpush1.msra.mxu0 %v743
    %1010 = vmatprep.subr.mxu0 %v750
    %1011 = vmatpush1.msra.mxu0 %v749
    %1012 = vmatprep.subr.mxu0 %v756
    %1013 = vmatpush1.msra.mxu0 %v755
    %1014 = vmatprep.subr.mxu0 %v762
    %1015 = vmatpush1.msra.mxu0 %v761
    %1016 = vmatprep.subr.mxu0 %v768
    %1017 = vmatpush1.msra.mxu0 %v767
    %1018 = vmatprep.subr.mxu0 %v774
    %1019 = vmatpush1.msra.mxu0 %v773
    %1020 = vmatprep.subr.mxu0 %v780
    %1021 = vmatpush1.msra.mxu0 %v779
    %1022 = vmatprep.subr.mxu0 %v786
    %1023 = vmatpush1.msra.mxu0 %v785
    %1024 = vmatprep.subr.mxu0 %v792
    %1025 = vmatpush1.msra.mxu0 %v791
    %1026 = vmatprep.subr.mxu0 %v798
    %1027 = vmatpush1.msra.mxu0 %v797
    %1028 = vmatprep.subr.mxu0 %v804
    %1029 = vmatpush1.msra.mxu0 %v803
    %1030 = vmatprep.subr.mxu0 %v810
    %1031 = vmatpush1.msra.mxu0 %v809
    %1032 = vmatprep.subr.mxu0 %v816
    %1033 = vmatpush1.msra.mxu0 %v815
    %1034 = vmatprep.subr.mxu0 %v822
    %1035 = vmatpush1.msra.mxu0 %v821
    %1036 = vmatprep.subr.mxu0 %v828
    %1037 = vmatpush1.msra.mxu0 %v827
    %1038 = vmatprep.subr.mxu0 %v834
    %1039 = vmatpush1.msra.mxu0 %v833
    %1040 = vmatprep.subr.mxu0 %v840
    %1041 = vmatpush1.msra.mxu0 %v839
    %1042 = vmatprep.subr.mxu0 %v846
    %1043 = vmatpush1.msra.mxu0 %v845
    %1044 = vmatprep.subr.mxu0 %v852
    %1045 = vmatpush1.msra.mxu0 %v851
    %1046 = vmatprep.subr.mxu0 %v858
    %1047 = vmatpush1.msra.mxu0 %v857
    %1048 = vmatprep.subr.mxu0 %v864
    %1049 = vmatpush1.msra.mxu0 %v863
    %1050 = vmatprep.subr.mxu0 %v870
    %1051 = vmatpush1.msra.mxu0 %v869
    %1052 = vmatprep.subr.mxu0 %v876
    %1053 = vmatpush1.msra.mxu0 %v875
    %1054 = vmatprep.subr.mxu0 %v882
    %1055 = vmatpush1.msra.mxu0 %v881
    %1056 = vmatprep.subr.mxu0 %v888
    %1057 = vmatpush1.msra.mxu0 %v887
    %1058 = vmatprep.mubr.f32.mxu0 0.0
    %1059 = vmatmul.mubr.f32.gmra.mrb[0].mxu0 0.0
    %v1060 = vpop.f32.mrb[0].mxu0
    %v1061 = vadd.f32 %v904, %v1060
    %v1062 = vpop.f32.mrb[0].mxu0
    %v1063 = vadd.f32 %v908, %v1062
    %1064 = vdwg.mxu0
    %1065 = vmatprep.subr.mxu0 %v704
    %1066 = vmatpush1.msra.mxu0 %v703
    %1067 = vmatprep.subr.mxu0 %v710
    %1068 = vmatpush1.msra.mxu0 %v709
    %1069 = vmatprep.subr.mxu0 %v716
    %1070 = vmatpush1.msra.mxu0 %v715
    %1071 = vmatprep.subr.mxu0 %v722
    %1072 = vmatpush1.msra.mxu0 %v721
    %1073 = vmatprep.subr.mxu0 %v728
    %1074 = vmatpush1.msra.mxu0 %v727
    %1075 = vmatprep.subr.mxu0 %v734
    %1076 = vmatpush1.msra.mxu0 %v733
    %1077 = vmatprep.subr.mxu0 %v740
    %1078 = vmatpush1.msra.mxu0 %v739
    %1079 = vmatprep.subr.mxu0 %v746
    %1080 = vmatpush1.msra.mxu0 %v745
    %1081 = vmatprep.subr.mxu0 %v752
    %1082 = vmatpush1.msra.mxu0 %v751
    %1083 = vmatprep.subr.mxu0 %v758
    %1084 = vmatpush1.msra.mxu0 %v757
    %1085 = vmatprep.subr.mxu0 %v764
    %1086 = vmatpush1.msra.mxu0 %v763
    %1087 = vmatprep.subr.mxu0 %v770
    %1088 = vmatpush1.msra.mxu0 %v769
    %1089 = vmatprep.subr.mxu0 %v776
    %1090 = vmatpush1.msra.mxu0 %v775
    %1091 = vmatprep.subr.mxu0 %v782
    %1092 = vmatpush1.msra.mxu0 %v781
    %1093 = vmatprep.subr.mxu0 %v788
    %1094 = vmatpush1.msra.mxu0 %v787
    %1095 = vmatprep.subr.mxu0 %v794
    %1096 = vmatpush1.msra.mxu0 %v793
    %1097 = vmatprep.subr.mxu0 %v800
    %1098 = vmatpush1.msra.mxu0 %v799
    %1099 = vmatprep.subr.mxu0 %v806
    %1100 = vmatpush1.msra.mxu0 %v805
    %1101 = vmatprep.subr.mxu0 %v812
    %1102 = vmatpush1.msra.mxu0 %v811
    %1103 = vmatprep.subr.mxu0 %v818
    %1104 = vmatpush1.msra.mxu0 %v817
    %1105 = vmatprep.subr.mxu0 %v824
    %1106 = vmatpush1.msra.mxu0 %v823
    %1107 = vmatprep.subr.mxu0 %v830
    %1108 = vmatpush1.msra.mxu0 %v829
    %1109 = vmatprep.subr.mxu0 %v836
    %1110 = vmatpush1.msra.mxu0 %v835
    %1111 = vmatprep.subr.mxu0 %v842
    %1112 = vmatpush1.msra.mxu0 %v841
    %1113 = vmatprep.subr.mxu0 %v848
    %1114 = vmatpush1.msra.mxu0 %v847
    %1115 = vmatprep.subr.mxu0 %v854
    %1116 = vmatpush1.msra.mxu0 %v853
    %1117 = vmatprep.subr.mxu0 %v860
    %1118 = vmatpush1.msra.mxu0 %v859
    %1119 = vmatprep.subr.mxu0 %v866
    %1120 = vmatpush1.msra.mxu0 %v865
    %1121 = vmatprep.subr.mxu0 %v872
    %1122 = vmatpush1.msra.mxu0 %v871
    %1123 = vmatprep.subr.mxu0 %v878
    %1124 = vmatpush1.msra.mxu0 %v877
    %1125 = vmatprep.subr.mxu0 %v884
    %1126 = vmatpush1.msra.mxu0 %v883
    %1127 = vmatprep.subr.mxu0 %v890
    %1128 = vmatpush1.msra.mxu0 %v889
    %1129 = vmatprep.mubr.f32.mxu0 0.0
    %1130 = vmatmul.mubr.f32.gmra.mrb[0].mxu0 0.0
    %v1131 = vpop.f32.mrb[0].mxu0
    %v1132 = vadd.f32 %v912, %v1131
    %v1133 = vpop.f32.mrb[0].mxu0
    %v1134 = vadd.f32 %v916, %v1133
    %1135 = vdwg.mxu0
    %v1136 = vld [vmem:[#allocation2] sm:$0xff]
    %v1137 = vld [vmem:[#allocation2 + $0x8] sm:$0xff]
    %v1138 = vld [vmem:[#allocation2 + $0x10] sm:$0xff]
    %s1139 = scalar_lea.vmem [#allocation2], 336
    %v1140 = vld [vmem:[%s1139 + $0x18] sm:$0xff]
    %v1141 = vld [vmem:[%s1139 + $0x20] sm:$0xff]
    %v1142 = vld [vmem:[%s1139 + $0x28] sm:$0xff]
    %v1143 = vadd.f32 %v1136, %v990
    %v1144 = vadd.f32 %v1137, %v992
    %v1145 = vxor.u32 %v1143, 2147483648
    %v1146 = vxor.u32 %v1144, 2147483648
    %v1147 = vmul.f32 %v1145, 1.442695
    %v1148 = vpow.pop %v1147
    %v1149 = vmul.f32 %v1146, 1.442695
    %v1150 = vpow.pop %v1149
    %v1151 = vadd.f32 %v1148, 1.0
    %v1152 = vadd.f32 %v1150, 1.0
    %v1153 = vrcp.pop %v1151
    %v1154 = vmul.f32 1.0, %v1153
    %v1155 = vrcp.pop %v1152
    %v1156 = vmul.f32 1.0, %v1155
    %v1157 = vmul.f32 %v1154, %v1061
    %v1158 = vadd.f32 %v1138, %v1157
    %v1159 = vtanh.pop %v1158
    %v1160 = vsub.f32 1.0, %v1156
    %v1161 = vmul.f32 %v1160, %v1159
    %v1162 = vmul.f32 %v1156, 0.0
    %v1163 = vadd.f32 %v1161, %v1162
    %v1164 = vadd.f32 %v1140, %v1063
    %v1165 = vadd.f32 %v1141, %v1132
    %v1166 = vxor.u32 %v1164, 2147483648
    %v1167 = vxor.u32 %v1165, 2147483648
    %v1168 = vmul.f32 %v1166, 1.442695
    %v1169 = vpow.pop %v1168
    %v1170 = vmul.f32 %v1167, 1.442695
    %v1171 = vpow.pop %v1170
    %v1172 = vadd.f32 %v1169, 1.0
    %v1173 = vadd.f32 %v1171, 1.0
    %v1174 = vrcp.pop %v1172
    %v1175 = vmul.f32 1.0, %v1174
    %v1176 = vrcp.pop %v1173
    %v1177 = vmul.f32 1.0, %v1176
    %v1178 = vmul.f32 %v1175, %v1134
    %v1179 = vadd.f32 %v1142, %v1178
    %v1180 = vtanh.pop %v1179
    %v1181 = vsub.f32 1.0, %v1177
    %v1182 = vmul.f32 %v1181, %v1180
    %v1183 = vmul.f32 %v1177, 0.0
    %v1184 = vadd.f32 %v1182, %v1183
    %1185 = vst [vmem:[#allocation3] sm:$0xff] %v1163
    %s1186 = scalar_lea.vmem [#allocation3], 112
    %1187 = vst [vmem:[%s1186 + $0x8] sm:$0xff] %v1184
    %v1188 = vld [vmem:[#allocation8] sm:$0xff]
    %v1189 = vld [vmem:[#allocation8 + $0x8] sm:$0xff]
    %v1190 = vld [vmem:[#allocation8 + $0x10] sm:$0xff]
    %v1191 = vld [vmem:[#allocation8 + $0x18] sm:$0xff]
    %v1192 = vld [vmem:[#allocation8 + $0x20] sm:$0xff]
    %v1193 = vld [vmem:[#allocation8 + $0x28] sm:$0xff]
    %v1194 = vld [vmem:[#allocation8 + $0x30] sm:$0xff]
    %v1195 = vld [vmem:[#allocation8 + $0x38] sm:$0xff]
    %v1196 = vld [vmem:[#allocation8 + $0x40] sm:$0xff]
    %v1197 = vld [vmem:[#allocation8 + $0x48] sm:$0xff]
    %v1198 = vld [vmem:[#allocation8 + $0x50] sm:$0xff]
    %v1199 = vld [vmem:[#allocation8 + $0x58] sm:$0xff]
    %v1200 = vld [vmem:[#allocation8 + $0x60] sm:$0xff]
    %v1201 = vld [vmem:[#allocation8 + $0x68] sm:$0xff]
    %v1202 = vld [vmem:[#allocation8 + $0x70] sm:$0xff]
    %v1203 = vld [vmem:[#allocation8 + $0x78] sm:$0xff]
    %v1204 = vld [vmem:[#allocation8 + $0x80] sm:$0xff]
    %v1205 = vld [vmem:[#allocation8 + $0x88] sm:$0xff]
    %v1206 = vld [vmem:[#allocation8 + $0x90] sm:$0xff]
    %v1207 = vld [vmem:[#allocation8 + $0x98] sm:$0xff]
    %v1208 = vld [vmem:[#allocation8 + $0xa0] sm:$0xff]
    %v1209 = vld [vmem:[#allocation8 + $0xa8] sm:$0xff]
    %v1210 = vld [vmem:[#allocation8 + $0xb0] sm:$0xff]
    %v1211 = vld [vmem:[#allocation8 + $0xb8] sm:$0xff]
    %v1212 = vld [vmem:[#allocation8 + $0xc0] sm:$0xff]
    %v1213 = vld [vmem:[#allocation8 + $0xc8] sm:$0xff]
    %v1214 = vld [vmem:[#allocation8 + $0xd0] sm:$0xff]
    %v1215 = vld [vmem:[#allocation8 + $0xd8] sm:$0xff]
    %v1216 = vld [vmem:[#allocation8 + $0xe0] sm:$0xff]
    %v1217 = vld [vmem:[#allocation8 + $0xe8] sm:$0xff]
    %v1218 = vld [vmem:[#allocation8 + $0xf0] sm:$0xff]
    %v1219 = vld [vmem:[#allocation8 + $0xf8] sm:$0xff]
    %v1220 = vld [vmem:[#allocation8 + $0x100] sm:$0xff]
    %v1221 = vld [vmem:[#allocation8 + $0x108] sm:$0xff]
    %v1222 = vld [vmem:[#allocation8 + $0x110] sm:$0xff]
    %v1223 = vld [vmem:[#allocation8 + $0x118] sm:$0xff]
    %v1224 = vld [vmem:[#allocation8 + $0x120] sm:$0xff]
    %v1225 = vld [vmem:[#allocation8 + $0x128] sm:$0xff]
    %v1226 = vld [vmem:[#allocation8 + $0x130] sm:$0xff]
    %v1227 = vld [vmem:[#allocation8 + $0x138] sm:$0xff]
    %v1228 = vld [vmem:[#allocation8 + $0x140] sm:$0xff]
    %v1229 = vld [vmem:[#allocation8 + $0x148] sm:$0xff]
    %v1230 = vld [vmem:[#allocation8 + $0x150] sm:$0xff]
    %v1231 = vld [vmem:[#allocation8 + $0x158] sm:$0xff]
    %v1232 = vld [vmem:[#allocation8 + $0x160] sm:$0xff]
    %v1233 = vld [vmem:[#allocation8 + $0x168] sm:$0xff]
    %v1234 = vld [vmem:[#allocation8 + $0x170] sm:$0xff]
    %v1235 = vld [vmem:[#allocation8 + $0x178] sm:$0xff]
    %v1236 = vld [vmem:[#allocation8 + $0x180] sm:$0xff]
    %v1237 = vld [vmem:[#allocation8 + $0x188] sm:$0xff]
    %v1238 = vld [vmem:[#allocation8 + $0x190] sm:$0xff]
    %v1239 = vld [vmem:[#allocation8 + $0x198] sm:$0xff]
    %v1240 = vld [vmem:[#allocation8 + $0x1a0] sm:$0xff]
    %v1241 = vld [vmem:[#allocation8 + $0x1a8] sm:$0xff]
    %v1242 = vld [vmem:[#allocation8 + $0x1b0] sm:$0xff]
    %v1243 = vld [vmem:[#allocation8 + $0x1b8] sm:$0xff]
    %v1244 = vld [vmem:[#allocation8 + $0x1c0] sm:$0xff]
    %v1245 = vld [vmem:[#allocation8 + $0x1c8] sm:$0xff]
    %v1246 = vld [vmem:[#allocation8 + $0x1d0] sm:$0xff]
    %v1247 = vld [vmem:[#allocation8 + $0x1d8] sm:$0xff]
    %v1248 = vld [vmem:[#allocation8 + $0x1e0] sm:$0xff]
    %v1249 = vld [vmem:[#allocation8 + $0x1e8] sm:$0xff]
    %v1250 = vld [vmem:[#allocation8 + $0x1f0] sm:$0xff]
    %v1251 = vld [vmem:[#allocation8 + $0x1f8] sm:$0xff]
    %v1252 = vld [vmem:[#allocation8 + $0x200] sm:$0xff]
    %v1253 = vld [vmem:[#allocation8 + $0x208] sm:$0xff]
    %v1254 = vld [vmem:[#allocation8 + $0x210] sm:$0xff]
    %v1255 = vld [vmem:[#allocation8 + $0x218] sm:$0xff]
    %v1256 = vld [vmem:[#allocation8 + $0x220] sm:$0xff]
    %v1257 = vld [vmem:[#allocation8 + $0x228] sm:$0xff]
    %v1258 = vld [vmem:[#allocation8 + $0x230] sm:$0xff]
    %v1259 = vld [vmem:[#allocation8 + $0x238] sm:$0xff]
    %v1260 = vld [vmem:[#allocation8 + $0x240] sm:$0xff]
    %v1261 = vld [vmem:[#allocation8 + $0x248] sm:$0xff]
    %v1262 = vld [vmem:[#allocation8 + $0x250] sm:$0xff]
    %v1263 = vld [vmem:[#allocation8 + $0x258] sm:$0xff]
    %v1264 = vld [vmem:[#allocation8 + $0x260] sm:$0xff]
    %v1265 = vld [vmem:[#allocation8 + $0x268] sm:$0xff]
    %v1266 = vld [vmem:[#allocation8 + $0x270] sm:$0xff]
    %v1267 = vld [vmem:[#allocation8 + $0x278] sm:$0xff]
    %v1268 = vld [vmem:[#allocation8 + $0x280] sm:$0xff]
    %v1269 = vld [vmem:[#allocation8 + $0x288] sm:$0xff]
    %v1270 = vld [vmem:[#allocation8 + $0x290] sm:$0xff]
    %v1271 = vld [vmem:[#allocation8 + $0x298] sm:$0xff]
    %v1272 = vld [vmem:[#allocation8 + $0x2a0] sm:$0xff]
    %v1273 = vld [vmem:[#allocation8 + $0x2a8] sm:$0xff]
    %v1274 = vld [vmem:[#allocation8 + $0x2b0] sm:$0xff]
    %v1275 = vld [vmem:[#allocation8 + $0x2b8] sm:$0xff]
    %v1276 = vld [vmem:[#allocation8 + $0x2c0] sm:$0xff]
    %v1277 = vld [vmem:[#allocation8 + $0x2c8] sm:$0xff]
    %v1278 = vld [vmem:[#allocation8 + $0x2d0] sm:$0xff]
    %v1279 = vld [vmem:[#allocation8 + $0x2d8] sm:$0xff]
    %v1280 = vld [vmem:[#allocation8 + $0x2e0] sm:$0xff]
    %v1281 = vld [vmem:[#allocation8 + $0x2e8] sm:$0xff]
    %v1282 = vld [vmem:[#allocation8 + $0x2f0] sm:$0xff]
    %v1283 = vld [vmem:[#allocation8 + $0x2f8] sm:$0xff]
    %v1284 = vld [vmem:[#allocation8 + $0x300] sm:$0xff]
    %v1285 = vld [vmem:[#allocation8 + $0x308] sm:$0xff]
    %v1286 = vld [vmem:[#allocation8 + $0x310] sm:$0xff]
    %v1287 = vld [vmem:[#allocation8 + $0x318] sm:$0xff]
    %v1288 = vld [vmem:[#allocation8 + $0x320] sm:$0xff]
    %v1289 = vld [vmem:[#allocation8 + $0x328] sm:$0xff]
    %v1290 = vld [vmem:[#allocation8 + $0x330] sm:$0xff]
    %v1291 = vld [vmem:[#allocation8 + $0x338] sm:$0xff]
    %v1292 = vld [vmem:[#allocation8 + $0x340] sm:$0xff]
    %v1293 = vld [vmem:[#allocation8 + $0x348] sm:$0xff]
    %v1294 = vld [vmem:[#allocation8 + $0x350] sm:$0xff]
    %v1295 = vld [vmem:[#allocation8 + $0x358] sm:$0xff]
    %v1296 = vld [vmem:[#allocation8 + $0x360] sm:$0xff]
    %v1297 = vld [vmem:[#allocation8 + $0x368] sm:$0xff]
    %v1298 = vld [vmem:[#allocation8 + $0x370] sm:$0xff]
    %v1299 = vld [vmem:[#allocation8 + $0x378] sm:$0xff]
    %v1300 = vld [vmem:[#allocation8 + $0x380] sm:$0xff]
    %v1301 = vld [vmem:[#allocation8 + $0x388] sm:$0xff]
    %v1302 = vld [vmem:[#allocation8 + $0x390] sm:$0xff]
    %v1303 = vld [vmem:[#allocation8 + $0x398] sm:$0xff]
    %v1304 = vld [vmem:[#allocation8 + $0x3a0] sm:$0xff]
    %v1305 = vld [vmem:[#allocation8 + $0x3a8] sm:$0xff]
    %v1306 = vld [vmem:[#allocation8 + $0x3b0] sm:$0xff]
    %v1307 = vld [vmem:[#allocation8 + $0x3b8] sm:$0xff]
    %v1308 = vld [vmem:[#allocation8 + $0x3c0] sm:$0xff]
    %v1309 = vld [vmem:[#allocation8 + $0x3c8] sm:$0xff]
    %v1310 = vld [vmem:[#allocation8 + $0x3d0] sm:$0xff]
    %v1311 = vld [vmem:[#allocation8 + $0x3d8] sm:$0xff]
    %v1312 = vld [vmem:[#allocation8 + $0x3e0] sm:$0xff]
    %v1313 = vld [vmem:[#allocation8 + $0x3e8] sm:$0xff]
    %v1314 = vld [vmem:[#allocation8 + $0x3f0] sm:$0xff]
    %v1315 = vld [vmem:[#allocation8 + $0x3f8] sm:$0xff]
    %v1316 = vld [vmem:[#allocation8 + $0x400] sm:$0xff]
    %v1317 = vld [vmem:[#allocation8 + $0x408] sm:$0xff]
    %v1318 = vld [vmem:[#allocation8 + $0x410] sm:$0xff]
    %v1319 = vld [vmem:[#allocation8 + $0x418] sm:$0xff]
    %v1320 = vld [vmem:[#allocation8 + $0x420] sm:$0xff]
    %v1321 = vld [vmem:[#allocation8 + $0x428] sm:$0xff]
    %v1322 = vld [vmem:[#allocation8 + $0x430] sm:$0xff]
    %v1323 = vld [vmem:[#allocation8 + $0x438] sm:$0xff]
    %v1324 = vld [vmem:[#allocation8 + $0x440] sm:$0xff]
    %v1325 = vld [vmem:[#allocation8 + $0x448] sm:$0xff]
    %v1326 = vld [vmem:[#allocation8 + $0x450] sm:$0xff]
    %v1327 = vld [vmem:[#allocation8 + $0x458] sm:$0xff]
    %v1328 = vld [vmem:[#allocation8 + $0x460] sm:$0xff]
    %v1329 = vld [vmem:[#allocation8 + $0x468] sm:$0xff]
    %v1330 = vld [vmem:[#allocation8 + $0x470] sm:$0xff]
    %v1331 = vld [vmem:[#allocation8 + $0x478] sm:$0xff]
    %v1332 = vld [vmem:[#allocation8 + $0x480] sm:$0xff]
    %v1333 = vld [vmem:[#allocation8 + $0x488] sm:$0xff]
    %v1334 = vld [vmem:[#allocation8 + $0x490] sm:$0xff]
    %v1335 = vld [vmem:[#allocation8 + $0x498] sm:$0xff]
    %v1336 = vld [vmem:[#allocation8 + $0x4a0] sm:$0xff]
    %v1337 = vld [vmem:[#allocation8 + $0x4a8] sm:$0xff]
    %v1338 = vld [vmem:[#allocation8 + $0x4b0] sm:$0xff]
    %v1339 = vld [vmem:[#allocation8 + $0x4b8] sm:$0xff]
    %v1340 = vld [vmem:[#allocation8 + $0x4c0] sm:$0xff]
    %v1341 = vld [vmem:[#allocation8 + $0x4c8] sm:$0xff]
    %v1342 = vld [vmem:[#allocation8 + $0x4d0] sm:$0xff]
    %v1343 = vld [vmem:[#allocation8 + $0x4d8] sm:$0xff]
    %v1344 = vld [vmem:[#allocation8 + $0x4e0] sm:$0xff]
    %v1345 = vld [vmem:[#allocation8 + $0x4e8] sm:$0xff]
    %v1346 = vld [vmem:[#allocation8 + $0x4f0] sm:$0xff]
    %v1347 = vld [vmem:[#allocation8 + $0x4f8] sm:$0xff]
    %v1348 = vld [vmem:[#allocation8 + $0x500] sm:$0xff]
    %v1349 = vld [vmem:[#allocation8 + $0x508] sm:$0xff]
    %v1350 = vld [vmem:[#allocation8 + $0x510] sm:$0xff]
    %v1351 = vld [vmem:[#allocation8 + $0x518] sm:$0xff]
    %v1352 = vld [vmem:[#allocation8 + $0x520] sm:$0xff]
    %v1353 = vld [vmem:[#allocation8 + $0x528] sm:$0xff]
    %v1354 = vld [vmem:[#allocation8 + $0x530] sm:$0xff]
    %v1355 = vld [vmem:[#allocation8 + $0x538] sm:$0xff]
    %v1356 = vld [vmem:[#allocation8 + $0x540] sm:$0xff]
    %v1357 = vld [vmem:[#allocation8 + $0x548] sm:$0xff]
    %v1358 = vld [vmem:[#allocation8 + $0x550] sm:$0xff]
    %v1359 = vld [vmem:[#allocation8 + $0x558] sm:$0xff]
    %v1360 = vld [vmem:[#allocation8 + $0x560] sm:$0xff]
    %v1361 = vld [vmem:[#allocation8 + $0x568] sm:$0xff]
    %v1362 = vld [vmem:[#allocation8 + $0x570] sm:$0xff]
    %v1363 = vld [vmem:[#allocation8 + $0x578] sm:$0xff]
    %v1364 = vld [vmem:[#allocation8 + $0x580] sm:$0xff]
    %v1365 = vld [vmem:[#allocation8 + $0x588] sm:$0xff]
    %v1366 = vld [vmem:[#allocation8 + $0x590] sm:$0xff]
    %v1367 = vld [vmem:[#allocation8 + $0x598] sm:$0xff]
    %v1368 = vld [vmem:[#allocation8 + $0x5a0] sm:$0xff]
    %v1369 = vld [vmem:[#allocation8 + $0x5a8] sm:$0xff]
    %v1370 = vld [vmem:[#allocation8 + $0x5b0] sm:$0xff]
    %v1371 = vld [vmem:[#allocation8 + $0x5b8] sm:$0xff]
    %v1372 = vld [vmem:[#allocation8 + $0x5c0] sm:$0xff]
    %v1373 = vld [vmem:[#allocation8 + $0x5c8] sm:$0xff]
    %v1374 = vld [vmem:[#allocation8 + $0x5d0] sm:$0xff]
    %v1375 = vld [vmem:[#allocation8 + $0x5d8] sm:$0xff]
    %v1376 = vld [vmem:[#allocation8 + $0x5e0] sm:$0xff]
    %v1377 = vld [vmem:[#allocation8 + $0x5e8] sm:$0xff]
    %v1378 = vld [vmem:[#allocation8 + $0x5f0] sm:$0xff]
    %v1379 = vld [vmem:[#allocation8 + $0x5f8] sm:$0xff]
    %v1380 = vld [vmem:[%s5] sm:$0x3f]
    %v1382 = vlaneseq
    %v1383 = vshrl.u32 %v1382, 7
    %v1384 = vsub.s32 0, %v1383
    %v1385 = vrot.slane %v1380, %v1384
    %v1386 = vlaneseq
    %v1387 = vshrl.u32 %v1386, 7
    %v1388 = vsub.s32 1, %v1387
    %v1389 = vrot.slane %v1380, %v1388
    %v1390 = vlaneseq
    %v1391 = vshrl.u32 %v1390, 7
    %v1392 = vsub.s32 2, %v1391
    %v1393 = vrot.slane %v1380, %v1392
    %v1394 = vlaneseq
    %v1395 = vshrl.u32 %v1394, 7
    %v1396 = vsub.s32 3, %v1395
    %v1397 = vrot.slane %v1380, %v1396
    %v1398 = vlaneseq
    %v1399 = vshrl.u32 %v1398, 7
    %v1400 = vsub.s32 4, %v1399
    %v1401 = vrot.slane %v1380, %v1400
    %v1402 = vlaneseq
    %v1403 = vshrl.u32 %v1402, 7
    %v1404 = vsub.s32 5, %v1403
    %v1405 = vrot.slane %v1380, %v1404
    %1412 = vmatprep.subr.mxu0 %v1189
    %1413 = vmatpush1.msra.mxu0 %v1188
    %1414 = vmatprep.subr.mxu0 %v1195
    %1415 = vmatpush1.msra.mxu0 %v1194
    %1416 = vmatprep.subr.mxu0 %v1201
    %1417 = vmatpush1.msra.mxu0 %v1200
    %1418 = vmatprep.subr.mxu0 %v1207
    %1419 = vmatpush1.msra.mxu0 %v1206
    %1420 = vmatprep.subr.mxu0 %v1213
    %1421 = vmatpush1.msra.mxu0 %v1212
    %1422 = vmatprep.subr.mxu0 %v1219
    %1423 = vmatpush1.msra.mxu0 %v1218
    %1424 = vmatprep.subr.mxu0 %v1225
    %1425 = vmatpush1.msra.mxu0 %v1224
    %1426 = vmatprep.subr.mxu0 %v1231
    %1427 = vmatpush1.msra.mxu0 %v1230
    %1428 = vmatprep.subr.mxu0 %v1237
    %1429 = vmatpush1.msra.mxu0 %v1236
    %1430 = vmatprep.subr.mxu0 %v1243
    %1431 = vmatpush1.msra.mxu0 %v1242
    %1432 = vmatprep.subr.mxu0 %v1249
    %1433 = vmatpush1.msra.mxu0 %v1248
    %1434 = vmatprep.subr.mxu0 %v1255
    %1435 = vmatpush1.msra.mxu0 %v1254
    %1436 = vmatprep.subr.mxu0 %v1261
    %1437 = vmatpush1.msra.mxu0 %v1260
    %1438 = vmatprep.subr.mxu0 %v1267
    %1439 = vmatpush1.msra.mxu0 %v1266
    %1440 = vmatprep.subr.mxu0 %v1273
    %1441 = vmatpush1.msra.mxu0 %v1272
    %1442 = vmatprep.subr.mxu0 %v1279
    %1443 = vmatpush1.msra.mxu0 %v1278
    %1444 = vmatprep.subr.mxu0 %v1285
    %1445 = vmatpush1.msra.mxu0 %v1284
    %1446 = vmatprep.subr.mxu0 %v1291
    %1447 = vmatpush1.msra.mxu0 %v1290
    %1448 = vmatprep.subr.mxu0 %v1297
    %1449 = vmatpush1.msra.mxu0 %v1296
    %1450 = vmatprep.subr.mxu0 %v1303
    %1451 = vmatpush1.msra.mxu0 %v1302
    %1452 = vmatprep.subr.mxu0 %v1309
    %1453 = vmatpush1.msra.mxu0 %v1308
    %1454 = vmatprep.subr.mxu0 %v1315
    %1455 = vmatpush1.msra.mxu0 %v1314
    %1456 = vmatprep.subr.mxu0 %v1321
    %1457 = vmatpush1.msra.mxu0 %v1320
    %1458 = vmatprep.subr.mxu0 %v1327
    %1459 = vmatpush1.msra.mxu0 %v1326
    %1460 = vmatprep.subr.mxu0 %v1333
    %1461 = vmatpush1.msra.mxu0 %v1332
    %1462 = vmatprep.subr.mxu0 %v1339
    %1463 = vmatpush1.msra.mxu0 %v1338
    %1464 = vmatprep.subr.mxu0 %v1345
    %1465 = vmatpush1.msra.mxu0 %v1344
    %1466 = vmatprep.subr.mxu0 %v1351
    %1467 = vmatpush1.msra.mxu0 %v1350
    %1468 = vmatprep.subr.mxu0 %v1357
    %1469 = vmatpush1.msra.mxu0 %v1356
    %1470 = vmatprep.subr.mxu0 %v1363
    %1471 = vmatpush1.msra.mxu0 %v1362
    %1472 = vmatprep.subr.mxu0 %v1369
    %1473 = vmatpush1.msra.mxu0 %v1368
    %1474 = vmatprep.subr.mxu0 %v1375
    %1475 = vmatpush1.msra.mxu0 %v1374
    %1476 = vmatprep.mubr.f32.mxu0 %v1184
    %1477 = vmatmul.mubr.f32.gmra.mrb[0].mxu0 %v1163
    %v1478 = vpop.f32.mrb[0].mxu0
    %v1479 = vadd.f32 %v1385, %v1478
    %v1480 = vpop.f32.mrb[0].mxu0
    %v1481 = vadd.f32 %v1389, %v1480
    %1482 = vdwg.mxu0
    %1483 = vmatprep.subr.mxu0 %v1191
    %1484 = vmatpush1.msra.mxu0 %v1190
    %1485 = vmatprep.subr.mxu0 %v1197
    %1486 = vmatpush1.msra.mxu0 %v1196
    %1487 = vmatprep.subr.mxu0 %v1203
    %1488 = vmatpush1.msra.mxu0 %v1202
    %1489 = vmatprep.subr.mxu0 %v1209
    %1490 = vmatpush1.msra.mxu0 %v1208
    %1491 = vmatprep.subr.mxu0 %v1215
    %1492 = vmatpush1.msra.mxu0 %v1214
    %1493 = vmatprep.subr.mxu0 %v1221
    %1494 = vmatpush1.msra.mxu0 %v1220
    %1495 = vmatprep.subr.mxu0 %v1227
    %1496 = vmatpush1.msra.mxu0 %v1226
    %1497 = vmatprep.subr.mxu0 %v1233
    %1498 = vmatpush1.msra.mxu0 %v1232
    %1499 = vmatprep.subr.mxu0 %v1239
    %1500 = vmatpush1.msra.mxu0 %v1238
    %1501 = vmatprep.subr.mxu0 %v1245
    %1502 = vmatpush1.msra.mxu0 %v1244
    %1503 = vmatprep.subr.mxu0 %v1251
    %1504 = vmatpush1.msra.mxu0 %v1250
    %1505 = vmatprep.subr.mxu0 %v1257
    %1506 = vmatpush1.msra.mxu0 %v1256
    %1507 = vmatprep.subr.mxu0 %v1263
    %1508 = vmatpush1.msra.mxu0 %v1262
    %1509 = vmatprep.subr.mxu0 %v1269
    %1510 = vmatpush1.msra.mxu0 %v1268
    %1511 = vmatprep.subr.mxu0 %v1275
    %1512 = vmatpush1.msra.mxu0 %v1274
    %1513 = vmatprep.subr.mxu0 %v1281
    %1514 = vmatpush1.msra.mxu0 %v1280
    %1515 = vmatprep.subr.mxu0 %v1287
    %1516 = vmatpush1.msra.mxu0 %v1286
    %1517 = vmatprep.subr.mxu0 %v1293
    %1518 = vmatpush1.msra.mxu0 %v1292
    %1519 = vmatprep.subr.mxu0 %v1299
    %1520 = vmatpush1.msra.mxu0 %v1298
    %1521 = vmatprep.subr.mxu0 %v1305
    %1522 = vmatpush1.msra.mxu0 %v1304
    %1523 = vmatprep.subr.mxu0 %v1311
    %1524 = vmatpush1.msra.mxu0 %v1310
    %1525 = vmatprep.subr.mxu0 %v1317
    %1526 = vmatpush1.msra.mxu0 %v1316
    %1527 = vmatprep.subr.mxu0 %v1323
    %1528 = vmatpush1.msra.mxu0 %v1322
    %1529 = vmatprep.subr.mxu0 %v1329
    %1530 = vmatpush1.msra.mxu0 %v1328
    %1531 = vmatprep.subr.mxu0 %v1335
    %1532 = vmatpush1.msra.mxu0 %v1334
    %1533 = vmatprep.subr.mxu0 %v1341
    %1534 = vmatpush1.msra.mxu0 %v1340
    %1535 = vmatprep.subr.mxu0 %v1347
    %1536 = vmatpush1.msra.mxu0 %v1346
    %1537 = vmatprep.subr.mxu0 %v1353
    %1538 = vmatpush1.msra.mxu0 %v1352
    %1539 = vmatprep.subr.mxu0 %v1359
    %1540 = vmatpush1.msra.mxu0 %v1358
    %1541 = vmatprep.subr.mxu0 %v1365
    %1542 = vmatpush1.msra.mxu0 %v1364
    %1543 = vmatprep.subr.mxu0 %v1371
    %1544 = vmatpush1.msra.mxu0 %v1370
    %1545 = vmatprep.subr.mxu0 %v1377
    %1546 = vmatpush1.msra.mxu0 %v1376
    %1547 = vmatprep.mubr.f32.mxu0 %v1184
    %1548 = vmatmul.mubr.f32.gmra.mrb[0].mxu0 %v1163
    %v1549 = vpop.f32.mrb[0].mxu0
    %v1550 = vadd.f32 %v1393, %v1549
    %v1551 = vpop.f32.mrb[0].mxu0
    %v1552 = vadd.f32 %v1397, %v1551
    %1553 = vdwg.mxu0
    %1554 = vmatprep.subr.mxu0 %v1193
    %1555 = vmatpush1.msra.mxu0 %v1192
    %1556 = vmatprep.subr.mxu0 %v1199
    %1557 = vmatpush1.msra.mxu0 %v1198
    %1558 = vmatprep.subr.mxu0 %v1205
    %1559 = vmatpush1.msra.mxu0 %v1204
    %1560 = vmatprep.subr.mxu0 %v1211
    %1561 = vmatpush1.msra.mxu0 %v1210
    %1562 = vmatprep.subr.mxu0 %v1217
    %1563 = vmatpush1.msra.mxu0 %v1216
    %1564 = vmatprep.subr.mxu0 %v1223
    %1565 = vmatpush1.msra.mxu0 %v1222
    %1566 = vmatprep.subr.mxu0 %v1229
    %1567 = vmatpush1.msra.mxu0 %v1228
    %1568 = vmatprep.subr.mxu0 %v1235
    %1569 = vmatpush1.msra.mxu0 %v1234
    %1570 = vmatprep.subr.mxu0 %v1241
    %1571 = vmatpush1.msra.mxu0 %v1240
    %1572 = vmatprep.subr.mxu0 %v1247
    %1573 = vmatpush1.msra.mxu0 %v1246
    %1574 = vmatprep.subr.mxu0 %v1253
    %1575 = vmatpush1.msra.mxu0 %v1252
    %1576 = vmatprep.subr.mxu0 %v1259
    %1577 = vmatpush1.msra.mxu0 %v1258
    %1578 = vmatprep.subr.mxu0 %v1265
    %1579 = vmatpush1.msra.mxu0 %v1264
    %1580 = vmatprep.subr.mxu0 %v1271
    %1581 = vmatpush1.msra.mxu0 %v1270
    %1582 = vmatprep.subr.mxu0 %v1277
    %1583 = vmatpush1.msra.mxu0 %v1276
    %1584 = vmatprep.subr.mxu0 %v1283
    %1585 = vmatpush1.msra.mxu0 %v1282
    %1586 = vmatprep.subr.mxu0 %v1289
    %1587 = vmatpush1.msra.mxu0 %v1288
    %1588 = vmatprep.subr.mxu0 %v1295
    %1589 = vmatpush1.msra.mxu0 %v1294
    %1590 = vmatprep.subr.mxu0 %v1301
    %1591 = vmatpush1.msra.mxu0 %v1300
    %1592 = vmatprep.subr.mxu0 %v1307
    %1593 = vmatpush1.msra.mxu0 %v1306
    %1594 = vmatprep.subr.mxu0 %v1313
    %1595 = vmatpush1.msra.mxu0 %v1312
    %1596 = vmatprep.subr.mxu0 %v1319
    %1597 = vmatpush1.msra.mxu0 %v1318
    %1598 = vmatprep.subr.mxu0 %v1325
    %1599 = vmatpush1.msra.mxu0 %v1324
    %1600 = vmatprep.subr.mxu0 %v1331
    %1601 = vmatpush1.msra.mxu0 %v1330
    %1602 = vmatprep.subr.mxu0 %v1337
    %1603 = vmatpush1.msra.mxu0 %v1336
    %1604 = vmatprep.subr.mxu0 %v1343
    %1605 = vmatpush1.msra.mxu0 %v1342
    %1606 = vmatprep.subr.mxu0 %v1349
    %1607 = vmatpush1.msra.mxu0 %v1348
    %1608 = vmatprep.subr.mxu0 %v1355
    %1609 = vmatpush1.msra.mxu0 %v1354
    %1610 = vmatprep.subr.mxu0 %v1361
    %1611 = vmatpush1.msra.mxu0 %v1360
    %1612 = vmatprep.subr.mxu0 %v1367
    %1613 = vmatpush1.msra.mxu0 %v1366
    %1614 = vmatprep.subr.mxu0 %v1373
    %1615 = vmatpush1.msra.mxu0 %v1372
    %1616 = vmatprep.subr.mxu0 %v1379
    %1617 = vmatpush1.msra.mxu0 %v1378
    %1618 = vmatprep.mubr.f32.mxu0 %v1184
    %1619 = vmatmul.mubr.f32.gmra.mrb[0].mxu0 %v1163
    %v1620 = vpop.f32.mrb[0].mxu0
    %v1621 = vadd.f32 %v1401, %v1620
    %v1622 = vpop.f32.mrb[0].mxu0
    %v1623 = vadd.f32 %v1405, %v1622
    %1624 = vdwg.mxu0
    %s1625 = scalar_lea.vmem [#allocation2], 48
    %v1626 = vld [vmem:[%s1625] sm:$0xff]
    %v1627 = vld [vmem:[%s1625 + $0x8] sm:$0xff]
    %v1628 = vld [vmem:[%s1625 + $0x10] sm:$0xff]
    %s1629 = scalar_lea.vmem [#allocation2], 288
    %v1630 = vld [vmem:[%s1629 + $0x18] sm:$0xff]
    %v1631 = vld [vmem:[%s1629 + $0x20] sm:$0xff]
    %v1632 = vld [vmem:[%s1629 + $0x28] sm:$0xff]
    %v1633 = vadd.f32 %v1626, %v1479
    %v1634 = vadd.f32 %v1627, %v1481
    %v1635 = vxor.u32 %v1633, 2147483648
    %v1636 = vxor.u32 %v1634, 2147483648
    %v1637 = vmul.f32 %v1635, 1.442695
    %v1638 = vpow.pop %v1637
    %v1639 = vmul.f32 %v1636, 1.442695
    %v1640 = vpow.pop %v1639
    %v1641 = vadd.f32 %v1638, 1.0
    %v1642 = vadd.f32 %v1640, 1.0
    %v1643 = vrcp.pop %v1641
    %v1644 = vmul.f32 1.0, %v1643
    %v1645 = vrcp.pop %v1642
    %v1646 = vmul.f32 1.0, %v1645
    %v1647 = vmul.f32 %v1644, %v1550
    %v1648 = vadd.f32 %v1628, %v1647
    %v1649 = vtanh.pop %v1648
    %v1650 = vsub.f32 1.0, %v1646
    %v1651 = vmul.f32 %v1650, %v1649
    %v1652 = vmul.f32 %v1646, %v1163
    %v1653 = vadd.f32 %v1651, %v1652
    %v1654 = vadd.f32 %v1630, %v1552
    %v1655 = vadd.f32 %v1631, %v1621
    %v1656 = vxor.u32 %v1654, 2147483648
    %v1657 = vxor.u32 %v1655, 2147483648
    %v1658 = vmul.f32 %v1656, 1.442695
    %v1659 = vpow.pop %v1658
    %v1660 = vmul.f32 %v1657, 1.442695
    %v1661 = vpow.pop %v1660
    %v1662 = vadd.f32 %v1659, 1.0
    %v1663 = vadd.f32 %v1661, 1.0
    %v1664 = vrcp.pop %v1662
    %v1665 = vmul.f32 1.0, %v1664
    %v1666 = vrcp.pop %v1663
    %v1667 = vmul.f32 1.0, %v1666
    %v1668 = vmul.f32 %v1665, %v1623
    %v1669 = vadd.f32 %v1632, %v1668
    %v1670 = vtanh.pop %v1669
    %v1671 = vsub.f32 1.0, %v1667
    %v1672 = vmul.f32 %v1671, %v1670
    %v1673 = vmul.f32 %v1667, %v1184
    %v1674 = vadd.f32 %v1672, %v1673
    %s1675 = scalar_lea.vmem [#allocation3], 16
    %1676 = vst [vmem:[%s1675] sm:$0xff] %v1653
    %s1677 = scalar_lea.vmem [#allocation3], 96
    %1678 = vst [vmem:[%s1677 + $0x8] sm:$0xff] %v1674
    %v1679 = vld [vmem:[#allocation8] sm:$0xff]
    %v1680 = vld [vmem:[#allocation8 + $0x8] sm:$0xff]
    %v1681 = vld [vmem:[#allocation8 + $0x10] sm:$0xff]
    %v1682 = vld [vmem:[#allocation8 + $0x18] sm:$0xff]
    %v1683 = vld [vmem:[#allocation8 + $0x20] sm:$0xff]
    %v1684 = vld [vmem:[#allocation8 + $0x28] sm:$0xff]
    %v1685 = vld [vmem:[#allocation8 + $0x30] sm:$0xff]
    %v1686 = vld [vmem:[#allocation8 + $0x38] sm:$0xff]
    %v1687 = vld [vmem:[#allocation8 + $0x40] sm:$0xff]
    %v1688 = vld [vmem:[#allocation8 + $0x48] sm:$0xff]
    %v1689 = vld [vmem:[#allocation8 + $0x50] sm:$0xff]
    %v1690 = vld [vmem:[#allocation8 + $0x58] sm:$0xff]
    %v1691 = vld [vmem:[#allocation8 + $0x60] sm:$0xff]
    %v1692 = vld [vmem:[#allocation8 + $0x68] sm:$0xff]
    %v1693 = vld [vmem:[#allocation8 + $0x70] sm:$0xff]
    %v1694 = vld [vmem:[#allocation8 + $0x78] sm:$0xff]
    %v1695 = vld [vmem:[#allocation8 + $0x80] sm:$0xff]
    %v1696 = vld [vmem:[#allocation8 + $0x88] sm:$0xff]
    %v1697 = vld [vmem:[#allocation8 + $0x90] sm:$0xff]
    %v1698 = vld [vmem:[#allocation8 + $0x98] sm:$0xff]
    %v1699 = vld [vmem:[#allocation8 + $0xa0] sm:$0xff]
    %v1700 = vld [vmem:[#allocation8 + $0xa8] sm:$0xff]
    %v1701 = vld [vmem:[#allocation8 + $0xb0] sm:$0xff]
    %v1702 = vld [vmem:[#allocation8 + $0xb8] sm:$0xff]
    %v1703 = vld [vmem:[#allocation8 + $0xc0] sm:$0xff]
    %v1704 = vld [vmem:[#allocation8 + $0xc8] sm:$0xff]
    %v1705 = vld [vmem:[#allocation8 + $0xd0] sm:$0xff]
    %v1706 = vld [vmem:[#allocation8 + $0xd8] sm:$0xff]
    %v1707 = vld [vmem:[#allocation8 + $0xe0] sm:$0xff]
    %v1708 = vld [vmem:[#allocation8 + $0xe8] sm:$0xff]
    %v1709 = vld [vmem:[#allocation8 + $0xf0] sm:$0xff]
    %v1710 = vld [vmem:[#allocation8 + $0xf8] sm:$0xff]
    %v1711 = vld [vmem:[#allocation8 + $0x100] sm:$0xff]
    %v1712 = vld [vmem:[#allocation8 + $0x108] sm:$0xff]
    %v1713 = vld [vmem:[#allocation8 + $0x110] sm:$0xff]
    %v1714 = vld [vmem:[#allocation8 + $0x118] sm:$0xff]
    %v1715 = vld [vmem:[#allocation8 + $0x120] sm:$0xff]
    %v1716 = vld [vmem:[#allocation8 + $0x128] sm:$0xff]
    %v1717 = vld [vmem:[#allocation8 + $0x130] sm:$0xff]
    %v1718 = vld [vmem:[#allocation8 + $0x138] sm:$0xff]
    %v1719 = vld [vmem:[#allocation8 + $0x140] sm:$0xff]
    %v1720 = vld [vmem:[#allocation8 + $0x148] sm:$0xff]
    %v1721 = vld [vmem:[#allocation8 + $0x150] sm:$0xff]
    %v1722 = vld [vmem:[#allocation8 + $0x158] sm:$0xff]
    %v1723 = vld [vmem:[#allocation8 + $0x160] sm:$0xff]
    %v1724 = vld [vmem:[#allocation8 + $0x168] sm:$0xff]
    %v1725 = vld [vmem:[#allocation8 + $0x170] sm:$0xff]
    %v1726 = vld [vmem:[#allocation8 + $0x178] sm:$0xff]
    %v1727 = vld [vmem:[#allocation8 + $0x180] sm:$0xff]
    %v1728 = vld [vmem:[#allocation8 + $0x188] sm:$0xff]
    %v1729 = vld [vmem:[#allocation8 + $0x190] sm:$0xff]
    %v1730 = vld [vmem:[#allocation8 + $0x198] sm:$0xff]
    %v1731 = vld [vmem:[#allocation8 + $0x1a0] sm:$0xff]
    %v1732 = vld [vmem:[#allocation8 + $0x1a8] sm:$0xff]
    %v1733 = vld [vmem:[#allocation8 + $0x1b0] sm:$0xff]
    %v1734 = vld [vmem:[#allocation8 + $0x1b8] sm:$0xff]
    %v1735 = vld [vmem:[#allocation8 + $0x1c0] sm:$0xff]
    %v1736 = vld [vmem:[#allocation8 + $0x1c8] sm:$0xff]
    %v1737 = vld [vmem:[#allocation8 + $0x1d0] sm:$0xff]
    %v1738 = vld [vmem:[#allocation8 + $0x1d8] sm:$0xff]
    %v1739 = vld [vmem:[#allocation8 + $0x1e0] sm:$0xff]
    %v1740 = vld [vmem:[#allocation8 + $0x1e8] sm:$0xff]
    %v1741 = vld [vmem:[#allocation8 + $0x1f0] sm:$0xff]
    %v1742 = vld [vmem:[#allocation8 + $0x1f8] sm:$0xff]
    %v1743 = vld [vmem:[#allocation8 + $0x200] sm:$0xff]
    %v1744 = vld [vmem:[#allocation8 + $0x208] sm:$0xff]
    %v1745 = vld [vmem:[#allocation8 + $0x210] sm:$0xff]
    %v1746 = vld [vmem:[#allocation8 + $0x218] sm:$0xff]
    %v1747 = vld [vmem:[#allocation8 + $0x220] sm:$0xff]
    %v1748 = vld [vmem:[#allocation8 + $0x228] sm:$0xff]
    %v1749 = vld [vmem:[#allocation8 + $0x230] sm:$0xff]
    %v1750 = vld [vmem:[#allocation8 + $0x238] sm:$0xff]
    %v1751 = vld [vmem:[#allocation8 + $0x240] sm:$0xff]
    %v1752 = vld [vmem:[#allocation8 + $0x248] sm:$0xff]
    %v1753 = vld [vmem:[#allocation8 + $0x250] sm:$0xff]
    %v1754 = vld [vmem:[#allocation8 + $0x258] sm:$0xff]
    %v1755 = vld [vmem:[#allocation8 + $0x260] sm:$0xff]
    %v1756 = vld [vmem:[#allocation8 + $0x268] sm:$0xff]
    %v1757 = vld [vmem:[#allocation8 + $0x270] sm:$0xff]
    %v1758 = vld [vmem:[#allocation8 + $0x278] sm:$0xff]
    %v1759 = vld [vmem:[#allocation8 + $0x280] sm:$0xff]
    %v1760 = vld [vmem:[#allocation8 + $0x288] sm:$0xff]
    %v1761 = vld [vmem:[#allocation8 + $0x290] sm:$0xff]
    %v1762 = vld [vmem:[#allocation8 + $0x298] sm:$0xff]
    %v1763 = vld [vmem:[#allocation8 + $0x2a0] sm:$0xff]
    %v1764 = vld [vmem:[#allocation8 + $0x2a8] sm:$0xff]
    %v1765 = vld [vmem:[#allocation8 + $0x2b0] sm:$0xff]
    %v1766 = vld [vmem:[#allocation8 + $0x2b8] sm:$0xff]
    %v1767 = vld [vmem:[#allocation8 + $0x2c0] sm:$0xff]
    %v1768 = vld [vmem:[#allocation8 + $0x2c8] sm:$0xff]
    %v1769 = vld [vmem:[#allocation8 + $0x2d0] sm:$0xff]
    %v1770 = vld [vmem:[#allocation8 + $0x2d8] sm:$0xff]
    %v1771 = vld [vmem:[#allocation8 + $0x2e0] sm:$0xff]
    %v1772 = vld [vmem:[#allocation8 + $0x2e8] sm:$0xff]
    %v1773 = vld [vmem:[#allocation8 + $0x2f0] sm:$0xff]
    %v1774 = vld [vmem:[#allocation8 + $0x2f8] sm:$0xff]
    %v1775 = vld [vmem:[#allocation8 + $0x300] sm:$0xff]
    %v1776 = vld [vmem:[#allocation8 + $0x308] sm:$0xff]
    %v1777 = vld [vmem:[#allocation8 + $0x310] sm:$0xff]
    %v1778 = vld [vmem:[#allocation8 + $0x318] sm:$0xff]
    %v1779 = vld [vmem:[#allocation8 + $0x320] sm:$0xff]
    %v1780 = vld [vmem:[#allocation8 + $0x328] sm:$0xff]
    %v1781 = vld [vmem:[#allocation8 + $0x330] sm:$0xff]
    %v1782 = vld [vmem:[#allocation8 + $0x338] sm:$0xff]
    %v1783 = vld [vmem:[#allocation8 + $0x340] sm:$0xff]
    %v1784 = vld [vmem:[#allocation8 + $0x348] sm:$0xff]
    %v1785 = vld [vmem:[#allocation8 + $0x350] sm:$0xff]
    %v1786 = vld [vmem:[#allocation8 + $0x358] sm:$0xff]
    %v1787 = vld [vmem:[#allocation8 + $0x360] sm:$0xff]
    %v1788 = vld [vmem:[#allocation8 + $0x368] sm:$0xff]
    %v1789 = vld [vmem:[#allocation8 + $0x370] sm:$0xff]
    %v1790 = vld [vmem:[#allocation8 + $0x378] sm:$0xff]
    %v1791 = vld [vmem:[#allocation8 + $0x380] sm:$0xff]
    %v1792 = vld [vmem:[#allocation8 + $0x388] sm:$0xff]
    %v1793 = vld [vmem:[#allocation8 + $0x390] sm:$0xff]
    %v1794 = vld [vmem:[#allocation8 + $0x398] sm:$0xff]
    %v1795 = vld [vmem:[#allocation8 + $0x3a0] sm:$0xff]
    %v1796 = vld [vmem:[#allocation8 + $0x3a8] sm:$0xff]
    %v1797 = vld [vmem:[#allocation8 + $0x3b0] sm:$0xff]
    %v1798 = vld [vmem:[#allocation8 + $0x3b8] sm:$0xff]
    %v1799 = vld [vmem:[#allocation8 + $0x3c0] sm:$0xff]
    %v1800 = vld [vmem:[#allocation8 + $0x3c8] sm:$0xff]
    %v1801 = vld [vmem:[#allocation8 + $0x3d0] sm:$0xff]
    %v1802 = vld [vmem:[#allocation8 + $0x3d8] sm:$0xff]
    %v1803 = vld [vmem:[#allocation8 + $0x3e0] sm:$0xff]
    %v1804 = vld [vmem:[#allocation8 + $0x3e8] sm:$0xff]
    %v1805 = vld [vmem:[#allocation8 + $0x3f0] sm:$0xff]
    %v1806 = vld [vmem:[#allocation8 + $0x3f8] sm:$0xff]
    %v1807 = vld [vmem:[#allocation8 + $0x400] sm:$0xff]
    %v1808 = vld [vmem:[#allocation8 + $0x408] sm:$0xff]
    %v1809 = vld [vmem:[#allocation8 + $0x410] sm:$0xff]
    %v1810 = vld [vmem:[#allocation8 + $0x418] sm:$0xff]
    %v1811 = vld [vmem:[#allocation8 + $0x420] sm:$0xff]
    %v1812 = vld [vmem:[#allocation8 + $0x428] sm:$0xff]
    %v1813 = vld [vmem:[#allocation8 + $0x430] sm:$0xff]
    %v1814 = vld [vmem:[#allocation8 + $0x438] sm:$0xff]
    %v1815 = vld [vmem:[#allocation8 + $0x440] sm:$0xff]
    %v1816 = vld [vmem:[#allocation8 + $0x448] sm:$0xff]
    %v1817 = vld [vmem:[#allocation8 + $0x450] sm:$0xff]
    %v1818 = vld [vmem:[#allocation8 + $0x458] sm:$0xff]
    %v1819 = vld [vmem:[#allocation8 + $0x460] sm:$0xff]
    %v1820 = vld [vmem:[#allocation8 + $0x468] sm:$0xff]
    %v1821 = vld [vmem:[#allocation8 + $0x470] sm:$0xff]
    %v1822 = vld [vmem:[#allocation8 + $0x478] sm:$0xff]
    %v1823 = vld [vmem:[#allocation8 + $0x480] sm:$0xff]
    %v1824 = vld [vmem:[#allocation8 + $0x488] sm:$0xff]
    %v1825 = vld [vmem:[#allocation8 + $0x490] sm:$0xff]
    %v1826 = vld [vmem:[#allocation8 + $0x498] sm:$0xff]
    %v1827 = vld [vmem:[#allocation8 + $0x4a0] sm:$0xff]
    %v1828 = vld [vmem:[#allocation8 + $0x4a8] sm:$0xff]
    %v1829 = vld [vmem:[#allocation8 + $0x4b0] sm:$0xff]
    %v1830 = vld [vmem:[#allocation8 + $0x4b8] sm:$0xff]
    %v1831 = vld [vmem:[#allocation8 + $0x4c0] sm:$0xff]
    %v1832 = vld [vmem:[#allocation8 + $0x4c8] sm:$0xff]
    %v1833 = vld [vmem:[#allocation8 + $0x4d0] sm:$0xff]
    %v1834 = vld [vmem:[#allocation8 + $0x4d8] sm:$0xff]
    %v1835 = vld [vmem:[#allocation8 + $0x4e0] sm:$0xff]
    %v1836 = vld [vmem:[#allocation8 + $0x4e8] sm:$0xff]
    %v1837 = vld [vmem:[#allocation8 + $0x4f0] sm:$0xff]
    %v1838 = vld [vmem:[#allocation8 + $0x4f8] sm:$0xff]
    %v1839 = vld [vmem:[#allocation8 + $0x500] sm:$0xff]
    %v1840 = vld [vmem:[#allocation8 + $0x508] sm:$0xff]
    %v1841 = vld [vmem:[#allocation8 + $0x510] sm:$0xff]
    %v1842 = vld [vmem:[#allocation8 + $0x518] sm:$0xff]
    %v1843 = vld [vmem:[#allocation8 + $0x520] sm:$0xff]
    %v1844 = vld [vmem:[#allocation8 + $0x528] sm:$0xff]
    %v1845 = vld [vmem:[#allocation8 + $0x530] sm:$0xff]
    %v1846 = vld [vmem:[#allocation8 + $0x538] sm:$0xff]
    %v1847 = vld [vmem:[#allocation8 + $0x540] sm:$0xff]
    %v1848 = vld [vmem:[#allocation8 + $0x548] sm:$0xff]
    %v1849 = vld [vmem:[#allocation8 + $0x550] sm:$0xff]
    %v1850 = vld [vmem:[#allocation8 + $0x558] sm:$0xff]
    %v1851 = vld [vmem:[#allocation8 + $0x560] sm:$0xff]
    %v1852 = vld [vmem:[#allocation8 + $0x568] sm:$0xff]
    %v1853 = vld [vmem:[#allocation8 + $0x570] sm:$0xff]
    %v1854 = vld [vmem:[#allocation8 + $0x578] sm:$0xff]
    %v1855 = vld [vmem:[#allocation8 + $0x580] sm:$0xff]
    %v1856 = vld [vmem:[#allocation8 + $0x588] sm:$0xff]
    %v1857 = vld [vmem:[#allocation8 + $0x590] sm:$0xff]
    %v1858 = vld [vmem:[#allocation8 + $0x598] sm:$0xff]
    %v1859 = vld [vmem:[#allocation8 + $0x5a0] sm:$0xff]
    %v1860 = vld [vmem:[#allocation8 + $0x5a8] sm:$0xff]
    %v1861 = vld [vmem:[#allocation8 + $0x5b0] sm:$0xff]
    %v1862 = vld [vmem:[#allocation8 + $0x5b8] sm:$0xff]
    %v1863 = vld [vmem:[#allocation8 + $0x5c0] sm:$0xff]
    %v1864 = vld [vmem:[#allocation8 + $0x5c8] sm:$0xff]
    %v1865 = vld [vmem:[#allocation8 + $0x5d0] sm:$0xff]
    %v1866 = vld [vmem:[#allocation8 + $0x5d8] sm:$0xff]
    %v1867 = vld [vmem:[#allocation8 + $0x5e0] sm:$0xff]
    %v1868 = vld [vmem:[#allocation8 + $0x5e8] sm:$0xff]
    %v1869 = vld [vmem:[#allocation8 + $0x5f0] sm:$0xff]
    %v1870 = vld [vmem:[#allocation8 + $0x5f8] sm:$0xff]
    %v1871 = vld [vmem:[%s5] sm:$0x3f]
    %v1873 = vlaneseq
    %v1874 = vshrl.u32 %v1873, 7
    %v1875 = vsub.s32 0, %v1874
    %v1876 = vrot.slane %v1871, %v1875
    %v1877 = vlaneseq
    %v1878 = vshrl.u32 %v1877, 7
    %v1879 = vsub.s32 1, %v1878
    %v1880 = vrot.slane %v1871, %v1879
    %v1881 = vlaneseq
    %v1882 = vshrl.u32 %v1881, 7
    %v1883 = vsub.s32 2, %v1882
    %v1884 = vrot.slane %v1871, %v1883
    %v1885 = vlaneseq
    %v1886 = vshrl.u32 %v1885, 7
    %v1887 = vsub.s32 3, %v1886
    %v1888 = vrot.slane %v1871, %v1887
    %v1889 = vlaneseq
    %v1890 = vshrl.u32 %v1889, 7
    %v1891 = vsub.s32 4, %v1890
    %v1892 = vrot.slane %v1871, %v1891
    %v1893 = vlaneseq
    %v1894 = vshrl.u32 %v1893, 7
    %v1895 = vsub.s32 5, %v1894
    %v1896 = vrot.slane %v1871, %v1895
    %1903 = vmatprep.subr.mxu0 %v1680
    %1904 = vmatpush1.msra.mxu0 %v1679
    %1905 = vmatprep.subr.mxu0 %v1686
    %1906 = vmatpush1.msra.mxu0 %v1685
    %1907 = vmatprep.subr.mxu0 %v1692
    %1908 = vmatpush1.msra.mxu0 %v1691
    %1909 = vmatprep.subr.mxu0 %v1698
    %1910 = vmatpush1.msra.mxu0 %v1697
    %1911 = vmatprep.subr.mxu0 %v1704
    %1912 = vmatpush1.msra.mxu0 %v1703
    %1913 = vmatprep.subr.mxu0 %v1710
    %1914 = vmatpush1.msra.mxu0 %v1709
    %1915 = vmatprep.subr.mxu0 %v1716
    %1916 = vmatpush1.msra.mxu0 %v1715
    %1917 = vmatprep.subr.mxu0 %v1722
    %1918 = vmatpush1.msra.mxu0 %v1721
    %1919 = vmatprep.subr.mxu0 %v1728
    %1920 = vmatpush1.msra.mxu0 %v1727
    %1921 = vmatprep.subr.mxu0 %v1734
    %1922 = vmatpush1.msra.mxu0 %v1733
    %1923 = vmatprep.subr.mxu0 %v1740
    %1924 = vmatpush1.msra.mxu0 %v1739
    %1925 = vmatprep.subr.mxu0 %v1746
    %1926 = vmatpush1.msra.mxu0 %v1745
    %1927 = vmatprep.subr.mxu0 %v1752
    %1928 = vmatpush1.msra.mxu0 %v1751
    %1929 = vmatprep.subr.mxu0 %v1758
    %1930 = vmatpush1.msra.mxu0 %v1757
    %1931 = vmatprep.subr.mxu0 %v1764
    %1932 = vmatpush1.msra.mxu0 %v1763
    %1933 = vmatprep.subr.mxu0 %v1770
    %1934 = vmatpush1.msra.mxu0 %v1769
    %1935 = vmatprep.subr.mxu0 %v1776
    %1936 = vmatpush1.msra.mxu0 %v1775
    %1937 = vmatprep.subr.mxu0 %v1782
    %1938 = vmatpush1.msra.mxu0 %v1781
    %1939 = vmatprep.subr.mxu0 %v1788
    %1940 = vmatpush1.msra.mxu0 %v1787
    %1941 = vmatprep.subr.mxu0 %v1794
    %1942 = vmatpush1.msra.mxu0 %v1793
    %1943 = vmatprep.subr.mxu0 %v1800
    %1944 = vmatpush1.msra.mxu0 %v1799
    %1945 = vmatprep.subr.mxu0 %v1806
    %1946 = vmatpush1.msra.mxu0 %v1805
    %1947 = vmatprep.subr.mxu0 %v1812
    %1948 = vmatpush1.msra.mxu0 %v1811
    %1949 = vmatprep.subr.mxu0 %v1818
    %1950 = vmatpush1.msra.mxu0 %v1817
    %1951 = vmatprep.subr.mxu0 %v1824
    %1952 = vmatpush1.msra.mxu0 %v1823
    %1953 = vmatprep.subr.mxu0 %v1830
    %1954 = vmatpush1.msra.mxu0 %v1829
    %1955 = vmatprep.subr.mxu0 %v1836
    %1956 = vmatpush1.msra.mxu0 %v1835
    %1957 = vmatprep.subr.mxu0 %v1842
    %1958 = vmatpush1.msra.mxu0 %v1841
    %1959 = vmatprep.subr.mxu0 %v1848
    %1960 = vmatpush1.msra.mxu0 %v1847
    %1961 = vmatprep.subr.mxu0 %v1854
    %1962 = vmatpush1.msra.mxu0 %v1853
    %1963 = vmatprep.subr.mxu0 %v1860
    %1964 = vmatpush1.msra.mxu0 %v1859
    %1965 = vmatprep.subr.mxu0 %v1866
    %1966 = vmatpush1.msra.mxu0 %v1865
    %1967 = vmatprep.mubr.f32.mxu0 %v1674
    %1968 = vmatmul.mubr.f32.gmra.mrb[0].mxu0 %v1653
    %v1969 = vpop.f32.mrb[0].mxu0
    %v1970 = vadd.f32 %v1876, %v1969
    %v1971 = vpop.f32.mrb[0].mxu0
    %v1972 = vadd.f32 %v1880, %v1971
    %1973 = vdwg.mxu0
    %1974 = vmatprep.subr.mxu0 %v1682
    %1975 = vmatpush1.msra.mxu0 %v1681
    %1976 = vmatprep.subr.mxu0 %v1688
    %1977 = vmatpush1.msra.mxu0 %v1687
    %1978 = vmatprep.subr.mxu0 %v1694
    %1979 = vmatpush1.msra.mxu0 %v1693
    %1980 = vmatprep.subr.mxu0 %v1700
    %1981 = vmatpush1.msra.mxu0 %v1699
    %1982 = vmatprep.subr.mxu0 %v1706
    %1983 = vmatpush1.msra.mxu0 %v1705
    %1984 = vmatprep.subr.mxu0 %v1712
    %1985 = vmatpush1.msra.mxu0 %v1711
    %1986 = vmatprep.subr.mxu0 %v1718
    %1987 = vmatpush1.msra.mxu0 %v1717
    %1988 = vmatprep.subr.mxu0 %v1724
    %1989 = vmatpush1.msra.mxu0 %v1723
    %1990 = vmatprep.subr.mxu0 %v1730
    %1991 = vmatpush1.msra.mxu0 %v1729
    %1992 = vmatprep.subr.mxu0 %v1736
    %1993 = vmatpush1.msra.mxu0 %v1735
    %1994 = vmatprep.subr.mxu0 %v1742
    %1995 = vmatpush1.msra.mxu0 %v1741
    %1996 = vmatprep.subr.mxu0 %v1748
    %1997 = vmatpush1.msra.mxu0 %v1747
    %1998 = vmatprep.subr.mxu0 %v1754
    %1999 = vmatpush1.msra.mxu0 %v1753
    %2000 = vmatprep.subr.mxu0 %v1760
    %2001 = vmatpush1.msra.mxu0 %v1759
    %2002 = vmatprep.subr.mxu0 %v1766
    %2003 = vmatpush1.msra.mxu0 %v1765
    %2004 = vmatprep.subr.mxu0 %v1772
    %2005 = vmatpush1.msra.mxu0 %v1771
    %2006 = vmatprep.subr.mxu0 %v1778
    %2007 = vmatpush1.msra.mxu0 %v1777
    %2008 = vmatprep.subr.mxu0 %v1784
    %2009 = vmatpush1.msra.mxu0 %v1783
    %2010 = vmatprep.subr.mxu0 %v1790
    %2011 = vmatpush1.msra.mxu0 %v1789
    %2012 = vmatprep.subr.mxu0 %v1796
    %2013 = vmatpush1.msra.mxu0 %v1795
    %2014 = vmatprep.subr.mxu0 %v1802
    %2015 = vmatpush1.msra.mxu0 %v1801
    %2016 = vmatprep.subr.mxu0 %v1808
    %2017 = vmatpush1.msra.mxu0 %v1807
    %2018 = vmatprep.subr.mxu0 %v1814
    %2019 = vmatpush1.msra.mxu0 %v1813
    %2020 = vmatprep.subr.mxu0 %v1820
    %2021 = vmatpush1.msra.mxu0 %v1819
    %2022 = vmatprep.subr.mxu0 %v1826
    %2023 = vmatpush1.msra.mxu0 %v1825
    %2024 = vmatprep.subr.mxu0 %v1832
    %2025 = vmatpush1.msra.mxu0 %v1831
    %2026 = vmatprep.subr.mxu0 %v1838
    %2027 = vmatpush1.msra.mxu0 %v1837
    %2028 = vmatprep.subr.mxu0 %v1844
    %2029 = vmatpush1.msra.mxu0 %v1843
    %2030 = vmatprep.subr.mxu0 %v1850
    %2031 = vmatpush1.msra.mxu0 %v1849
    %2032 = vmatprep.subr.mxu0 %v1856
    %2033 = vmatpush1.msra.mxu0 %v1855
    %2034 = vmatprep.subr.mxu0 %v1862
    %2035 = vmatpush1.msra.mxu0 %v1861
    %2036 = vmatprep.subr.mxu0 %v1868
    %2037 = vmatpush1.msra.mxu0 %v1867
    %2038 = vmatprep.mubr.f32.mxu0 %v1674
    %2039 = vmatmul.mubr.f32.gmra.mrb[0].mxu0 %v1653
    %v2040 = vpop.f32.mrb[0].mxu0
    %v2041 = vadd.f32 %v1884, %v2040
    %v2042 = vpop.f32.mrb[0].mxu0
    %v2043 = vadd.f32 %v1888, %v2042
    %2044 = vdwg.mxu0
    %2045 = vmatprep.subr.mxu0 %v1684
    %2046 = vmatpush1.msra.mxu0 %v1683
    %2047 = vmatprep.subr.mxu0 %v1690
    %2048 = vmatpush1.msra.mxu0 %v1689
    %2049 = vmatprep.subr.mxu0 %v1696
    %2050 = vmatpush1.msra.mxu0 %v1695
    %2051 = vmatprep.subr.mxu0 %v1702
    %2052 = vmatpush1.msra.mxu0 %v1701
    %2053 = vmatprep.subr.mxu0 %v1708
    %2054 = vmatpush1.msra.mxu0 %v1707
    %2055 = vmatprep.subr.mxu0 %v1714
    %2056 = vmatpush1.msra.mxu0 %v1713
    %2057 = vmatprep.subr.mxu0 %v1720
    %2058 = vmatpush1.msra.mxu0 %v1719
    %2059 = vmatprep.subr.mxu0 %v1726
    %2060 = vmatpush1.msra.mxu0 %v1725
    %2061 = vmatprep.subr.mxu0 %v1732
    %2062 = vmatpush1.msra.mxu0 %v1731
    %2063 = vmatprep.subr.mxu0 %v1738
    %2064 = vmatpush1.msra.mxu0 %v1737
    %2065 = vmatprep.subr.mxu0 %v1744
    %2066 = vmatpush1.msra.mxu0 %v1743
    %2067 = vmatprep.subr.mxu0 %v1750
    %2068 = vmatpush1.msra.mxu0 %v1749
    %2069 = vmatprep.subr.mxu0 %v1756
    %2070 = vmatpush1.msra.mxu0 %v1755
    %2071 = vmatprep.subr.mxu0 %v1762
    %2072 = vmatpush1.msra.mxu0 %v1761
    %2073 = vmatprep.subr.mxu0 %v1768
    %2074 = vmatpush1.msra.mxu0 %v1767
    %2075 = vmatprep.subr.mxu0 %v1774
    %2076 = vmatpush1.msra.mxu0 %v1773
    %2077 = vmatprep.subr.mxu0 %v1780
    %2078 = vmatpush1.msra.mxu0 %v1779
    %2079 = vmatprep.subr.mxu0 %v1786
    %2080 = vmatpush1.msra.mxu0 %v1785
    %2081 = vmatprep.subr.mxu0 %v1792
    %2082 = vmatpush1.msra.mxu0 %v1791
    %2083 = vmatprep.subr.mxu0 %v1798
    %2084 = vmatpush1.msra.mxu0 %v1797
    %2085 = vmatprep.subr.mxu0 %v1804
    %2086 = vmatpush1.msra.mxu0 %v1803
    %2087 = vmatprep.subr.mxu0 %v1810
    %2088 = vmatpush1.msra.mxu0 %v1809
    %2089 = vmatprep.subr.mxu0 %v1816
    %2090 = vmatpush1.msra.mxu0 %v1815
    %2091 = vmatprep.subr.mxu0 %v1822
    %2092 = vmatpush1.msra.mxu0 %v1821
    %2093 = vmatprep.subr.mxu0 %v1828
    %2094 = vmatpush1.msra.mxu0 %v1827
    %2095 = vmatprep.subr.mxu0 %v1834
    %2096 = vmatpush1.msra.mxu0 %v1833
    %2097 = vmatprep.subr.mxu0 %v1840
    %2098 = vmatpush1.msra.mxu0 %v1839
    %2099 = vmatprep.subr.mxu0 %v1846
    %2100 = vmatpush1.msra.mxu0 %v1845
    %2101 = vmatprep.subr.mxu0 %v1852
    %2102 = vmatpush1.msra.mxu0 %v1851
    %2103 = vmatprep.subr.mxu0 %v1858
    %2104 = vmatpush1.msra.mxu0 %v1857
    %2105 = vmatprep.subr.mxu0 %v1864
    %2106 = vmatpush1.msra.mxu0 %v1863
    %2107 = vmatprep.subr.mxu0 %v1870
    %2108 = vmatpush1.msra.mxu0 %v1869
    %2109 = vmatprep.mubr.f32.mxu0 %v1674
    %2110 = vmatmul.mubr.f32.gmra.mrb[0].mxu0 %v1653
    %v2111 = vpop.f32.mrb[0].mxu0
    %v2112 = vadd.f32 %v1892, %v2111
    %v2113 = vpop.f32.mrb[0].mxu0
    %v2114 = vadd.f32 %v1896, %v2113
    %2115 = vdwg.mxu0
    %s2116 = scalar_lea.vmem [#allocation2], 96
    %v2117 = vld [vmem:[%s2116] sm:$0xff]
    %v2118 = vld [vmem:[%s2116 + $0x8] sm:$0xff]
    %v2119 = vld [vmem:[%s2116 + $0x10] sm:$0xff]
    %s2120 = scalar_lea.vmem [#allocation2], 240
    %v2121 = vld [vmem:[%s2120 + $0x18] sm:$0xff]
    %v2122 = vld [vmem:[%s2120 + $0x20] sm:$0xff]
    %v2123 = vld [vmem:[%s2120 + $0x28] sm:$0xff]
    %v2124 = vadd.f32 %v2117, %v1970
    %v2125 = vadd.f32 %v2118, %v1972
    %v2126 = vxor.u32 %v2124, 2147483648
    %v2127 = vxor.u32 %v2125, 2147483648
    %v2128 = vmul.f32 %v2126, 1.442695
    %v2129 = vpow.pop %v2128
    %v2130 = vmul.f32 %v2127, 1.442695
    %v2131 = vpow.pop %v2130
    %v2132 = vadd.f32 %v2129, 1.0
    %v2133 = vadd.f32 %v2131, 1.0
    %v2134 = vrcp.pop %v2132
    %v2135 = vmul.f32 1.0, %v2134
    %v2136 = vrcp.pop %v2133
    %v2137 = vmul.f32 1.0, %v2136
    %v2138 = vmul.f32 %v2135, %v2041
    %v2139 = vadd.f32 %v2119, %v2138
    %v2140 = vtanh.pop %v2139
    %v2141 = vsub.f32 1.0, %v2137
    %v2142 = vmul.f32 %v2141, %v2140
    %v2143 = vmul.f32 %v2137, %v1653
    %v2144 = vadd.f32 %v2142, %v2143
    %v2145 = vadd.f32 %v2121, %v2043
    %v2146 = vadd.f32 %v2122, %v2112
    %v2147 = vxor.u32 %v2145, 2147483648
    %v2148 = vxor.u32 %v2146, 2147483648
    %v2149 = vmul.f32 %v2147, 1.442695
    %v2150 = vpow.pop %v2149
    %v2151 = vmul.f32 %v2148, 1.442695
    %v2152 = vpow.pop %v2151
    %v2153 = vadd.f32 %v2150, 1.0
    %v2154 = vadd.f32 %v2152, 1.0
    %v2155 = vrcp.pop %v2153
    %v2156 = vmul.f32 1.0, %v2155
    %v2157 = vrcp.pop %v2154
    %v2158 = vmul.f32 1.0, %v2157
    %v2159 = vmul.f32 %v2156, %v2114
    %v2160 = vadd.f32 %v2123, %v2159
    %v2161 = vtanh.pop %v2160
    %v2162 = vsub.f32 1.0, %v2158
    %v2163 = vmul.f32 %v2162, %v2161
    %v2164 = vmul.f32 %v2158, %v1674
    %v2165 = vadd.f32 %v2163, %v2164
    %s2166 = scalar_lea.vmem [#allocation3], 32
    %2167 = vst [vmem:[%s2166] sm:$0xff] %v2144
    %s2168 = scalar_lea.vmem [#allocation3], 80
    %2169 = vst [vmem:[%s2168 + $0x8] sm:$0xff] %v2165
    %v2170 = vld [vmem:[#allocation8] sm:$0xff]
    %v2171 = vld [vmem:[#allocation8 + $0x8] sm:$0xff]
    %v2172 = vld [vmem:[#allocation8 + $0x10] sm:$0xff]
    %v2173 = vld [vmem:[#allocation8 + $0x18] sm:$0xff]
    %v2174 = vld [vmem:[#allocation8 + $0x20] sm:$0xff]
    %v2175 = vld [vmem:[#allocation8 + $0x28] sm:$0xff]
    %v2176 = vld [vmem:[#allocation8 + $0x30] sm:$0xff]
    %v2177 = vld [vmem:[#allocation8 + $0x38] sm:$0xff]
    %v2178 = vld [vmem:[#allocation8 + $0x40] sm:$0xff]
    %v2179 = vld [vmem:[#allocation8 + $0x48] sm:$0xff]
    %v2180 = vld [vmem:[#allocation8 + $0x50] sm:$0xff]
    %v2181 = vld [vmem:[#allocation8 + $0x58] sm:$0xff]
    %v2182 = vld [vmem:[#allocation8 + $0x60] sm:$0xff]
    %v2183 = vld [vmem:[#allocation8 + $0x68] sm:$0xff]
    %v2184 = vld [vmem:[#allocation8 + $0x70] sm:$0xff]
    %v2185 = vld [vmem:[#allocation8 + $0x78] sm:$0xff]
    %v2186 = vld [vmem:[#allocation8 + $0x80] sm:$0xff]
    %v2187 = vld [vmem:[#allocation8 + $0x88] sm:$0xff]
    %v2188 = vld [vmem:[#allocation8 + $0x90] sm:$0xff]
    %v2189 = vld [vmem:[#allocation8 + $0x98] sm:$0xff]
    %v2190 = vld [vmem:[#allocation8 + $0xa0] sm:$0xff]
    %v2191 = vld [vmem:[#allocation8 + $0xa8] sm:$0xff]
    %v2192 = vld [vmem:[#allocation8 + $0xb0] sm:$0xff]
    %v2193 = vld [vmem:[#allocation8 + $0xb8] sm:$0xff]
    %v2194 = vld [vmem:[#allocation8 + $0xc0] sm:$0xff]
    %v2195 = vld [vmem:[#allocation8 + $0xc8] sm:$0xff]
    %v2196 = vld [vmem:[#allocation8 + $0xd0] sm:$0xff]
    %v2197 = vld [vmem:[#allocation8 + $0xd8] sm:$0xff]
    %v2198 = vld [vmem:[#allocation8 + $0xe0] sm:$0xff]
    %v2199 = vld [vmem:[#allocation8 + $0xe8] sm:$0xff]
    %v2200 = vld [vmem:[#allocation8 + $0xf0] sm:$0xff]
    %v2201 = vld [vmem:[#allocation8 + $0xf8] sm:$0xff]
    %v2202 = vld [vmem:[#allocation8 + $0x100] sm:$0xff]
    %v2203 = vld [vmem:[#allocation8 + $0x108] sm:$0xff]
    %v2204 = vld [vmem:[#allocation8 + $0x110] sm:$0xff]
    %v2205 = vld [vmem:[#allocation8 + $0x118] sm:$0xff]
    %v2206 = vld [vmem:[#allocation8 + $0x120] sm:$0xff]
    %v2207 = vld [vmem:[#allocation8 + $0x128] sm:$0xff]
    %v2208 = vld [vmem:[#allocation8 + $0x130] sm:$0xff]
    %v2209 = vld [vmem:[#allocation8 + $0x138] sm:$0xff]
    %v2210 = vld [vmem:[#allocation8 + $0x140] sm:$0xff]
    %v2211 = vld [vmem:[#allocation8 + $0x148] sm:$0xff]
    %v2212 = vld [vmem:[#allocation8 + $0x150] sm:$0xff]
    %v2213 = vld [vmem:[#allocation8 + $0x158] sm:$0xff]
    %v2214 = vld [vmem:[#allocation8 + $0x160] sm:$0xff]
    %v2215 = vld [vmem:[#allocation8 + $0x168] sm:$0xff]
    %v2216 = vld [vmem:[#allocation8 + $0x170] sm:$0xff]
    %v2217 = vld [vmem:[#allocation8 + $0x178] sm:$0xff]
    %v2218 = vld [vmem:[#allocation8 + $0x180] sm:$0xff]
    %v2219 = vld [vmem:[#allocation8 + $0x188] sm:$0xff]
    %v2220 = vld [vmem:[#allocation8 + $0x190] sm:$0xff]
    %v2221 = vld [vmem:[#allocation8 + $0x198] sm:$0xff]
    %v2222 = vld [vmem:[#allocation8 + $0x1a0] sm:$0xff]
    %v2223 = vld [vmem:[#allocation8 + $0x1a8] sm:$0xff]
    %v2224 = vld [vmem:[#allocation8 + $0x1b0] sm:$0xff]
    %v2225 = vld [vmem:[#allocation8 + $0x1b8] sm:$0xff]
    %v2226 = vld [vmem:[#allocation8 + $0x1c0] sm:$0xff]
    %v2227 = vld [vmem:[#allocation8 + $0x1c8] sm:$0xff]
    %v2228 = vld [vmem:[#allocation8 + $0x1d0] sm:$0xff]
    %v2229 = vld [vmem:[#allocation8 + $0x1d8] sm:$0xff]
    %v2230 = vld [vmem:[#allocation8 + $0x1e0] sm:$0xff]
    %v2231 = vld [vmem:[#allocation8 + $0x1e8] sm:$0xff]
    %v2232 = vld [vmem:[#allocation8 + $0x1f0] sm:$0xff]
    %v2233 = vld [vmem:[#allocation8 + $0x1f8] sm:$0xff]
    %v2234 = vld [vmem:[#allocation8 + $0x200] sm:$0xff]
    %v2235 = vld [vmem:[#allocation8 + $0x208] sm:$0xff]
    %v2236 = vld [vmem:[#allocation8 + $0x210] sm:$0xff]
    %v2237 = vld [vmem:[#allocation8 + $0x218] sm:$0xff]
    %v2238 = vld [vmem:[#allocation8 + $0x220] sm:$0xff]
    %v2239 = vld [vmem:[#allocation8 + $0x228] sm:$0xff]
    %v2240 = vld [vmem:[#allocation8 + $0x230] sm:$0xff]
    %v2241 = vld [vmem:[#allocation8 + $0x238] sm:$0xff]
    %v2242 = vld [vmem:[#allocation8 + $0x240] sm:$0xff]
    %v2243 = vld [vmem:[#allocation8 + $0x248] sm:$0xff]
    %v2244 = vld [vmem:[#allocation8 + $0x250] sm:$0xff]
    %v2245 = vld [vmem:[#allocation8 + $0x258] sm:$0xff]
    %v2246 = vld [vmem:[#allocation8 + $0x260] sm:$0xff]
    %v2247 = vld [vmem:[#allocation8 + $0x268] sm:$0xff]
    %v2248 = vld [vmem:[#allocation8 + $0x270] sm:$0xff]
    %v2249 = vld [vmem:[#allocation8 + $0x278] sm:$0xff]
    %v2250 = vld [vmem:[#allocation8 + $0x280] sm:$0xff]
    %v2251 = vld [vmem:[#allocation8 + $0x288] sm:$0xff]
    %v2252 = vld [vmem:[#allocation8 + $0x290] sm:$0xff]
    %v2253 = vld [vmem:[#allocation8 + $0x298] sm:$0xff]
    %v2254 = vld [vmem:[#allocation8 + $0x2a0] sm:$0xff]
    %v2255 = vld [vmem:[#allocation8 + $0x2a8] sm:$0xff]
    %v2256 = vld [vmem:[#allocation8 + $0x2b0] sm:$0xff]
    %v2257 = vld [vmem:[#allocation8 + $0x2b8] sm:$0xff]
    %v2258 = vld [vmem:[#allocation8 + $0x2c0] sm:$0xff]
    %v2259 = vld [vmem:[#allocation8 + $0x2c8] sm:$0xff]
    %v2260 = vld [vmem:[#allocation8 + $0x2d0] sm:$0xff]
    %v2261 = vld [vmem:[#allocation8 + $0x2d8] sm:$0xff]
    %v2262 = vld [vmem:[#allocation8 + $0x2e0] sm:$0xff]
    %v2263 = vld [vmem:[#allocation8 + $0x2e8] sm:$0xff]
    %v2264 = vld [vmem:[#allocation8 + $0x2f0] sm:$0xff]
    %v2265 = vld [vmem:[#allocation8 + $0x2f8] sm:$0xff]
    %v2266 = vld [vmem:[#allocation8 + $0x300] sm:$0xff]
    %v2267 = vld [vmem:[#allocation8 + $0x308] sm:$0xff]
    %v2268 = vld [vmem:[#allocation8 + $0x310] sm:$0xff]
    %v2269 = vld [vmem:[#allocation8 + $0x318] sm:$0xff]
    %v2270 = vld [vmem:[#allocation8 + $0x320] sm:$0xff]
    %v2271 = vld [vmem:[#allocation8 + $0x328] sm:$0xff]
    %v2272 = vld [vmem:[#allocation8 + $0x330] sm:$0xff]
    %v2273 = vld [vmem:[#allocation8 + $0x338] sm:$0xff]
    %v2274 = vld [vmem:[#allocation8 + $0x340] sm:$0xff]
    %v2275 = vld [vmem:[#allocation8 + $0x348] sm:$0xff]
    %v2276 = vld [vmem:[#allocation8 + $0x350] sm:$0xff]
    %v2277 = vld [vmem:[#allocation8 + $0x358] sm:$0xff]
    %v2278 = vld [vmem:[#allocation8 + $0x360] sm:$0xff]
    %v2279 = vld [vmem:[#allocation8 + $0x368] sm:$0xff]
    %v2280 = vld [vmem:[#allocation8 + $0x370] sm:$0xff]
    %v2281 = vld [vmem:[#allocation8 + $0x378] sm:$0xff]
    %v2282 = vld [vmem:[#allocation8 + $0x380] sm:$0xff]
    %v2283 = vld [vmem:[#allocation8 + $0x388] sm:$0xff]
    %v2284 = vld [vmem:[#allocation8 + $0x390] sm:$0xff]
    %v2285 = vld [vmem:[#allocation8 + $0x398] sm:$0xff]
    %v2286 = vld [vmem:[#allocation8 + $0x3a0] sm:$0xff]
    %v2287 = vld [vmem:[#allocation8 + $0x3a8] sm:$0xff]
    %v2288 = vld [vmem:[#allocation8 + $0x3b0] sm:$0xff]
    %v2289 = vld [vmem:[#allocation8 + $0x3b8] sm:$0xff]
    %v2290 = vld [vmem:[#allocation8 + $0x3c0] sm:$0xff]
    %v2291 = vld [vmem:[#allocation8 + $0x3c8] sm:$0xff]
    %v2292 = vld [vmem:[#allocation8 + $0x3d0] sm:$0xff]
    %v2293 = vld [vmem:[#allocation8 + $0x3d8] sm:$0xff]
    %v2294 = vld [vmem:[#allocation8 + $0x3e0] sm:$0xff]
    %v2295 = vld [vmem:[#allocation8 + $0x3e8] sm:$0xff]
    %v2296 = vld [vmem:[#allocation8 + $0x3f0] sm:$0xff]
    %v2297 = vld [vmem:[#allocation8 + $0x3f8] sm:$0xff]
    %v2298 = vld [vmem:[#allocation8 + $0x400] sm:$0xff]
    %v2299 = vld [vmem:[#allocation8 + $0x408] sm:$0xff]
    %v2300 = vld [vmem:[#allocation8 + $0x410] sm:$0xff]
    %v2301 = vld [vmem:[#allocation8 + $0x418] sm:$0xff]
    %v2302 = vld [vmem:[#allocation8 + $0x420] sm:$0xff]
    %v2303 = vld [vmem:[#allocation8 + $0x428] sm:$0xff]
    %v2304 = vld [vmem:[#allocation8 + $0x430] sm:$0xff]
    %v2305 = vld [vmem:[#allocation8 + $0x438] sm:$0xff]
    %v2306 = vld [vmem:[#allocation8 + $0x440] sm:$0xff]
    %v2307 = vld [vmem:[#allocation8 + $0x448] sm:$0xff]
    %v2308 = vld [vmem:[#allocation8 + $0x450] sm:$0xff]
    %v2309 = vld [vmem:[#allocation8 + $0x458] sm:$0xff]
    %v2310 = vld [vmem:[#allocation8 + $0x460] sm:$0xff]
    %v2311 = vld [vmem:[#allocation8 + $0x468] sm:$0xff]
    %v2312 = vld [vmem:[#allocation8 + $0x470] sm:$0xff]
    %v2313 = vld [vmem:[#allocation8 + $0x478] sm:$0xff]
    %v2314 = vld [vmem:[#allocation8 + $0x480] sm:$0xff]
    %v2315 = vld [vmem:[#allocation8 + $0x488] sm:$0xff]
    %v2316 = vld [vmem:[#allocation8 + $0x490] sm:$0xff]
    %v2317 = vld [vmem:[#allocation8 + $0x498] sm:$0xff]
    %v2318 = vld [vmem:[#allocation8 + $0x4a0] sm:$0xff]
    %v2319 = vld [vmem:[#allocation8 + $0x4a8] sm:$0xff]
    %v2320 = vld [vmem:[#allocation8 + $0x4b0] sm:$0xff]
    %v2321 = vld [vmem:[#allocation8 + $0x4b8] sm:$0xff]
    %v2322 = vld [vmem:[#allocation8 + $0x4c0] sm:$0xff]
    %v2323 = vld [vmem:[#allocation8 + $0x4c8] sm:$0xff]
    %v2324 = vld [vmem:[#allocation8 + $0x4d0] sm:$0xff]
    %v2325 = vld [vmem:[#allocation8 + $0x4d8] sm:$0xff]
    %v2326 = vld [vmem:[#allocation8 + $0x4e0] sm:$0xff]
    %v2327 = vld [vmem:[#allocation8 + $0x4e8] sm:$0xff]
    %v2328 = vld [vmem:[#allocation8 + $0x4f0] sm:$0xff]
    %v2329 = vld [vmem:[#allocation8 + $0x4f8] sm:$0xff]
    %v2330 = vld [vmem:[#allocation8 + $0x500] sm:$0xff]
    %v2331 = vld [vmem:[#allocation8 + $0x508] sm:$0xff]
    %v2332 = vld [vmem:[#allocation8 + $0x510] sm:$0xff]
    %v2333 = vld [vmem:[#allocation8 + $0x518] sm:$0xff]
    %v2334 = vld [vmem:[#allocation8 + $0x520] sm:$0xff]
    %v2335 = vld [vmem:[#allocation8 + $0x528] sm:$0xff]
    %v2336 = vld [vmem:[#allocation8 + $0x530] sm:$0xff]
    %v2337 = vld [vmem:[#allocation8 + $0x538] sm:$0xff]
    %v2338 = vld [vmem:[#allocation8 + $0x540] sm:$0xff]
    %v2339 = vld [vmem:[#allocation8 + $0x548] sm:$0xff]
    %v2340 = vld [vmem:[#allocation8 + $0x550] sm:$0xff]
    %v2341 = vld [vmem:[#allocation8 + $0x558] sm:$0xff]
    %v2342 = vld [vmem:[#allocation8 + $0x560] sm:$0xff]
    %v2343 = vld [vmem:[#allocation8 + $0x568] sm:$0xff]
    %v2344 = vld [vmem:[#allocation8 + $0x570] sm:$0xff]
    %v2345 = vld [vmem:[#allocation8 + $0x578] sm:$0xff]
    %v2346 = vld [vmem:[#allocation8 + $0x580] sm:$0xff]
    %v2347 = vld [vmem:[#allocation8 + $0x588] sm:$0xff]
    %v2348 = vld [vmem:[#allocation8 + $0x590] sm:$0xff]
    %v2349 = vld [vmem:[#allocation8 + $0x598] sm:$0xff]
    %v2350 = vld [vmem:[#allocation8 + $0x5a0] sm:$0xff]
    %v2351 = vld [vmem:[#allocation8 + $0x5a8] sm:$0xff]
    %v2352 = vld [vmem:[#allocation8 + $0x5b0] sm:$0xff]
    %v2353 = vld [vmem:[#allocation8 + $0x5b8] sm:$0xff]
    %v2354 = vld [vmem:[#allocation8 + $0x5c0] sm:$0xff]
    %v2355 = vld [vmem:[#allocation8 + $0x5c8] sm:$0xff]
    %v2356 = vld [vmem:[#allocation8 + $0x5d0] sm:$0xff]
    %v2357 = vld [vmem:[#allocation8 + $0x5d8] sm:$0xff]
    %v2358 = vld [vmem:[#allocation8 + $0x5e0] sm:$0xff]
    %v2359 = vld [vmem:[#allocation8 + $0x5e8] sm:$0xff]
    %v2360 = vld [vmem:[#allocation8 + $0x5f0] sm:$0xff]
    %v2361 = vld [vmem:[#allocation8 + $0x5f8] sm:$0xff]
    %v2362 = vld [vmem:[%s5] sm:$0x3f]
    %v2364 = vlaneseq
    %v2365 = vshrl.u32 %v2364, 7
    %v2366 = vsub.s32 0, %v2365
    %v2367 = vrot.slane %v2362, %v2366
    %v2368 = vlaneseq
    %v2369 = vshrl.u32 %v2368, 7
    %v2370 = vsub.s32 1, %v2369
    %v2371 = vrot.slane %v2362, %v2370
    %v2372 = vlaneseq
    %v2373 = vshrl.u32 %v2372, 7
    %v2374 = vsub.s32 2, %v2373
    %v2375 = vrot.slane %v2362, %v2374
    %v2376 = vlaneseq
    %v2377 = vshrl.u32 %v2376, 7
    %v2378 = vsub.s32 3, %v2377
    %v2379 = vrot.slane %v2362, %v2378
    %v2380 = vlaneseq
    %v2381 = vshrl.u32 %v2380, 7
    %v2382 = vsub.s32 4, %v2381
    %v2383 = vrot.slane %v2362, %v2382
    %v2384 = vlaneseq
    %v2385 = vshrl.u32 %v2384, 7
    %v2386 = vsub.s32 5, %v2385
    %v2387 = vrot.slane %v2362, %v2386
    %2394 = vmatprep.subr.mxu0 %v2171
    %2395 = vmatpush1.msra.mxu0 %v2170
    %2396 = vmatprep.subr.mxu0 %v2177
    %2397 = vmatpush1.msra.mxu0 %v2176
    %2398 = vmatprep.subr.mxu0 %v2183
    %2399 = vmatpush1.msra.mxu0 %v2182
    %2400 = vmatprep.subr.mxu0 %v2189
    %2401 = vmatpush1.msra.mxu0 %v2188
    %2402 = vmatprep.subr.mxu0 %v2195
    %2403 = vmatpush1.msra.mxu0 %v2194
    %2404 = vmatprep.subr.mxu0 %v2201
    %2405 = vmatpush1.msra.mxu0 %v2200
    %2406 = vmatprep.subr.mxu0 %v2207
    %2407 = vmatpush1.msra.mxu0 %v2206
    %2408 = vmatprep.subr.mxu0 %v2213
    %2409 = vmatpush1.msra.mxu0 %v2212
    %2410 = vmatprep.subr.mxu0 %v2219
    %2411 = vmatpush1.msra.mxu0 %v2218
    %2412 = vmatprep.subr.mxu0 %v2225
    %2413 = vmatpush1.msra.mxu0 %v2224
    %2414 = vmatprep.subr.mxu0 %v2231
    %2415 = vmatpush1.msra.mxu0 %v2230
    %2416 = vmatprep.subr.mxu0 %v2237
    %2417 = vmatpush1.msra.mxu0 %v2236
    %2418 = vmatprep.subr.mxu0 %v2243
    %2419 = vmatpush1.msra.mxu0 %v2242
    %2420 = vmatprep.subr.mxu0 %v2249
    %2421 = vmatpush1.msra.mxu0 %v2248
    %2422 = vmatprep.subr.mxu0 %v2255
    %2423 = vmatpush1.msra.mxu0 %v2254
    %2424 = vmatprep.subr.mxu0 %v2261
    %2425 = vmatpush1.msra.mxu0 %v2260
    %2426 = vmatprep.subr.mxu0 %v2267
    %2427 = vmatpush1.msra.mxu0 %v2266
    %2428 = vmatprep.subr.mxu0 %v2273
    %2429 = vmatpush1.msra.mxu0 %v2272
    %2430 = vmatprep.subr.mxu0 %v2279
    %2431 = vmatpush1.msra.mxu0 %v2278
    %2432 = vmatprep.subr.mxu0 %v2285
    %2433 = vmatpush1.msra.mxu0 %v2284
    %2434 = vmatprep.subr.mxu0 %v2291
    %2435 = vmatpush1.msra.mxu0 %v2290
    %2436 = vmatprep.subr.mxu0 %v2297
    %2437 = vmatpush1.msra.mxu0 %v2296
    %2438 = vmatprep.subr.mxu0 %v2303
    %2439 = vmatpush1.msra.mxu0 %v2302
    %2440 = vmatprep.subr.mxu0 %v2309
    %2441 = vmatpush1.msra.mxu0 %v2308
    %2442 = vmatprep.subr.mxu0 %v2315
    %2443 = vmatpush1.msra.mxu0 %v2314
    %2444 = vmatprep.subr.mxu0 %v2321
    %2445 = vmatpush1.msra.mxu0 %v2320
    %2446 = vmatprep.subr.mxu0 %v2327
    %2447 = vmatpush1.msra.mxu0 %v2326
    %2448 = vmatprep.subr.mxu0 %v2333
    %2449 = vmatpush1.msra.mxu0 %v2332
    %2450 = vmatprep.subr.mxu0 %v2339
    %2451 = vmatpush1.msra.mxu0 %v2338
    %2452 = vmatprep.subr.mxu0 %v2345
    %2453 = vmatpush1.msra.mxu0 %v2344
    %2454 = vmatprep.subr.mxu0 %v2351
    %2455 = vmatpush1.msra.mxu0 %v2350
    %2456 = vmatprep.subr.mxu0 %v2357
    %2457 = vmatpush1.msra.mxu0 %v2356
    %2458 = vmatprep.mubr.f32.mxu0 %v2165
    %2459 = vmatmul.mubr.f32.gmra.mrb[0].mxu0 %v2144
    %v2460 = vpop.f32.mrb[0].mxu0
    %v2461 = vadd.f32 %v2367, %v2460
    %v2462 = vpop.f32.mrb[0].mxu0
    %v2463 = vadd.f32 %v2371, %v2462
    %2464 = vdwg.mxu0
    %2465 = vmatprep.subr.mxu0 %v2173
    %2466 = vmatpush1.msra.mxu0 %v2172
    %2467 = vmatprep.subr.mxu0 %v2179
    %2468 = vmatpush1.msra.mxu0 %v2178
    %2469 = vmatprep.subr.mxu0 %v2185
    %2470 = vmatpush1.msra.mxu0 %v2184
    %2471 = vmatprep.subr.mxu0 %v2191
    %2472 = vmatpush1.msra.mxu0 %v2190
    %2473 = vmatprep.subr.mxu0 %v2197
    %2474 = vmatpush1.msra.mxu0 %v2196
    %2475 = vmatprep.subr.mxu0 %v2203
    %2476 = vmatpush1.msra.mxu0 %v2202
    %2477 = vmatprep.subr.mxu0 %v2209
    %2478 = vmatpush1.msra.mxu0 %v2208
    %2479 = vmatprep.subr.mxu0 %v2215
    %2480 = vmatpush1.msra.mxu0 %v2214
    %2481 = vmatprep.subr.mxu0 %v2221
    %2482 = vmatpush1.msra.mxu0 %v2220
    %2483 = vmatprep.subr.mxu0 %v2227
    %2484 = vmatpush1.msra.mxu0 %v2226
    %2485 = vmatprep.subr.mxu0 %v2233
    %2486 = vmatpush1.msra.mxu0 %v2232
    %2487 = vmatprep.subr.mxu0 %v2239
    %2488 = vmatpush1.msra.mxu0 %v2238
    %2489 = vmatprep.subr.mxu0 %v2245
    %2490 = vmatpush1.msra.mxu0 %v2244
    %2491 = vmatprep.subr.mxu0 %v2251
    %2492 = vmatpush1.msra.mxu0 %v2250
    %2493 = vmatprep.subr.mxu0 %v2257
    %2494 = vmatpush1.msra.mxu0 %v2256
    %2495 = vmatprep.subr.mxu0 %v2263
    %2496 = vmatpush1.msra.mxu0 %v2262
    %2497 = vmatprep.subr.mxu0 %v2269
    %2498 = vmatpush1.msra.mxu0 %v2268
    %2499 = vmatprep.subr.mxu0 %v2275
    %2500 = vmatpush1.msra.mxu0 %v2274
    %2501 = vmatprep.subr.mxu0 %v2281
    %2502 = vmatpush1.msra.mxu0 %v2280
    %2503 = vmatprep.subr.mxu0 %v2287
    %2504 = vmatpush1.msra.mxu0 %v2286
    %2505 = vmatprep.subr.mxu0 %v2293
    %2506 = vmatpush1.msra.mxu0 %v2292
    %2507 = vmatprep.subr.mxu0 %v2299
    %2508 = vmatpush1.msra.mxu0 %v2298
    %2509 = vmatprep.subr.mxu0 %v2305
    %2510 = vmatpush1.msra.mxu0 %v2304
    %2511 = vmatprep.subr.mxu0 %v2311
    %2512 = vmatpush1.msra.mxu0 %v2310
    %2513 = vmatprep.subr.mxu0 %v2317
    %2514 = vmatpush1.msra.mxu0 %v2316
    %2515 = vmatprep.subr.mxu0 %v2323
    %2516 = vmatpush1.msra.mxu0 %v2322
    %2517 = vmatprep.subr.mxu0 %v2329
    %2518 = vmatpush1.msra.mxu0 %v2328
    %2519 = vmatprep.subr.mxu0 %v2335
    %2520 = vmatpush1.msra.mxu0 %v2334
    %2521 = vmatprep.subr.mxu0 %v2341
    %2522 = vmatpush1.msra.mxu0 %v2340
    %2523 = vmatprep.subr.mxu0 %v2347
    %2524 = vmatpush1.msra.mxu0 %v2346
    %2525 = vmatprep.subr.mxu0 %v2353
    %2526 = vmatpush1.msra.mxu0 %v2352
    %2527 = vmatprep.subr.mxu0 %v2359
    %2528 = vmatpush1.msra.mxu0 %v2358
    %2529 = vmatprep.mubr.f32.mxu0 %v2165
    %2530 = vmatmul.mubr.f32.gmra.mrb[0].mxu0 %v2144
    %v2531 = vpop.f32.mrb[0].mxu0
    %v2532 = vadd.f32 %v2375, %v2531
    %v2533 = vpop.f32.mrb[0].mxu0
    %v2534 = vadd.f32 %v2379, %v2533
    %2535 = vdwg.mxu0
    %2536 = vmatprep.subr.mxu0 %v2175
    %2537 = vmatpush1.msra.mxu0 %v2174
    %2538 = vmatprep.subr.mxu0 %v2181
    %2539 = vmatpush1.msra.mxu0 %v2180
    %2540 = vmatprep.subr.mxu0 %v2187
    %2541 = vmatpush1.msra.mxu0 %v2186
    %2542 = vmatprep.subr.mxu0 %v2193
    %2543 = vmatpush1.msra.mxu0 %v2192
    %2544 = vmatprep.subr.mxu0 %v2199
    %2545 = vmatpush1.msra.mxu0 %v2198
    %2546 = vmatprep.subr.mxu0 %v2205
    %2547 = vmatpush1.msra.mxu0 %v2204
    %2548 = vmatprep.subr.mxu0 %v2211
    %2549 = vmatpush1.msra.mxu0 %v2210
    %2550 = vmatprep.subr.mxu0 %v2217
    %2551 = vmatpush1.msra.mxu0 %v2216
    %2552 = vmatprep.subr.mxu0 %v2223
    %2553 = vmatpush1.msra.mxu0 %v2222
    %2554 = vmatprep.subr.mxu0 %v2229
    %2555 = vmatpush1.msra.mxu0 %v2228
    %2556 = vmatprep.subr.mxu0 %v2235
    %2557 = vmatpush1.msra.mxu0 %v2234
    %2558 = vmatprep.subr.mxu0 %v2241
    %2559 = vmatpush1.msra.mxu0 %v2240
    %2560 = vmatprep.subr.mxu0 %v2247
    %2561 = vmatpush1.msra.mxu0 %v2246
    %2562 = vmatprep.subr.mxu0 %v2253
    %2563 = vmatpush1.msra.mxu0 %v2252
    %2564 = vmatprep.subr.mxu0 %v2259
    %2565 = vmatpush1.msra.mxu0 %v2258
    %2566 = vmatprep.subr.mxu0 %v2265
    %2567 = vmatpush1.msra.mxu0 %v2264
    %2568 = vmatprep.subr.mxu0 %v2271
    %2569 = vmatpush1.msra.mxu0 %v2270
    %2570 = vmatprep.subr.mxu0 %v2277
    %2571 = vmatpush1.msra.mxu0 %v2276
    %2572 = vmatprep.subr.mxu0 %v2283
    %2573 = vmatpush1.msra.mxu0 %v2282
    %2574 = vmatprep.subr.mxu0 %v2289
    %2575 = vmatpush1.msra.mxu0 %v2288
    %2576 = vmatprep.subr.mxu0 %v2295
    %2577 = vmatpush1.msra.mxu0 %v2294
    %2578 = vmatprep.subr.mxu0 %v2301
    %2579 = vmatpush1.msra.mxu0 %v2300
    %2580 = vmatprep.subr.mxu0 %v2307
    %2581 = vmatpush1.msra.mxu0 %v2306
    %2582 = vmatprep.subr.mxu0 %v2313
    %2583 = vmatpush1.msra.mxu0 %v2312
    %2584 = vmatprep.subr.mxu0 %v2319
    %2585 = vmatpush1.msra.mxu0 %v2318
    %2586 = vmatprep.subr.mxu0 %v2325
    %2587 = vmatpush1.msra.mxu0 %v2324
    %2588 = vmatprep.subr.mxu0 %v2331
    %2589 = vmatpush1.msra.mxu0 %v2330
    %2590 = vmatprep.subr.mxu0 %v2337
    %2591 = vmatpush1.msra.mxu0 %v2336
    %2592 = vmatprep.subr.mxu0 %v2343
    %2593 = vmatpush1.msra.mxu0 %v2342
    %2594 = vmatprep.subr.mxu0 %v2349
    %2595 = vmatpush1.msra.mxu0 %v2348
    %2596 = vmatprep.subr.mxu0 %v2355
    %2597 = vmatpush1.msra.mxu0 %v2354
    %2598 = vmatprep.subr.mxu0 %v2361
    %2599 = vmatpush1.msra.mxu0 %v2360
    %2600 = vmatprep.mubr.f32.mxu0 %v2165
    %2601 = vmatmul.mubr.f32.gmra.mrb[0].mxu0 %v2144
    %v2602 = vpop.f32.mrb[0].mxu0
    %v2603 = vadd.f32 %v2383, %v2602
    %v2604 = vpop.f32.mrb[0].mxu0
    %v2605 = vadd.f32 %v2387, %v2604
    %2606 = vdwg.mxu0
    %s2607 = scalar_lea.vmem [#allocation2], 144
    %v2608 = vld [vmem:[%s2607] sm:$0xff]
    %v2609 = vld [vmem:[%s2607 + $0x8] sm:$0xff]
    %v2610 = vld [vmem:[%s2607 + $0x10] sm:$0xff]
    %s2611 = scalar_lea.vmem [#allocation2], 192
    %v2612 = vld [vmem:[%s2611 + $0x18] sm:$0xff]
    %v2613 = vld [vmem:[%s2611 + $0x20] sm:$0xff]
    %v2614 = vld [vmem:[%s2611 + $0x28] sm:$0xff]
    %v2615 = vadd.f32 %v2608, %v2461
    %v2616 = vadd.f32 %v2609, %v2463
    %v2617 = vxor.u32 %v2615, 2147483648
    %v2618 = vxor.u32 %v2616, 2147483648
    %v2619 = vmul.f32 %v2617, 1.442695
    %v2620 = vpow.pop %v2619
    %v2621 = vmul.f32 %v2618, 1.442695
    %v2622 = vpow.pop %v2621
    %v2623 = vadd.f32 %v2620, 1.0
    %v2624 = vadd.f32 %v2622, 1.0
    %v2625 = vrcp.pop %v2623
    %v2626 = vmul.f32 1.0, %v2625
    %v2627 = vrcp.pop %v2624
    %v2628 = vmul.f32 1.0, %v2627
    %v2629 = vmul.f32 %v2626, %v2532
    %v2630 = vadd.f32 %v2610, %v2629
    %v2631 = vtanh.pop %v2630
    %v2632 = vsub.f32 1.0, %v2628
    %v2633 = vmul.f32 %v2632, %v2631
    %v2634 = vmul.f32 %v2628, %v2144
    %v2635 = vadd.f32 %v2633, %v2634
    %v2636 = vadd.f32 %v2612, %v2534
    %v2637 = vadd.f32 %v2613, %v2603
    %v2638 = vxor.u32 %v2636, 2147483648
    %v2639 = vxor.u32 %v2637, 2147483648
    %v2640 = vmul.f32 %v2638, 1.442695
    %v2641 = vpow.pop %v2640
    %v2642 = vmul.f32 %v2639, 1.442695
    %v2643 = vpow.pop %v2642
    %v2644 = vadd.f32 %v2641, 1.0
    %v2645 = vadd.f32 %v2643, 1.0
    %v2646 = vrcp.pop %v2644
    %v2647 = vmul.f32 1.0, %v2646
    %v2648 = vrcp.pop %v2645
    %v2649 = vmul.f32 1.0, %v2648
    %v2650 = vmul.f32 %v2647, %v2605
    %v2651 = vadd.f32 %v2614, %v2650
    %v2652 = vtanh.pop %v2651
    %v2653 = vsub.f32 1.0, %v2649
    %v2654 = vmul.f32 %v2653, %v2652
    %v2655 = vmul.f32 %v2649, %v2165
    %v2656 = vadd.f32 %v2654, %v2655
    %s2657 = scalar_lea.vmem [#allocation3], 48
    %2658 = vst [vmem:[%s2657] sm:$0xff] %v2635
    %s2659 = scalar_lea.vmem [#allocation3], 64
    %2660 = vst [vmem:[%s2659 + $0x8] sm:$0xff] %v2656
    %v2661 = vld [vmem:[#allocation8] sm:$0xff]
    %v2662 = vld [vmem:[#allocation8 + $0x8] sm:$0xff]
    %v2663 = vld [vmem:[#allocation8 + $0x10] sm:$0xff]
    %v2664 = vld [vmem:[#allocation8 + $0x18] sm:$0xff]
    %v2665 = vld [vmem:[#allocation8 + $0x20] sm:$0xff]
    %v2666 = vld [vmem:[#allocation8 + $0x28] sm:$0xff]
    %v2667 = vld [vmem:[#allocation8 + $0x30] sm:$0xff]
    %v2668 = vld [vmem:[#allocation8 + $0x38] sm:$0xff]
    %v2669 = vld [vmem:[#allocation8 + $0x40] sm:$0xff]
    %v2670 = vld [vmem:[#allocation8 + $0x48] sm:$0xff]
    %v2671 = vld [vmem:[#allocation8 + $0x50] sm:$0xff]
    %v2672 = vld [vmem:[#allocation8 + $0x58] sm:$0xff]
    %v2673 = vld [vmem:[#allocation8 + $0x60] sm:$0xff]
    %v2674 = vld [vmem:[#allocation8 + $0x68] sm:$0xff]
    %v2675 = vld [vmem:[#allocation8 + $0x70] sm:$0xff]
    %v2676 = vld [vmem:[#allocation8 + $0x78] sm:$0xff]
    %v2677 = vld [vmem:[#allocation8 + $0x80] sm:$0xff]
    %v2678 = vld [vmem:[#allocation8 + $0x88] sm:$0xff]
    %v2679 = vld [vmem:[#allocation8 + $0x90] sm:$0xff]
    %v2680 = vld [vmem:[#allocation8 + $0x98] sm:$0xff]
    %v2681 = vld [vmem:[#allocation8 + $0xa0] sm:$0xff]
    %v2682 = vld [vmem:[#allocation8 + $0xa8] sm:$0xff]
    %v2683 = vld [vmem:[#allocation8 + $0xb0] sm:$0xff]
    %v2684 = vld [vmem:[#allocation8 + $0xb8] sm:$0xff]
    %v2685 = vld [vmem:[#allocation8 + $0xc0] sm:$0xff]
    %v2686 = vld [vmem:[#allocation8 + $0xc8] sm:$0xff]
    %v2687 = vld [vmem:[#allocation8 + $0xd0] sm:$0xff]
    %v2688 = vld [vmem:[#allocation8 + $0xd8] sm:$0xff]
    %v2689 = vld [vmem:[#allocation8 + $0xe0] sm:$0xff]
    %v2690 = vld [vmem:[#allocation8 + $0xe8] sm:$0xff]
    %v2691 = vld [vmem:[#allocation8 + $0xf0] sm:$0xff]
    %v2692 = vld [vmem:[#allocation8 + $0xf8] sm:$0xff]
    %v2693 = vld [vmem:[#allocation8 + $0x100] sm:$0xff]
    %v2694 = vld [vmem:[#allocation8 + $0x108] sm:$0xff]
    %v2695 = vld [vmem:[#allocation8 + $0x110] sm:$0xff]
    %v2696 = vld [vmem:[#allocation8 + $0x118] sm:$0xff]
    %v2697 = vld [vmem:[#allocation8 + $0x120] sm:$0xff]
    %v2698 = vld [vmem:[#allocation8 + $0x128] sm:$0xff]
    %v2699 = vld [vmem:[#allocation8 + $0x130] sm:$0xff]
    %v2700 = vld [vmem:[#allocation8 + $0x138] sm:$0xff]
    %v2701 = vld [vmem:[#allocation8 + $0x140] sm:$0xff]
    %v2702 = vld [vmem:[#allocation8 + $0x148] sm:$0xff]
    %v2703 = vld [vmem:[#allocation8 + $0x150] sm:$0xff]
    %v2704 = vld [vmem:[#allocation8 + $0x158] sm:$0xff]
    %v2705 = vld [vmem:[#allocation8 + $0x160] sm:$0xff]
    %v2706 = vld [vmem:[#allocation8 + $0x168] sm:$0xff]
    %v2707 = vld [vmem:[#allocation8 + $0x170] sm:$0xff]
    %v2708 = vld [vmem:[#allocation8 + $0x178] sm:$0xff]
    %v2709 = vld [vmem:[#allocation8 + $0x180] sm:$0xff]
    %v2710 = vld [vmem:[#allocation8 + $0x188] sm:$0xff]
    %v2711 = vld [vmem:[#allocation8 + $0x190] sm:$0xff]
    %v2712 = vld [vmem:[#allocation8 + $0x198] sm:$0xff]
    %v2713 = vld [vmem:[#allocation8 + $0x1a0] sm:$0xff]
    %v2714 = vld [vmem:[#allocation8 + $0x1a8] sm:$0xff]
    %v2715 = vld [vmem:[#allocation8 + $0x1b0] sm:$0xff]
    %v2716 = vld [vmem:[#allocation8 + $0x1b8] sm:$0xff]
    %v2717 = vld [vmem:[#allocation8 + $0x1c0] sm:$0xff]
    %v2718 = vld [vmem:[#allocation8 + $0x1c8] sm:$0xff]
    %v2719 = vld [vmem:[#allocation8 + $0x1d0] sm:$0xff]
    %v2720 = vld [vmem:[#allocation8 + $0x1d8] sm:$0xff]
    %v2721 = vld [vmem:[#allocation8 + $0x1e0] sm:$0xff]
    %v2722 = vld [vmem:[#allocation8 + $0x1e8] sm:$0xff]
    %v2723 = vld [vmem:[#allocation8 + $0x1f0] sm:$0xff]
    %v2724 = vld [vmem:[#allocation8 + $0x1f8] sm:$0xff]
    %v2725 = vld [vmem:[#allocation8 + $0x200] sm:$0xff]
    %v2726 = vld [vmem:[#allocation8 + $0x208] sm:$0xff]
    %v2727 = vld [vmem:[#allocation8 + $0x210] sm:$0xff]
    %v2728 = vld [vmem:[#allocation8 + $0x218] sm:$0xff]
    %v2729 = vld [vmem:[#allocation8 + $0x220] sm:$0xff]
    %v2730 = vld [vmem:[#allocation8 + $0x228] sm:$0xff]
    %v2731 = vld [vmem:[#allocation8 + $0x230] sm:$0xff]
    %v2732 = vld [vmem:[#allocation8 + $0x238] sm:$0xff]
    %v2733 = vld [vmem:[#allocation8 + $0x240] sm:$0xff]
    %v2734 = vld [vmem:[#allocation8 + $0x248] sm:$0xff]
    %v2735 = vld [vmem:[#allocation8 + $0x250] sm:$0xff]
    %v2736 = vld [vmem:[#allocation8 + $0x258] sm:$0xff]
    %v2737 = vld [vmem:[#allocation8 + $0x260] sm:$0xff]
    %v2738 = vld [vmem:[#allocation8 + $0x268] sm:$0xff]
    %v2739 = vld [vmem:[#allocation8 + $0x270] sm:$0xff]
    %v2740 = vld [vmem:[#allocation8 + $0x278] sm:$0xff]
    %v2741 = vld [vmem:[#allocation8 + $0x280] sm:$0xff]
    %v2742 = vld [vmem:[#allocation8 + $0x288] sm:$0xff]
    %v2743 = vld [vmem:[#allocation8 + $0x290] sm:$0xff]
    %v2744 = vld [vmem:[#allocation8 + $0x298] sm:$0xff]
    %v2745 = vld [vmem:[#allocation8 + $0x2a0] sm:$0xff]
    %v2746 = vld [vmem:[#allocation8 + $0x2a8] sm:$0xff]
    %v2747 = vld [vmem:[#allocation8 + $0x2b0] sm:$0xff]
    %v2748 = vld [vmem:[#allocation8 + $0x2b8] sm:$0xff]
    %v2749 = vld [vmem:[#allocation8 + $0x2c0] sm:$0xff]
    %v2750 = vld [vmem:[#allocation8 + $0x2c8] sm:$0xff]
    %v2751 = vld [vmem:[#allocation8 + $0x2d0] sm:$0xff]
    %v2752 = vld [vmem:[#allocation8 + $0x2d8] sm:$0xff]
    %v2753 = vld [vmem:[#allocation8 + $0x2e0] sm:$0xff]
    %v2754 = vld [vmem:[#allocation8 + $0x2e8] sm:$0xff]
    %v2755 = vld [vmem:[#allocation8 + $0x2f0] sm:$0xff]
    %v2756 = vld [vmem:[#allocation8 + $0x2f8] sm:$0xff]
    %v2757 = vld [vmem:[#allocation8 + $0x300] sm:$0xff]
    %v2758 = vld [vmem:[#allocation8 + $0x308] sm:$0xff]
    %v2759 = vld [vmem:[#allocation8 + $0x310] sm:$0xff]
    %v2760 = vld [vmem:[#allocation8 + $0x318] sm:$0xff]
    %v2761 = vld [vmem:[#allocation8 + $0x320] sm:$0xff]
    %v2762 = vld [vmem:[#allocation8 + $0x328] sm:$0xff]
    %v2763 = vld [vmem:[#allocation8 + $0x330] sm:$0xff]
    %v2764 = vld [vmem:[#allocation8 + $0x338] sm:$0xff]
    %v2765 = vld [vmem:[#allocation8 + $0x340] sm:$0xff]
    %v2766 = vld [vmem:[#allocation8 + $0x348] sm:$0xff]
    %v2767 = vld [vmem:[#allocation8 + $0x350] sm:$0xff]
    %v2768 = vld [vmem:[#allocation8 + $0x358] sm:$0xff]
    %v2769 = vld [vmem:[#allocation8 + $0x360] sm:$0xff]
    %v2770 = vld [vmem:[#allocation8 + $0x368] sm:$0xff]
    %v2771 = vld [vmem:[#allocation8 + $0x370] sm:$0xff]
    %v2772 = vld [vmem:[#allocation8 + $0x378] sm:$0xff]
    %v2773 = vld [vmem:[#allocation8 + $0x380] sm:$0xff]
    %v2774 = vld [vmem:[#allocation8 + $0x388] sm:$0xff]
    %v2775 = vld [vmem:[#allocation8 + $0x390] sm:$0xff]
    %v2776 = vld [vmem:[#allocation8 + $0x398] sm:$0xff]
    %v2777 = vld [vmem:[#allocation8 + $0x3a0] sm:$0xff]
    %v2778 = vld [vmem:[#allocation8 + $0x3a8] sm:$0xff]
    %v2779 = vld [vmem:[#allocation8 + $0x3b0] sm:$0xff]
    %v2780 = vld [vmem:[#allocation8 + $0x3b8] sm:$0xff]
    %v2781 = vld [vmem:[#allocation8 + $0x3c0] sm:$0xff]
    %v2782 = vld [vmem:[#allocation8 + $0x3c8] sm:$0xff]
    %v2783 = vld [vmem:[#allocation8 + $0x3d0] sm:$0xff]
    %v2784 = vld [vmem:[#allocation8 + $0x3d8] sm:$0xff]
    %v2785 = vld [vmem:[#allocation8 + $0x3e0] sm:$0xff]
    %v2786 = vld [vmem:[#allocation8 + $0x3e8] sm:$0xff]
    %v2787 = vld [vmem:[#allocation8 + $0x3f0] sm:$0xff]
    %v2788 = vld [vmem:[#allocation8 + $0x3f8] sm:$0xff]
    %v2789 = vld [vmem:[#allocation8 + $0x400] sm:$0xff]
    %v2790 = vld [vmem:[#allocation8 + $0x408] sm:$0xff]
    %v2791 = vld [vmem:[#allocation8 + $0x410] sm:$0xff]
    %v2792 = vld [vmem:[#allocation8 + $0x418] sm:$0xff]
    %v2793 = vld [vmem:[#allocation8 + $0x420] sm:$0xff]
    %v2794 = vld [vmem:[#allocation8 + $0x428] sm:$0xff]
    %v2795 = vld [vmem:[#allocation8 + $0x430] sm:$0xff]
    %v2796 = vld [vmem:[#allocation8 + $0x438] sm:$0xff]
    %v2797 = vld [vmem:[#allocation8 + $0x440] sm:$0xff]
    %v2798 = vld [vmem:[#allocation8 + $0x448] sm:$0xff]
    %v2799 = vld [vmem:[#allocation8 + $0x450] sm:$0xff]
    %v2800 = vld [vmem:[#allocation8 + $0x458] sm:$0xff]
    %v2801 = vld [vmem:[#allocation8 + $0x460] sm:$0xff]
    %v2802 = vld [vmem:[#allocation8 + $0x468] sm:$0xff]
    %v2803 = vld [vmem:[#allocation8 + $0x470] sm:$0xff]
    %v2804 = vld [vmem:[#allocation8 + $0x478] sm:$0xff]
    %v2805 = vld [vmem:[#allocation8 + $0x480] sm:$0xff]
    %v2806 = vld [vmem:[#allocation8 + $0x488] sm:$0xff]
    %v2807 = vld [vmem:[#allocation8 + $0x490] sm:$0xff]
    %v2808 = vld [vmem:[#allocation8 + $0x498] sm:$0xff]
    %v2809 = vld [vmem:[#allocation8 + $0x4a0] sm:$0xff]
    %v2810 = vld [vmem:[#allocation8 + $0x4a8] sm:$0xff]
    %v2811 = vld [vmem:[#allocation8 + $0x4b0] sm:$0xff]
    %v2812 = vld [vmem:[#allocation8 + $0x4b8] sm:$0xff]
    %v2813 = vld [vmem:[#allocation8 + $0x4c0] sm:$0xff]
    %v2814 = vld [vmem:[#allocation8 + $0x4c8] sm:$0xff]
    %v2815 = vld [vmem:[#allocation8 + $0x4d0] sm:$0xff]
    %v2816 = vld [vmem:[#allocation8 + $0x4d8] sm:$0xff]
    %v2817 = vld [vmem:[#allocation8 + $0x4e0] sm:$0xff]
    %v2818 = vld [vmem:[#allocation8 + $0x4e8] sm:$0xff]
    %v2819 = vld [vmem:[#allocation8 + $0x4f0] sm:$0xff]
    %v2820 = vld [vmem:[#allocation8 + $0x4f8] sm:$0xff]
    %v2821 = vld [vmem:[#allocation8 + $0x500] sm:$0xff]
    %v2822 = vld [vmem:[#allocation8 + $0x508] sm:$0xff]
    %v2823 = vld [vmem:[#allocation8 + $0x510] sm:$0xff]
    %v2824 = vld [vmem:[#allocation8 + $0x518] sm:$0xff]
    %v2825 = vld [vmem:[#allocation8 + $0x520] sm:$0xff]
    %v2826 = vld [vmem:[#allocation8 + $0x528] sm:$0xff]
    %v2827 = vld [vmem:[#allocation8 + $0x530] sm:$0xff]
    %v2828 = vld [vmem:[#allocation8 + $0x538] sm:$0xff]
    %v2829 = vld [vmem:[#allocation8 + $0x540] sm:$0xff]
    %v2830 = vld [vmem:[#allocation8 + $0x548] sm:$0xff]
    %v2831 = vld [vmem:[#allocation8 + $0x550] sm:$0xff]
    %v2832 = vld [vmem:[#allocation8 + $0x558] sm:$0xff]
    %v2833 = vld [vmem:[#allocation8 + $0x560] sm:$0xff]
    %v2834 = vld [vmem:[#allocation8 + $0x568] sm:$0xff]
    %v2835 = vld [vmem:[#allocation8 + $0x570] sm:$0xff]
    %v2836 = vld [vmem:[#allocation8 + $0x578] sm:$0xff]
    %v2837 = vld [vmem:[#allocation8 + $0x580] sm:$0xff]
    %v2838 = vld [vmem:[#allocation8 + $0x588] sm:$0xff]
    %v2839 = vld [vmem:[#allocation8 + $0x590] sm:$0xff]
    %v2840 = vld [vmem:[#allocation8 + $0x598] sm:$0xff]
    %v2841 = vld [vmem:[#allocation8 + $0x5a0] sm:$0xff]
    %v2842 = vld [vmem:[#allocation8 + $0x5a8] sm:$0xff]
    %v2843 = vld [vmem:[#allocation8 + $0x5b0] sm:$0xff]
    %v2844 = vld [vmem:[#allocation8 + $0x5b8] sm:$0xff]
    %v2845 = vld [vmem:[#allocation8 + $0x5c0] sm:$0xff]
    %v2846 = vld [vmem:[#allocation8 + $0x5c8] sm:$0xff]
    %v2847 = vld [vmem:[#allocation8 + $0x5d0] sm:$0xff]
    %v2848 = vld [vmem:[#allocation8 + $0x5d8] sm:$0xff]
    %v2849 = vld [vmem:[#allocation8 + $0x5e0] sm:$0xff]
    %v2850 = vld [vmem:[#allocation8 + $0x5e8] sm:$0xff]
    %v2851 = vld [vmem:[#allocation8 + $0x5f0] sm:$0xff]
    %v2852 = vld [vmem:[#allocation8 + $0x5f8] sm:$0xff]
    %v2853 = vld [vmem:[%s5] sm:$0x3f]
    %v2855 = vlaneseq
    %v2856 = vshrl.u32 %v2855, 7
    %v2857 = vsub.s32 0, %v2856
    %v2858 = vrot.slane %v2853, %v2857
    %v2859 = vlaneseq
    %v2860 = vshrl.u32 %v2859, 7
    %v2861 = vsub.s32 1, %v2860
    %v2862 = vrot.slane %v2853, %v2861
    %v2863 = vlaneseq
    %v2864 = vshrl.u32 %v2863, 7
    %v2865 = vsub.s32 2, %v2864
    %v2866 = vrot.slane %v2853, %v2865
    %v2867 = vlaneseq
    %v2868 = vshrl.u32 %v2867, 7
    %v2869 = vsub.s32 3, %v2868
    %v2870 = vrot.slane %v2853, %v2869
    %v2871 = vlaneseq
    %v2872 = vshrl.u32 %v2871, 7
    %v2873 = vsub.s32 4, %v2872
    %v2874 = vrot.slane %v2853, %v2873
    %v2875 = vlaneseq
    %v2876 = vshrl.u32 %v2875, 7
    %v2877 = vsub.s32 5, %v2876
    %v2878 = vrot.slane %v2853, %v2877
    %2885 = vmatprep.subr.mxu0 %v2662
    %2886 = vmatpush1.msra.mxu0 %v2661
    %2887 = vmatprep.subr.mxu0 %v2668
    %2888 = vmatpush1.msra.mxu0 %v2667
    %2889 = vmatprep.subr.mxu0 %v2674
    %2890 = vmatpush1.msra.mxu0 %v2673
    %2891 = vmatprep.subr.mxu0 %v2680
    %2892 = vmatpush1.msra.mxu0 %v2679
    %2893 = vmatprep.subr.mxu0 %v2686
    %2894 = vmatpush1.msra.mxu0 %v2685
    %2895 = vmatprep.subr.mxu0 %v2692
    %2896 = vmatpush1.msra.mxu0 %v2691
    %2897 = vmatprep.subr.mxu0 %v2698
    %2898 = vmatpush1.msra.mxu0 %v2697
    %2899 = vmatprep.subr.mxu0 %v2704
    %2900 = vmatpush1.msra.mxu0 %v2703
    %2901 = vmatprep.subr.mxu0 %v2710
    %2902 = vmatpush1.msra.mxu0 %v2709
    %2903 = vmatprep.subr.mxu0 %v2716
    %2904 = vmatpush1.msra.mxu0 %v2715
    %2905 = vmatprep.subr.mxu0 %v2722
    %2906 = vmatpush1.msra.mxu0 %v2721
    %2907 = vmatprep.subr.mxu0 %v2728
    %2908 = vmatpush1.msra.mxu0 %v2727
    %2909 = vmatprep.subr.mxu0 %v2734
    %2910 = vmatpush1.msra.mxu0 %v2733
    %2911 = vmatprep.subr.mxu0 %v2740
    %2912 = vmatpush1.msra.mxu0 %v2739
    %2913 = vmatprep.subr.mxu0 %v2746
    %2914 = vmatpush1.msra.mxu0 %v2745
    %2915 = vmatprep.subr.mxu0 %v2752
    %2916 = vmatpush1.msra.mxu0 %v2751
    %2917 = vmatprep.subr.mxu0 %v2758
    %2918 = vmatpush1.msra.mxu0 %v2757
    %2919 = vmatprep.subr.mxu0 %v2764
    %2920 = vmatpush1.msra.mxu0 %v2763
    %2921 = vmatprep.subr.mxu0 %v2770
    %2922 = vmatpush1.msra.mxu0 %v2769
    %2923 = vmatprep.subr.mxu0 %v2776
    %2924 = vmatpush1.msra.mxu0 %v2775
    %2925 = vmatprep.subr.mxu0 %v2782
    %2926 = vmatpush1.msra.mxu0 %v2781
    %2927 = vmatprep.subr.mxu0 %v2788
    %2928 = vmatpush1.msra.mxu0 %v2787
    %2929 = vmatprep.subr.mxu0 %v2794
    %2930 = vmatpush1.msra.mxu0 %v2793
    %2931 = vmatprep.subr.mxu0 %v2800
    %2932 = vmatpush1.msra.mxu0 %v2799
    %2933 = vmatprep.subr.mxu0 %v2806
    %2934 = vmatpush1.msra.mxu0 %v2805
    %2935 = vmatprep.subr.mxu0 %v2812
    %2936 = vmatpush1.msra.mxu0 %v2811
    %2937 = vmatprep.subr.mxu0 %v2818
    %2938 = vmatpush1.msra.mxu0 %v2817
    %2939 = vmatprep.subr.mxu0 %v2824
    %2940 = vmatpush1.msra.mxu0 %v2823
    %2941 = vmatprep.subr.mxu0 %v2830
    %2942 = vmatpush1.msra.mxu0 %v2829
    %2943 = vmatprep.subr.mxu0 %v2836
    %2944 = vmatpush1.msra.mxu0 %v2835
    %2945 = vmatprep.subr.mxu0 %v2842
    %2946 = vmatpush1.msra.mxu0 %v2841
    %2947 = vmatprep.subr.mxu0 %v2848
    %2948 = vmatpush1.msra.mxu0 %v2847
    %2949 = vmatprep.mubr.f32.mxu0 %v2656
    %2950 = vmatmul.mubr.f32.gmra.mrb[0].mxu0 %v2635
    %v2951 = vpop.f32.mrb[0].mxu0
    %v2952 = vadd.f32 %v2858, %v2951
    %v2953 = vpop.f32.mrb[0].mxu0
    %v2954 = vadd.f32 %v2862, %v2953
    %2955 = vdwg.mxu0
    %2956 = vmatprep.subr.mxu0 %v2664
    %2957 = vmatpush1.msra.mxu0 %v2663
    %2958 = vmatprep.subr.mxu0 %v2670
    %2959 = vmatpush1.msra.mxu0 %v2669
    %2960 = vmatprep.subr.mxu0 %v2676
    %2961 = vmatpush1.msra.mxu0 %v2675
    %2962 = vmatprep.subr.mxu0 %v2682
    %2963 = vmatpush1.msra.mxu0 %v2681
    %2964 = vmatprep.subr.mxu0 %v2688
    %2965 = vmatpush1.msra.mxu0 %v2687
    %2966 = vmatprep.subr.mxu0 %v2694
    %2967 = vmatpush1.msra.mxu0 %v2693
    %2968 = vmatprep.subr.mxu0 %v2700
    %2969 = vmatpush1.msra.mxu0 %v2699
    %2970 = vmatprep.subr.mxu0 %v2706
    %2971 = vmatpush1.msra.mxu0 %v2705
    %2972 = vmatprep.subr.mxu0 %v2712
    %2973 = vmatpush1.msra.mxu0 %v2711
    %2974 = vmatprep.subr.mxu0 %v2718
    %2975 = vmatpush1.msra.mxu0 %v2717
    %2976 = vmatprep.subr.mxu0 %v2724
    %2977 = vmatpush1.msra.mxu0 %v2723
    %2978 = vmatprep.subr.mxu0 %v2730
    %2979 = vmatpush1.msra.mxu0 %v2729
    %2980 = vmatprep.subr.mxu0 %v2736
    %2981 = vmatpush1.msra.mxu0 %v2735
    %2982 = vmatprep.subr.mxu0 %v2742
    %2983 = vmatpush1.msra.mxu0 %v2741
    %2984 = vmatprep.subr.mxu0 %v2748
    %2985 = vmatpush1.msra.mxu0 %v2747
    %2986 = vmatprep.subr.mxu0 %v2754
    %2987 = vmatpush1.msra.mxu0 %v2753
    %2988 = vmatprep.subr.mxu0 %v2760
    %2989 = vmatpush1.msra.mxu0 %v2759
    %2990 = vmatprep.subr.mxu0 %v2766
    %2991 = vmatpush1.msra.mxu0 %v2765
    %2992 = vmatprep.subr.mxu0 %v2772
    %2993 = vmatpush1.msra.mxu0 %v2771
    %2994 = vmatprep.subr.mxu0 %v2778
    %2995 = vmatpush1.msra.mxu0 %v2777
    %2996 = vmatprep.subr.mxu0 %v2784
    %2997 = vmatpush1.msra.mxu0 %v2783
    %2998 = vmatprep.subr.mxu0 %v2790
    %2999 = vmatpush1.msra.mxu0 %v2789
    %3000 = vmatprep.subr.mxu0 %v2796
    %3001 = vmatpush1.msra.mxu0 %v2795
    %3002 = vmatprep.subr.mxu0 %v2802
    %3003 = vmatpush1.msra.mxu0 %v2801
    %3004 = vmatprep.subr.mxu0 %v2808
    %3005 = vmatpush1.msra.mxu0 %v2807
    %3006 = vmatprep.subr.mxu0 %v2814
    %3007 = vmatpush1.msra.mxu0 %v2813
    %3008 = vmatprep.subr.mxu0 %v2820
    %3009 = vmatpush1.msra.mxu0 %v2819
    %3010 = vmatprep.subr.mxu0 %v2826
    %3011 = vmatpush1.msra.mxu0 %v2825
    %3012 = vmatprep.subr.mxu0 %v2832
    %3013 = vmatpush1.msra.mxu0 %v2831
    %3014 = vmatprep.subr.mxu0 %v2838
    %3015 = vmatpush1.msra.mxu0 %v2837
    %3016 = vmatprep.subr.mxu0 %v2844
    %3017 = vmatpush1.msra.mxu0 %v2843
    %3018 = vmatprep.subr.mxu0 %v2850
    %3019 = vmatpush1.msra.mxu0 %v2849
    %3020 = vmatprep.mubr.f32.mxu0 %v2656
    %3021 = vmatmul.mubr.f32.gmra.mrb[0].mxu0 %v2635
    %v3022 = vpop.f32.mrb[0].mxu0
    %v3023 = vadd.f32 %v2866, %v3022
    %v3024 = vpop.f32.mrb[0].mxu0
    %v3025 = vadd.f32 %v2870, %v3024
    %3026 = vdwg.mxu0
    %3027 = vmatprep.subr.mxu0 %v2666
    %3028 = vmatpush1.msra.mxu0 %v2665
    %3029 = vmatprep.subr.mxu0 %v2672
    %3030 = vmatpush1.msra.mxu0 %v2671
    %3031 = vmatprep.subr.mxu0 %v2678
    %3032 = vmatpush1.msra.mxu0 %v2677
    %3033 = vmatprep.subr.mxu0 %v2684
    %3034 = vmatpush1.msra.mxu0 %v2683
    %3035 = vmatprep.subr.mxu0 %v2690
    %3036 = vmatpush1.msra.mxu0 %v2689
    %3037 = vmatprep.subr.mxu0 %v2696
    %3038 = vmatpush1.msra.mxu0 %v2695
    %3039 = vmatprep.subr.mxu0 %v2702
    %3040 = vmatpush1.msra.mxu0 %v2701
    %3041 = vmatprep.subr.mxu0 %v2708
    %3042 = vmatpush1.msra.mxu0 %v2707
    %3043 = vmatprep.subr.mxu0 %v2714
    %3044 = vmatpush1.msra.mxu0 %v2713
    %3045 = vmatprep.subr.mxu0 %v2720
    %3046 = vmatpush1.msra.mxu0 %v2719
    %3047 = vmatprep.subr.mxu0 %v2726
    %3048 = vmatpush1.msra.mxu0 %v2725
    %3049 = vmatprep.subr.mxu0 %v2732
    %3050 = vmatpush1.msra.mxu0 %v2731
    %3051 = vmatprep.subr.mxu0 %v2738
    %3052 = vmatpush1.msra.mxu0 %v2737
    %3053 = vmatprep.subr.mxu0 %v2744
    %3054 = vmatpush1.msra.mxu0 %v2743
    %3055 = vmatprep.subr.mxu0 %v2750
    %3056 = vmatpush1.msra.mxu0 %v2749
    %3057 = vmatprep.subr.mxu0 %v2756
    %3058 = vmatpush1.msra.mxu0 %v2755
    %3059 = vmatprep.subr.mxu0 %v2762
    %3060 = vmatpush1.msra.mxu0 %v2761
    %3061 = vmatprep.subr.mxu0 %v2768
    %3062 = vmatpush1.msra.mxu0 %v2767
    %3063 = vmatprep.subr.mxu0 %v2774
    %3064 = vmatpush1.msra.mxu0 %v2773
    %3065 = vmatprep.subr.mxu0 %v2780
    %3066 = vmatpush1.msra.mxu0 %v2779
    %3067 = vmatprep.subr.mxu0 %v2786
    %3068 = vmatpush1.msra.mxu0 %v2785
    %3069 = vmatprep.subr.mxu0 %v2792
    %3070 = vmatpush1.msra.mxu0 %v2791
    %3071 = vmatprep.subr.mxu0 %v2798
    %3072 = vmatpush1.msra.mxu0 %v2797
    %3073 = vmatprep.subr.mxu0 %v2804
    %3074 = vmatpush1.msra.mxu0 %v2803
    %3075 = vmatprep.subr.mxu0 %v2810
    %3076 = vmatpush1.msra.mxu0 %v2809
    %3077 = vmatprep.subr.mxu0 %v2816
    %3078 = vmatpush1.msra.mxu0 %v2815
    %3079 = vmatprep.subr.mxu0 %v2822
    %3080 = vmatpush1.msra.mxu0 %v2821
    %3081 = vmatprep.subr.mxu0 %v2828
    %3082 = vmatpush1.msra.mxu0 %v2827
    %3083 = vmatprep.subr.mxu0 %v2834
    %3084 = vmatpush1.msra.mxu0 %v2833
    %3085 = vmatprep.subr.mxu0 %v2840
    %3086 = vmatpush1.msra.mxu0 %v2839
    %3087 = vmatprep.subr.mxu0 %v2846
    %3088 = vmatpush1.msra.mxu0 %v2845
    %3089 = vmatprep.subr.mxu0 %v2852
    %3090 = vmatpush1.msra.mxu0 %v2851
    %3091 = vmatprep.mubr.f32.mxu0 %v2656
    %3092 = vmatmul.mubr.f32.gmra.mrb[0].mxu0 %v2635
    %v3093 = vpop.f32.mrb[0].mxu0
    %v3094 = vadd.f32 %v2874, %v3093
    %v3095 = vpop.f32.mrb[0].mxu0
    %v3096 = vadd.f32 %v2878, %v3095
    %3097 = vdwg.mxu0
    %v3098 = vld [vmem:[%s2611] sm:$0xff]
    %v3099 = vld [vmem:[%s2611 + $0x8] sm:$0xff]
    %v3100 = vld [vmem:[%s2611 + $0x10] sm:$0xff]
    %v3101 = vld [vmem:[%s2607 + $0x18] sm:$0xff]
    %v3102 = vld [vmem:[%s2607 + $0x20] sm:$0xff]
    %v3103 = vld [vmem:[%s2607 + $0x28] sm:$0xff]
    %v3104 = vadd.f32 %v3098, %v2952
    %v3105 = vadd.f32 %v3099, %v2954
    %v3106 = vxor.u32 %v3104, 2147483648
    %v3107 = vxor.u32 %v3105, 2147483648
    %v3108 = vmul.f32 %v3106, 1.442695
    %v3109 = vpow.pop %v3108
    %v3110 = vmul.f32 %v3107, 1.442695
    %v3111 = vpow.pop %v3110
    %v3112 = vadd.f32 %v3109, 1.0
    %v3113 = vadd.f32 %v3111, 1.0
    %v3114 = vrcp.pop %v3112
    %v3115 = vmul.f32 1.0, %v3114
    %v3116 = vrcp.pop %v3113
    %v3117 = vmul.f32 1.0, %v3116
    %v3118 = vmul.f32 %v3115, %v3023
    %v3119 = vadd.f32 %v3100, %v3118
    %v3120 = vtanh.pop %v3119
    %v3121 = vsub.f32 1.0, %v3117
    %v3122 = vmul.f32 %v3121, %v3120
    %v3123 = vmul.f32 %v3117, %v2635
    %v3124 = vadd.f32 %v3122, %v3123
    %v3125 = vadd.f32 %v3101, %v3025
    %v3126 = vadd.f32 %v3102, %v3094
    %v3127 = vxor.u32 %v3125, 2147483648
    %v3128 = vxor.u32 %v3126, 2147483648
    %v3129 = vmul.f32 %v3127, 1.442695
    %v3130 = vpow.pop %v3129
    %v3131 = vmul.f32 %v3128, 1.442695
    %v3132 = vpow.pop %v3131
    %v3133 = vadd.f32 %v3130, 1.0
    %v3134 = vadd.f32 %v3132, 1.0
    %v3135 = vrcp.pop %v3133
    %v3136 = vmul.f32 1.0, %v3135
    %v3137 = vrcp.pop %v3134
    %v3138 = vmul.f32 1.0, %v3137
    %v3139 = vmul.f32 %v3136, %v3096
    %v3140 = vadd.f32 %v3103, %v3139
    %v3141 = vtanh.pop %v3140
    %v3142 = vsub.f32 1.0, %v3138
    %v3143 = vmul.f32 %v3142, %v3141
    %v3144 = vmul.f32 %v3138, %v2656
    %v3145 = vadd.f32 %v3143, %v3144
    %3146 = vst [vmem:[%s2659] sm:$0xff] %v3124
    %3147 = vst [vmem:[%s2657 + $0x8] sm:$0xff] %v3145
    %v3148 = vld [vmem:[#allocation8] sm:$0xff]
    %v3149 = vld [vmem:[#allocation8 + $0x8] sm:$0xff]
    %v3150 = vld [vmem:[#allocation8 + $0x10] sm:$0xff]
    %v3151 = vld [vmem:[#allocation8 + $0x18] sm:$0xff]
    %v3152 = vld [vmem:[#allocation8 + $0x20] sm:$0xff]
    %v3153 = vld [vmem:[#allocation8 + $0x28] sm:$0xff]
    %v3154 = vld [vmem:[#allocation8 + $0x30] sm:$0xff]
    %v3155 = vld [vmem:[#allocation8 + $0x38] sm:$0xff]
    %v3156 = vld [vmem:[#allocation8 + $0x40] sm:$0xff]
    %v3157 = vld [vmem:[#allocation8 + $0x48] sm:$0xff]
    %v3158 = vld [vmem:[#allocation8 + $0x50] sm:$0xff]
    %v3159 = vld [vmem:[#allocation8 + $0x58] sm:$0xff]
    %v3160 = vld [vmem:[#allocation8 + $0x60] sm:$0xff]
    %v3161 = vld [vmem:[#allocation8 + $0x68] sm:$0xff]
    %v3162 = vld [vmem:[#allocation8 + $0x70] sm:$0xff]
    %v3163 = vld [vmem:[#allocation8 + $0x78] sm:$0xff]
    %v3164 = vld [vmem:[#allocation8 + $0x80] sm:$0xff]
    %v3165 = vld [vmem:[#allocation8 + $0x88] sm:$0xff]
    %v3166 = vld [vmem:[#allocation8 + $0x90] sm:$0xff]
    %v3167 = vld [vmem:[#allocation8 + $0x98] sm:$0xff]
    %v3168 = vld [vmem:[#allocation8 + $0xa0] sm:$0xff]
    %v3169 = vld [vmem:[#allocation8 + $0xa8] sm:$0xff]
    %v3170 = vld [vmem:[#allocation8 + $0xb0] sm:$0xff]
    %v3171 = vld [vmem:[#allocation8 + $0xb8] sm:$0xff]
    %v3172 = vld [vmem:[#allocation8 + $0xc0] sm:$0xff]
    %v3173 = vld [vmem:[#allocation8 + $0xc8] sm:$0xff]
    %v3174 = vld [vmem:[#allocation8 + $0xd0] sm:$0xff]
    %v3175 = vld [vmem:[#allocation8 + $0xd8] sm:$0xff]
    %v3176 = vld [vmem:[#allocation8 + $0xe0] sm:$0xff]
    %v3177 = vld [vmem:[#allocation8 + $0xe8] sm:$0xff]
    %v3178 = vld [vmem:[#allocation8 + $0xf0] sm:$0xff]
    %v3179 = vld [vmem:[#allocation8 + $0xf8] sm:$0xff]
    %v3180 = vld [vmem:[#allocation8 + $0x100] sm:$0xff]
    %v3181 = vld [vmem:[#allocation8 + $0x108] sm:$0xff]
    %v3182 = vld [vmem:[#allocation8 + $0x110] sm:$0xff]
    %v3183 = vld [vmem:[#allocation8 + $0x118] sm:$0xff]
    %v3184 = vld [vmem:[#allocation8 + $0x120] sm:$0xff]
    %v3185 = vld [vmem:[#allocation8 + $0x128] sm:$0xff]
    %v3186 = vld [vmem:[#allocation8 + $0x130] sm:$0xff]
    %v3187 = vld [vmem:[#allocation8 + $0x138] sm:$0xff]
    %v3188 = vld [vmem:[#allocation8 + $0x140] sm:$0xff]
    %v3189 = vld [vmem:[#allocation8 + $0x148] sm:$0xff]
    %v3190 = vld [vmem:[#allocation8 + $0x150] sm:$0xff]
    %v3191 = vld [vmem:[#allocation8 + $0x158] sm:$0xff]
    %v3192 = vld [vmem:[#allocation8 + $0x160] sm:$0xff]
    %v3193 = vld [vmem:[#allocation8 + $0x168] sm:$0xff]
    %v3194 = vld [vmem:[#allocation8 + $0x170] sm:$0xff]
    %v3195 = vld [vmem:[#allocation8 + $0x178] sm:$0xff]
    %v3196 = vld [vmem:[#allocation8 + $0x180] sm:$0xff]
    %v3197 = vld [vmem:[#allocation8 + $0x188] sm:$0xff]
    %v3198 = vld [vmem:[#allocation8 + $0x190] sm:$0xff]
    %v3199 = vld [vmem:[#allocation8 + $0x198] sm:$0xff]
    %v3200 = vld [vmem:[#allocation8 + $0x1a0] sm:$0xff]
    %v3201 = vld [vmem:[#allocation8 + $0x1a8] sm:$0xff]
    %v3202 = vld [vmem:[#allocation8 + $0x1b0] sm:$0xff]
    %v3203 = vld [vmem:[#allocation8 + $0x1b8] sm:$0xff]
    %v3204 = vld [vmem:[#allocation8 + $0x1c0] sm:$0xff]
    %v3205 = vld [vmem:[#allocation8 + $0x1c8] sm:$0xff]
    %v3206 = vld [vmem:[#allocation8 + $0x1d0] sm:$0xff]
    %v3207 = vld [vmem:[#allocation8 + $0x1d8] sm:$0xff]
    %v3208 = vld [vmem:[#allocation8 + $0x1e0] sm:$0xff]
    %v3209 = vld [vmem:[#allocation8 + $0x1e8] sm:$0xff]
    %v3210 = vld [vmem:[#allocation8 + $0x1f0] sm:$0xff]
    %v3211 = vld [vmem:[#allocation8 + $0x1f8] sm:$0xff]
    %v3212 = vld [vmem:[#allocation8 + $0x200] sm:$0xff]
    %v3213 = vld [vmem:[#allocation8 + $0x208] sm:$0xff]
    %v3214 = vld [vmem:[#allocation8 + $0x210] sm:$0xff]
    %v3215 = vld [vmem:[#allocation8 + $0x218] sm:$0xff]
    %v3216 = vld [vmem:[#allocation8 + $0x220] sm:$0xff]
    %v3217 = vld [vmem:[#allocation8 + $0x228] sm:$0xff]
    %v3218 = vld [vmem:[#allocation8 + $0x230] sm:$0xff]
    %v3219 = vld [vmem:[#allocation8 + $0x238] sm:$0xff]
    %v3220 = vld [vmem:[#allocation8 + $0x240] sm:$0xff]
    %v3221 = vld [vmem:[#allocation8 + $0x248] sm:$0xff]
    %v3222 = vld [vmem:[#allocation8 + $0x250] sm:$0xff]
    %v3223 = vld [vmem:[#allocation8 + $0x258] sm:$0xff]
    %v3224 = vld [vmem:[#allocation8 + $0x260] sm:$0xff]
    %v3225 = vld [vmem:[#allocation8 + $0x268] sm:$0xff]
    %v3226 = vld [vmem:[#allocation8 + $0x270] sm:$0xff]
    %v3227 = vld [vmem:[#allocation8 + $0x278] sm:$0xff]
    %v3228 = vld [vmem:[#allocation8 + $0x280] sm:$0xff]
    %v3229 = vld [vmem:[#allocation8 + $0x288] sm:$0xff]
    %v3230 = vld [vmem:[#allocation8 + $0x290] sm:$0xff]
    %v3231 = vld [vmem:[#allocation8 + $0x298] sm:$0xff]
    %v3232 = vld [vmem:[#allocation8 + $0x2a0] sm:$0xff]
    %v3233 = vld [vmem:[#allocation8 + $0x2a8] sm:$0xff]
    %v3234 = vld [vmem:[#allocation8 + $0x2b0] sm:$0xff]
    %v3235 = vld [vmem:[#allocation8 + $0x2b8] sm:$0xff]
    %v3236 = vld [vmem:[#allocation8 + $0x2c0] sm:$0xff]
    %v3237 = vld [vmem:[#allocation8 + $0x2c8] sm:$0xff]
    %v3238 = vld [vmem:[#allocation8 + $0x2d0] sm:$0xff]
    %v3239 = vld [vmem:[#allocation8 + $0x2d8] sm:$0xff]
    %v3240 = vld [vmem:[#allocation8 + $0x2e0] sm:$0xff]
    %v3241 = vld [vmem:[#allocation8 + $0x2e8] sm:$0xff]
    %v3242 = vld [vmem:[#allocation8 + $0x2f0] sm:$0xff]
    %v3243 = vld [vmem:[#allocation8 + $0x2f8] sm:$0xff]
    %v3244 = vld [vmem:[#allocation8 + $0x300] sm:$0xff]
    %v3245 = vld [vmem:[#allocation8 + $0x308] sm:$0xff]
    %v3246 = vld [vmem:[#allocation8 + $0x310] sm:$0xff]
    %v3247 = vld [vmem:[#allocation8 + $0x318] sm:$0xff]
    %v3248 = vld [vmem:[#allocation8 + $0x320] sm:$0xff]
    %v3249 = vld [vmem:[#allocation8 + $0x328] sm:$0xff]
    %v3250 = vld [vmem:[#allocation8 + $0x330] sm:$0xff]
    %v3251 = vld [vmem:[#allocation8 + $0x338] sm:$0xff]
    %v3252 = vld [vmem:[#allocation8 + $0x340] sm:$0xff]
    %v3253 = vld [vmem:[#allocation8 + $0x348] sm:$0xff]
    %v3254 = vld [vmem:[#allocation8 + $0x350] sm:$0xff]
    %v3255 = vld [vmem:[#allocation8 + $0x358] sm:$0xff]
    %v3256 = vld [vmem:[#allocation8 + $0x360] sm:$0xff]
    %v3257 = vld [vmem:[#allocation8 + $0x368] sm:$0xff]
    %v3258 = vld [vmem:[#allocation8 + $0x370] sm:$0xff]
    %v3259 = vld [vmem:[#allocation8 + $0x378] sm:$0xff]
    %v3260 = vld [vmem:[#allocation8 + $0x380] sm:$0xff]
    %v3261 = vld [vmem:[#allocation8 + $0x388] sm:$0xff]
    %v3262 = vld [vmem:[#allocation8 + $0x390] sm:$0xff]
    %v3263 = vld [vmem:[#allocation8 + $0x398] sm:$0xff]
    %v3264 = vld [vmem:[#allocation8 + $0x3a0] sm:$0xff]
    %v3265 = vld [vmem:[#allocation8 + $0x3a8] sm:$0xff]
    %v3266 = vld [vmem:[#allocation8 + $0x3b0] sm:$0xff]
    %v3267 = vld [vmem:[#allocation8 + $0x3b8] sm:$0xff]
    %v3268 = vld [vmem:[#allocation8 + $0x3c0] sm:$0xff]
    %v3269 = vld [vmem:[#allocation8 + $0x3c8] sm:$0xff]
    %v3270 = vld [vmem:[#allocation8 + $0x3d0] sm:$0xff]
    %v3271 = vld [vmem:[#allocation8 + $0x3d8] sm:$0xff]
    %v3272 = vld [vmem:[#allocation8 + $0x3e0] sm:$0xff]
    %v3273 = vld [vmem:[#allocation8 + $0x3e8] sm:$0xff]
    %v3274 = vld [vmem:[#allocation8 + $0x3f0] sm:$0xff]
    %v3275 = vld [vmem:[#allocation8 + $0x3f8] sm:$0xff]
    %v3276 = vld [vmem:[#allocation8 + $0x400] sm:$0xff]
    %v3277 = vld [vmem:[#allocation8 + $0x408] sm:$0xff]
    %v3278 = vld [vmem:[#allocation8 + $0x410] sm:$0xff]
    %v3279 = vld [vmem:[#allocation8 + $0x418] sm:$0xff]
    %v3280 = vld [vmem:[#allocation8 + $0x420] sm:$0xff]
    %v3281 = vld [vmem:[#allocation8 + $0x428] sm:$0xff]
    %v3282 = vld [vmem:[#allocation8 + $0x430] sm:$0xff]
    %v3283 = vld [vmem:[#allocation8 + $0x438] sm:$0xff]
    %v3284 = vld [vmem:[#allocation8 + $0x440] sm:$0xff]
    %v3285 = vld [vmem:[#allocation8 + $0x448] sm:$0xff]
    %v3286 = vld [vmem:[#allocation8 + $0x450] sm:$0xff]
    %v3287 = vld [vmem:[#allocation8 + $0x458] sm:$0xff]
    %v3288 = vld [vmem:[#allocation8 + $0x460] sm:$0xff]
    %v3289 = vld [vmem:[#allocation8 + $0x468] sm:$0xff]
    %v3290 = vld [vmem:[#allocation8 + $0x470] sm:$0xff]
    %v3291 = vld [vmem:[#allocation8 + $0x478] sm:$0xff]
    %v3292 = vld [vmem:[#allocation8 + $0x480] sm:$0xff]
    %v3293 = vld [vmem:[#allocation8 + $0x488] sm:$0xff]
    %v3294 = vld [vmem:[#allocation8 + $0x490] sm:$0xff]
    %v3295 = vld [vmem:[#allocation8 + $0x498] sm:$0xff]
    %v3296 = vld [vmem:[#allocation8 + $0x4a0] sm:$0xff]
    %v3297 = vld [vmem:[#allocation8 + $0x4a8] sm:$0xff]
    %v3298 = vld [vmem:[#allocation8 + $0x4b0] sm:$0xff]
    %v3299 = vld [vmem:[#allocation8 + $0x4b8] sm:$0xff]
    %v3300 = vld [vmem:[#allocation8 + $0x4c0] sm:$0xff]
    %v3301 = vld [vmem:[#allocation8 + $0x4c8] sm:$0xff]
    %v3302 = vld [vmem:[#allocation8 + $0x4d0] sm:$0xff]
    %v3303 = vld [vmem:[#allocation8 + $0x4d8] sm:$0xff]
    %v3304 = vld [vmem:[#allocation8 + $0x4e0] sm:$0xff]
    %v3305 = vld [vmem:[#allocation8 + $0x4e8] sm:$0xff]
    %v3306 = vld [vmem:[#allocation8 + $0x4f0] sm:$0xff]
    %v3307 = vld [vmem:[#allocation8 + $0x4f8] sm:$0xff]
    %v3308 = vld [vmem:[#allocation8 + $0x500] sm:$0xff]
    %v3309 = vld [vmem:[#allocation8 + $0x508] sm:$0xff]
    %v3310 = vld [vmem:[#allocation8 + $0x510] sm:$0xff]
    %v3311 = vld [vmem:[#allocation8 + $0x518] sm:$0xff]
    %v3312 = vld [vmem:[#allocation8 + $0x520] sm:$0xff]
    %v3313 = vld [vmem:[#allocation8 + $0x528] sm:$0xff]
    %v3314 = vld [vmem:[#allocation8 + $0x530] sm:$0xff]
    %v3315 = vld [vmem:[#allocation8 + $0x538] sm:$0xff]
    %v3316 = vld [vmem:[#allocation8 + $0x540] sm:$0xff]
    %v3317 = vld [vmem:[#allocation8 + $0x548] sm:$0xff]
    %v3318 = vld [vmem:[#allocation8 + $0x550] sm:$0xff]
    %v3319 = vld [vmem:[#allocation8 + $0x558] sm:$0xff]
    %v3320 = vld [vmem:[#allocation8 + $0x560] sm:$0xff]
    %v3321 = vld [vmem:[#allocation8 + $0x568] sm:$0xff]
    %v3322 = vld [vmem:[#allocation8 + $0x570] sm:$0xff]
    %v3323 = vld [vmem:[#allocation8 + $0x578] sm:$0xff]
    %v3324 = vld [vmem:[#allocation8 + $0x580] sm:$0xff]
    %v3325 = vld [vmem:[#allocation8 + $0x588] sm:$0xff]
    %v3326 = vld [vmem:[#allocation8 + $0x590] sm:$0xff]
    %v3327 = vld [vmem:[#allocation8 + $0x598] sm:$0xff]
    %v3328 = vld [vmem:[#allocation8 + $0x5a0] sm:$0xff]
    %v3329 = vld [vmem:[#allocation8 + $0x5a8] sm:$0xff]
    %v3330 = vld [vmem:[#allocation8 + $0x5b0] sm:$0xff]
    %v3331 = vld [vmem:[#allocation8 + $0x5b8] sm:$0xff]
    %v3332 = vld [vmem:[#allocation8 + $0x5c0] sm:$0xff]
    %v3333 = vld [vmem:[#allocation8 + $0x5c8] sm:$0xff]
    %v3334 = vld [vmem:[#allocation8 + $0x5d0] sm:$0xff]
    %v3335 = vld [vmem:[#allocation8 + $0x5d8] sm:$0xff]
    %v3336 = vld [vmem:[#allocation8 + $0x5e0] sm:$0xff]
    %v3337 = vld [vmem:[#allocation8 + $0x5e8] sm:$0xff]
    %v3338 = vld [vmem:[#allocation8 + $0x5f0] sm:$0xff]
    %v3339 = vld [vmem:[#allocation8 + $0x5f8] sm:$0xff]
    %v3340 = vld [vmem:[%s5] sm:$0x3f]
    %v3342 = vlaneseq
    %v3343 = vshrl.u32 %v3342, 7
    %v3344 = vsub.s32 0, %v3343
    %v3345 = vrot.slane %v3340, %v3344
    %v3346 = vlaneseq
    %v3347 = vshrl.u32 %v3346, 7
    %v3348 = vsub.s32 1, %v3347
    %v3349 = vrot.slane %v3340, %v3348
    %v3350 = vlaneseq
    %v3351 = vshrl.u32 %v3350, 7
    %v3352 = vsub.s32 2, %v3351
    %v3353 = vrot.slane %v3340, %v3352
    %v3354 = vlaneseq
    %v3355 = vshrl.u32 %v3354, 7
    %v3356 = vsub.s32 3, %v3355
    %v3357 = vrot.slane %v3340, %v3356
    %v3358 = vlaneseq
    %v3359 = vshrl.u32 %v3358, 7
    %v3360 = vsub.s32 4, %v3359
    %v3361 = vrot.slane %v3340, %v3360
    %v3362 = vlaneseq
    %v3363 = vshrl.u32 %v3362, 7
    %v3364 = vsub.s32 5, %v3363
    %v3365 = vrot.slane %v3340, %v3364
    %3372 = vmatprep.subr.mxu0 %v3149
    %3373 = vmatpush1.msra.mxu0 %v3148
    %3374 = vmatprep.subr.mxu0 %v3155
    %3375 = vmatpush1.msra.mxu0 %v3154
    %3376 = vmatprep.subr.mxu0 %v3161
    %3377 = vmatpush1.msra.mxu0 %v3160
    %3378 = vmatprep.subr.mxu0 %v3167
    %3379 = vmatpush1.msra.mxu0 %v3166
    %3380 = vmatprep.subr.mxu0 %v3173
    %3381 = vmatpush1.msra.mxu0 %v3172
    %3382 = vmatprep.subr.mxu0 %v3179
    %3383 = vmatpush1.msra.mxu0 %v3178
    %3384 = vmatprep.subr.mxu0 %v3185
    %3385 = vmatpush1.msra.mxu0 %v3184
    %3386 = vmatprep.subr.mxu0 %v3191
    %3387 = vmatpush1.msra.mxu0 %v3190
    %3388 = vmatprep.subr.mxu0 %v3197
    %3389 = vmatpush1.msra.mxu0 %v3196
    %3390 = vmatprep.subr.mxu0 %v3203
    %3391 = vmatpush1.msra.mxu0 %v3202
    %3392 = vmatprep.subr.mxu0 %v3209
    %3393 = vmatpush1.msra.mxu0 %v3208
    %3394 = vmatprep.subr.mxu0 %v3215
    %3395 = vmatpush1.msra.mxu0 %v3214
    %3396 = vmatprep.subr.mxu0 %v3221
    %3397 = vmatpush1.msra.mxu0 %v3220
    %3398 = vmatprep.subr.mxu0 %v3227
    %3399 = vmatpush1.msra.mxu0 %v3226
    %3400 = vmatprep.subr.mxu0 %v3233
    %3401 = vmatpush1.msra.mxu0 %v3232
    %3402 = vmatprep.subr.mxu0 %v3239
    %3403 = vmatpush1.msra.mxu0 %v3238
    %3404 = vmatprep.subr.mxu0 %v3245
    %3405 = vmatpush1.msra.mxu0 %v3244
    %3406 = vmatprep.subr.mxu0 %v3251
    %3407 = vmatpush1.msra.mxu0 %v3250
    %3408 = vmatprep.subr.mxu0 %v3257
    %3409 = vmatpush1.msra.mxu0 %v3256
    %3410 = vmatprep.subr.mxu0 %v3263
    %3411 = vmatpush1.msra.mxu0 %v3262
    %3412 = vmatprep.subr.mxu0 %v3269
    %3413 = vmatpush1.msra.mxu0 %v3268
    %3414 = vmatprep.subr.mxu0 %v3275
    %3415 = vmatpush1.msra.mxu0 %v3274
    %3416 = vmatprep.subr.mxu0 %v3281
    %3417 = vmatpush1.msra.mxu0 %v3280
    %3418 = vmatprep.subr.mxu0 %v3287
    %3419 = vmatpush1.msra.mxu0 %v3286
    %3420 = vmatprep.subr.mxu0 %v3293
    %3421 = vmatpush1.msra.mxu0 %v3292
    %3422 = vmatprep.subr.mxu0 %v3299
    %3423 = vmatpush1.msra.mxu0 %v3298
    %3424 = vmatprep.subr.mxu0 %v3305
    %3425 = vmatpush1.msra.mxu0 %v3304
    %3426 = vmatprep.subr.mxu0 %v3311
    %3427 = vmatpush1.msra.mxu0 %v3310
    %3428 = vmatprep.subr.mxu0 %v3317
    %3429 = vmatpush1.msra.mxu0 %v3316
    %3430 = vmatprep.subr.mxu0 %v3323
    %3431 = vmatpush1.msra.mxu0 %v3322
    %3432 = vmatprep.subr.mxu0 %v3329
    %3433 = vmatpush1.msra.mxu0 %v3328
    %3434 = vmatprep.subr.mxu0 %v3335
    %3435 = vmatpush1.msra.mxu0 %v3334
    %3436 = vmatprep.mubr.f32.mxu0 %v3145
    %3437 = vmatmul.mubr.f32.gmra.mrb[0].mxu0 %v3124
    %v3438 = vpop.f32.mrb[0].mxu0
    %v3439 = vadd.f32 %v3345, %v3438
    %v3440 = vpop.f32.mrb[0].mxu0
    %v3441 = vadd.f32 %v3349, %v3440
    %3442 = vdwg.mxu0
    %3443 = vmatprep.subr.mxu0 %v3151
    %3444 = vmatpush1.msra.mxu0 %v3150
    %3445 = vmatprep.subr.mxu0 %v3157
    %3446 = vmatpush1.msra.mxu0 %v3156
    %3447 = vmatprep.subr.mxu0 %v3163
    %3448 = vmatpush1.msra.mxu0 %v3162
    %3449 = vmatprep.subr.mxu0 %v3169
    %3450 = vmatpush1.msra.mxu0 %v3168
    %3451 = vmatprep.subr.mxu0 %v3175
    %3452 = vmatpush1.msra.mxu0 %v3174
    %3453 = vmatprep.subr.mxu0 %v3181
    %3454 = vmatpush1.msra.mxu0 %v3180
    %3455 = vmatprep.subr.mxu0 %v3187
    %3456 = vmatpush1.msra.mxu0 %v3186
    %3457 = vmatprep.subr.mxu0 %v3193
    %3458 = vmatpush1.msra.mxu0 %v3192
    %3459 = vmatprep.subr.mxu0 %v3199
    %3460 = vmatpush1.msra.mxu0 %v3198
    %3461 = vmatprep.subr.mxu0 %v3205
    %3462 = vmatpush1.msra.mxu0 %v3204
    %3463 = vmatprep.subr.mxu0 %v3211
    %3464 = vmatpush1.msra.mxu0 %v3210
    %3465 = vmatprep.subr.mxu0 %v3217
    %3466 = vmatpush1.msra.mxu0 %v3216
    %3467 = vmatprep.subr.mxu0 %v3223
    %3468 = vmatpush1.msra.mxu0 %v3222
    %3469 = vmatprep.subr.mxu0 %v3229
    %3470 = vmatpush1.msra.mxu0 %v3228
    %3471 = vmatprep.subr.mxu0 %v3235
    %3472 = vmatpush1.msra.mxu0 %v3234
    %3473 = vmatprep.subr.mxu0 %v3241
    %3474 = vmatpush1.msra.mxu0 %v3240
    %3475 = vmatprep.subr.mxu0 %v3247
    %3476 = vmatpush1.msra.mxu0 %v3246
    %3477 = vmatprep.subr.mxu0 %v3253
    %3478 = vmatpush1.msra.mxu0 %v3252
    %3479 = vmatprep.subr.mxu0 %v3259
    %3480 = vmatpush1.msra.mxu0 %v3258
    %3481 = vmatprep.subr.mxu0 %v3265
    %3482 = vmatpush1.msra.mxu0 %v3264
    %3483 = vmatprep.subr.mxu0 %v3271
    %3484 = vmatpush1.msra.mxu0 %v3270
    %3485 = vmatprep.subr.mxu0 %v3277
    %3486 = vmatpush1.msra.mxu0 %v3276
    %3487 = vmatprep.subr.mxu0 %v3283
    %3488 = vmatpush1.msra.mxu0 %v3282
    %3489 = vmatprep.subr.mxu0 %v3289
    %3490 = vmatpush1.msra.mxu0 %v3288
    %3491 = vmatprep.subr.mxu0 %v3295
    %3492 = vmatpush1.msra.mxu0 %v3294
    %3493 = vmatprep.subr.mxu0 %v3301
    %3494 = vmatpush1.msra.mxu0 %v3300
    %3495 = vmatprep.subr.mxu0 %v3307
    %3496 = vmatpush1.msra.mxu0 %v3306
    %3497 = vmatprep.subr.mxu0 %v3313
    %3498 = vmatpush1.msra.mxu0 %v3312
    %3499 = vmatprep.subr.mxu0 %v3319
    %3500 = vmatpush1.msra.mxu0 %v3318
    %3501 = vmatprep.subr.mxu0 %v3325
    %3502 = vmatpush1.msra.mxu0 %v3324
    %3503 = vmatprep.subr.mxu0 %v3331
    %3504 = vmatpush1.msra.mxu0 %v3330
    %3505 = vmatprep.subr.mxu0 %v3337
    %3506 = vmatpush1.msra.mxu0 %v3336
    %3507 = vmatprep.mubr.f32.mxu0 %v3145
    %3508 = vmatmul.mubr.f32.gmra.mrb[0].mxu0 %v3124
    %v3509 = vpop.f32.mrb[0].mxu0
    %v3510 = vadd.f32 %v3353, %v3509
    %v3511 = vpop.f32.mrb[0].mxu0
    %v3512 = vadd.f32 %v3357, %v3511
    %3513 = vdwg.mxu0
    %3514 = vmatprep.subr.mxu0 %v3153
    %3515 = vmatpush1.msra.mxu0 %v3152
    %3516 = vmatprep.subr.mxu0 %v3159
    %3517 = vmatpush1.msra.mxu0 %v3158
    %3518 = vmatprep.subr.mxu0 %v3165
    %3519 = vmatpush1.msra.mxu0 %v3164
    %3520 = vmatprep.subr.mxu0 %v3171
    %3521 = vmatpush1.msra.mxu0 %v3170
    %3522 = vmatprep.subr.mxu0 %v3177
    %3523 = vmatpush1.msra.mxu0 %v3176
    %3524 = vmatprep.subr.mxu0 %v3183
    %3525 = vmatpush1.msra.mxu0 %v3182
    %3526 = vmatprep.subr.mxu0 %v3189
    %3527 = vmatpush1.msra.mxu0 %v3188
    %3528 = vmatprep.subr.mxu0 %v3195
    %3529 = vmatpush1.msra.mxu0 %v3194
    %3530 = vmatprep.subr.mxu0 %v3201
    %3531 = vmatpush1.msra.mxu0 %v3200
    %3532 = vmatprep.subr.mxu0 %v3207
    %3533 = vmatpush1.msra.mxu0 %v3206
    %3534 = vmatprep.subr.mxu0 %v3213
    %3535 = vmatpush1.msra.mxu0 %v3212
    %3536 = vmatprep.subr.mxu0 %v3219
    %3537 = vmatpush1.msra.mxu0 %v3218
    %3538 = vmatprep.subr.mxu0 %v3225
    %3539 = vmatpush1.msra.mxu0 %v3224
    %3540 = vmatprep.subr.mxu0 %v3231
    %3541 = vmatpush1.msra.mxu0 %v3230
    %3542 = vmatprep.subr.mxu0 %v3237
    %3543 = vmatpush1.msra.mxu0 %v3236
    %3544 = vmatprep.subr.mxu0 %v3243
    %3545 = vmatpush1.msra.mxu0 %v3242
    %3546 = vmatprep.subr.mxu0 %v3249
    %3547 = vmatpush1.msra.mxu0 %v3248
    %3548 = vmatprep.subr.mxu0 %v3255
    %3549 = vmatpush1.msra.mxu0 %v3254
    %3550 = vmatprep.subr.mxu0 %v3261
    %3551 = vmatpush1.msra.mxu0 %v3260
    %3552 = vmatprep.subr.mxu0 %v3267
    %3553 = vmatpush1.msra.mxu0 %v3266
    %3554 = vmatprep.subr.mxu0 %v3273
    %3555 = vmatpush1.msra.mxu0 %v3272
    %3556 = vmatprep.subr.mxu0 %v3279
    %3557 = vmatpush1.msra.mxu0 %v3278
    %3558 = vmatprep.subr.mxu0 %v3285
    %3559 = vmatpush1.msra.mxu0 %v3284
    %3560 = vmatprep.subr.mxu0 %v3291
    %3561 = vmatpush1.msra.mxu0 %v3290
    %3562 = vmatprep.subr.mxu0 %v3297
    %3563 = vmatpush1.msra.mxu0 %v3296
    %3564 = vmatprep.subr.mxu0 %v3303
    %3565 = vmatpush1.msra.mxu0 %v3302
    %3566 = vmatprep.subr.mxu0 %v3309
    %3567 = vmatpush1.msra.mxu0 %v3308
    %3568 = vmatprep.subr.mxu0 %v3315
    %3569 = vmatpush1.msra.mxu0 %v3314
    %3570 = vmatprep.subr.mxu0 %v3321
    %3571 = vmatpush1.msra.mxu0 %v3320
    %3572 = vmatprep.subr.mxu0 %v3327
    %3573 = vmatpush1.msra.mxu0 %v3326
    %3574 = vmatprep.subr.mxu0 %v3333
    %3575 = vmatpush1.msra.mxu0 %v3332
    %3576 = vmatprep.subr.mxu0 %v3339
    %3577 = vmatpush1.msra.mxu0 %v3338
    %3578 = vmatprep.mubr.f32.mxu0 %v3145
    %3579 = vmatmul.mubr.f32.gmra.mrb[0].mxu0 %v3124
    %v3580 = vpop.f32.mrb[0].mxu0
    %v3581 = vadd.f32 %v3361, %v3580
    %v3582 = vpop.f32.mrb[0].mxu0
    %v3583 = vadd.f32 %v3365, %v3582
    %3584 = vdwg.mxu0
    %v3585 = vld [vmem:[%s2120] sm:$0xff]
    %v3586 = vld [vmem:[%s2120 + $0x8] sm:$0xff]
    %v3587 = vld [vmem:[%s2120 + $0x10] sm:$0xff]
    %v3588 = vld [vmem:[%s2116 + $0x18] sm:$0xff]
    %v3589 = vld [vmem:[%s2116 + $0x20] sm:$0xff]
    %v3590 = vld [vmem:[%s2116 + $0x28] sm:$0xff]
    %v3591 = vadd.f32 %v3585, %v3439
    %v3592 = vadd.f32 %v3586, %v3441
    %v3593 = vxor.u32 %v3591, 2147483648
    %v3594 = vxor.u32 %v3592, 2147483648
    %v3595 = vmul.f32 %v3593, 1.442695
    %v3596 = vpow.pop %v3595
    %v3597 = vmul.f32 %v3594, 1.442695
    %v3598 = vpow.pop %v3597
    %v3599 = vadd.f32 %v3596, 1.0
    %v3600 = vadd.f32 %v3598, 1.0
    %v3601 = vrcp.pop %v3599
    %v3602 = vmul.f32 1.0, %v3601
    %v3603 = vrcp.pop %v3600
    %v3604 = vmul.f32 1.0, %v3603
    %v3605 = vmul.f32 %v3602, %v3510
    %v3606 = vadd.f32 %v3587, %v3605
    %v3607 = vtanh.pop %v3606
    %v3608 = vsub.f32 1.0, %v3604
    %v3609 = vmul.f32 %v3608, %v3607
    %v3610 = vmul.f32 %v3604, %v3124
    %v3611 = vadd.f32 %v3609, %v3610
    %v3612 = vadd.f32 %v3588, %v3512
    %v3613 = vadd.f32 %v3589, %v3581
    %v3614 = vxor.u32 %v3612, 2147483648
    %v3615 = vxor.u32 %v3613, 2147483648
    %v3616 = vmul.f32 %v3614, 1.442695
    %v3617 = vpow.pop %v3616
    %v3618 = vmul.f32 %v3615, 1.442695
    %v3619 = vpow.pop %v3618
    %v3620 = vadd.f32 %v3617, 1.0
    %v3621 = vadd.f32 %v3619, 1.0
    %v3622 = vrcp.pop %v3620
    %v3623 = vmul.f32 1.0, %v3622
    %v3624 = vrcp.pop %v3621
    %v3625 = vmul.f32 1.0, %v3624
    %v3626 = vmul.f32 %v3623, %v3583
    %v3627 = vadd.f32 %v3590, %v3626
    %v3628 = vtanh.pop %v3627
    %v3629 = vsub.f32 1.0, %v3625
    %v3630 = vmul.f32 %v3629, %v3628
    %v3631 = vmul.f32 %v3625, %v3145
    %v3632 = vadd.f32 %v3630, %v3631
    %3633 = vst [vmem:[%s2168] sm:$0xff] %v3611
    %3634 = vst [vmem:[%s2166 + $0x8] sm:$0xff] %v3632
    %v3635 = vld [vmem:[#allocation8] sm:$0xff]
    %v3636 = vld [vmem:[#allocation8 + $0x8] sm:$0xff]
    %v3637 = vld [vmem:[#allocation8 + $0x10] sm:$0xff]
    %v3638 = vld [vmem:[#allocation8 + $0x18] sm:$0xff]
    %v3639 = vld [vmem:[#allocation8 + $0x20] sm:$0xff]
    %v3640 = vld [vmem:[#allocation8 + $0x28] sm:$0xff]
    %v3641 = vld [vmem:[#allocation8 + $0x30] sm:$0xff]
    %v3642 = vld [vmem:[#allocation8 + $0x38] sm:$0xff]
    %v3643 = vld [vmem:[#allocation8 + $0x40] sm:$0xff]
    %v3644 = vld [vmem:[#allocation8 + $0x48] sm:$0xff]
    %v3645 = vld [vmem:[#allocation8 + $0x50] sm:$0xff]
    %v3646 = vld [vmem:[#allocation8 + $0x58] sm:$0xff]
    %v3647 = vld [vmem:[#allocation8 + $0x60] sm:$0xff]
    %v3648 = vld [vmem:[#allocation8 + $0x68] sm:$0xff]
    %v3649 = vld [vmem:[#allocation8 + $0x70] sm:$0xff]
    %v3650 = vld [vmem:[#allocation8 + $0x78] sm:$0xff]
    %v3651 = vld [vmem:[#allocation8 + $0x80] sm:$0xff]
    %v3652 = vld [vmem:[#allocation8 + $0x88] sm:$0xff]
    %v3653 = vld [vmem:[#allocation8 + $0x90] sm:$0xff]
    %v3654 = vld [vmem:[#allocation8 + $0x98] sm:$0xff]
    %v3655 = vld [vmem:[#allocation8 + $0xa0] sm:$0xff]
    %v3656 = vld [vmem:[#allocation8 + $0xa8] sm:$0xff]
    %v3657 = vld [vmem:[#allocation8 + $0xb0] sm:$0xff]
    %v3658 = vld [vmem:[#allocation8 + $0xb8] sm:$0xff]
    %v3659 = vld [vmem:[#allocation8 + $0xc0] sm:$0xff]
    %v3660 = vld [vmem:[#allocation8 + $0xc8] sm:$0xff]
    %v3661 = vld [vmem:[#allocation8 + $0xd0] sm:$0xff]
    %v3662 = vld [vmem:[#allocation8 + $0xd8] sm:$0xff]
    %v3663 = vld [vmem:[#allocation8 + $0xe0] sm:$0xff]
    %v3664 = vld [vmem:[#allocation8 + $0xe8] sm:$0xff]
    %v3665 = vld [vmem:[#allocation8 + $0xf0] sm:$0xff]
    %v3666 = vld [vmem:[#allocation8 + $0xf8] sm:$0xff]
    %v3667 = vld [vmem:[#allocation8 + $0x100] sm:$0xff]
    %v3668 = vld [vmem:[#allocation8 + $0x108] sm:$0xff]
    %v3669 = vld [vmem:[#allocation8 + $0x110] sm:$0xff]
    %v3670 = vld [vmem:[#allocation8 + $0x118] sm:$0xff]
    %v3671 = vld [vmem:[#allocation8 + $0x120] sm:$0xff]
    %v3672 = vld [vmem:[#allocation8 + $0x128] sm:$0xff]
    %v3673 = vld [vmem:[#allocation8 + $0x130] sm:$0xff]
    %v3674 = vld [vmem:[#allocation8 + $0x138] sm:$0xff]
    %v3675 = vld [vmem:[#allocation8 + $0x140] sm:$0xff]
    %v3676 = vld [vmem:[#allocation8 + $0x148] sm:$0xff]
    %v3677 = vld [vmem:[#allocation8 + $0x150] sm:$0xff]
    %v3678 = vld [vmem:[#allocation8 + $0x158] sm:$0xff]
    %v3679 = vld [vmem:[#allocation8 + $0x160] sm:$0xff]
    %v3680 = vld [vmem:[#allocation8 + $0x168] sm:$0xff]
    %v3681 = vld [vmem:[#allocation8 + $0x170] sm:$0xff]
    %v3682 = vld [vmem:[#allocation8 + $0x178] sm:$0xff]
    %v3683 = vld [vmem:[#allocation8 + $0x180] sm:$0xff]
    %v3684 = vld [vmem:[#allocation8 + $0x188] sm:$0xff]
    %v3685 = vld [vmem:[#allocation8 + $0x190] sm:$0xff]
    %v3686 = vld [vmem:[#allocation8 + $0x198] sm:$0xff]
    %v3687 = vld [vmem:[#allocation8 + $0x1a0] sm:$0xff]
    %v3688 = vld [vmem:[#allocation8 + $0x1a8] sm:$0xff]
    %v3689 = vld [vmem:[#allocation8 + $0x1b0] sm:$0xff]
    %v3690 = vld [vmem:[#allocation8 + $0x1b8] sm:$0xff]
    %v3691 = vld [vmem:[#allocation8 + $0x1c0] sm:$0xff]
    %v3692 = vld [vmem:[#allocation8 + $0x1c8] sm:$0xff]
    %v3693 = vld [vmem:[#allocation8 + $0x1d0] sm:$0xff]
    %v3694 = vld [vmem:[#allocation8 + $0x1d8] sm:$0xff]
    %v3695 = vld [vmem:[#allocation8 + $0x1e0] sm:$0xff]
    %v3696 = vld [vmem:[#allocation8 + $0x1e8] sm:$0xff]
    %v3697 = vld [vmem:[#allocation8 + $0x1f0] sm:$0xff]
    %v3698 = vld [vmem:[#allocation8 + $0x1f8] sm:$0xff]
    %v3699 = vld [vmem:[#allocation8 + $0x200] sm:$0xff]
    %v3700 = vld [vmem:[#allocation8 + $0x208] sm:$0xff]
    %v3701 = vld [vmem:[#allocation8 + $0x210] sm:$0xff]
    %v3702 = vld [vmem:[#allocation8 + $0x218] sm:$0xff]
    %v3703 = vld [vmem:[#allocation8 + $0x220] sm:$0xff]
    %v3704 = vld [vmem:[#allocation8 + $0x228] sm:$0xff]
    %v3705 = vld [vmem:[#allocation8 + $0x230] sm:$0xff]
    %v3706 = vld [vmem:[#allocation8 + $0x238] sm:$0xff]
    %v3707 = vld [vmem:[#allocation8 + $0x240] sm:$0xff]
    %v3708 = vld [vmem:[#allocation8 + $0x248] sm:$0xff]
    %v3709 = vld [vmem:[#allocation8 + $0x250] sm:$0xff]
    %v3710 = vld [vmem:[#allocation8 + $0x258] sm:$0xff]
    %v3711 = vld [vmem:[#allocation8 + $0x260] sm:$0xff]
    %v3712 = vld [vmem:[#allocation8 + $0x268] sm:$0xff]
    %v3713 = vld [vmem:[#allocation8 + $0x270] sm:$0xff]
    %v3714 = vld [vmem:[#allocation8 + $0x278] sm:$0xff]
    %v3715 = vld [vmem:[#allocation8 + $0x280] sm:$0xff]
    %v3716 = vld [vmem:[#allocation8 + $0x288] sm:$0xff]
    %v3717 = vld [vmem:[#allocation8 + $0x290] sm:$0xff]
    %v3718 = vld [vmem:[#allocation8 + $0x298] sm:$0xff]
    %v3719 = vld [vmem:[#allocation8 + $0x2a0] sm:$0xff]
    %v3720 = vld [vmem:[#allocation8 + $0x2a8] sm:$0xff]
    %v3721 = vld [vmem:[#allocation8 + $0x2b0] sm:$0xff]
    %v3722 = vld [vmem:[#allocation8 + $0x2b8] sm:$0xff]
    %v3723 = vld [vmem:[#allocation8 + $0x2c0] sm:$0xff]
    %v3724 = vld [vmem:[#allocation8 + $0x2c8] sm:$0xff]
    %v3725 = vld [vmem:[#allocation8 + $0x2d0] sm:$0xff]
    %v3726 = vld [vmem:[#allocation8 + $0x2d8] sm:$0xff]
    %v3727 = vld [vmem:[#allocation8 + $0x2e0] sm:$0xff]
    %v3728 = vld [vmem:[#allocation8 + $0x2e8] sm:$0xff]
    %v3729 = vld [vmem:[#allocation8 + $0x2f0] sm:$0xff]
    %v3730 = vld [vmem:[#allocation8 + $0x2f8] sm:$0xff]
    %v3731 = vld [vmem:[#allocation8 + $0x300] sm:$0xff]
    %v3732 = vld [vmem:[#allocation8 + $0x308] sm:$0xff]
    %v3733 = vld [vmem:[#allocation8 + $0x310] sm:$0xff]
    %v3734 = vld [vmem:[#allocation8 + $0x318] sm:$0xff]
    %v3735 = vld [vmem:[#allocation8 + $0x320] sm:$0xff]
    %v3736 = vld [vmem:[#allocation8 + $0x328] sm:$0xff]
    %v3737 = vld [vmem:[#allocation8 + $0x330] sm:$0xff]
    %v3738 = vld [vmem:[#allocation8 + $0x338] sm:$0xff]
    %v3739 = vld [vmem:[#allocation8 + $0x340] sm:$0xff]
    %v3740 = vld [vmem:[#allocation8 + $0x348] sm:$0xff]
    %v3741 = vld [vmem:[#allocation8 + $0x350] sm:$0xff]
    %v3742 = vld [vmem:[#allocation8 + $0x358] sm:$0xff]
    %v3743 = vld [vmem:[#allocation8 + $0x360] sm:$0xff]
    %v3744 = vld [vmem:[#allocation8 + $0x368] sm:$0xff]
    %v3745 = vld [vmem:[#allocation8 + $0x370] sm:$0xff]
    %v3746 = vld [vmem:[#allocation8 + $0x378] sm:$0xff]
    %v3747 = vld [vmem:[#allocation8 + $0x380] sm:$0xff]
    %v3748 = vld [vmem:[#allocation8 + $0x388] sm:$0xff]
    %v3749 = vld [vmem:[#allocation8 + $0x390] sm:$0xff]
    %v3750 = vld [vmem:[#allocation8 + $0x398] sm:$0xff]
    %v3751 = vld [vmem:[#allocation8 + $0x3a0] sm:$0xff]
    %v3752 = vld [vmem:[#allocation8 + $0x3a8] sm:$0xff]
    %v3753 = vld [vmem:[#allocation8 + $0x3b0] sm:$0xff]
    %v3754 = vld [vmem:[#allocation8 + $0x3b8] sm:$0xff]
    %v3755 = vld [vmem:[#allocation8 + $0x3c0] sm:$0xff]
    %v3756 = vld [vmem:[#allocation8 + $0x3c8] sm:$0xff]
    %v3757 = vld [vmem:[#allocation8 + $0x3d0] sm:$0xff]
    %v3758 = vld [vmem:[#allocation8 + $0x3d8] sm:$0xff]
    %v3759 = vld [vmem:[#allocation8 + $0x3e0] sm:$0xff]
    %v3760 = vld [vmem:[#allocation8 + $0x3e8] sm:$0xff]
    %v3761 = vld [vmem:[#allocation8 + $0x3f0] sm:$0xff]
    %v3762 = vld [vmem:[#allocation8 + $0x3f8] sm:$0xff]
    %v3763 = vld [vmem:[#allocation8 + $0x400] sm:$0xff]
    %v3764 = vld [vmem:[#allocation8 + $0x408] sm:$0xff]
    %v3765 = vld [vmem:[#allocation8 + $0x410] sm:$0xff]
    %v3766 = vld [vmem:[#allocation8 + $0x418] sm:$0xff]
    %v3767 = vld [vmem:[#allocation8 + $0x420] sm:$0xff]
    %v3768 = vld [vmem:[#allocation8 + $0x428] sm:$0xff]
    %v3769 = vld [vmem:[#allocation8 + $0x430] sm:$0xff]
    %v3770 = vld [vmem:[#allocation8 + $0x438] sm:$0xff]
    %v3771 = vld [vmem:[#allocation8 + $0x440] sm:$0xff]
    %v3772 = vld [vmem:[#allocation8 + $0x448] sm:$0xff]
    %v3773 = vld [vmem:[#allocation8 + $0x450] sm:$0xff]
    %v3774 = vld [vmem:[#allocation8 + $0x458] sm:$0xff]
    %v3775 = vld [vmem:[#allocation8 + $0x460] sm:$0xff]
    %v3776 = vld [vmem:[#allocation8 + $0x468] sm:$0xff]
    %v3777 = vld [vmem:[#allocation8 + $0x470] sm:$0xff]
    %v3778 = vld [vmem:[#allocation8 + $0x478] sm:$0xff]
    %v3779 = vld [vmem:[#allocation8 + $0x480] sm:$0xff]
    %v3780 = vld [vmem:[#allocation8 + $0x488] sm:$0xff]
    %v3781 = vld [vmem:[#allocation8 + $0x490] sm:$0xff]
    %v3782 = vld [vmem:[#allocation8 + $0x498] sm:$0xff]
    %v3783 = vld [vmem:[#allocation8 + $0x4a0] sm:$0xff]
    %v3784 = vld [vmem:[#allocation8 + $0x4a8] sm:$0xff]
    %v3785 = vld [vmem:[#allocation8 + $0x4b0] sm:$0xff]
    %v3786 = vld [vmem:[#allocation8 + $0x4b8] sm:$0xff]
    %v3787 = vld [vmem:[#allocation8 + $0x4c0] sm:$0xff]
    %v3788 = vld [vmem:[#allocation8 + $0x4c8] sm:$0xff]
    %v3789 = vld [vmem:[#allocation8 + $0x4d0] sm:$0xff]
    %v3790 = vld [vmem:[#allocation8 + $0x4d8] sm:$0xff]
    %v3791 = vld [vmem:[#allocation8 + $0x4e0] sm:$0xff]
    %v3792 = vld [vmem:[#allocation8 + $0x4e8] sm:$0xff]
    %v3793 = vld [vmem:[#allocation8 + $0x4f0] sm:$0xff]
    %v3794 = vld [vmem:[#allocation8 + $0x4f8] sm:$0xff]
    %v3795 = vld [vmem:[#allocation8 + $0x500] sm:$0xff]
    %v3796 = vld [vmem:[#allocation8 + $0x508] sm:$0xff]
    %v3797 = vld [vmem:[#allocation8 + $0x510] sm:$0xff]
    %v3798 = vld [vmem:[#allocation8 + $0x518] sm:$0xff]
    %v3799 = vld [vmem:[#allocation8 + $0x520] sm:$0xff]
    %v3800 = vld [vmem:[#allocation8 + $0x528] sm:$0xff]
    %v3801 = vld [vmem:[#allocation8 + $0x530] sm:$0xff]
    %v3802 = vld [vmem:[#allocation8 + $0x538] sm:$0xff]
    %v3803 = vld [vmem:[#allocation8 + $0x540] sm:$0xff]
    %v3804 = vld [vmem:[#allocation8 + $0x548] sm:$0xff]
    %v3805 = vld [vmem:[#allocation8 + $0x550] sm:$0xff]
    %v3806 = vld [vmem:[#allocation8 + $0x558] sm:$0xff]
    %v3807 = vld [vmem:[#allocation8 + $0x560] sm:$0xff]
    %v3808 = vld [vmem:[#allocation8 + $0x568] sm:$0xff]
    %v3809 = vld [vmem:[#allocation8 + $0x570] sm:$0xff]
    %v3810 = vld [vmem:[#allocation8 + $0x578] sm:$0xff]
    %v3811 = vld [vmem:[#allocation8 + $0x580] sm:$0xff]
    %v3812 = vld [vmem:[#allocation8 + $0x588] sm:$0xff]
    %v3813 = vld [vmem:[#allocation8 + $0x590] sm:$0xff]
    %v3814 = vld [vmem:[#allocation8 + $0x598] sm:$0xff]
    %v3815 = vld [vmem:[#allocation8 + $0x5a0] sm:$0xff]
    %v3816 = vld [vmem:[#allocation8 + $0x5a8] sm:$0xff]
    %v3817 = vld [vmem:[#allocation8 + $0x5b0] sm:$0xff]
    %v3818 = vld [vmem:[#allocation8 + $0x5b8] sm:$0xff]
    %v3819 = vld [vmem:[#allocation8 + $0x5c0] sm:$0xff]
    %v3820 = vld [vmem:[#allocation8 + $0x5c8] sm:$0xff]
    %v3821 = vld [vmem:[#allocation8 + $0x5d0] sm:$0xff]
    %v3822 = vld [vmem:[#allocation8 + $0x5d8] sm:$0xff]
    %v3823 = vld [vmem:[#allocation8 + $0x5e0] sm:$0xff]
    %v3824 = vld [vmem:[#allocation8 + $0x5e8] sm:$0xff]
    %v3825 = vld [vmem:[#allocation8 + $0x5f0] sm:$0xff]
    %v3826 = vld [vmem:[#allocation8 + $0x5f8] sm:$0xff]
    %v3827 = vld [vmem:[%s5] sm:$0x3f]
    %v3829 = vlaneseq
    %v3830 = vshrl.u32 %v3829, 7
    %v3831 = vsub.s32 0, %v3830
    %v3832 = vrot.slane %v3827, %v3831
    %v3833 = vlaneseq
    %v3834 = vshrl.u32 %v3833, 7
    %v3835 = vsub.s32 1, %v3834
    %v3836 = vrot.slane %v3827, %v3835
    %v3837 = vlaneseq
    %v3838 = vshrl.u32 %v3837, 7
    %v3839 = vsub.s32 2, %v3838
    %v3840 = vrot.slane %v3827, %v3839
    %v3841 = vlaneseq
    %v3842 = vshrl.u32 %v3841, 7
    %v3843 = vsub.s32 3, %v3842
    %v3844 = vrot.slane %v3827, %v3843
    %v3845 = vlaneseq
    %v3846 = vshrl.u32 %v3845, 7
    %v3847 = vsub.s32 4, %v3846
    %v3848 = vrot.slane %v3827, %v3847
    %v3849 = vlaneseq
    %v3850 = vshrl.u32 %v3849, 7
    %v3851 = vsub.s32 5, %v3850
    %v3852 = vrot.slane %v3827, %v3851
    %3859 = vmatprep.subr.mxu0 %v3636
    %3860 = vmatpush1.msra.mxu0 %v3635
    %3861 = vmatprep.subr.mxu0 %v3642
    %3862 = vmatpush1.msra.mxu0 %v3641
    %3863 = vmatprep.subr.mxu0 %v3648
    %3864 = vmatpush1.msra.mxu0 %v3647
    %3865 = vmatprep.subr.mxu0 %v3654
    %3866 = vmatpush1.msra.mxu0 %v3653
    %3867 = vmatprep.subr.mxu0 %v3660
    %3868 = vmatpush1.msra.mxu0 %v3659
    %3869 = vmatprep.subr.mxu0 %v3666
    %3870 = vmatpush1.msra.mxu0 %v3665
    %3871 = vmatprep.subr.mxu0 %v3672
    %3872 = vmatpush1.msra.mxu0 %v3671
    %3873 = vmatprep.subr.mxu0 %v3678
    %3874 = vmatpush1.msra.mxu0 %v3677
    %3875 = vmatprep.subr.mxu0 %v3684
    %3876 = vmatpush1.msra.mxu0 %v3683
    %3877 = vmatprep.subr.mxu0 %v3690
    %3878 = vmatpush1.msra.mxu0 %v3689
    %3879 = vmatprep.subr.mxu0 %v3696
    %3880 = vmatpush1.msra.mxu0 %v3695
    %3881 = vmatprep.subr.mxu0 %v3702
    %3882 = vmatpush1.msra.mxu0 %v3701
    %3883 = vmatprep.subr.mxu0 %v3708
    %3884 = vmatpush1.msra.mxu0 %v3707
    %3885 = vmatprep.subr.mxu0 %v3714
    %3886 = vmatpush1.msra.mxu0 %v3713
    %3887 = vmatprep.subr.mxu0 %v3720
    %3888 = vmatpush1.msra.mxu0 %v3719
    %3889 = vmatprep.subr.mxu0 %v3726
    %3890 = vmatpush1.msra.mxu0 %v3725
    %3891 = vmatprep.subr.mxu0 %v3732
    %3892 = vmatpush1.msra.mxu0 %v3731
    %3893 = vmatprep.subr.mxu0 %v3738
    %3894 = vmatpush1.msra.mxu0 %v3737
    %3895 = vmatprep.subr.mxu0 %v3744
    %3896 = vmatpush1.msra.mxu0 %v3743
    %3897 = vmatprep.subr.mxu0 %v3750
    %3898 = vmatpush1.msra.mxu0 %v3749
    %3899 = vmatprep.subr.mxu0 %v3756
    %3900 = vmatpush1.msra.mxu0 %v3755
    %3901 = vmatprep.subr.mxu0 %v3762
    %3902 = vmatpush1.msra.mxu0 %v3761
    %3903 = vmatprep.subr.mxu0 %v3768
    %3904 = vmatpush1.msra.mxu0 %v3767
    %3905 = vmatprep.subr.mxu0 %v3774
    %3906 = vmatpush1.msra.mxu0 %v3773
    %3907 = vmatprep.subr.mxu0 %v3780
    %3908 = vmatpush1.msra.mxu0 %v3779
    %3909 = vmatprep.subr.mxu0 %v3786
    %3910 = vmatpush1.msra.mxu0 %v3785
    %3911 = vmatprep.subr.mxu0 %v3792
    %3912 = vmatpush1.msra.mxu0 %v3791
    %3913 = vmatprep.subr.mxu0 %v3798
    %3914 = vmatpush1.msra.mxu0 %v3797
    %3915 = vmatprep.subr.mxu0 %v3804
    %3916 = vmatpush1.msra.mxu0 %v3803
    %3917 = vmatprep.subr.mxu0 %v3810
    %3918 = vmatpush1.msra.mxu0 %v3809
    %3919 = vmatprep.subr.mxu0 %v3816
    %3920 = vmatpush1.msra.mxu0 %v3815
    %3921 = vmatprep.subr.mxu0 %v3822
    %3922 = vmatpush1.msra.mxu0 %v3821
    %3923 = vmatprep.mubr.f32.mxu0 %v3632
    %3924 = vmatmul.mubr.f32.gmra.mrb[0].mxu0 %v3611
    %v3925 = vpop.f32.mrb[0].mxu0
    %v3926 = vadd.f32 %v3832, %v3925
    %v3927 = vpop.f32.mrb[0].mxu0
    %v3928 = vadd.f32 %v3836, %v3927
    %3929 = vdwg.mxu0
    %3930 = vmatprep.subr.mxu0 %v3638
    %3931 = vmatpush1.msra.mxu0 %v3637
    %3932 = vmatprep.subr.mxu0 %v3644
    %3933 = vmatpush1.msra.mxu0 %v3643
    %3934 = vmatprep.subr.mxu0 %v3650
    %3935 = vmatpush1.msra.mxu0 %v3649
    %3936 = vmatprep.subr.mxu0 %v3656
    %3937 = vmatpush1.msra.mxu0 %v3655
    %3938 = vmatprep.subr.mxu0 %v3662
    %3939 = vmatpush1.msra.mxu0 %v3661
    %3940 = vmatprep.subr.mxu0 %v3668
    %3941 = vmatpush1.msra.mxu0 %v3667
    %3942 = vmatprep.subr.mxu0 %v3674
    %3943 = vmatpush1.msra.mxu0 %v3673
    %3944 = vmatprep.subr.mxu0 %v3680
    %3945 = vmatpush1.msra.mxu0 %v3679
    %3946 = vmatprep.subr.mxu0 %v3686
    %3947 = vmatpush1.msra.mxu0 %v3685
    %3948 = vmatprep.subr.mxu0 %v3692
    %3949 = vmatpush1.msra.mxu0 %v3691
    %3950 = vmatprep.subr.mxu0 %v3698
    %3951 = vmatpush1.msra.mxu0 %v3697
    %3952 = vmatprep.subr.mxu0 %v3704
    %3953 = vmatpush1.msra.mxu0 %v3703
    %3954 = vmatprep.subr.mxu0 %v3710
    %3955 = vmatpush1.msra.mxu0 %v3709
    %3956 = vmatprep.subr.mxu0 %v3716
    %3957 = vmatpush1.msra.mxu0 %v3715
    %3958 = vmatprep.subr.mxu0 %v3722
    %3959 = vmatpush1.msra.mxu0 %v3721
    %3960 = vmatprep.subr.mxu0 %v3728
    %3961 = vmatpush1.msra.mxu0 %v3727
    %3962 = vmatprep.subr.mxu0 %v3734
    %3963 = vmatpush1.msra.mxu0 %v3733
    %3964 = vmatprep.subr.mxu0 %v3740
    %3965 = vmatpush1.msra.mxu0 %v3739
    %3966 = vmatprep.subr.mxu0 %v3746
    %3967 = vmatpush1.msra.mxu0 %v3745
    %3968 = vmatprep.subr.mxu0 %v3752
    %3969 = vmatpush1.msra.mxu0 %v3751
    %3970 = vmatprep.subr.mxu0 %v3758
    %3971 = vmatpush1.msra.mxu0 %v3757
    %3972 = vmatprep.subr.mxu0 %v3764
    %3973 = vmatpush1.msra.mxu0 %v3763
    %3974 = vmatprep.subr.mxu0 %v3770
    %3975 = vmatpush1.msra.mxu0 %v3769
    %3976 = vmatprep.subr.mxu0 %v3776
    %3977 = vmatpush1.msra.mxu0 %v3775
    %3978 = vmatprep.subr.mxu0 %v3782
    %3979 = vmatpush1.msra.mxu0 %v3781
    %3980 = vmatprep.subr.mxu0 %v3788
    %3981 = vmatpush1.msra.mxu0 %v3787
    %3982 = vmatprep.subr.mxu0 %v3794
    %3983 = vmatpush1.msra.mxu0 %v3793
    %3984 = vmatprep.subr.mxu0 %v3800
    %3985 = vmatpush1.msra.mxu0 %v3799
    %3986 = vmatprep.subr.mxu0 %v3806
    %3987 = vmatpush1.msra.mxu0 %v3805
    %3988 = vmatprep.subr.mxu0 %v3812
    %3989 = vmatpush1.msra.mxu0 %v3811
    %3990 = vmatprep.subr.mxu0 %v3818
    %3991 = vmatpush1.msra.mxu0 %v3817
    %3992 = vmatprep.subr.mxu0 %v3824
    %3993 = vmatpush1.msra.mxu0 %v3823
    %3994 = vmatprep.mubr.f32.mxu0 %v3632
    %3995 = vmatmul.mubr.f32.gmra.mrb[0].mxu0 %v3611
    %v3996 = vpop.f32.mrb[0].mxu0
    %v3997 = vadd.f32 %v3840, %v3996
    %v3998 = vpop.f32.mrb[0].mxu0
    %v3999 = vadd.f32 %v3844, %v3998
    %4000 = vdwg.mxu0
    %4001 = vmatprep.subr.mxu0 %v3640
    %4002 = vmatpush1.msra.mxu0 %v3639
    %4003 = vmatprep.subr.mxu0 %v3646
    %4004 = vmatpush1.msra.mxu0 %v3645
    %4005 = vmatprep.subr.mxu0 %v3652
    %4006 = vmatpush1.msra.mxu0 %v3651
    %4007 = vmatprep.subr.mxu0 %v3658
    %4008 = vmatpush1.msra.mxu0 %v3657
    %4009 = vmatprep.subr.mxu0 %v3664
    %4010 = vmatpush1.msra.mxu0 %v3663
    %4011 = vmatprep.subr.mxu0 %v3670
    %4012 = vmatpush1.msra.mxu0 %v3669
    %4013 = vmatprep.subr.mxu0 %v3676
    %4014 = vmatpush1.msra.mxu0 %v3675
    %4015 = vmatprep.subr.mxu0 %v3682
    %4016 = vmatpush1.msra.mxu0 %v3681
    %4017 = vmatprep.subr.mxu0 %v3688
    %4018 = vmatpush1.msra.mxu0 %v3687
    %4019 = vmatprep.subr.mxu0 %v3694
    %4020 = vmatpush1.msra.mxu0 %v3693
    %4021 = vmatprep.subr.mxu0 %v3700
    %4022 = vmatpush1.msra.mxu0 %v3699
    %4023 = vmatprep.subr.mxu0 %v3706
    %4024 = vmatpush1.msra.mxu0 %v3705
    %4025 = vmatprep.subr.mxu0 %v3712
    %4026 = vmatpush1.msra.mxu0 %v3711
    %4027 = vmatprep.subr.mxu0 %v3718
    %4028 = vmatpush1.msra.mxu0 %v3717
    %4029 = vmatprep.subr.mxu0 %v3724
    %4030 = vmatpush1.msra.mxu0 %v3723
    %4031 = vmatprep.subr.mxu0 %v3730
    %4032 = vmatpush1.msra.mxu0 %v3729
    %4033 = vmatprep.subr.mxu0 %v3736
    %4034 = vmatpush1.msra.mxu0 %v3735
    %4035 = vmatprep.subr.mxu0 %v3742
    %4036 = vmatpush1.msra.mxu0 %v3741
    %4037 = vmatprep.subr.mxu0 %v3748
    %4038 = vmatpush1.msra.mxu0 %v3747
    %4039 = vmatprep.subr.mxu0 %v3754
    %4040 = vmatpush1.msra.mxu0 %v3753
    %4041 = vmatprep.subr.mxu0 %v3760
    %4042 = vmatpush1.msra.mxu0 %v3759
    %4043 = vmatprep.subr.mxu0 %v3766
    %4044 = vmatpush1.msra.mxu0 %v3765
    %4045 = vmatprep.subr.mxu0 %v3772
    %4046 = vmatpush1.msra.mxu0 %v3771
    %4047 = vmatprep.subr.mxu0 %v3778
    %4048 = vmatpush1.msra.mxu0 %v3777
    %4049 = vmatprep.subr.mxu0 %v3784
    %4050 = vmatpush1.msra.mxu0 %v3783
    %4051 = vmatprep.subr.mxu0 %v3790
    %4052 = vmatpush1.msra.mxu0 %v3789
    %4053 = vmatprep.subr.mxu0 %v3796
    %4054 = vmatpush1.msra.mxu0 %v3795
    %4055 = vmatprep.subr.mxu0 %v3802
    %4056 = vmatpush1.msra.mxu0 %v3801
    %4057 = vmatprep.subr.mxu0 %v3808
    %4058 = vmatpush1.msra.mxu0 %v3807
    %4059 = vmatprep.subr.mxu0 %v3814
    %4060 = vmatpush1.msra.mxu0 %v3813
    %4061 = vmatprep.subr.mxu0 %v3820
    %4062 = vmatpush1.msra.mxu0 %v3819
    %4063 = vmatprep.subr.mxu0 %v3826
    %4064 = vmatpush1.msra.mxu0 %v3825
    %4065 = vmatprep.mubr.f32.mxu0 %v3632
    %4066 = vmatmul.mubr.f32.gmra.mrb[0].mxu0 %v3611
    %v4067 = vpop.f32.mrb[0].mxu0
    %v4068 = vadd.f32 %v3848, %v4067
    %v4069 = vpop.f32.mrb[0].mxu0
    %v4070 = vadd.f32 %v3852, %v4069
    %4071 = vdwg.mxu0
    %v4072 = vld [vmem:[%s1629] sm:$0xff]
    %v4073 = vld [vmem:[%s1629 + $0x8] sm:$0xff]
    %v4074 = vld [vmem:[%s1629 + $0x10] sm:$0xff]
    %v4075 = vld [vmem:[%s1625 + $0x18] sm:$0xff]
    %v4076 = vld [vmem:[%s1625 + $0x20] sm:$0xff]
    %v4077 = vld [vmem:[%s1625 + $0x28] sm:$0xff]
    %v4078 = vadd.f32 %v4072, %v3926
    %v4079 = vadd.f32 %v4073, %v3928
    %v4080 = vxor.u32 %v4078, 2147483648
    %v4081 = vxor.u32 %v4079, 2147483648
    %v4082 = vmul.f32 %v4080, 1.442695
    %v4083 = vpow.pop %v4082
    %v4084 = vmul.f32 %v4081, 1.442695
    %v4085 = vpow.pop %v4084
    %v4086 = vadd.f32 %v4083, 1.0
    %v4087 = vadd.f32 %v4085, 1.0
    %v4088 = vrcp.pop %v4086
    %v4089 = vmul.f32 1.0, %v4088
    %v4090 = vrcp.pop %v4087
    %v4091 = vmul.f32 1.0, %v4090
    %v4092 = vmul.f32 %v4089, %v3997
    %v4093 = vadd.f32 %v4074, %v4092
    %v4094 = vtanh.pop %v4093
    %v4095 = vsub.f32 1.0, %v4091
    %v4096 = vmul.f32 %v4095, %v4094
    %v4097 = vmul.f32 %v4091, %v3611
    %v4098 = vadd.f32 %v4096, %v4097
    %v4099 = vadd.f32 %v4075, %v3999
    %v4100 = vadd.f32 %v4076, %v4068
    %v4101 = vxor.u32 %v4099, 2147483648
    %v4102 = vxor.u32 %v4100, 2147483648
    %v4103 = vmul.f32 %v4101, 1.442695
    %v4104 = vpow.pop %v4103
    %v4105 = vmul.f32 %v4102, 1.442695
    %v4106 = vpow.pop %v4105
    %v4107 = vadd.f32 %v4104, 1.0
    %v4108 = vadd.f32 %v4106, 1.0
    %v4109 = vrcp.pop %v4107
    %v4110 = vmul.f32 1.0, %v4109
    %v4111 = vrcp.pop %v4108
    %v4112 = vmul.f32 1.0, %v4111
    %v4113 = vmul.f32 %v4110, %v4070
    %v4114 = vadd.f32 %v4077, %v4113
    %v4115 = vtanh.pop %v4114
    %v4116 = vsub.f32 1.0, %v4112
    %v4117 = vmul.f32 %v4116, %v4115
    %v4118 = vmul.f32 %v4112, %v3632
    %v4119 = vadd.f32 %v4117, %v4118
    %4120 = vst [vmem:[%s1677] sm:$0xff] %v4098
    %4121 = vst [vmem:[%s1675 + $0x8] sm:$0xff] %v4119
    %v4122 = vld [vmem:[#allocation8] sm:$0xff]
    %v4123 = vld [vmem:[#allocation8 + $0x8] sm:$0xff]
    %v4124 = vld [vmem:[#allocation8 + $0x10] sm:$0xff]
    %v4125 = vld [vmem:[#allocation8 + $0x18] sm:$0xff]
    %v4126 = vld [vmem:[#allocation8 + $0x20] sm:$0xff]
    %v4127 = vld [vmem:[#allocation8 + $0x28] sm:$0xff]
    %v4128 = vld [vmem:[#allocation8 + $0x30] sm:$0xff]
    %v4129 = vld [vmem:[#allocation8 + $0x38] sm:$0xff]
    %v4130 = vld [vmem:[#allocation8 + $0x40] sm:$0xff]
    %v4131 = vld [vmem:[#allocation8 + $0x48] sm:$0xff]
    %v4132 = vld [vmem:[#allocation8 + $0x50] sm:$0xff]
    %v4133 = vld [vmem:[#allocation8 + $0x58] sm:$0xff]
    %v4134 = vld [vmem:[#allocation8 + $0x60] sm:$0xff]
    %v4135 = vld [vmem:[#allocation8 + $0x68] sm:$0xff]
    %v4136 = vld [vmem:[#allocation8 + $0x70] sm:$0xff]
    %v4137 = vld [vmem:[#allocation8 + $0x78] sm:$0xff]
    %v4138 = vld [vmem:[#allocation8 + $0x80] sm:$0xff]
    %v4139 = vld [vmem:[#allocation8 + $0x88] sm:$0xff]
    %v4140 = vld [vmem:[#allocation8 + $0x90] sm:$0xff]
    %v4141 = vld [vmem:[#allocation8 + $0x98] sm:$0xff]
    %v4142 = vld [vmem:[#allocation8 + $0xa0] sm:$0xff]
    %v4143 = vld [vmem:[#allocation8 + $0xa8] sm:$0xff]
    %v4144 = vld [vmem:[#allocation8 + $0xb0] sm:$0xff]
    %v4145 = vld [vmem:[#allocation8 + $0xb8] sm:$0xff]
    %v4146 = vld [vmem:[#allocation8 + $0xc0] sm:$0xff]
    %v4147 = vld [vmem:[#allocation8 + $0xc8] sm:$0xff]
    %v4148 = vld [vmem:[#allocation8 + $0xd0] sm:$0xff]
    %v4149 = vld [vmem:[#allocation8 + $0xd8] sm:$0xff]
    %v4150 = vld [vmem:[#allocation8 + $0xe0] sm:$0xff]
    %v4151 = vld [vmem:[#allocation8 + $0xe8] sm:$0xff]
    %v4152 = vld [vmem:[#allocation8 + $0xf0] sm:$0xff]
    %v4153 = vld [vmem:[#allocation8 + $0xf8] sm:$0xff]
    %v4154 = vld [vmem:[#allocation8 + $0x100] sm:$0xff]
    %v4155 = vld [vmem:[#allocation8 + $0x108] sm:$0xff]
    %v4156 = vld [vmem:[#allocation8 + $0x110] sm:$0xff]
    %v4157 = vld [vmem:[#allocation8 + $0x118] sm:$0xff]
    %v4158 = vld [vmem:[#allocation8 + $0x120] sm:$0xff]
    %v4159 = vld [vmem:[#allocation8 + $0x128] sm:$0xff]
    %v4160 = vld [vmem:[#allocation8 + $0x130] sm:$0xff]
    %v4161 = vld [vmem:[#allocation8 + $0x138] sm:$0xff]
    %v4162 = vld [vmem:[#allocation8 + $0x140] sm:$0xff]
    %v4163 = vld [vmem:[#allocation8 + $0x148] sm:$0xff]
    %v4164 = vld [vmem:[#allocation8 + $0x150] sm:$0xff]
    %v4165 = vld [vmem:[#allocation8 + $0x158] sm:$0xff]
    %v4166 = vld [vmem:[#allocation8 + $0x160] sm:$0xff]
    %v4167 = vld [vmem:[#allocation8 + $0x168] sm:$0xff]
    %v4168 = vld [vmem:[#allocation8 + $0x170] sm:$0xff]
    %v4169 = vld [vmem:[#allocation8 + $0x178] sm:$0xff]
    %v4170 = vld [vmem:[#allocation8 + $0x180] sm:$0xff]
    %v4171 = vld [vmem:[#allocation8 + $0x188] sm:$0xff]
    %v4172 = vld [vmem:[#allocation8 + $0x190] sm:$0xff]
    %v4173 = vld [vmem:[#allocation8 + $0x198] sm:$0xff]
    %v4174 = vld [vmem:[#allocation8 + $0x1a0] sm:$0xff]
    %v4175 = vld [vmem:[#allocation8 + $0x1a8] sm:$0xff]
    %v4176 = vld [vmem:[#allocation8 + $0x1b0] sm:$0xff]
    %v4177 = vld [vmem:[#allocation8 + $0x1b8] sm:$0xff]
    %v4178 = vld [vmem:[#allocation8 + $0x1c0] sm:$0xff]
    %v4179 = vld [vmem:[#allocation8 + $0x1c8] sm:$0xff]
    %v4180 = vld [vmem:[#allocation8 + $0x1d0] sm:$0xff]
    %v4181 = vld [vmem:[#allocation8 + $0x1d8] sm:$0xff]
    %v4182 = vld [vmem:[#allocation8 + $0x1e0] sm:$0xff]
    %v4183 = vld [vmem:[#allocation8 + $0x1e8] sm:$0xff]
    %v4184 = vld [vmem:[#allocation8 + $0x1f0] sm:$0xff]
    %v4185 = vld [vmem:[#allocation8 + $0x1f8] sm:$0xff]
    %v4186 = vld [vmem:[#allocation8 + $0x200] sm:$0xff]
    %v4187 = vld [vmem:[#allocation8 + $0x208] sm:$0xff]
    %v4188 = vld [vmem:[#allocation8 + $0x210] sm:$0xff]
    %v4189 = vld [vmem:[#allocation8 + $0x218] sm:$0xff]
    %v4190 = vld [vmem:[#allocation8 + $0x220] sm:$0xff]
    %v4191 = vld [vmem:[#allocation8 + $0x228] sm:$0xff]
    %v4192 = vld [vmem:[#allocation8 + $0x230] sm:$0xff]
    %v4193 = vld [vmem:[#allocation8 + $0x238] sm:$0xff]
    %v4194 = vld [vmem:[#allocation8 + $0x240] sm:$0xff]
    %v4195 = vld [vmem:[#allocation8 + $0x248] sm:$0xff]
    %v4196 = vld [vmem:[#allocation8 + $0x250] sm:$0xff]
    %v4197 = vld [vmem:[#allocation8 + $0x258] sm:$0xff]
    %v4198 = vld [vmem:[#allocation8 + $0x260] sm:$0xff]
    %v4199 = vld [vmem:[#allocation8 + $0x268] sm:$0xff]
    %v4200 = vld [vmem:[#allocation8 + $0x270] sm:$0xff]
    %v4201 = vld [vmem:[#allocation8 + $0x278] sm:$0xff]
    %v4202 = vld [vmem:[#allocation8 + $0x280] sm:$0xff]
    %v4203 = vld [vmem:[#allocation8 + $0x288] sm:$0xff]
    %v4204 = vld [vmem:[#allocation8 + $0x290] sm:$0xff]
    %v4205 = vld [vmem:[#allocation8 + $0x298] sm:$0xff]
    %v4206 = vld [vmem:[#allocation8 + $0x2a0] sm:$0xff]
    %v4207 = vld [vmem:[#allocation8 + $0x2a8] sm:$0xff]
    %v4208 = vld [vmem:[#allocation8 + $0x2b0] sm:$0xff]
    %v4209 = vld [vmem:[#allocation8 + $0x2b8] sm:$0xff]
    %v4210 = vld [vmem:[#allocation8 + $0x2c0] sm:$0xff]
    %v4211 = vld [vmem:[#allocation8 + $0x2c8] sm:$0xff]
    %v4212 = vld [vmem:[#allocation8 + $0x2d0] sm:$0xff]
    %v4213 = vld [vmem:[#allocation8 + $0x2d8] sm:$0xff]
    %v4214 = vld [vmem:[#allocation8 + $0x2e0] sm:$0xff]
    %v4215 = vld [vmem:[#allocation8 + $0x2e8] sm:$0xff]
    %v4216 = vld [vmem:[#allocation8 + $0x2f0] sm:$0xff]
    %v4217 = vld [vmem:[#allocation8 + $0x2f8] sm:$0xff]
    %v4218 = vld [vmem:[#allocation8 + $0x300] sm:$0xff]
    %v4219 = vld [vmem:[#allocation8 + $0x308] sm:$0xff]
    %v4220 = vld [vmem:[#allocation8 + $0x310] sm:$0xff]
    %v4221 = vld [vmem:[#allocation8 + $0x318] sm:$0xff]
    %v4222 = vld [vmem:[#allocation8 + $0x320] sm:$0xff]
    %v4223 = vld [vmem:[#allocation8 + $0x328] sm:$0xff]
    %v4224 = vld [vmem:[#allocation8 + $0x330] sm:$0xff]
    %v4225 = vld [vmem:[#allocation8 + $0x338] sm:$0xff]
    %v4226 = vld [vmem:[#allocation8 + $0x340] sm:$0xff]
    %v4227 = vld [vmem:[#allocation8 + $0x348] sm:$0xff]
    %v4228 = vld [vmem:[#allocation8 + $0x350] sm:$0xff]
    %v4229 = vld [vmem:[#allocation8 + $0x358] sm:$0xff]
    %v4230 = vld [vmem:[#allocation8 + $0x360] sm:$0xff]
    %v4231 = vld [vmem:[#allocation8 + $0x368] sm:$0xff]
    %v4232 = vld [vmem:[#allocation8 + $0x370] sm:$0xff]
    %v4233 = vld [vmem:[#allocation8 + $0x378] sm:$0xff]
    %v4234 = vld [vmem:[#allocation8 + $0x380] sm:$0xff]
    %v4235 = vld [vmem:[#allocation8 + $0x388] sm:$0xff]
    %v4236 = vld [vmem:[#allocation8 + $0x390] sm:$0xff]
    %v4237 = vld [vmem:[#allocation8 + $0x398] sm:$0xff]
    %v4238 = vld [vmem:[#allocation8 + $0x3a0] sm:$0xff]
    %v4239 = vld [vmem:[#allocation8 + $0x3a8] sm:$0xff]
    %v4240 = vld [vmem:[#allocation8 + $0x3b0] sm:$0xff]
    %v4241 = vld [vmem:[#allocation8 + $0x3b8] sm:$0xff]
    %v4242 = vld [vmem:[#allocation8 + $0x3c0] sm:$0xff]
    %v4243 = vld [vmem:[#allocation8 + $0x3c8] sm:$0xff]
    %v4244 = vld [vmem:[#allocation8 + $0x3d0] sm:$0xff]
    %v4245 = vld [vmem:[#allocation8 + $0x3d8] sm:$0xff]
    %v4246 = vld [vmem:[#allocation8 + $0x3e0] sm:$0xff]
    %v4247 = vld [vmem:[#allocation8 + $0x3e8] sm:$0xff]
    %v4248 = vld [vmem:[#allocation8 + $0x3f0] sm:$0xff]
    %v4249 = vld [vmem:[#allocation8 + $0x3f8] sm:$0xff]
    %v4250 = vld [vmem:[#allocation8 + $0x400] sm:$0xff]
    %v4251 = vld [vmem:[#allocation8 + $0x408] sm:$0xff]
    %v4252 = vld [vmem:[#allocation8 + $0x410] sm:$0xff]
    %v4253 = vld [vmem:[#allocation8 + $0x418] sm:$0xff]
    %v4254 = vld [vmem:[#allocation8 + $0x420] sm:$0xff]
    %v4255 = vld [vmem:[#allocation8 + $0x428] sm:$0xff]
    %v4256 = vld [vmem:[#allocation8 + $0x430] sm:$0xff]
    %v4257 = vld [vmem:[#allocation8 + $0x438] sm:$0xff]
    %v4258 = vld [vmem:[#allocation8 + $0x440] sm:$0xff]
    %v4259 = vld [vmem:[#allocation8 + $0x448] sm:$0xff]
    %v4260 = vld [vmem:[#allocation8 + $0x450] sm:$0xff]
    %v4261 = vld [vmem:[#allocation8 + $0x458] sm:$0xff]
    %v4262 = vld [vmem:[#allocation8 + $0x460] sm:$0xff]
    %v4263 = vld [vmem:[#allocation8 + $0x468] sm:$0xff]
    %v4264 = vld [vmem:[#allocation8 + $0x470] sm:$0xff]
    %v4265 = vld [vmem:[#allocation8 + $0x478] sm:$0xff]
    %v4266 = vld [vmem:[#allocation8 + $0x480] sm:$0xff]
    %v4267 = vld [vmem:[#allocation8 + $0x488] sm:$0xff]
    %v4268 = vld [vmem:[#allocation8 + $0x490] sm:$0xff]
    %v4269 = vld [vmem:[#allocation8 + $0x498] sm:$0xff]
    %v4270 = vld [vmem:[#allocation8 + $0x4a0] sm:$0xff]
    %v4271 = vld [vmem:[#allocation8 + $0x4a8] sm:$0xff]
    %v4272 = vld [vmem:[#allocation8 + $0x4b0] sm:$0xff]
    %v4273 = vld [vmem:[#allocation8 + $0x4b8] sm:$0xff]
    %v4274 = vld [vmem:[#allocation8 + $0x4c0] sm:$0xff]
    %v4275 = vld [vmem:[#allocation8 + $0x4c8] sm:$0xff]
    %v4276 = vld [vmem:[#allocation8 + $0x4d0] sm:$0xff]
    %v4277 = vld [vmem:[#allocation8 + $0x4d8] sm:$0xff]
    %v4278 = vld [vmem:[#allocation8 + $0x4e0] sm:$0xff]
    %v4279 = vld [vmem:[#allocation8 + $0x4e8] sm:$0xff]
    %v4280 = vld [vmem:[#allocation8 + $0x4f0] sm:$0xff]
    %v4281 = vld [vmem:[#allocation8 + $0x4f8] sm:$0xff]
    %v4282 = vld [vmem:[#allocation8 + $0x500] sm:$0xff]
    %v4283 = vld [vmem:[#allocation8 + $0x508] sm:$0xff]
    %v4284 = vld [vmem:[#allocation8 + $0x510] sm:$0xff]
    %v4285 = vld [vmem:[#allocation8 + $0x518] sm:$0xff]
    %v4286 = vld [vmem:[#allocation8 + $0x520] sm:$0xff]
    %v4287 = vld [vmem:[#allocation8 + $0x528] sm:$0xff]
    %v4288 = vld [vmem:[#allocation8 + $0x530] sm:$0xff]
    %v4289 = vld [vmem:[#allocation8 + $0x538] sm:$0xff]
    %v4290 = vld [vmem:[#allocation8 + $0x540] sm:$0xff]
    %v4291 = vld [vmem:[#allocation8 + $0x548] sm:$0xff]
    %v4292 = vld [vmem:[#allocation8 + $0x550] sm:$0xff]
    %v4293 = vld [vmem:[#allocation8 + $0x558] sm:$0xff]
    %v4294 = vld [vmem:[#allocation8 + $0x560] sm:$0xff]
    %v4295 = vld [vmem:[#allocation8 + $0x568] sm:$0xff]
    %v4296 = vld [vmem:[#allocation8 + $0x570] sm:$0xff]
    %v4297 = vld [vmem:[#allocation8 + $0x578] sm:$0xff]
    %v4298 = vld [vmem:[#allocation8 + $0x580] sm:$0xff]
    %v4299 = vld [vmem:[#allocation8 + $0x588] sm:$0xff]
    %v4300 = vld [vmem:[#allocation8 + $0x590] sm:$0xff]
    %v4301 = vld [vmem:[#allocation8 + $0x598] sm:$0xff]
    %v4302 = vld [vmem:[#allocation8 + $0x5a0] sm:$0xff]
    %v4303 = vld [vmem:[#allocation8 + $0x5a8] sm:$0xff]
    %v4304 = vld [vmem:[#allocation8 + $0x5b0] sm:$0xff]
    %v4305 = vld [vmem:[#allocation8 + $0x5b8] sm:$0xff]
    %v4306 = vld [vmem:[#allocation8 + $0x5c0] sm:$0xff]
    %v4307 = vld [vmem:[#allocation8 + $0x5c8] sm:$0xff]
    %v4308 = vld [vmem:[#allocation8 + $0x5d0] sm:$0xff]
    %v4309 = vld [vmem:[#allocation8 + $0x5d8] sm:$0xff]
    %v4310 = vld [vmem:[#allocation8 + $0x5e0] sm:$0xff]
    %v4311 = vld [vmem:[#allocation8 + $0x5e8] sm:$0xff]
    %v4312 = vld [vmem:[#allocation8 + $0x5f0] sm:$0xff]
    %v4313 = vld [vmem:[#allocation8 + $0x5f8] sm:$0xff]
    %v4314 = vld [vmem:[%s5] sm:$0x3f]
    %v4316 = vlaneseq
    %v4317 = vshrl.u32 %v4316, 7
    %v4318 = vsub.s32 0, %v4317
    %v4319 = vrot.slane %v4314, %v4318
    %v4320 = vlaneseq
    %v4321 = vshrl.u32 %v4320, 7
    %v4322 = vsub.s32 1, %v4321
    %v4323 = vrot.slane %v4314, %v4322
    %v4324 = vlaneseq
    %v4325 = vshrl.u32 %v4324, 7
    %v4326 = vsub.s32 2, %v4325
    %v4327 = vrot.slane %v4314, %v4326
    %v4328 = vlaneseq
    %v4329 = vshrl.u32 %v4328, 7
    %v4330 = vsub.s32 3, %v4329
    %v4331 = vrot.slane %v4314, %v4330
    %v4332 = vlaneseq
    %v4333 = vshrl.u32 %v4332, 7
    %v4334 = vsub.s32 4, %v4333
    %v4335 = vrot.slane %v4314, %v4334
    %v4336 = vlaneseq
    %v4337 = vshrl.u32 %v4336, 7
    %v4338 = vsub.s32 5, %v4337
    %v4339 = vrot.slane %v4314, %v4338
    %4346 = vmatprep.subr.mxu0 %v4123
    %4347 = vmatpush1.msra.mxu0 %v4122
    %4348 = vmatprep.subr.mxu0 %v4129
    %4349 = vmatpush1.msra.mxu0 %v4128
    %4350 = vmatprep.subr.mxu0 %v4135
    %4351 = vmatpush1.msra.mxu0 %v4134
    %4352 = vmatprep.subr.mxu0 %v4141
    %4353 = vmatpush1.msra.mxu0 %v4140
    %4354 = vmatprep.subr.mxu0 %v4147
    %4355 = vmatpush1.msra.mxu0 %v4146
    %4356 = vmatprep.subr.mxu0 %v4153
    %4357 = vmatpush1.msra.mxu0 %v4152
    %4358 = vmatprep.subr.mxu0 %v4159
    %4359 = vmatpush1.msra.mxu0 %v4158
    %4360 = vmatprep.subr.mxu0 %v4165
    %4361 = vmatpush1.msra.mxu0 %v4164
    %4362 = vmatprep.subr.mxu0 %v4171
    %4363 = vmatpush1.msra.mxu0 %v4170
    %4364 = vmatprep.subr.mxu0 %v4177
    %4365 = vmatpush1.msra.mxu0 %v4176
    %4366 = vmatprep.subr.mxu0 %v4183
    %4367 = vmatpush1.msra.mxu0 %v4182
    %4368 = vmatprep.subr.mxu0 %v4189
    %4369 = vmatpush1.msra.mxu0 %v4188
    %4370 = vmatprep.subr.mxu0 %v4195
    %4371 = vmatpush1.msra.mxu0 %v4194
    %4372 = vmatprep.subr.mxu0 %v4201
    %4373 = vmatpush1.msra.mxu0 %v4200
    %4374 = vmatprep.subr.mxu0 %v4207
    %4375 = vmatpush1.msra.mxu0 %v4206
    %4376 = vmatprep.subr.mxu0 %v4213
    %4377 = vmatpush1.msra.mxu0 %v4212
    %4378 = vmatprep.subr.mxu0 %v4219
    %4379 = vmatpush1.msra.mxu0 %v4218
    %4380 = vmatprep.subr.mxu0 %v4225
    %4381 = vmatpush1.msra.mxu0 %v4224
    %4382 = vmatprep.subr.mxu0 %v4231
    %4383 = vmatpush1.msra.mxu0 %v4230
    %4384 = vmatprep.subr.mxu0 %v4237
    %4385 = vmatpush1.msra.mxu0 %v4236
    %4386 = vmatprep.subr.mxu0 %v4243
    %4387 = vmatpush1.msra.mxu0 %v4242
    %4388 = vmatprep.subr.mxu0 %v4249
    %4389 = vmatpush1.msra.mxu0 %v4248
    %4390 = vmatprep.subr.mxu0 %v4255
    %4391 = vmatpush1.msra.mxu0 %v4254
    %4392 = vmatprep.subr.mxu0 %v4261
    %4393 = vmatpush1.msra.mxu0 %v4260
    %4394 = vmatprep.subr.mxu0 %v4267
    %4395 = vmatpush1.msra.mxu0 %v4266
    %4396 = vmatprep.subr.mxu0 %v4273
    %4397 = vmatpush1.msra.mxu0 %v4272
    %4398 = vmatprep.subr.mxu0 %v4279
    %4399 = vmatpush1.msra.mxu0 %v4278
    %4400 = vmatprep.subr.mxu0 %v4285
    %4401 = vmatpush1.msra.mxu0 %v4284
    %4402 = vmatprep.subr.mxu0 %v4291
    %4403 = vmatpush1.msra.mxu0 %v4290
    %4404 = vmatprep.subr.mxu0 %v4297
    %4405 = vmatpush1.msra.mxu0 %v4296
    %4406 = vmatprep.subr.mxu0 %v4303
    %4407 = vmatpush1.msra.mxu0 %v4302
    %4408 = vmatprep.subr.mxu0 %v4309
    %4409 = vmatpush1.msra.mxu0 %v4308
    %4410 = vmatprep.mubr.f32.mxu0 %v4119
    %4411 = vmatmul.mubr.f32.gmra.mrb[0].mxu0 %v4098
    %v4412 = vpop.f32.mrb[0].mxu0
    %v4413 = vadd.f32 %v4319, %v4412
    %v4414 = vpop.f32.mrb[0].mxu0
    %v4415 = vadd.f32 %v4323, %v4414
    %4416 = vdwg.mxu0
    %4417 = vmatprep.subr.mxu0 %v4125
    %4418 = vmatpush1.msra.mxu0 %v4124
    %4419 = vmatprep.subr.mxu0 %v4131
    %4420 = vmatpush1.msra.mxu0 %v4130
    %4421 = vmatprep.subr.mxu0 %v4137
    %4422 = vmatpush1.msra.mxu0 %v4136
    %4423 = vmatprep.subr.mxu0 %v4143
    %4424 = vmatpush1.msra.mxu0 %v4142
    %4425 = vmatprep.subr.mxu0 %v4149
    %4426 = vmatpush1.msra.mxu0 %v4148
    %4427 = vmatprep.subr.mxu0 %v4155
    %4428 = vmatpush1.msra.mxu0 %v4154
    %4429 = vmatprep.subr.mxu0 %v4161
    %4430 = vmatpush1.msra.mxu0 %v4160
    %4431 = vmatprep.subr.mxu0 %v4167
    %4432 = vmatpush1.msra.mxu0 %v4166
    %4433 = vmatprep.subr.mxu0 %v4173
    %4434 = vmatpush1.msra.mxu0 %v4172
    %4435 = vmatprep.subr.mxu0 %v4179
    %4436 = vmatpush1.msra.mxu0 %v4178
    %4437 = vmatprep.subr.mxu0 %v4185
    %4438 = vmatpush1.msra.mxu0 %v4184
    %4439 = vmatprep.subr.mxu0 %v4191
    %4440 = vmatpush1.msra.mxu0 %v4190
    %4441 = vmatprep.subr.mxu0 %v4197
    %4442 = vmatpush1.msra.mxu0 %v4196
    %4443 = vmatprep.subr.mxu0 %v4203
    %4444 = vmatpush1.msra.mxu0 %v4202
    %4445 = vmatprep.subr.mxu0 %v4209
    %4446 = vmatpush1.msra.mxu0 %v4208
    %4447 = vmatprep.subr.mxu0 %v4215
    %4448 = vmatpush1.msra.mxu0 %v4214
    %4449 = vmatprep.subr.mxu0 %v4221
    %4450 = vmatpush1.msra.mxu0 %v4220
    %4451 = vmatprep.subr.mxu0 %v4227
    %4452 = vmatpush1.msra.mxu0 %v4226
    %4453 = vmatprep.subr.mxu0 %v4233
    %4454 = vmatpush1.msra.mxu0 %v4232
    %4455 = vmatprep.subr.mxu0 %v4239
    %4456 = vmatpush1.msra.mxu0 %v4238
    %4457 = vmatprep.subr.mxu0 %v4245
    %4458 = vmatpush1.msra.mxu0 %v4244
    %4459 = vmatprep.subr.mxu0 %v4251
    %4460 = vmatpush1.msra.mxu0 %v4250
    %4461 = vmatprep.subr.mxu0 %v4257
    %4462 = vmatpush1.msra.mxu0 %v4256
    %4463 = vmatprep.subr.mxu0 %v4263
    %4464 = vmatpush1.msra.mxu0 %v4262
    %4465 = vmatprep.subr.mxu0 %v4269
    %4466 = vmatpush1.msra.mxu0 %v4268
    %4467 = vmatprep.subr.mxu0 %v4275
    %4468 = vmatpush1.msra.mxu0 %v4274
    %4469 = vmatprep.subr.mxu0 %v4281
    %4470 = vmatpush1.msra.mxu0 %v4280
    %4471 = vmatprep.subr.mxu0 %v4287
    %4472 = vmatpush1.msra.mxu0 %v4286
    %4473 = vmatprep.subr.mxu0 %v4293
    %4474 = vmatpush1.msra.mxu0 %v4292
    %4475 = vmatprep.subr.mxu0 %v4299
    %4476 = vmatpush1.msra.mxu0 %v4298
    %4477 = vmatprep.subr.mxu0 %v4305
    %4478 = vmatpush1.msra.mxu0 %v4304
    %4479 = vmatprep.subr.mxu0 %v4311
    %4480 = vmatpush1.msra.mxu0 %v4310
    %4481 = vmatprep.mubr.f32.mxu0 %v4119
    %4482 = vmatmul.mubr.f32.gmra.mrb[0].mxu0 %v4098
    %v4483 = vpop.f32.mrb[0].mxu0
    %v4484 = vadd.f32 %v4327, %v4483
    %v4485 = vpop.f32.mrb[0].mxu0
    %v4486 = vadd.f32 %v4331, %v4485
    %4487 = vdwg.mxu0
    %4488 = vmatprep.subr.mxu0 %v4127
    %4489 = vmatpush1.msra.mxu0 %v4126
    %4490 = vmatprep.subr.mxu0 %v4133
    %4491 = vmatpush1.msra.mxu0 %v4132
    %4492 = vmatprep.subr.mxu0 %v4139
    %4493 = vmatpush1.msra.mxu0 %v4138
    %4494 = vmatprep.subr.mxu0 %v4145
    %4495 = vmatpush1.msra.mxu0 %v4144
    %4496 = vmatprep.subr.mxu0 %v4151
    %4497 = vmatpush1.msra.mxu0 %v4150
    %4498 = vmatprep.subr.mxu0 %v4157
    %4499 = vmatpush1.msra.mxu0 %v4156
    %4500 = vmatprep.subr.mxu0 %v4163
    %4501 = vmatpush1.msra.mxu0 %v4162
    %4502 = vmatprep.subr.mxu0 %v4169
    %4503 = vmatpush1.msra.mxu0 %v4168
    %4504 = vmatprep.subr.mxu0 %v4175
    %4505 = vmatpush1.msra.mxu0 %v4174
    %4506 = vmatprep.subr.mxu0 %v4181
    %4507 = vmatpush1.msra.mxu0 %v4180
    %4508 = vmatprep.subr.mxu0 %v4187
    %4509 = vmatpush1.msra.mxu0 %v4186
    %4510 = vmatprep.subr.mxu0 %v4193
    %4511 = vmatpush1.msra.mxu0 %v4192
    %4512 = vmatprep.subr.mxu0 %v4199
    %4513 = vmatpush1.msra.mxu0 %v4198
    %4514 = vmatprep.subr.mxu0 %v4205
    %4515 = vmatpush1.msra.mxu0 %v4204
    %4516 = vmatprep.subr.mxu0 %v4211
    %4517 = vmatpush1.msra.mxu0 %v4210
    %4518 = vmatprep.subr.mxu0 %v4217
    %4519 = vmatpush1.msra.mxu0 %v4216
    %4520 = vmatprep.subr.mxu0 %v4223
    %4521 = vmatpush1.msra.mxu0 %v4222
    %4522 = vmatprep.subr.mxu0 %v4229
    %4523 = vmatpush1.msra.mxu0 %v4228
    %4524 = vmatprep.subr.mxu0 %v4235
    %4525 = vmatpush1.msra.mxu0 %v4234
    %4526 = vmatprep.subr.mxu0 %v4241
    %4527 = vmatpush1.msra.mxu0 %v4240
    %4528 = vmatprep.subr.mxu0 %v4247
    %4529 = vmatpush1.msra.mxu0 %v4246
    %4530 = vmatprep.subr.mxu0 %v4253
    %4531 = vmatpush1.msra.mxu0 %v4252
    %4532 = vmatprep.subr.mxu0 %v4259
    %4533 = vmatpush1.msra.mxu0 %v4258
    %4534 = vmatprep.subr.mxu0 %v4265
    %4535 = vmatpush1.msra.mxu0 %v4264
    %4536 = vmatprep.subr.mxu0 %v4271
    %4537 = vmatpush1.msra.mxu0 %v4270
    %4538 = vmatprep.subr.mxu0 %v4277
    %4539 = vmatpush1.msra.mxu0 %v4276
    %4540 = vmatprep.subr.mxu0 %v4283
    %4541 = vmatpush1.msra.mxu0 %v4282
    %4542 = vmatprep.subr.mxu0 %v4289
    %4543 = vmatpush1.msra.mxu0 %v4288
    %4544 = vmatprep.subr.mxu0 %v4295
    %4545 = vmatpush1.msra.mxu0 %v4294
    %4546 = vmatprep.subr.mxu0 %v4301
    %4547 = vmatpush1.msra.mxu0 %v4300
    %4548 = vmatprep.subr.mxu0 %v4307
    %4549 = vmatpush1.msra.mxu0 %v4306
    %4550 = vmatprep.subr.mxu0 %v4313
    %4551 = vmatpush1.msra.mxu0 %v4312
    %4552 = vmatprep.mubr.f32.mxu0 %v4119
    %4553 = vmatmul.mubr.f32.gmra.mrb[0].mxu0 %v4098
    %v4554 = vpop.f32.mrb[0].mxu0
    %v4555 = vadd.f32 %v4335, %v4554
    %v4556 = vpop.f32.mrb[0].mxu0
    %v4557 = vadd.f32 %v4339, %v4556
    %4558 = vdwg.mxu0
    %v4559 = vld [vmem:[%s1139] sm:$0xff]
    %v4560 = vld [vmem:[%s1139 + $0x8] sm:$0xff]
    %v4561 = vld [vmem:[%s1139 + $0x10] sm:$0xff]
    %v4562 = vld [vmem:[#allocation2 + $0x18] sm:$0xff]
    %v4563 = vld [vmem:[#allocation2 + $0x20] sm:$0xff]
    %v4564 = vld [vmem:[#allocation2 + $0x28] sm:$0xff]
    %v4565 = vadd.f32 %v4559, %v4413
    %v4566 = vadd.f32 %v4560, %v4415
    %v4567 = vxor.u32 %v4565, 2147483648
    %v4568 = vxor.u32 %v4566, 2147483648
    %v4569 = vmul.f32 %v4567, 1.442695
    %v4570 = vpow.pop %v4569
    %v4571 = vmul.f32 %v4568, 1.442695
    %v4572 = vpow.pop %v4571
    %v4573 = vadd.f32 %v4570, 1.0
    %v4574 = vadd.f32 %v4572, 1.0
    %v4575 = vrcp.pop %v4573
    %v4576 = vmul.f32 1.0, %v4575
    %v4577 = vrcp.pop %v4574
    %v4578 = vmul.f32 1.0, %v4577
    %v4579 = vmul.f32 %v4576, %v4484
    %v4580 = vadd.f32 %v4561, %v4579
    %v4581 = vtanh.pop %v4580
    %v4582 = vsub.f32 1.0, %v4578
    %v4583 = vmul.f32 %v4582, %v4581
    %v4584 = vmul.f32 %v4578, %v4098
    %v4585 = vadd.f32 %v4583, %v4584
    %v4586 = vadd.f32 %v4562, %v4486
    %v4587 = vadd.f32 %v4563, %v4555
    %v4588 = vxor.u32 %v4586, 2147483648
    %v4589 = vxor.u32 %v4587, 2147483648
    %v4590 = vmul.f32 %v4588, 1.442695
    %v4591 = vpow.pop %v4590
    %v4592 = vmul.f32 %v4589, 1.442695
    %v4593 = vpow.pop %v4592
    %v4594 = vadd.f32 %v4591, 1.0
    %v4595 = vadd.f32 %v4593, 1.0
    %v4596 = vrcp.pop %v4594
    %v4597 = vmul.f32 1.0, %v4596
    %v4598 = vrcp.pop %v4595
    %v4599 = vmul.f32 1.0, %v4598
    %v4600 = vmul.f32 %v4597, %v4557
    %v4601 = vadd.f32 %v4564, %v4600
    %v4602 = vtanh.pop %v4601
    %v4603 = vsub.f32 1.0, %v4599
    %v4604 = vmul.f32 %v4603, %v4602
    %v4605 = vmul.f32 %v4599, %v4119
    %v4606 = vadd.f32 %v4604, %v4605
    %4607 = vst [vmem:[%s1186] sm:$0xff] %v4585
    %4608 = vst [vmem:[#allocation3 + $0x8] sm:$0xff] %v4606
    %v4609 = vld [vmem:[#allocation3] sm:$0xff]
    %v4610 = vld [vmem:[#allocation3 + $0x8] sm:$0xff]
    %v4611 = vld [vmem:[#allocation3 + $0x10] sm:$0xff]
    %v4612 = vld [vmem:[#allocation3 + $0x18] sm:$0xff]
    %v4613 = vld [vmem:[#allocation3 + $0x20] sm:$0xff]
    %v4614 = vld [vmem:[#allocation3 + $0x28] sm:$0xff]
    %v4615 = vld [vmem:[#allocation3 + $0x30] sm:$0xff]
    %v4616 = vld [vmem:[#allocation3 + $0x38] sm:$0xff]
    %v4617 = vld [vmem:[#allocation3 + $0x40] sm:$0xff]
    %v4618 = vld [vmem:[#allocation3 + $0x48] sm:$0xff]
    %v4619 = vld [vmem:[#allocation3 + $0x50] sm:$0xff]
    %v4620 = vld [vmem:[#allocation3 + $0x58] sm:$0xff]
    %v4621 = vld [vmem:[#allocation3 + $0x60] sm:$0xff]
    %v4622 = vld [vmem:[#allocation3 + $0x68] sm:$0xff]
    %v4623 = vld [vmem:[#allocation3 + $0x70] sm:$0xff]
    %v4624 = vld [vmem:[#allocation3 + $0x78] sm:$0xff]
    %v4625 = vld [vmem:[#allocation10] sm:$0xff]
    %v4626 = vld [vmem:[#allocation10 + $0x8] sm:$0xff]
    %v4627 = vld [vmem:[#allocation10 + $0x10] sm:$0xff]
    %v4628 = vld [vmem:[#allocation10 + $0x18] sm:$0xff]
    %v4629 = vld [vmem:[#allocation10 + $0x20] sm:$0xff]
    %v4630 = vld [vmem:[#allocation10 + $0x28] sm:$0xff]
    %v4631 = vld [vmem:[#allocation10 + $0x30] sm:$0xff]
    %v4632 = vld [vmem:[#allocation10 + $0x38] sm:$0xff]
    %v4633 = vld [vmem:[#allocation10 + $0x40] sm:$0xff]
    %v4634 = vld [vmem:[#allocation10 + $0x48] sm:$0xff]
    %v4635 = vld [vmem:[#allocation10 + $0x50] sm:$0xff]
    %v4636 = vld [vmem:[#allocation10 + $0x58] sm:$0xff]
    %v4637 = vld [vmem:[#allocation10 + $0x60] sm:$0xff]
    %v4638 = vld [vmem:[#allocation10 + $0x68] sm:$0xff]
    %v4639 = vld [vmem:[#allocation10 + $0x70] sm:$0xff]
    %v4640 = vld [vmem:[#allocation10 + $0x78] sm:$0xff]
    %v4641 = vld [vmem:[#allocation10 + $0x80] sm:$0xff]
    %v4642 = vld [vmem:[#allocation10 + $0x88] sm:$0xff]
    %v4643 = vld [vmem:[#allocation10 + $0x90] sm:$0xff]
    %v4644 = vld [vmem:[#allocation10 + $0x98] sm:$0xff]
    %v4645 = vld [vmem:[#allocation10 + $0xa0] sm:$0xff]
    %v4646 = vld [vmem:[#allocation10 + $0xa8] sm:$0xff]
    %v4647 = vld [vmem:[#allocation10 + $0xb0] sm:$0xff]
    %v4648 = vld [vmem:[#allocation10 + $0xb8] sm:$0xff]
    %v4649 = vld [vmem:[#allocation10 + $0xc0] sm:$0xff]
    %v4650 = vld [vmem:[#allocation10 + $0xc8] sm:$0xff]
    %v4651 = vld [vmem:[#allocation10 + $0xd0] sm:$0xff]
    %v4652 = vld [vmem:[#allocation10 + $0xd8] sm:$0xff]
    %v4653 = vld [vmem:[#allocation10 + $0xe0] sm:$0xff]
    %v4654 = vld [vmem:[#allocation10 + $0xe8] sm:$0xff]
    %v4655 = vld [vmem:[#allocation10 + $0xf0] sm:$0xff]
    %v4656 = vld [vmem:[#allocation10 + $0xf8] sm:$0xff]
    %4657 = vmatprep.subr.mxu0 0.0
    %4658 = vmatpush1.msra.mxu0 %v4625
    %4659 = vmatprep.subr.mxu0 0.0
    %4660 = vmatpush1.msra.mxu0 %v4626
    %4661 = vmatprep.subr.mxu0 0.0
    %4662 = vmatpush1.msra.mxu0 %v4627
    %4663 = vmatprep.subr.mxu0 0.0
    %4664 = vmatpush1.msra.mxu0 %v4628
    %4665 = vmatprep.subr.mxu0 0.0
    %4666 = vmatpush1.msra.mxu0 %v4629
    %4667 = vmatprep.subr.mxu0 0.0
    %4668 = vmatpush1.msra.mxu0 %v4630
    %4669 = vmatprep.subr.mxu0 0.0
    %4670 = vmatpush1.msra.mxu0 %v4631
    %4671 = vmatprep.subr.mxu0 0.0
    %4672 = vmatpush1.msra.mxu0 %v4632
    %4673 = vmatprep.subr.mxu0 0.0
    %4674 = vmatpush1.msra.mxu0 %v4633
    %4675 = vmatprep.subr.mxu0 0.0
    %4676 = vmatpush1.msra.mxu0 %v4634
    %4677 = vmatprep.subr.mxu0 0.0
    %4678 = vmatpush1.msra.mxu0 %v4635
    %4679 = vmatprep.subr.mxu0 0.0
    %4680 = vmatpush1.msra.mxu0 %v4636
    %4681 = vmatprep.subr.mxu0 0.0
    %4682 = vmatpush1.msra.mxu0 %v4637
    %4683 = vmatprep.subr.mxu0 0.0
    %4684 = vmatpush1.msra.mxu0 %v4638
    %4685 = vmatprep.subr.mxu0 0.0
    %4686 = vmatpush1.msra.mxu0 %v4639
    %4687 = vmatprep.subr.mxu0 0.0
    %4688 = vmatpush1.msra.mxu0 %v4640
    %4689 = vmatprep.subr.mxu0 0.0
    %4690 = vmatpush1.msra.mxu0 %v4641
    %4691 = vmatprep.subr.mxu0 0.0
    %4692 = vmatpush1.msra.mxu0 %v4642
    %4693 = vmatprep.subr.mxu0 0.0
    %4694 = vmatpush1.msra.mxu0 %v4643
    %4695 = vmatprep.subr.mxu0 0.0
    %4696 = vmatpush1.msra.mxu0 %v4644
    %4697 = vmatprep.subr.mxu0 0.0
    %4698 = vmatpush1.msra.mxu0 %v4645
    %4699 = vmatprep.subr.mxu0 0.0
    %4700 = vmatpush1.msra.mxu0 %v4646
    %4701 = vmatprep.subr.mxu0 0.0
    %4702 = vmatpush1.msra.mxu0 %v4647
    %4703 = vmatprep.subr.mxu0 0.0
    %4704 = vmatpush1.msra.mxu0 %v4648
    %4705 = vmatprep.subr.mxu0 0.0
    %4706 = vmatpush1.msra.mxu0 %v4649
    %4707 = vmatprep.subr.mxu0 0.0
    %4708 = vmatpush1.msra.mxu0 %v4650
    %4709 = vmatprep.subr.mxu0 0.0
    %4710 = vmatpush1.msra.mxu0 %v4651
    %4711 = vmatprep.subr.mxu0 0.0
    %4712 = vmatpush1.msra.mxu0 %v4652
    %4713 = vmatprep.subr.mxu0 0.0
    %4714 = vmatpush1.msra.mxu0 %v4653
    %4715 = vmatprep.subr.mxu0 0.0
    %4716 = vmatpush1.msra.mxu0 %v4654
    %4717 = vmatprep.subr.mxu0 0.0
    %4718 = vmatpush1.msra.mxu0 %v4655
    %4719 = vmatprep.subr.mxu0 0.0
    %4720 = vmatpush1.msra.mxu0 %v4656
    %4721 = vmatprep.mubr.f32.mxu0 %v4610
    %4722 = vmatmul.mubr.f32.gmra.mrb[0].mxu0 %v4609
    %v4723 = vpop.f32.mrb[0].mxu0
    %v4724 = vadd.f32 0.0, %v4723
    %v4725 = vpop.f32.mrb[0].mxu0
    %4726 = vmatprep.mubr.f32.mxu0 %v4612
    %4727 = vmatmul.mubr.f32.gmra.mrb[0].mxu0 %v4611
    %v4728 = vpop.f32.mrb[0].mxu0
    %v4729 = vadd.f32 0.0, %v4728
    %v4730 = vpop.f32.mrb[0].mxu0
    %4731 = vmatprep.mubr.f32.mxu0 %v4614
    %4732 = vmatmul.mubr.f32.gmra.mrb[0].mxu0 %v4613
    %v4733 = vpop.f32.mrb[0].mxu0
    %v4734 = vadd.f32 0.0, %v4733
    %v4735 = vpop.f32.mrb[0].mxu0
    %4736 = vmatprep.mubr.f32.mxu0 %v4616
    %4737 = vmatmul.mubr.f32.gmra.mrb[0].mxu0 %v4615
    %v4738 = vpop.f32.mrb[0].mxu0
    %v4739 = vadd.f32 0.0, %v4738
    %v4740 = vpop.f32.mrb[0].mxu0
    %4741 = vmatprep.mubr.f32.mxu0 %v4618
    %4742 = vmatmul.mubr.f32.gmra.mrb[0].mxu0 %v4617
    %v4743 = vpop.f32.mrb[0].mxu0
    %v4744 = vadd.f32 0.0, %v4743
    %v4745 = vpop.f32.mrb[0].mxu0
    %4746 = vmatprep.mubr.f32.mxu0 %v4620
    %4747 = vmatmul.mubr.f32.gmra.mrb[0].mxu0 %v4619
    %v4748 = vpop.f32.mrb[0].mxu0
    %v4749 = vadd.f32 0.0, %v4748
    %v4750 = vpop.f32.mrb[0].mxu0
    %4751 = vmatprep.mubr.f32.mxu0 %v4622
    %4752 = vmatmul.mubr.f32.gmra.mrb[0].mxu0 %v4621
    %v4753 = vpop.f32.mrb[0].mxu0
    %v4754 = vadd.f32 0.0, %v4753
    %v4755 = vpop.f32.mrb[0].mxu0
    %4756 = vmatprep.mubr.f32.mxu0 %v4624
    %4757 = vmatmul.mubr.f32.gmra.mrb[0].mxu0 %v4623
    %v4758 = vpop.f32.mrb[0].mxu0
    %v4759 = vadd.f32 0.0, %v4758
    %v4760 = vpop.f32.mrb[0].mxu0
    %4761 = vdwg.mxu0
    %v4762 = vld [vmem:[#allocation4] sm:$0x1]
    %v4764 = vlaneseq
    %v4765 = vshrl.u32 %v4764, 7
    %v4766 = vsub.s32 0, %v4765
    %v4767 = vrot.slane %v4762, %v4766
    %v4769 = vadd.f32 %v4724, %v4767
    %v4770 = vadd.f32 %v4729, %v4767
    %v4771 = vadd.f32 %v4734, %v4767
    %v4772 = vadd.f32 %v4739, %v4767
    %v4773 = vadd.f32 %v4744, %v4767
    %v4774 = vadd.f32 %v4749, %v4767
    %v4775 = vadd.f32 %v4754, %v4767
    %v4776 = vadd.f32 %v4759, %v4767
    %v4777 = vadd.f32 %v4769, 0.0
    %v4778 = vadd.f32 %v4770, 0.0
    %v4779 = vadd.f32 %v4771, 0.0
    %v4780 = vadd.f32 %v4772, 0.0
    %v4781 = vadd.f32 %v4773, 0.0
    %v4782 = vadd.f32 %v4774, 0.0
    %v4783 = vadd.f32 %v4775, 0.0
    %v4784 = vadd.f32 %v4776, 0.0
    %4793 = vset.pattern.permute.xlu0 0
    %4794 = vperm.xlu0 %4793, %v4777
    %v4795 = vpop.permute.xlu0 %4794
    %4796 = vset.pattern.permute.xlu0 0
    %4797 = vperm.xlu0 %4796, %v4778
    %v4798 = vpop.permute.xlu0 %4797
    %4799 = vset.pattern.permute.xlu0 0
    %4800 = vperm.xlu0 %4799, %v4779
    %v4801 = vpop.permute.xlu0 %4800
    %4802 = vset.pattern.permute.xlu0 0
    %4803 = vperm.xlu0 %4802, %v4780
    %v4804 = vpop.permute.xlu0 %4803
    %4805 = vset.pattern.permute.xlu0 0
    %4806 = vperm.xlu0 %4805, %v4781
    %v4807 = vpop.permute.xlu0 %4806
    %4808 = vset.pattern.permute.xlu0 0
    %4809 = vperm.xlu0 %4808, %v4782
    %v4810 = vpop.permute.xlu0 %4809
    %4811 = vset.pattern.permute.xlu0 0
    %4812 = vperm.xlu0 %4811, %v4783
    %v4813 = vpop.permute.xlu0 %4812
    %4814 = vset.pattern.permute.xlu0 0
    %4815 = vperm.xlu0 %4814, %v4784
    %v4816 = vpop.permute.xlu0 %4815
    %v4817 = vlaneseq
    %v4818 = vand.u32 %v4817, 127
    %v4819 = vlaneseq
    %v4820 = vshrl.u32 %v4819, 7
    %v4821 = vsub.s32 %v4818, %v4820
    %v4822 = vrot.slane %v4795, %v4821
    %v4823 = vlaneseq
    %v4824 = vshrl.u32 %v4823, 7
    %v4825 = vsub.s32 %v4818, %v4824
    %v4826 = vrot.slane %v4798, %v4825
    %v4827 = vlaneseq
    %v4828 = vshrl.u32 %v4827, 7
    %v4829 = vsub.s32 %v4818, %v4828
    %v4830 = vrot.slane %v4801, %v4829
    %v4831 = vlaneseq
    %v4832 = vshrl.u32 %v4831, 7
    %v4833 = vsub.s32 %v4818, %v4832
    %v4834 = vrot.slane %v4804, %v4833
    %v4835 = vlaneseq
    %v4836 = vshrl.u32 %v4835, 7
    %v4837 = vsub.s32 %v4818, %v4836
    %v4838 = vrot.slane %v4807, %v4837
    %v4839 = vlaneseq
    %v4840 = vshrl.u32 %v4839, 7
    %v4841 = vsub.s32 %v4818, %v4840
    %v4842 = vrot.slane %v4810, %v4841
    %v4843 = vlaneseq
    %v4844 = vshrl.u32 %v4843, 7
    %v4845 = vsub.s32 %v4818, %v4844
    %v4846 = vrot.slane %v4813, %v4845
    %v4847 = vlaneseq
    %v4848 = vshrl.u32 %v4847, 7
    %v4849 = vsub.s32 %v4818, %v4848
    %v4850 = vrot.slane %v4816, %v4849
    %vm4851 = vcmask 1041409
    %v4852 = vsel %vm4851, %v4826, %v4822
    %vm4853 = vcmask 1042434
    %v4854 = vsel %vm4853, %v4830, %v4852
    %vm4855 = vcmask 1043459
    %v4856 = vsel %vm4855, %v4834, %v4854
    %vm4857 = vcmask 1044484
    %v4858 = vsel %vm4857, %v4838, %v4856
    %vm4859 = vcmask 1045509
    %v4860 = vsel %vm4859, %v4842, %v4858
    %vm4861 = vcmask 1046534
    %v4862 = vsel %vm4861, %v4846, %v4860
    %vm4863 = vcmask 1047559
    %v4864 = vsel %vm4863, %v4850, %v4862
    %vm4866 = vcmask 64512
    %4867 = vst.msk [vmem:[#allocation13] sm:$0xff] %vm4866, %v4864
    %v4868 = vld [vmem:[%s7] sm:$0x1]
    %v4869 = vld [vmem:[%s7 + $0x1] sm:$0x1]
    %v4870 = vld [vmem:[%s7 + $0x2] sm:$0x1]
    %v4871 = vld [vmem:[%s7 + $0x3] sm:$0x1]
    %v4872 = vld [vmem:[%s7 + $0x4] sm:$0x1]
    %v4873 = vld [vmem:[%s7 + $0x5] sm:$0x1]
    %v4874 = vld [vmem:[%s7 + $0x6] sm:$0x1]
    %v4875 = vld [vmem:[%s7 + $0x7] sm:$0x1]
    %v4884 = vlaneseq
    %v4885 = vshrl.u32 %v4884, 7
    %v4886 = vsub.s32 0, %v4885
    %v4887 = vrot.slane %v4868, %v4886
    %v4888 = vlaneseq
    %v4889 = vshrl.u32 %v4888, 7
    %v4890 = vsub.s32 0, %v4889
    %v4891 = vrot.slane %v4869, %v4890
    %v4892 = vlaneseq
    %v4893 = vshrl.u32 %v4892, 7
    %v4894 = vsub.s32 0, %v4893
    %v4895 = vrot.slane %v4870, %v4894
    %v4896 = vlaneseq
    %v4897 = vshrl.u32 %v4896, 7
    %v4898 = vsub.s32 0, %v4897
    %v4899 = vrot.slane %v4871, %v4898
    %v4900 = vlaneseq
    %v4901 = vshrl.u32 %v4900, 7
    %v4902 = vsub.s32 0, %v4901
    %v4903 = vrot.slane %v4872, %v4902
    %v4904 = vlaneseq
    %v4905 = vshrl.u32 %v4904, 7
    %v4906 = vsub.s32 0, %v4905
    %v4907 = vrot.slane %v4873, %v4906
    %v4908 = vlaneseq
    %v4909 = vshrl.u32 %v4908, 7
    %v4910 = vsub.s32 0, %v4909
    %v4911 = vrot.slane %v4874, %v4910
    %v4912 = vlaneseq
    %v4913 = vshrl.u32 %v4912, 7
    %v4914 = vsub.s32 0, %v4913
    %v4915 = vrot.slane %v4875, %v4914
    %4916 = vrot.lane.b32.xlu0 %v4887, 1
    %v4917 = vpop.permute.xlu0 %4916
    %4918 = vrot.lane.b32.xlu0 %v4891, 1
    %v4919 = vpop.permute.xlu0 %4918
    %4920 = vrot.lane.b32.xlu0 %v4895, 1
    %v4921 = vpop.permute.xlu0 %4920
    %4922 = vrot.lane.b32.xlu0 %v4899, 1
    %v4923 = vpop.permute.xlu0 %4922
    %4924 = vrot.lane.b32.xlu0 %v4903, 1
    %v4925 = vpop.permute.xlu0 %4924
    %4926 = vrot.lane.b32.xlu0 %v4907, 1
    %v4927 = vpop.permute.xlu0 %4926
    %4928 = vrot.lane.b32.xlu0 %v4911, 1
    %v4929 = vpop.permute.xlu0 %4928
    %4930 = vrot.lane.b32.xlu0 %v4915, 1
    %v4931 = vpop.permute.xlu0 %4930
    %v4940 = vadd.f32 %v4724, %v4917
    %v4941 = vadd.f32 %v4729, %v4919
    %v4942 = vadd.f32 %v4734, %v4921
    %v4943 = vadd.f32 %v4739, %v4923
    %v4944 = vadd.f32 %v4744, %v4925
    %v4945 = vadd.f32 %v4749, %v4927
    %v4946 = vadd.f32 %v4754, %v4929
    %v4947 = vadd.f32 %v4759, %v4931
    %v4948 = vtanh.pop %v4940
    %v4949 = vtanh.pop %v4941
    %v4950 = vtanh.pop %v4942
    %v4951 = vtanh.pop %v4943
    %v4952 = vtanh.pop %v4944
    %v4953 = vtanh.pop %v4945
    %v4954 = vtanh.pop %v4946
    %v4955 = vtanh.pop %v4947
    %v4956 = vmul.f32 %v4948, 1.442695
    %v4957 = vpow.pop %v4956
    %v4958 = vmul.f32 %v4949, 1.442695
    %v4959 = vpow.pop %v4958
    %v4960 = vmul.f32 %v4950, 1.442695
    %v4961 = vpow.pop %v4960
    %v4962 = vmul.f32 %v4951, 1.442695
    %v4963 = vpow.pop %v4962
    %v4964 = vmul.f32 %v4952, 1.442695
    %v4965 = vpow.pop %v4964
    %v4966 = vmul.f32 %v4953, 1.442695
    %v4967 = vpow.pop %v4966
    %v4968 = vmul.f32 %v4954, 1.442695
    %v4969 = vpow.pop %v4968
    %v4970 = vmul.f32 %v4955, 1.442695
    %v4971 = vpow.pop %v4970
    %v4972 = vld [vmem:[%s1] sm:$0xff]
    %v4973 = vld [vmem:[%s1 + $0x8] sm:$0xff]
    %v4974 = vld [vmem:[%s1 + $0x10] sm:$0xff]
    %v4975 = vld [vmem:[%s1 + $0x18] sm:$0xff]
    %v4976 = vld [vmem:[%s1 + $0x20] sm:$0xff]
    %v4977 = vld [vmem:[%s1 + $0x28] sm:$0xff]
    %v4978 = vld [vmem:[%s1 + $0x30] sm:$0xff]
    %v4979 = vld [vmem:[%s1 + $0x38] sm:$0xff]
    %4988 = vrot.lane.b32.xlu0 %v4972, 1
    %v4989 = vpop.permute.xlu0 %4988
    %4990 = vrot.lane.b32.xlu0 %v4973, 1
    %v4991 = vpop.permute.xlu0 %4990
    %4992 = vrot.lane.b32.xlu0 %v4974, 1
    %v4993 = vpop.permute.xlu0 %4992
    %4994 = vrot.lane.b32.xlu0 %v4975, 1
    %v4995 = vpop.permute.xlu0 %4994
    %4996 = vrot.lane.b32.xlu0 %v4976, 1
    %v4997 = vpop.permute.xlu0 %4996
    %4998 = vrot.lane.b32.xlu0 %v4977, 1
    %v4999 = vpop.permute.xlu0 %4998
    %5000 = vrot.lane.b32.xlu0 %v4978, 1
    %v5001 = vpop.permute.xlu0 %5000
    %5002 = vrot.lane.b32.xlu0 %v4979, 1
    %v5003 = vpop.permute.xlu0 %5002
    %v5012 = vmul.f32 %v4957, %v4989
    %v5013 = vmul.f32 %v4959, %v4991
    %v5014 = vmul.f32 %v4961, %v4993
    %v5015 = vmul.f32 %v4963, %v4995
    %v5016 = vmul.f32 %v4965, %v4997
    %v5017 = vmul.f32 %v4967, %v4999
    %v5018 = vmul.f32 %v4969, %v5001
    %v5019 = vmul.f32 %v4971, %v5003
    %vm5020 = vcmask 15368
    %v5021 = vsel %vm5020, %v5012, 0.0
    %v5022 = vsel %vm5020, %v5013, 0.0
    %v5023 = vadd.f32 %v5021, %v5022
    %v5024 = vsel %vm5020, %v5014, 0.0
    %v5025 = vadd.f32 %v5023, %v5024
    %v5026 = vsel %vm5020, %v5015, 0.0
    %v5027 = vadd.f32 %v5025, %v5026
    %v5028 = vsel %vm5020, %v5016, 0.0
    %v5029 = vadd.f32 %v5027, %v5028
    %v5030 = vsel %vm5020, %v5017, 0.0
    %v5031 = vadd.f32 %v5029, %v5030
    %v5032 = vsel %vm5020, %v5018, 0.0
    %v5033 = vadd.f32 %v5031, %v5032
    %v5034 = vsel %vm5020, %v5019, 0.0
    %v5035 = vadd.f32 %v5033, %v5034
    %v5036 = vrcp.pop %v5035
    %v5037 = vmul.f32 %v5012, %v5036
    %v5038 = vmul.f32 %v5013, %v5036
    %v5039 = vmul.f32 %v5014, %v5036
    %v5040 = vmul.f32 %v5015, %v5036
    %v5041 = vmul.f32 %v5016, %v5036
    %v5042 = vmul.f32 %v5017, %v5036
    %v5043 = vmul.f32 %v5018, %v5036
    %v5044 = vmul.f32 %v5019, %v5036
    %v5045 = vadd.f32 %v5037, 1e-10
    %v5046 = vadd.f32 %v5038, 1e-10
    %v5047 = vadd.f32 %v5039, 1e-10
    %v5048 = vadd.f32 %v5040, 1e-10
    %v5049 = vadd.f32 %v5041, 1e-10
    %v5050 = vadd.f32 %v5042, 1e-10
    %v5051 = vadd.f32 %v5043, 1e-10
    %v5052 = vadd.f32 %v5044, 1e-10
    %5054 = vset.pattern.permute.xlu0 1
    %5055 = vperm.xlu0 %5054, %v5045
    %v5056 = vpop.permute.xlu0 %5055
    %5059 = vset.pattern.permute.xlu0 1
    %5060 = vperm.xlu0 %5059, %v5046
    %v5061 = vpop.permute.xlu0 %5060
    %5064 = vset.pattern.permute.xlu0 1
    %5065 = vperm.xlu0 %5064, %v5047
    %v5066 = vpop.permute.xlu0 %5065
    %5069 = vset.pattern.permute.xlu0 1
    %5070 = vperm.xlu0 %5069, %v5048
    %v5071 = vpop.permute.xlu0 %5070
    %5074 = vset.pattern.permute.xlu0 1
    %5075 = vperm.xlu0 %5074, %v5049
    %v5076 = vpop.permute.xlu0 %5075
    %5079 = vset.pattern.permute.xlu0 1
    %5080 = vperm.xlu0 %5079, %v5050
    %v5081 = vpop.permute.xlu0 %5080
    %5084 = vset.pattern.permute.xlu0 1
    %5085 = vperm.xlu0 %5084, %v5051
    %v5086 = vpop.permute.xlu0 %5085
    %5089 = vset.pattern.permute.xlu0 1
    %5090 = vperm.xlu0 %5089, %v5052
    %v5091 = vpop.permute.xlu0 %5090
    %v5093 = vmul.f32 %v5056, %v4609
    %v5094 = vmul.f32 %v5056, %v4610
    %v5095 = vmul.f32 %v5061, %v4611
    %v5096 = vmul.f32 %v5061, %v4612
    %v5097 = vmul.f32 %v5066, %v4613
    %v5098 = vmul.f32 %v5066, %v4614
    %v5099 = vmul.f32 %v5071, %v4615
    %v5100 = vmul.f32 %v5071, %v4616
    %v5101 = vmul.f32 %v5076, %v4617
    %v5102 = vmul.f32 %v5076, %v4618
    %v5103 = vmul.f32 %v5081, %v4619
    %v5104 = vmul.f32 %v5081, %v4620
    %v5105 = vmul.f32 %v5086, %v4621
    %v5106 = vmul.f32 %v5086, %v4622
    %v5107 = vmul.f32 %v5091, %v4623
    %v5108 = vmul.f32 %v5091, %v4624
    %v5109 = vadd.f32 %v5093, %v5095
    %v5110 = vadd.f32 %v5109, %v5097
    %v5111 = vadd.f32 %v5110, %v5099
    %v5112 = vadd.f32 %v5111, %v5101
    %v5113 = vadd.f32 %v5112, %v5103
    %v5114 = vadd.f32 %v5113, %v5105
    %v5115 = vadd.f32 %v5114, %v5107
    %v5116 = vadd.f32 %v5094, %v5096
    %v5117 = vadd.f32 %v5116, %v5098
    %v5118 = vadd.f32 %v5117, %v5100
    %v5119 = vadd.f32 %v5118, %v5102
    %v5120 = vadd.f32 %v5119, %v5104
    %v5121 = vadd.f32 %v5120, %v5106
    %v5122 = vadd.f32 %v5121, %v5108
    %v5123 = vmax.f32 %v4609, %v4613
    %v5124 = vmax.f32 %v4611, %v4615
    %v5125 = vmax.f32 %v5123, %v4617
    %v5126 = vmax.f32 %v5124, %v4619
    %v5127 = vmax.f32 %v5125, %v4621
    %v5128 = vmax.f32 %v5126, %v4623
    %v5129 = vmax.f32 %v5127, %v5128
    %v5130 = vmax.f32 %v4610, %v4614
    %v5131 = vmax.f32 %v4612, %v4616
    %v5132 = vmax.f32 %v5130, %v4618
    %v5133 = vmax.f32 %v5131, %v4620
    %v5134 = vmax.f32 %v5132, %v4622
    %v5135 = vmax.f32 %v5133, %v4624
    %v5136 = vmax.f32 %v5134, %v5135
    %v5137 = vld [vmem:[#allocation11] sm:$0xff]
    %v5138 = vld [vmem:[#allocation11 + $0x8] sm:$0xff]
    %v5139 = vld [vmem:[#allocation11 + $0x10] sm:$0xff]
    %v5140 = vld [vmem:[#allocation11 + $0x18] sm:$0xff]
    %v5141 = vld [vmem:[#allocation11 + $0x20] sm:$0xff]
    %v5142 = vld [vmem:[#allocation11 + $0x28] sm:$0xff]
    %v5143 = vld [vmem:[#allocation11 + $0x30] sm:$0xff]
    %v5144 = vld [vmem:[#allocation11 + $0x38] sm:$0xff]
    %v5145 = vld [vmem:[#allocation11 + $0x40] sm:$0xff]
    %v5146 = vld [vmem:[#allocation11 + $0x48] sm:$0xff]
    %v5147 = vld [vmem:[#allocation11 + $0x50] sm:$0xff]
    %v5148 = vld [vmem:[#allocation11 + $0x58] sm:$0xff]
    %v5149 = vld [vmem:[#allocation11 + $0x60] sm:$0xff]
    %v5150 = vld [vmem:[#allocation11 + $0x68] sm:$0xff]
    %v5151 = vld [vmem:[#allocation11 + $0x70] sm:$0xff]
    %v5152 = vld [vmem:[#allocation11 + $0x78] sm:$0xff]
    %v5153 = vld [vmem:[#allocation11 + $0x80] sm:$0xff]
    %v5154 = vld [vmem:[#allocation11 + $0x88] sm:$0xff]
    %v5155 = vld [vmem:[#allocation11 + $0x90] sm:$0xff]
    %v5156 = vld [vmem:[#allocation11 + $0x98] sm:$0xff]
    %v5157 = vld [vmem:[#allocation11 + $0xa0] sm:$0xff]
    %v5158 = vld [vmem:[#allocation11 + $0xa8] sm:$0xff]
    %v5159 = vld [vmem:[#allocation11 + $0xb0] sm:$0xff]
    %v5160 = vld [vmem:[#allocation11 + $0xb8] sm:$0xff]
    %v5161 = vld [vmem:[#allocation11 + $0xc0] sm:$0xff]
    %v5162 = vld [vmem:[#allocation11 + $0xc8] sm:$0xff]
    %v5163 = vld [vmem:[#allocation11 + $0xd0] sm:$0xff]
    %v5164 = vld [vmem:[#allocation11 + $0xd8] sm:$0xff]
    %v5165 = vld [vmem:[#allocation11 + $0xe0] sm:$0xff]
    %v5166 = vld [vmem:[#allocation11 + $0xe8] sm:$0xff]
    %v5167 = vld [vmem:[#allocation11 + $0xf0] sm:$0xff]
    %v5168 = vld [vmem:[#allocation11 + $0xf8] sm:$0xff]
    %v5169 = vld [vmem:[#allocation11 + $0x100] sm:$0xff]
    %v5170 = vld [vmem:[#allocation11 + $0x108] sm:$0xff]
    %v5171 = vld [vmem:[#allocation11 + $0x110] sm:$0xff]
    %v5172 = vld [vmem:[#allocation11 + $0x118] sm:$0xff]
    %v5173 = vld [vmem:[#allocation11 + $0x120] sm:$0xff]
    %v5174 = vld [vmem:[#allocation11 + $0x128] sm:$0xff]
    %v5175 = vld [vmem:[#allocation11 + $0x130] sm:$0xff]
    %v5176 = vld [vmem:[#allocation11 + $0x138] sm:$0xff]
    %v5177 = vld [vmem:[#allocation11 + $0x140] sm:$0xff]
    %v5178 = vld [vmem:[#allocation11 + $0x148] sm:$0xff]
    %v5179 = vld [vmem:[#allocation11 + $0x150] sm:$0xff]
    %v5180 = vld [vmem:[#allocation11 + $0x158] sm:$0xff]
    %v5181 = vld [vmem:[#allocation11 + $0x160] sm:$0xff]
    %v5182 = vld [vmem:[#allocation11 + $0x168] sm:$0xff]
    %v5183 = vld [vmem:[#allocation11 + $0x170] sm:$0xff]
    %v5184 = vld [vmem:[#allocation11 + $0x178] sm:$0xff]
    %v5185 = vld [vmem:[#allocation11 + $0x180] sm:$0xff]
    %v5186 = vld [vmem:[#allocation11 + $0x188] sm:$0xff]
    %v5187 = vld [vmem:[#allocation11 + $0x190] sm:$0xff]
    %v5188 = vld [vmem:[#allocation11 + $0x198] sm:$0xff]
    %v5189 = vld [vmem:[#allocation11 + $0x1a0] sm:$0xff]
    %v5190 = vld [vmem:[#allocation11 + $0x1a8] sm:$0xff]
    %v5191 = vld [vmem:[#allocation11 + $0x1b0] sm:$0xff]
    %v5192 = vld [vmem:[#allocation11 + $0x1b8] sm:$0xff]
    %v5193 = vld [vmem:[#allocation11 + $0x1c0] sm:$0xff]
    %v5194 = vld [vmem:[#allocation11 + $0x1c8] sm:$0xff]
    %v5195 = vld [vmem:[#allocation11 + $0x1d0] sm:$0xff]
    %v5196 = vld [vmem:[#allocation11 + $0x1d8] sm:$0xff]
    %v5197 = vld [vmem:[#allocation11 + $0x1e0] sm:$0xff]
    %v5198 = vld [vmem:[#allocation11 + $0x1e8] sm:$0xff]
    %v5199 = vld [vmem:[#allocation11 + $0x1f0] sm:$0xff]
    %v5200 = vld [vmem:[#allocation11 + $0x1f8] sm:$0xff]
    %v5201 = vld [vmem:[%s10] sm:$0x1]
    %v5203 = vlaneseq
    %v5204 = vshrl.u32 %v5203, 7
    %v5205 = vsub.s32 0, %v5204
    %v5206 = vrot.slane %v5201, %v5205
    %5208 = vmatprep.subr.mxu0 0.0
    %5209 = vmatpush1.msra.mxu0 %v5137
    %5210 = vmatprep.subr.mxu0 0.0
    %5211 = vmatpush1.msra.mxu0 %v5138
    %5212 = vmatprep.subr.mxu0 0.0
    %5213 = vmatpush1.msra.mxu0 %v5139
    %5214 = vmatprep.subr.mxu0 0.0
    %5215 = vmatpush1.msra.mxu0 %v5140
    %5216 = vmatprep.subr.mxu0 0.0
    %5217 = vmatpush1.msra.mxu0 %v5141
    %5218 = vmatprep.subr.mxu0 0.0
    %5219 = vmatpush1.msra.mxu0 %v5142
    %5220 = vmatprep.subr.mxu0 0.0
    %5221 = vmatpush1.msra.mxu0 %v5143
    %5222 = vmatprep.subr.mxu0 0.0
    %5223 = vmatpush1.msra.mxu0 %v5144
    %5224 = vmatprep.subr.mxu0 0.0
    %5225 = vmatpush1.msra.mxu0 %v5145
    %5226 = vmatprep.subr.mxu0 0.0
    %5227 = vmatpush1.msra.mxu0 %v5146
    %5228 = vmatprep.subr.mxu0 0.0
    %5229 = vmatpush1.msra.mxu0 %v5147
    %5230 = vmatprep.subr.mxu0 0.0
    %5231 = vmatpush1.msra.mxu0 %v5148
    %5232 = vmatprep.subr.mxu0 0.0
    %5233 = vmatpush1.msra.mxu0 %v5149
    %5234 = vmatprep.subr.mxu0 0.0
    %5235 = vmatpush1.msra.mxu0 %v5150
    %5236 = vmatprep.subr.mxu0 0.0
    %5237 = vmatpush1.msra.mxu0 %v5151
    %5238 = vmatprep.subr.mxu0 0.0
    %5239 = vmatpush1.msra.mxu0 %v5152
    %5240 = vmatprep.subr.mxu0 0.0
    %5241 = vmatpush1.msra.mxu0 %v5153
    %5242 = vmatprep.subr.mxu0 0.0
    %5243 = vmatpush1.msra.mxu0 %v5154
    %5244 = vmatprep.subr.mxu0 0.0
    %5245 = vmatpush1.msra.mxu0 %v5155
    %5246 = vmatprep.subr.mxu0 0.0
    %5247 = vmatpush1.msra.mxu0 %v5156
    %5248 = vmatprep.subr.mxu0 0.0
    %5249 = vmatpush1.msra.mxu0 %v5157
    %5250 = vmatprep.subr.mxu0 0.0
    %5251 = vmatpush1.msra.mxu0 %v5158
    %5252 = vmatprep.subr.mxu0 0.0
    %5253 = vmatpush1.msra.mxu0 %v5159
    %5254 = vmatprep.subr.mxu0 0.0
    %5255 = vmatpush1.msra.mxu0 %v5160
    %5256 = vmatprep.subr.mxu0 0.0
    %5257 = vmatpush1.msra.mxu0 %v5161
    %5258 = vmatprep.subr.mxu0 0.0
    %5259 = vmatpush1.msra.mxu0 %v5162
    %5260 = vmatprep.subr.mxu0 0.0
    %5261 = vmatpush1.msra.mxu0 %v5163
    %5262 = vmatprep.subr.mxu0 0.0
    %5263 = vmatpush1.msra.mxu0 %v5164
    %5264 = vmatprep.subr.mxu0 0.0
    %5265 = vmatpush1.msra.mxu0 %v5165
    %5266 = vmatprep.subr.mxu0 0.0
    %5267 = vmatpush1.msra.mxu0 %v5166
    %5268 = vmatprep.subr.mxu0 0.0
    %5269 = vmatpush1.msra.mxu0 %v5167
    %5270 = vmatprep.subr.mxu0 0.0
    %5271 = vmatpush1.msra.mxu0 %v5168
    %5272 = vmatprep.mubr.f32.mxu0 %v5136
    %5273 = vmatmul.mubr.f32.gmra.mrb[0].mxu0 %v5129
    %v5274 = vpop.f32.mrb[0].mxu0
    %v5275 = vadd.f32 %v5206, %v5274
    %v5276 = vpop.f32.mrb[0].mxu0
    %5277 = vdwg.mxu0
    %5278 = vmatprep.subr.mxu0 0.0
    %5279 = vmatpush1.msra.mxu0 %v5169
    %5280 = vmatprep.subr.mxu0 0.0
    %5281 = vmatpush1.msra.mxu0 %v5170
    %5282 = vmatprep.subr.mxu0 0.0
    %5283 = vmatpush1.msra.mxu0 %v5171
    %5284 = vmatprep.subr.mxu0 0.0
    %5285 = vmatpush1.msra.mxu0 %v5172
    %5286 = vmatprep.subr.mxu0 0.0
    %5287 = vmatpush1.msra.mxu0 %v5173
    %5288 = vmatprep.subr.mxu0 0.0
    %5289 = vmatpush1.msra.mxu0 %v5174
    %5290 = vmatprep.subr.mxu0 0.0
    %5291 = vmatpush1.msra.mxu0 %v5175
    %5292 = vmatprep.subr.mxu0 0.0
    %5293 = vmatpush1.msra.mxu0 %v5176
    %5294 = vmatprep.subr.mxu0 0.0
    %5295 = vmatpush1.msra.mxu0 %v5177
    %5296 = vmatprep.subr.mxu0 0.0
    %5297 = vmatpush1.msra.mxu0 %v5178
    %5298 = vmatprep.subr.mxu0 0.0
    %5299 = vmatpush1.msra.mxu0 %v5179
    %5300 = vmatprep.subr.mxu0 0.0
    %5301 = vmatpush1.msra.mxu0 %v5180
    %5302 = vmatprep.subr.mxu0 0.0
    %5303 = vmatpush1.msra.mxu0 %v5181
    %5304 = vmatprep.subr.mxu0 0.0
    %5305 = vmatpush1.msra.mxu0 %v5182
    %5306 = vmatprep.subr.mxu0 0.0
    %5307 = vmatpush1.msra.mxu0 %v5183
    %5308 = vmatprep.subr.mxu0 0.0
    %5309 = vmatpush1.msra.mxu0 %v5184
    %5310 = vmatprep.subr.mxu0 0.0
    %5311 = vmatpush1.msra.mxu0 %v5185
    %5312 = vmatprep.subr.mxu0 0.0
    %5313 = vmatpush1.msra.mxu0 %v5186
    %5314 = vmatprep.subr.mxu0 0.0
    %5315 = vmatpush1.msra.mxu0 %v5187
    %5316 = vmatprep.subr.mxu0 0.0
    %5317 = vmatpush1.msra.mxu0 %v5188
    %5318 = vmatprep.subr.mxu0 0.0
    %5319 = vmatpush1.msra.mxu0 %v5189
    %5320 = vmatprep.subr.mxu0 0.0
    %5321 = vmatpush1.msra.mxu0 %v5190
    %5322 = vmatprep.subr.mxu0 0.0
    %5323 = vmatpush1.msra.mxu0 %v5191
    %5324 = vmatprep.subr.mxu0 0.0
    %5325 = vmatpush1.msra.mxu0 %v5192
    %5326 = vmatprep.subr.mxu0 0.0
    %5327 = vmatpush1.msra.mxu0 %v5193
    %5328 = vmatprep.subr.mxu0 0.0
    %5329 = vmatpush1.msra.mxu0 %v5194
    %5330 = vmatprep.subr.mxu0 0.0
    %5331 = vmatpush1.msra.mxu0 %v5195
    %5332 = vmatprep.subr.mxu0 0.0
    %5333 = vmatpush1.msra.mxu0 %v5196
    %5334 = vmatprep.subr.mxu0 0.0
    %5335 = vmatpush1.msra.mxu0 %v5197
    %5336 = vmatprep.subr.mxu0 0.0
    %5337 = vmatpush1.msra.mxu0 %v5198
    %5338 = vmatprep.subr.mxu0 0.0
    %5339 = vmatpush1.msra.mxu0 %v5199
    %5340 = vmatprep.subr.mxu0 0.0
    %5341 = vmatpush1.msra.mxu0 %v5200
    %5342 = vmatprep.mubr.f32.mxu0 %v5122
    %5343 = vmatmul.mubr.f32.gmra.mrb[0].mxu0 %v5115
    %v5344 = vpop.f32.mrb[0].mxu0
    %v5345 = vadd.f32 %v5275, %v5344
    %v5346 = vpop.f32.mrb[0].mxu0
    %5347 = vdwg.mxu0
    %5348 = vst [vmem:[#allocation14] sm:$0xff] %v5345
    // Predicated region
    $region62: #{tpu_custom_call.1} parent=1 // pred_check
      _
    $region63: #{tpu_custom_call.1} parent=1 // pred_check_branch
      %5350 = sbr.rel (0) target = $region65
    $region64: #{tpu_custom_call.1} parent=1 // pred_region
      %s5352 = ssub.s32 128, 128
      %5353 = vsyncadd [#allocation7], %s5352
      %s5355 = sshll.u32 [#allocation13], 4
      %s5356 = int_to_ptr.vmem [resolvable:$true] %s5355
      %5358 = dma.vmem_to_hbm [thread:$0]  %s5356, 128, %s11, [#allocation7]
    $region65: #{tpu_custom_call.1} parent=1 // pred_fallthru
      _
    // Predicated region
    $region66: #{tpu_custom_call.1} parent=1 // pred_check
      _
    $region67: #{tpu_custom_call.1} parent=1 // pred_check_branch
      %5360 = sbr.rel (0) target = $region69
    $region68: #{tpu_custom_call.1} parent=1 // pred_region
      %s5362 = ssub.s32 128, 128
      %5363 = vsyncadd [#allocation15], %s5362
      %s5365 = sshll.u32 [#allocation14], 4
      %s5366 = int_to_ptr.vmem [resolvable:$true] %s5365
      %5368 = dma.vmem_to_hbm [thread:$0]  %s5366, 128, %s12, [#allocation15]
    $region69: #{tpu_custom_call.1} parent=1 // pred_fallthru
      _
    // Predicated region
    $region70: #{tpu_custom_call.1} parent=1 // pred_check
      _
    $region71: #{tpu_custom_call.1} parent=1 // pred_check_branch
      %5370 = sbr.rel (0) target = $region73
    $region72: #{tpu_custom_call.1} parent=1 // pred_region
      %5371 = dma.done [#allocation7], 128
    $region73: #{tpu_custom_call.1} parent=1 // pred_fallthru
      _
    // Predicated region
    $region74: #{tpu_custom_call.1} parent=1 // pred_check
      _
    $region75: #{tpu_custom_call.1} parent=1 // pred_check_branch
      %5373 = sbr.rel (0) target = $region77
    $region76: #{tpu_custom_call.1} parent=1 // pred_region
      %5374 = dma.done [#allocation15], 128
    $region77: #{tpu_custom_call.1} parent=1 // pred_fallthru
      _
    %5375 = vsyncpa [#allocation6], 1
    %5376 = vsyncpa [#allocation9], 1
    %5377 = vsyncpa [#allocation12], 1
    %5378 = vsyncpa [#allocation7], 1
    %5379 = vsyncpa [#allocation15], 1

</llo_original>
